<compile_context>
chip_gen: v5e
topology: v5e:2x2
jax: 0.10.0
libtpu: 0.0.40
codegen_flags: <defaults>
</compile_context>

<pallas_src>
import functools
import math

import jax
import jax.numpy as jnp
from jax.experimental import pallas as pl
from jax.experimental.pallas import tpu as pltpu


def _convnet_kernel(*refs, dims, eps):
    """Whole-network fused forward (depth x [conv3x3 -> BN(train) -> pool -> ReLU]).

    refs layout (depth = len(dims)):
      refs[0]                 patch0  (N*H0*W0, 32)          bf16  layer-0 im2col
      refs[1 : 1+depth]       w_i     (32, 64) / (576, 64)    bf16  conv weights, K=(dy,dx,cin)
      refs[1+depth]           gammas  (depth, 64)             f32   BN weight
      refs[2+depth]           betas   (depth, 64)             f32   BN bias
      refs[3+depth]           out     (N, oh, ow, 64)         f32   final activation
      refs[4+depth]           pad     (N, H1+2, W1+2, 64)     bf16  shared padded-input scratch
      refs[5+depth]           slab    (N*H1*W1, 576)          bf16  shared im2col scratch
    """
    depth = len(dims)
    p0_ref = refs[0]
    w_refs = refs[1:1 + depth]
    g_ref = refs[1 + depth]
    be_ref = refs[2 + depth]
    o_ref = refs[3 + depth]
    pad_ref = refs[4 + depth] if depth > 1 else None
    slab_ref = refs[5 + depth] if depth > 1 else None

    N = o_ref.shape[0]
    y = None

    for i, (H, W, _cin, pool) in enumerate(dims):
        rows = N * H * W

        if i == 0:
            # Layer 0: im2col prepared by the wrapper -> single K=32 matmul.
            a = jnp.dot(p0_ref[...], w_refs[0][...],
                        preferred_element_type=jnp.float32)            # (rows, 64)
        else:
            # ---- halo-only zeroing + single interior write of the shared pad ----
            zrow = jnp.zeros((N, 1, W + 2, 64), jnp.bfloat16)
            zcol = jnp.zeros((N, H, 1, 64), jnp.bfloat16)
            pad_ref[:, 0:1, 0:W + 2, :] = zrow                          # top halo
            pad_ref[:, H + 1:H + 2, 0:W + 2, :] = zrow                  # bottom halo
            pad_ref[:, 1:H + 1, 0:1, :] = zcol                          # left halo
            pad_ref[:, 1:H + 1, W + 1:W + 2, :] = zcol                  # right halo
            pad_ref[:, 1:H + 1, 1:W + 1, :] = y.astype(jnp.bfloat16)    # interior

            # ---- 9-tap im2col into the shared slab, then ONE K=576 MXU matmul ----
            for t in range(9):
                dy, dx = t // 3, t % 3
                win = pad_ref[:, dy:dy + H, dx:dx + W, :]               # (N,H,W,64)
                slab_ref[0:rows, t * 64:(t + 1) * 64] = win.reshape(rows, 64)
            a = jnp.dot(slab_ref[0:rows, :], w_refs[i][...],
                        preferred_element_type=jnp.float32)             # (rows, 64)

        # ---- BatchNorm2d, training mode (batch mean, biased variance), two-pass.
        # Conv bias is omitted: a per-channel constant added before BN is
        # cancelled exactly by the batch-mean subtraction.
        inv_n = 1.0 / float(rows)
        mean = jnp.sum(a, axis=0, keepdims=True) * inv_n                # (1, 64)
        d = a - mean
        var = jnp.sum(d * d, axis=0, keepdims=True) * inv_n             # (1, 64)
        scale = g_ref[i:i + 1, :] * jax.lax.rsqrt(var + eps)
        y = (d * scale + be_ref[i:i + 1, :]).reshape(N, H, W, 64)

        # ---- MaxPool2d(2) then ReLU (commutes with pooling; 4x less ReLU work).
        if pool:
            Hc, Wc = (H // 2) * 2, (W // 2) * 2
            if (Hc, Wc) != (H, W):                                      # PyTorch floors odd dims
                y = y[:, :Hc, :Wc, :]
            y = y.reshape(N, Hc // 2, 2, Wc, 64)
            y = jnp.maximum(y[:, :, 0], y[:, :, 1])                     # pool over H
            y = y.reshape(N, Hc // 2, Wc // 2, 2, 64)
            y = jnp.maximum(y[:, :, :, 0], y[:, :, :, 1])               # pool over W
        y = jnp.maximum(y, 0.0)                                         # ReLU

    o_ref[...] = y.astype(o_ref.dtype)


def convnet_forward(x_nchw, params, *, flatten=True, eps=1e-5):
    """ConvNet.forward: depth ConvBlocks (pool for i < 4), then Flatten."""
    depth = len(params)
    x = jnp.transpose(x_nchw, (0, 2, 3, 1))                    # NCHW -> NHWC
    N, H0, W0, C0 = x.shape

    # Static per-layer geometry (H, W, Cin, pool) with floor pooling.
    dims = []
    h, w, c = H0, W0, C0
    for i in range(depth):
        pool = i < 4
        dims.append((h, w, c, pool))
        if pool:
            h, w = h // 2, w // 2
        c = 64
    oh, ow = h, w

    # Layer-0 im2col in XLA (tiny 3-channel input): zero-pad by 1, stack the
    # nine 3x3 taps along the channel axis, zero-pad K 27 -> 32.
    k0 = 9 * C0
    xp = jnp.pad(x, ((0, 0), (1, 1), (1, 1), (0, 0)))
    taps = [xp[:, dy:dy + H0, dx:dx + W0, :] for dy in range(3) for dx in range(3)]
    patch0 = jnp.concatenate(taps, axis=-1)                    # (N, H0, W0, 27)
    patch0 = jnp.pad(patch0, ((0, 0), (0, 0), (0, 0), (0, 32 - k0)))
    patch0 = patch0.reshape(N * H0 * W0, 32).astype(jnp.bfloat16)

    # Conv weights (3,3,Cin,64) -> (9*Cin, 64), K ordered (dy, dx, cin);
    # layer 0 K zero-padded to 32.  Conv bias intentionally NOT fed to the
    # kernel — training-mode BN cancels it exactly.
    w_list = []
    for i, (wt, _b, _g, _beta) in enumerate(params):
        cin = wt.shape[2]
        wk = wt.reshape(9 * cin, 64)
        if i == 0:
            wk = jnp.pad(wk, ((0, 32 - 9 * cin), (0, 0)))
        w_list.append(wk.astype(jnp.bfloat16))
    gammas = jnp.stack([g for (_, _, g, _) in params]).astype(jnp.float32)
    betas = jnp.stack([b for (_, _, _, b) in params]).astype(jnp.float32)

    # Shared scratch for all 64-channel layers (they run strictly sequentially,
    # so one max-sized buffer of each kind suffices).
    scratch = []
    if depth > 1:
        H1, W1, _, _ = dims[1]
        scratch = [pltpu.VMEM((N, H1 + 2, W1 + 2, 64), jnp.bfloat16),   # padded input
                   pltpu.VMEM((N * H1 * W1, 9 * 64), jnp.bfloat16)]     # im2col slab

    vmem = pl.BlockSpec(memory_space=pltpu.MemorySpace.VMEM)
    kernel = functools.partial(_convnet_kernel, dims=tuple(dims), eps=eps)

    out = pl.pallas_call(
        kernel,
        out_shape=jax.ShapeDtypeStruct((N, oh, ow, 64), jnp.float32),
        in_specs=[vmem] * (1 + depth + 2),
        out_specs=vmem,
        scratch_shapes=scratch,
        compiler_params=pltpu.CompilerParams(
            # Working set here is ~1 MiB; the explicit limit documents the
            # budget and is safe on every generation (>= v5e's 16 MiB scoped
            # default, <= v7x's 64 MiB physical). Raise per-generation once a
            # batch/row grid with larger tiles is introduced.
            vmem_limit_bytes=32 * 1024 * 1024),
    )(patch0, *w_list, gammas, betas)

    if flatten:
        if oh == 1 and ow == 1:
            # 1x1 spatial: NHWC flatten == NCHW flatten, so no transpose pass.
            return out.reshape(N, 64)
        # TODO(synk): emit a lane-dense NCHW-flatten (N, 64*oh*ow) slab directly
        # from the kernel so this XLA transpose disappears for oh, ow > 1.
        return jnp.transpose(out, (0, 3, 1, 2)).reshape(N, -1)
    return jnp.transpose(out, (0, 3, 1, 2))


def init_convnet_params(key, depth):
    """Deterministic param init mirroring init_layer() / PyTorch defaults.

    Conv weight ~ N(0, sqrt(2 / (3*3*outdim))); conv bias ~ U(+-1/sqrt(fan_in))
    (kept for fidelity, but cancelled by training-mode BN so unused by the
    kernel); BN gamma=1, beta=0.  Weights in (kh, kw, Cin, Cout) layout.
    """
    params = []
    for i in range(depth):
        indim = 3 if i == 0 else 64
        outdim = 64
        key, kw_key, kb_key = jax.random.split(key, 3)
        n = 3 * 3 * outdim
        wt = jax.random.normal(kw_key, (3, 3, indim, outdim),
                               jnp.float32) * math.sqrt(2.0 / float(n))
        bound = 1.0 / math.sqrt(indim * 3 * 3)
        b = jax.random.uniform(kb_key, (outdim,), jnp.float32, -bound, bound)
        gamma = jnp.ones((outdim,), jnp.float32)
        beta = jnp.zeros((outdim,), jnp.float32)
        params.append((wt, b, gamma, beta))
    return params


if __name__ == "__main__":
    key = jax.random.PRNGKey(0)
    k_params, k_x = jax.random.split(key)

    depth = 4                      # ConvNet(depth=4); all blocks pool (i < 4)
    batch, in_ch, spatial = 2, 3, 16
    x = jax.random.normal(k_x, (batch, in_ch, spatial, spatial), jnp.float32)

    params = init_convnet_params(k_params, depth)
    fwd = jax.jit(functools.partial(convnet_forward, flatten=True))
    out = jax.block_until_ready(fwd(x, params))

    # depth=4 with 16x16 input -> spatial 16 / 2^4 = 1, so features = 64*1*1.
    assert out.shape == (batch, 64), out.shape
    assert bool(jnp.all(jnp.isfinite(out)))
    print("KERNEL_OK")
</pallas_src>

<mosaic_0001>
module attributes {stable_mosaic.version = 11 : i64} {
  func.func @_convnet_kernel(%arg0: memref<512x32xbf16, #tpu.memory_space<vmem>>, %arg1: memref<32x64xbf16, #tpu.memory_space<vmem>>, %arg2: memref<576x64xbf16, #tpu.memory_space<vmem>>, %arg3: memref<576x64xbf16, #tpu.memory_space<vmem>>, %arg4: memref<576x64xbf16, #tpu.memory_space<vmem>>, %arg5: memref<4x64xf32, #tpu.memory_space<vmem>>, %arg6: memref<4x64xf32, #tpu.memory_space<vmem>>, %arg7: memref<2x1x1x64xf32, #tpu.memory_space<vmem>>, %arg8: memref<2x10x10x64xbf16, #tpu.memory_space<vmem>>, %arg9: memref<128x576xbf16, #tpu.memory_space<vmem>>) attributes {dimension_semantics = [], scalar_prefetch = 0 : i64, scratch_operands = 2 : i64, tpu.core_type = #tpu.core_type<tc>} {
    %c0 = arith.constant 0 : index
    %c0_0 = arith.constant 0 : index
    %0 = vector.load %arg0[%c0, %c0_0] : memref<512x32xbf16, #tpu.memory_space<vmem>>, vector<512x32xbf16>
    %c0_1 = arith.constant 0 : index
    %c0_2 = arith.constant 0 : index
    %1 = vector.load %arg1[%c0_1, %c0_2] : memref<32x64xbf16, #tpu.memory_space<vmem>>, vector<32x64xbf16>
    %cst = arith.constant dense<0.000000e+00> : vector<512x64xf32>
    %2 = tpu.matmul %0, %1, %cst {dimension_numbers = #tpu.dot_dimension_numbers<[1], [0], [0], [1], [0, 0, 1, 1], [], []>} : vector<512x32xbf16>, vector<32x64xbf16>, vector<512x64xf32> -> vector<512x64xf32>
    %cst_3 = arith.constant dense<0.000000e+00> : vector<64xf32>
    %3 = vector.multi_reduction <add>, %2, %cst_3 [0] : vector<512x64xf32> to vector<64xf32>
    %4 = vector.shape_cast %3 : vector<64xf32> to vector<1x64xf32>
    %cst_4 = arith.constant 0.001953125 : f32
    %5 = vector.broadcast %cst_4 : f32 to vector<1x64xf32>
    %6 = arith.mulf %4, %5 : vector<1x64xf32>
    %7 = vector.broadcast %6 : vector<1x64xf32> to vector<512x64xf32>
    %8 = arith.subf %2, %7 : vector<512x64xf32>
    %9 = arith.mulf %8, %8 : vector<512x64xf32>
    %cst_5 = arith.constant dense<0.000000e+00> : vector<64xf32>
    %10 = vector.multi_reduction <add>, %9, %cst_5 [0] : vector<512x64xf32> to vector<64xf32>
    %11 = vector.shape_cast %10 : vector<64xf32> to vector<1x64xf32>
    %cst_6 = arith.constant 0.001953125 : f32
    %12 = vector.broadcast %cst_6 : f32 to vector<1x64xf32>
    %13 = arith.mulf %11, %12 : vector<1x64xf32>
    %c0_7 = arith.constant 0 : index
    %c0_8 = arith.constant 0 : index
    %14 = vector.load %arg5[%c0_7, %c0_8] : memref<4x64xf32, #tpu.memory_space<vmem>>, vector<1x64xf32>
    %cst_9 = arith.constant 9.99999974E-6 : f32
    %15 = vector.broadcast %cst_9 : f32 to vector<1x64xf32>
    %16 = arith.addf %13, %15 : vector<1x64xf32>
    %17 = math.rsqrt %16 : vector<1x64xf32>
    %18 = arith.mulf %14, %17 : vector<1x64xf32>
    %19 = vector.broadcast %18 : vector<1x64xf32> to vector<512x64xf32>
    %20 = arith.mulf %8, %19 : vector<512x64xf32>
    %c0_10 = arith.constant 0 : index
    %c0_11 = arith.constant 0 : index
    %21 = vector.load %arg6[%c0_10, %c0_11] : memref<4x64xf32, #tpu.memory_space<vmem>>, vector<1x64xf32>
    %22 = vector.broadcast %21 : vector<1x64xf32> to vector<512x64xf32>
    %23 = arith.addf %20, %22 : vector<512x64xf32>
    %24 = vector.shape_cast %23 : vector<512x64xf32> to vector<2x16x16x64xf32>
    %25 = vector.shape_cast %24 : vector<2x16x16x64xf32> to vector<2x8x2x16x64xf32>
    %26 = vector.extract_strided_slice %25 {offsets = [0, 0, 0, 0, 0], sizes = [2, 8, 1, 16, 64], strides = [1, 1, 1, 1, 1]} : vector<2x8x2x16x64xf32> to vector<2x8x1x16x64xf32>
    %27 = vector.shape_cast %26 : vector<2x8x1x16x64xf32> to vector<2x8x16x64xf32>
    %28 = vector.extract_strided_slice %25 {offsets = [0, 0, 1, 0, 0], sizes = [2, 8, 1, 16, 64], strides = [1, 1, 1, 1, 1]} : vector<2x8x2x16x64xf32> to vector<2x8x1x16x64xf32>
    %29 = vector.shape_cast %28 : vector<2x8x1x16x64xf32> to vector<2x8x16x64xf32>
    %30 = arith.maximumf %27, %29 : vector<2x8x16x64xf32>
    %31 = vector.shape_cast %30 : vector<2x8x16x64xf32> to vector<2x8x8x2x64xf32>
    %32 = vector.extract_strided_slice %31 {offsets = [0, 0, 0, 0, 0], sizes = [2, 8, 8, 1, 64], strides = [1, 1, 1, 1, 1]} : vector<2x8x8x2x64xf32> to vector<2x8x8x1x64xf32>
    %33 = vector.shape_cast %32 : vector<2x8x8x1x64xf32> to vector<2x8x8x64xf32>
    %34 = vector.extract_strided_slice %31 {offsets = [0, 0, 0, 1, 0], sizes = [2, 8, 8, 1, 64], strides = [1, 1, 1, 1, 1]} : vector<2x8x8x2x64xf32> to vector<2x8x8x1x64xf32>
    %35 = vector.shape_cast %34 : vector<2x8x8x1x64xf32> to vector<2x8x8x64xf32>
    %36 = arith.maximumf %33, %35 : vector<2x8x8x64xf32>
    %cst_12 = arith.constant 0.000000e+00 : f32
    %37 = vector.broadcast %cst_12 : f32 to vector<2x8x8x64xf32>
    %38 = arith.maximumf %36, %37 : vector<2x8x8x64xf32>
    %cst_13 = arith.constant 0.000000e+00 : bf16
    %39 = vector.broadcast %cst_13 : bf16 to vector<2x1x10x64xbf16>
    %cst_14 = arith.constant 0.000000e+00 : bf16
    %40 = vector.broadcast %cst_14 : bf16 to vector<2x8x1x64xbf16>
    %c0_15 = arith.constant 0 : index
    %c0_16 = arith.constant 0 : index
    %c0_17 = arith.constant 0 : index
    %c0_18 = arith.constant 0 : index
    %41 = vector.load %arg8[%c0_15, %c0_16, %c0_17, %c0_18] : memref<2x10x10x64xbf16, #tpu.memory_space<vmem>>, vector<2x1x10x64xbf16>
    tpu.vector_store %arg8[%c0_15, %c0_16, %c0_17, %c0_18], %39 {strides = array<i32>} : memref<2x10x10x64xbf16, #tpu.memory_space<vmem>>, vector<2x1x10x64xbf16>,
    %c0_19 = arith.constant 0 : index
    %c9 = arith.constant 9 : index
    %c0_20 = arith.constant 0 : index
    %c0_21 = arith.constant 0 : index
    %42 = vector.load %arg8[%c0_19, %c9, %c0_20, %c0_21] : memref<2x10x10x64xbf16, #tpu.memory_space<vmem>>, vector<2x1x10x64xbf16>
    tpu.vector_store %arg8[%c0_19, %c9, %c0_20, %c0_21], %39 {strides = array<i32>} : memref<2x10x10x64xbf16, #tpu.memory_space<vmem>>, vector<2x1x10x64xbf16>,
    %c0_22 = arith.constant 0 : index
    %c1 = arith.constant 1 : index
    %c0_23 = arith.constant 0 : index
    %c0_24 = arith.constant 0 : index
    %43 = vector.load %arg8[%c0_22, %c1, %c0_23, %c0_24] : memref<2x10x10x64xbf16, #tpu.memory_space<vmem>>, vector<2x8x1x64xbf16>
    tpu.vector_store %arg8[%c0_22, %c1, %c0_23, %c0_24], %40 {strides = array<i32>} : memref<2x10x10x64xbf16, #tpu.memory_space<vmem>>, vector<2x8x1x64xbf16>,
    %c0_25 = arith.constant 0 : index
    %c1_26 = arith.constant 1 : index
    %c9_27 = arith.constant 9 : index
    %c0_28 = arith.constant 0 : index
    %44 = vector.load %arg8[%c0_25, %c1_26, %c9_27, %c0_28] : memref<2x10x10x64xbf16, #tpu.memory_space<vmem>>, vector<2x8x1x64xbf16>
    tpu.vector_store %arg8[%c0_25, %c1_26, %c9_27, %c0_28], %40 {strides = array<i32>} : memref<2x10x10x64xbf16, #tpu.memory_space<vmem>>, vector<2x8x1x64xbf16>,
    %45 = arith.truncf %38 : vector<2x8x8x64xf32> to vector<2x8x8x64xbf16>
    %c0_29 = arith.constant 0 : index
    %c1_30 = arith.constant 1 : index
    %c1_31 = arith.constant 1 : index
    %c0_32 = arith.constant 0 : index
    %46 = vector.load %arg8[%c0_29, %c1_30, %c1_31, %c0_32] : memref<2x10x10x64xbf16, #tpu.memory_space<vmem>>, vector<2x8x8x64xbf16>
    tpu.vector_store %arg8[%c0_29, %c1_30, %c1_31, %c0_32], %45 {strides = array<i32>} : memref<2x10x10x64xbf16, #tpu.memory_space<vmem>>, vector<2x8x8x64xbf16>,
    %c0_33 = arith.constant 0 : index
    %c0_34 = arith.constant 0 : index
    %c0_35 = arith.constant 0 : index
    %c0_36 = arith.constant 0 : index
    %47 = vector.load %arg8[%c0_33, %c0_34, %c0_35, %c0_36] : memref<2x10x10x64xbf16, #tpu.memory_space<vmem>>, vector<2x8x8x64xbf16>
    %48 = vector.shape_cast %47 : vector<2x8x8x64xbf16> to vector<128x64xbf16>
    %c0_37 = arith.constant 0 : index
    %c0_38 = arith.constant 0 : index
    %49 = vector.load %arg9[%c0_37, %c0_38] : memref<128x576xbf16, #tpu.memory_space<vmem>>, vector<128x64xbf16>
    tpu.vector_store %arg9[%c0_37, %c0_38], %48 {strides = array<i32>} : memref<128x576xbf16, #tpu.memory_space<vmem>>, vector<128x64xbf16>,
    %c0_39 = arith.constant 0 : index
    %c0_40 = arith.constant 0 : index
    %c1_41 = arith.constant 1 : index
    %c0_42 = arith.constant 0 : index
    %50 = vector.load %arg8[%c0_39, %c0_40, %c1_41, %c0_42] : memref<2x10x10x64xbf16, #tpu.memory_space<vmem>>, vector<2x8x8x64xbf16>
    %51 = vector.shape_cast %50 : vector<2x8x8x64xbf16> to vector<128x64xbf16>
    %c0_43 = arith.constant 0 : index
    %c64 = arith.constant 64 : index
    %52 = vector.load %arg9[%c0_43, %c64] : memref<128x576xbf16, #tpu.memory_space<vmem>>, vector<128x64xbf16>
    tpu.vector_store %arg9[%c0_43, %c64], %51 {strides = array<i32>} : memref<128x576xbf16, #tpu.memory_space<vmem>>, vector<128x64xbf16>,
    %c0_44 = arith.constant 0 : index
    %c0_45 = arith.constant 0 : index
    %c2 = arith.constant 2 : index
    %c0_46 = arith.constant 0 : index
    %53 = vector.load %arg8[%c0_44, %c0_45, %c2, %c0_46] : memref<2x10x10x64xbf16, #tpu.memory_space<vmem>>, vector<2x8x8x64xbf16>
    %54 = vector.shape_cast %53 : vector<2x8x8x64xbf16> to vector<128x64xbf16>
    %c0_47 = arith.constant 0 : index
    %c128 = arith.constant 128 : index
    %55 = vector.load %arg9[%c0_47, %c128] : memref<128x576xbf16, #tpu.memory_space<vmem>>, vector<128x64xbf16>
    tpu.vector_store %arg9[%c0_47, %c128], %54 {strides = array<i32>} : memref<128x576xbf16, #tpu.memory_space<vmem>>, vector<128x64xbf16>,
    %c0_48 = arith.constant 0 : index
    %c1_49 = arith.constant 1 : index
    %c0_50 = arith.constant 0 : index
    %c0_51 = arith.constant 0 : index
    %56 = vector.load %arg8[%c0_48, %c1_49, %c0_50, %c0_51] : memref<2x10x10x64xbf16, #tpu.memory_space<vmem>>, vector<2x8x8x64xbf16>
    %57 = vector.shape_cast %56 : vector<2x8x8x64xbf16> to vector<128x64xbf16>
    %c0_52 = arith.constant 0 : index
    %c192 = arith.constant 192 : index
    %58 = vector.load %arg9[%c0_52, %c192] : memref<128x576xbf16, #tpu.memory_space<vmem>>, vector<128x64xbf16>
    tpu.vector_store %arg9[%c0_52, %c192], %57 {strides = array<i32>} : memref<128x576xbf16, #tpu.memory_space<vmem>>, vector<128x64xbf16>,
    %c0_53 = arith.constant 0 : index
    %c1_54 = arith.constant 1 : index
    %c1_55 = arith.constant 1 : index
    %c0_56 = arith.constant 0 : index
    %59 = vector.load %arg8[%c0_53, %c1_54, %c1_55, %c0_56] : memref<2x10x10x64xbf16, #tpu.memory_space<vmem>>, vector<2x8x8x64xbf16>
    %60 = vector.shape_cast %59 : vector<2x8x8x64xbf16> to vector<128x64xbf16>
    %c0_57 = arith.constant 0 : index
    %c256 = arith.constant 256 : index
    %61 = vector.load %arg9[%c0_57, %c256] : memref<128x576xbf16, #tpu.memory_space<vmem>>, vector<128x64xbf16>
    tpu.vector_store %arg9[%c0_57, %c256], %60 {strides = array<i32>} : memref<128x576xbf16, #tpu.memory_space<vmem>>, vector<128x64xbf16>,
    %c0_58 = arith.constant 0 : index
    %c1_59 = arith.constant 1 : index
    %c2_60 = arith.constant 2 : index
    %c0_61 = arith.constant 0 : index
    %62 = vector.load %arg8[%c0_58, %c1_59, %c2_60, %c0_61] : memref<2x10x10x64xbf16, #tpu.memory_space<vmem>>, vector<2x8x8x64xbf16>
    %63 = vector.shape_cast %62 : vector<2x8x8x64xbf16> to vector<128x64xbf16>
    %c0_62 = arith.constant 0 : index
    %c320 = arith.constant 320 : index
    %64 = vector.load %arg9[%c0_62, %c320] : memref<128x576xbf16, #tpu.memory_space<vmem>>, vector<128x64xbf16>
    tpu.vector_store %arg9[%c0_62, %c320], %63 {strides = array<i32>} : memref<128x576xbf16, #tpu.memory_space<vmem>>, vector<128x64xbf16>,
    %c0_63 = arith.constant 0 : index
    %c2_64 = arith.constant 2 : index
    %c0_65 = arith.constant 0 : index
    %c0_66 = arith.constant 0 : index
    %65 = vector.load %arg8[%c0_63, %c2_64, %c0_65, %c0_66] : memref<2x10x10x64xbf16, #tpu.memory_space<vmem>>, vector<2x8x8x64xbf16>
    %66 = vector.shape_cast %65 : vector<2x8x8x64xbf16> to vector<128x64xbf16>
    %c0_67 = arith.constant 0 : index
    %c384 = arith.constant 384 : index
    %67 = vector.load %arg9[%c0_67, %c384] : memref<128x576xbf16, #tpu.memory_space<vmem>>, vector<128x64xbf16>
    tpu.vector_store %arg9[%c0_67, %c384], %66 {strides = array<i32>} : memref<128x576xbf16, #tpu.memory_space<vmem>>, vector<128x64xbf16>,
    %c0_68 = arith.constant 0 : index
    %c2_69 = arith.constant 2 : index
    %c1_70 = arith.constant 1 : index
    %c0_71 = arith.constant 0 : index
    %68 = vector.load %arg8[%c0_68, %c2_69, %c1_70, %c0_71] : memref<2x10x10x64xbf16, #tpu.memory_space<vmem>>, vector<2x8x8x64xbf16>
    %69 = vector.shape_cast %68 : vector<2x8x8x64xbf16> to vector<128x64xbf16>
    %c0_72 = arith.constant 0 : index
    %c448 = arith.constant 448 : index
    %70 = vector.load %arg9[%c0_72, %c448] : memref<128x576xbf16, #tpu.memory_space<vmem>>, vector<128x64xbf16>
    tpu.vector_store %arg9[%c0_72, %c448], %69 {strides = array<i32>} : memref<128x576xbf16, #tpu.memory_space<vmem>>, vector<128x64xbf16>,
    %c0_73 = arith.constant 0 : index
    %c2_74 = arith.constant 2 : index
    %c2_75 = arith.constant 2 : index
    %c0_76 = arith.constant 0 : index
    %71 = vector.load %arg8[%c0_73, %c2_74, %c2_75, %c0_76] : memref<2x10x10x64xbf16, #tpu.memory_space<vmem>>, vector<2x8x8x64xbf16>
    %72 = vector.shape_cast %71 : vector<2x8x8x64xbf16> to vector<128x64xbf16>
    %c0_77 = arith.constant 0 : index
    %c512 = arith.constant 512 : index
    %73 = vector.load %arg9[%c0_77, %c512] : memref<128x576xbf16, #tpu.memory_space<vmem>>, vector<128x64xbf16>
    tpu.vector_store %arg9[%c0_77, %c512], %72 {strides = array<i32>} : memref<128x576xbf16, #tpu.memory_space<vmem>>, vector<128x64xbf16>,
    %c0_78 = arith.constant 0 : index
    %c0_79 = arith.constant 0 : index
    %74 = vector.load %arg9[%c0_78, %c0_79] : memref<128x576xbf16, #tpu.memory_space<vmem>>, vector<128x576xbf16>
    %c0_80 = arith.constant 0 : index
    %c0_81 = arith.constant 0 : index
    %75 = vector.load %arg2[%c0_80, %c0_81] : memref<576x64xbf16, #tpu.memory_space<vmem>>, vector<576x64xbf16>
    %cst_82 = arith.constant dense<0.000000e+00> : vector<128x64xf32>
    %76 = tpu.matmul %74, %75, %cst_82 {dimension_numbers = #tpu.dot_dimension_numbers<[1], [0], [0], [1], [0, 0, 1, 1], [], []>} : vector<128x576xbf16>, vector<576x64xbf16>, vector<128x64xf32> -> vector<128x64xf32>
    %cst_83 = arith.constant dense<0.000000e+00> : vector<64xf32>
    %77 = vector.multi_reduction <add>, %76, %cst_83 [0] : vector<128x64xf32> to vector<64xf32>
    %78 = vector.shape_cast %77 : vector<64xf32> to vector<1x64xf32>
    %cst_84 = arith.constant 7.812500e-03 : f32
    %79 = vector.broadcast %cst_84 : f32 to vector<1x64xf32>
    %80 = arith.mulf %78, %79 : vector<1x64xf32>
    %81 = vector.broadcast %80 : vector<1x64xf32> to vector<128x64xf32>
    %82 = arith.subf %76, %81 : vector<128x64xf32>
    %83 = arith.mulf %82, %82 : vector<128x64xf32>
    %cst_85 = arith.constant dense<0.000000e+00> : vector<64xf32>
    %84 = vector.multi_reduction <add>, %83, %cst_85 [0] : vector<128x64xf32> to vector<64xf32>
    %85 = vector.shape_cast %84 : vector<64xf32> to vector<1x64xf32>
    %cst_86 = arith.constant 7.812500e-03 : f32
    %86 = vector.broadcast %cst_86 : f32 to vector<1x64xf32>
    %87 = arith.mulf %85, %86 : vector<1x64xf32>
    %c1_87 = arith.constant 1 : index
    %c0_88 = arith.constant 0 : index
    %88 = vector.load %arg5[%c1_87, %c0_88] : memref<4x64xf32, #tpu.memory_space<vmem>>, vector<1x64xf32>
    %cst_89 = arith.constant 9.99999974E-6 : f32
    %89 = vector.broadcast %cst_89 : f32 to vector<1x64xf32>
    %90 = arith.addf %87, %89 : vector<1x64xf32>
    %91 = math.rsqrt %90 : vector<1x64xf32>
    %92 = arith.mulf %88, %91 : vector<1x64xf32>
    %93 = vector.broadcast %92 : vector<1x64xf32> to vector<128x64xf32>
    %94 = arith.mulf %82, %93 : vector<128x64xf32>
    %c1_90 = arith.constant 1 : index
    %c0_91 = arith.constant 0 : index
    %95 = vector.load %arg6[%c1_90, %c0_91] : memref<4x64xf32, #tpu.memory_space<vmem>>, vector<1x64xf32>
    %96 = vector.broadcast %95 : vector<1x64xf32> to vector<128x64xf32>
    %97 = arith.addf %94, %96 : vector<128x64xf32>
    %98 = vector.shape_cast %97 : vector<128x64xf32> to vector<2x8x8x64xf32>
    %99 = vector.shape_cast %98 : vector<2x8x8x64xf32> to vector<2x4x2x8x64xf32>
    %100 = vector.extract_strided_slice %99 {offsets = [0, 0, 0, 0, 0], sizes = [2, 4, 1, 8, 64], strides = [1, 1, 1, 1, 1]} : vector<2x4x2x8x64xf32> to vector<2x4x1x8x64xf32>
    %101 = vector.shape_cast %100 : vector<2x4x1x8x64xf32> to vector<2x4x8x64xf32>
    %102 = vector.extract_strided_slice %99 {offsets = [0, 0, 1, 0, 0], sizes = [2, 4, 1, 8, 64], strides = [1, 1, 1, 1, 1]} : vector<2x4x2x8x64xf32> to vector<2x4x1x8x64xf32>
    %103 = vector.shape_cast %102 : vector<2x4x1x8x64xf32> to vector<2x4x8x64xf32>
    %104 = arith.maximumf %101, %103 : vector<2x4x8x64xf32>
    %105 = vector.shape_cast %104 : vector<2x4x8x64xf32> to vector<2x4x4x2x64xf32>
    %106 = vector.extract_strided_slice %105 {offsets = [0, 0, 0, 0, 0], sizes = [2, 4, 4, 1, 64], strides = [1, 1, 1, 1, 1]} : vector<2x4x4x2x64xf32> to vector<2x4x4x1x64xf32>
    %107 = vector.shape_cast %106 : vector<2x4x4x1x64xf32> to vector<2x4x4x64xf32>
    %108 = vector.extract_strided_slice %105 {offsets = [0, 0, 0, 1, 0], sizes = [2, 4, 4, 1, 64], strides = [1, 1, 1, 1, 1]} : vector<2x4x4x2x64xf32> to vector<2x4x4x1x64xf32>
    %109 = vector.shape_cast %108 : vector<2x4x4x1x64xf32> to vector<2x4x4x64xf32>
    %110 = arith.maximumf %107, %109 : vector<2x4x4x64xf32>
    %cst_92 = arith.constant 0.000000e+00 : f32
    %111 = vector.broadcast %cst_92 : f32 to vector<2x4x4x64xf32>
    %112 = arith.maximumf %110, %111 : vector<2x4x4x64xf32>
    %cst_93 = arith.constant 0.000000e+00 : bf16
    %113 = vector.broadcast %cst_93 : bf16 to vector<2x1x6x64xbf16>
    %cst_94 = arith.constant 0.000000e+00 : bf16
    %114 = vector.broadcast %cst_94 : bf16 to vector<2x4x1x64xbf16>
    %c0_95 = arith.constant 0 : index
    %c0_96 = arith.constant 0 : index
    %c0_97 = arith.constant 0 : index
    %c0_98 = arith.constant 0 : index
    %115 = vector.load %arg8[%c0_95, %c0_96, %c0_97, %c0_98] : memref<2x10x10x64xbf16, #tpu.memory_space<vmem>>, vector<2x1x6x64xbf16>
    tpu.vector_store %arg8[%c0_95, %c0_96, %c0_97, %c0_98], %113 {strides = array<i32>} : memref<2x10x10x64xbf16, #tpu.memory_space<vmem>>, vector<2x1x6x64xbf16>,
    %c0_99 = arith.constant 0 : index
    %c5 = arith.constant 5 : index
    %c0_100 = arith.constant 0 : index
    %c0_101 = arith.constant 0 : index
    %116 = vector.load %arg8[%c0_99, %c5, %c0_100, %c0_101] : memref<2x10x10x64xbf16, #tpu.memory_space<vmem>>, vector<2x1x6x64xbf16>
    tpu.vector_store %arg8[%c0_99, %c5, %c0_100, %c0_101], %113 {strides = array<i32>} : memref<2x10x10x64xbf16, #tpu.memory_space<vmem>>, vector<2x1x6x64xbf16>,
    %c0_102 = arith.constant 0 : index
    %c1_103 = arith.constant 1 : index
    %c0_104 = arith.constant 0 : index
    %c0_105 = arith.constant 0 : index
    %117 = vector.load %arg8[%c0_102, %c1_103, %c0_104, %c0_105] : memref<2x10x10x64xbf16, #tpu.memory_space<vmem>>, vector<2x4x1x64xbf16>
    tpu.vector_store %arg8[%c0_102, %c1_103, %c0_104, %c0_105], %114 {strides = array<i32>} : memref<2x10x10x64xbf16, #tpu.memory_space<vmem>>, vector<2x4x1x64xbf16>,
    %c0_106 = arith.constant 0 : index
    %c1_107 = arith.constant 1 : index
    %c5_108 = arith.constant 5 : index
    %c0_109 = arith.constant 0 : index
    %118 = vector.load %arg8[%c0_106, %c1_107, %c5_108, %c0_109] : memref<2x10x10x64xbf16, #tpu.memory_space<vmem>>, vector<2x4x1x64xbf16>
    tpu.vector_store %arg8[%c0_106, %c1_107, %c5_108, %c0_109], %114 {strides = array<i32>} : memref<2x10x10x64xbf16, #tpu.memory_space<vmem>>, vector<2x4x1x64xbf16>,
    %119 = arith.truncf %112 : vector<2x4x4x64xf32> to vector<2x4x4x64xbf16>
    %c0_110 = arith.constant 0 : index
    %c1_111 = arith.constant 1 : index
    %c1_112 = arith.constant 1 : index
    %c0_113 = arith.constant 0 : index
    %120 = vector.load %arg8[%c0_110, %c1_111, %c1_112, %c0_113] : memref<2x10x10x64xbf16, #tpu.memory_space<vmem>>, vector<2x4x4x64xbf16>
    tpu.vector_store %arg8[%c0_110, %c1_111, %c1_112, %c0_113], %119 {strides = array<i32>} : memref<2x10x10x64xbf16, #tpu.memory_space<vmem>>, vector<2x4x4x64xbf16>,
    %c0_114 = arith.constant 0 : index
    %c0_115 = arith.constant 0 : index
    %c0_116 = arith.constant 0 : index
    %c0_117 = arith.constant 0 : index
    %121 = vector.load %arg8[%c0_114, %c0_115, %c0_116, %c0_117] : memref<2x10x10x64xbf16, #tpu.memory_space<vmem>>, vector<2x4x4x64xbf16>
    %122 = vector.shape_cast %121 : vector<2x4x4x64xbf16> to vector<32x64xbf16>
    %c0_118 = arith.constant 0 : index
    %c0_119 = arith.constant 0 : index
    %123 = vector.load %arg9[%c0_118, %c0_119] : memref<128x576xbf16, #tpu.memory_space<vmem>>, vector<32x64xbf16>
    tpu.vector_store %arg9[%c0_118, %c0_119], %122 {strides = array<i32>} : memref<128x576xbf16, #tpu.memory_space<vmem>>, vector<32x64xbf16>,
    %c0_120 = arith.constant 0 : index
    %c0_121 = arith.constant 0 : index
    %c1_122 = arith.constant 1 : index
    %c0_123 = arith.constant 0 : index
    %124 = vector.load %arg8[%c0_120, %c0_121, %c1_122, %c0_123] : memref<2x10x10x64xbf16, #tpu.memory_space<vmem>>, vector<2x4x4x64xbf16>
    %125 = vector.shape_cast %124 : vector<2x4x4x64xbf16> to vector<32x64xbf16>
    %c0_124 = arith.constant 0 : index
    %c64_125 = arith.constant 64 : index
    %126 = vector.load %arg9[%c0_124, %c64_125] : memref<128x576xbf16, #tpu.memory_space<vmem>>, vector<32x64xbf16>
    tpu.vector_store %arg9[%c0_124, %c64_125], %125 {strides = array<i32>} : memref<128x576xbf16, #tpu.memory_space<vmem>>, vector<32x64xbf16>,
    %c0_126 = arith.constant 0 : index
    %c0_127 = arith.constant 0 : index
    %c2_128 = arith.constant 2 : index
    %c0_129 = arith.constant 0 : index
    %127 = vector.load %arg8[%c0_126, %c0_127, %c2_128, %c0_129] : memref<2x10x10x64xbf16, #tpu.memory_space<vmem>>, vector<2x4x4x64xbf16>
    %128 = vector.shape_cast %127 : vector<2x4x4x64xbf16> to vector<32x64xbf16>
    %c0_130 = arith.constant 0 : index
    %c128_131 = arith.constant 128 : index
    %129 = vector.load %arg9[%c0_130, %c128_131] : memref<128x576xbf16, #tpu.memory_space<vmem>>, vector<32x64xbf16>
    tpu.vector_store %arg9[%c0_130, %c128_131], %128 {strides = array<i32>} : memref<128x576xbf16, #tpu.memory_space<vmem>>, vector<32x64xbf16>,
    %c0_132 = arith.constant 0 : index
    %c1_133 = arith.constant 1 : index
    %c0_134 = arith.constant 0 : index
    %c0_135 = arith.constant 0 : index
    %130 = vector.load %arg8[%c0_132, %c1_133, %c0_134, %c0_135] : memref<2x10x10x64xbf16, #tpu.memory_space<vmem>>, vector<2x4x4x64xbf16>
    %131 = vector.shape_cast %130 : vector<2x4x4x64xbf16> to vector<32x64xbf16>
    %c0_136 = arith.constant 0 : index
    %c192_137 = arith.constant 192 : index
    %132 = vector.load %arg9[%c0_136, %c192_137] : memref<128x576xbf16, #tpu.memory_space<vmem>>, vector<32x64xbf16>
    tpu.vector_store %arg9[%c0_136, %c192_137], %131 {strides = array<i32>} : memref<128x576xbf16, #tpu.memory_space<vmem>>, vector<32x64xbf16>,
    %c0_138 = arith.constant 0 : index
    %c1_139 = arith.constant 1 : index
    %c1_140 = arith.constant 1 : index
    %c0_141 = arith.constant 0 : index
    %133 = vector.load %arg8[%c0_138, %c1_139, %c1_140, %c0_141] : memref<2x10x10x64xbf16, #tpu.memory_space<vmem>>, vector<2x4x4x64xbf16>
    %134 = vector.shape_cast %133 : vector<2x4x4x64xbf16> to vector<32x64xbf16>
    %c0_142 = arith.constant 0 : index
    %c256_143 = arith.constant 256 : index
    %135 = vector.load %arg9[%c0_142, %c256_143] : memref<128x576xbf16, #tpu.memory_space<vmem>>, vector<32x64xbf16>
    tpu.vector_store %arg9[%c0_142, %c256_143], %134 {strides = array<i32>} : memref<128x576xbf16, #tpu.memory_space<vmem>>, vector<32x64xbf16>,
    %c0_144 = arith.constant 0 : index
    %c1_145 = arith.constant 1 : index
    %c2_146 = arith.constant 2 : index
    %c0_147 = arith.constant 0 : index
    %136 = vector.load %arg8[%c0_144, %c1_145, %c2_146, %c0_147] : memref<2x10x10x64xbf16, #tpu.memory_space<vmem>>, vector<2x4x4x64xbf16>
    %137 = vector.shape_cast %136 : vector<2x4x4x64xbf16> to vector<32x64xbf16>
    %c0_148 = arith.constant 0 : index
    %c320_149 = arith.constant 320 : index
    %138 = vector.load %arg9[%c0_148, %c320_149] : memref<128x576xbf16, #tpu.memory_space<vmem>>, vector<32x64xbf16>
    tpu.vector_store %arg9[%c0_148, %c320_149], %137 {strides = array<i32>} : memref<128x576xbf16, #tpu.memory_space<vmem>>, vector<32x64xbf16>,
    %c0_150 = arith.constant 0 : index
    %c2_151 = arith.constant 2 : index
    %c0_152 = arith.constant 0 : index
    %c0_153 = arith.constant 0 : index
    %139 = vector.load %arg8[%c0_150, %c2_151, %c0_152, %c0_153] : memref<2x10x10x64xbf16, #tpu.memory_space<vmem>>, vector<2x4x4x64xbf16>
    %140 = vector.shape_cast %139 : vector<2x4x4x64xbf16> to vector<32x64xbf16>
    %c0_154 = arith.constant 0 : index
    %c384_155 = arith.constant 384 : index
    %141 = vector.load %arg9[%c0_154, %c384_155] : memref<128x576xbf16, #tpu.memory_space<vmem>>, vector<32x64xbf16>
    tpu.vector_store %arg9[%c0_154, %c384_155], %140 {strides = array<i32>} : memref<128x576xbf16, #tpu.memory_space<vmem>>, vector<32x64xbf16>,
    %c0_156 = arith.constant 0 : index
    %c2_157 = arith.constant 2 : index
    %c1_158 = arith.constant 1 : index
    %c0_159 = arith.constant 0 : index
    %142 = vector.load %arg8[%c0_156, %c2_157, %c1_158, %c0_159] : memref<2x10x10x64xbf16, #tpu.memory_space<vmem>>, vector<2x4x4x64xbf16>
    %143 = vector.shape_cast %142 : vector<2x4x4x64xbf16> to vector<32x64xbf16>
    %c0_160 = arith.constant 0 : index
    %c448_161 = arith.constant 448 : index
    %144 = vector.load %arg9[%c0_160, %c448_161] : memref<128x576xbf16, #tpu.memory_space<vmem>>, vector<32x64xbf16>
    tpu.vector_store %arg9[%c0_160, %c448_161], %143 {strides = array<i32>} : memref<128x576xbf16, #tpu.memory_space<vmem>>, vector<32x64xbf16>,
    %c0_162 = arith.constant 0 : index
    %c2_163 = arith.constant 2 : index
    %c2_164 = arith.constant 2 : index
    %c0_165 = arith.constant 0 : index
    %145 = vector.load %arg8[%c0_162, %c2_163, %c2_164, %c0_165] : memref<2x10x10x64xbf16, #tpu.memory_space<vmem>>, vector<2x4x4x64xbf16>
    %146 = vector.shape_cast %145 : vector<2x4x4x64xbf16> to vector<32x64xbf16>
    %c0_166 = arith.constant 0 : index
    %c512_167 = arith.constant 512 : index
    %147 = vector.load %arg9[%c0_166, %c512_167] : memref<128x576xbf16, #tpu.memory_space<vmem>>, vector<32x64xbf16>
    tpu.vector_store %arg9[%c0_166, %c512_167], %146 {strides = array<i32>} : memref<128x576xbf16, #tpu.memory_space<vmem>>, vector<32x64xbf16>,
    %c0_168 = arith.constant 0 : index
    %c0_169 = arith.constant 0 : index
    %148 = vector.load %arg9[%c0_168, %c0_169] : memref<128x576xbf16, #tpu.memory_space<vmem>>, vector<32x576xbf16>
    %c0_170 = arith.constant 0 : index
    %c0_171 = arith.constant 0 : index
    %149 = vector.load %arg3[%c0_170, %c0_171] : memref<576x64xbf16, #tpu.memory_space<vmem>>, vector<576x64xbf16>
    %cst_172 = arith.constant dense<0.000000e+00> : vector<32x64xf32>
    %150 = tpu.matmul %148, %149, %cst_172 {dimension_numbers = #tpu.dot_dimension_numbers<[1], [0], [0], [1], [0, 0, 1, 1], [], []>} : vector<32x576xbf16>, vector<576x64xbf16>, vector<32x64xf32> -> vector<32x64xf32>
    %cst_173 = arith.constant dense<0.000000e+00> : vector<64xf32>
    %151 = vector.multi_reduction <add>, %150, %cst_173 [0] : vector<32x64xf32> to vector<64xf32>
    %152 = vector.shape_cast %151 : vector<64xf32> to vector<1x64xf32>
    %cst_174 = arith.constant 3.125000e-02 : f32
    %153 = vector.broadcast %cst_174 : f32 to vector<1x64xf32>
    %154 = arith.mulf %152, %153 : vector<1x64xf32>
    %155 = vector.broadcast %154 : vector<1x64xf32> to vector<32x64xf32>
    %156 = arith.subf %150, %155 : vector<32x64xf32>
    %157 = arith.mulf %156, %156 : vector<32x64xf32>
    %cst_175 = arith.constant dense<0.000000e+00> : vector<64xf32>
    %158 = vector.multi_reduction <add>, %157, %cst_175 [0] : vector<32x64xf32> to vector<64xf32>
    %159 = vector.shape_cast %158 : vector<64xf32> to vector<1x64xf32>
    %cst_176 = arith.constant 3.125000e-02 : f32
    %160 = vector.broadcast %cst_176 : f32 to vector<1x64xf32>
    %161 = arith.mulf %159, %160 : vector<1x64xf32>
    %c2_177 = arith.constant 2 : index
    %c0_178 = arith.constant 0 : index
    %162 = vector.load %arg5[%c2_177, %c0_178] : memref<4x64xf32, #tpu.memory_space<vmem>>, vector<1x64xf32>
    %cst_179 = arith.constant 9.99999974E-6 : f32
    %163 = vector.broadcast %cst_179 : f32 to vector<1x64xf32>
    %164 = arith.addf %161, %163 : vector<1x64xf32>
    %165 = math.rsqrt %164 : vector<1x64xf32>
    %166 = arith.mulf %162, %165 : vector<1x64xf32>
    %167 = vector.broadcast %166 : vector<1x64xf32> to vector<32x64xf32>
    %168 = arith.mulf %156, %167 : vector<32x64xf32>
    %c2_180 = arith.constant 2 : index
    %c0_181 = arith.constant 0 : index
    %169 = vector.load %arg6[%c2_180, %c0_181] : memref<4x64xf32, #tpu.memory_space<vmem>>, vector<1x64xf32>
    %170 = vector.broadcast %169 : vector<1x64xf32> to vector<32x64xf32>
    %171 = arith.addf %168, %170 : vector<32x64xf32>
    %172 = vector.shape_cast %171 : vector<32x64xf32> to vector<2x4x4x64xf32>
    %173 = vector.shape_cast %172 : vector<2x4x4x64xf32> to vector<2x2x2x4x64xf32>
    %174 = vector.extract_strided_slice %173 {offsets = [0, 0, 0, 0, 0], sizes = [2, 2, 1, 4, 64], strides = [1, 1, 1, 1, 1]} : vector<2x2x2x4x64xf32> to vector<2x2x1x4x64xf32>
    %175 = vector.shape_cast %174 : vector<2x2x1x4x64xf32> to vector<2x2x4x64xf32>
    %176 = vector.extract_strided_slice %173 {offsets = [0, 0, 1, 0, 0], sizes = [2, 2, 1, 4, 64], strides = [1, 1, 1, 1, 1]} : vector<2x2x2x4x64xf32> to vector<2x2x1x4x64xf32>
    %177 = vector.shape_cast %176 : vector<2x2x1x4x64xf32> to vector<2x2x4x64xf32>
    %178 = arith.maximumf %175, %177 : vector<2x2x4x64xf32>
    %179 = vector.shape_cast %178 : vector<2x2x4x64xf32> to vector<2x2x2x2x64xf32>
    %180 = vector.extract_strided_slice %179 {offsets = [0, 0, 0, 0, 0], sizes = [2, 2, 2, 1, 64], strides = [1, 1, 1, 1, 1]} : vector<2x2x2x2x64xf32> to vector<2x2x2x1x64xf32>
    %181 = vector.shape_cast %180 : vector<2x2x2x1x64xf32> to vector<2x2x2x64xf32>
    %182 = vector.extract_strided_slice %179 {offsets = [0, 0, 0, 1, 0], sizes = [2, 2, 2, 1, 64], strides = [1, 1, 1, 1, 1]} : vector<2x2x2x2x64xf32> to vector<2x2x2x1x64xf32>
    %183 = vector.shape_cast %182 : vector<2x2x2x1x64xf32> to vector<2x2x2x64xf32>
    %184 = arith.maximumf %181, %183 : vector<2x2x2x64xf32>
    %cst_182 = arith.constant 0.000000e+00 : f32
    %185 = vector.broadcast %cst_182 : f32 to vector<2x2x2x64xf32>
    %186 = arith.maximumf %184, %185 : vector<2x2x2x64xf32>
    %cst_183 = arith.constant 0.000000e+00 : bf16
    %187 = vector.broadcast %cst_183 : bf16 to vector<2x1x4x64xbf16>
    %cst_184 = arith.constant 0.000000e+00 : bf16
    %188 = vector.broadcast %cst_184 : bf16 to vector<2x2x1x64xbf16>
    %c0_185 = arith.constant 0 : index
    %c0_186 = arith.constant 0 : index
    %c0_187 = arith.constant 0 : index
    %c0_188 = arith.constant 0 : index
    %189 = vector.load %arg8[%c0_185, %c0_186, %c0_187, %c0_188] : memref<2x10x10x64xbf16, #tpu.memory_space<vmem>>, vector<2x1x4x64xbf16>
    tpu.vector_store %arg8[%c0_185, %c0_186, %c0_187, %c0_188], %187 {strides = array<i32>} : memref<2x10x10x64xbf16, #tpu.memory_space<vmem>>, vector<2x1x4x64xbf16>,
    %c0_189 = arith.constant 0 : index
    %c3 = arith.constant 3 : index
    %c0_190 = arith.constant 0 : index
    %c0_191 = arith.constant 0 : index
    %190 = vector.load %arg8[%c0_189, %c3, %c0_190, %c0_191] : memref<2x10x10x64xbf16, #tpu.memory_space<vmem>>, vector<2x1x4x64xbf16>
    tpu.vector_store %arg8[%c0_189, %c3, %c0_190, %c0_191], %187 {strides = array<i32>} : memref<2x10x10x64xbf16, #tpu.memory_space<vmem>>, vector<2x1x4x64xbf16>,
    %c0_192 = arith.constant 0 : index
    %c1_193 = arith.constant 1 : index
    %c0_194 = arith.constant 0 : index
    %c0_195 = arith.constant 0 : index
    %191 = vector.load %arg8[%c0_192, %c1_193, %c0_194, %c0_195] : memref<2x10x10x64xbf16, #tpu.memory_space<vmem>>, vector<2x2x1x64xbf16>
    tpu.vector_store %arg8[%c0_192, %c1_193, %c0_194, %c0_195], %188 {strides = array<i32>} : memref<2x10x10x64xbf16, #tpu.memory_space<vmem>>, vector<2x2x1x64xbf16>,
    %c0_196 = arith.constant 0 : index
    %c1_197 = arith.constant 1 : index
    %c3_198 = arith.constant 3 : index
    %c0_199 = arith.constant 0 : index
    %192 = vector.load %arg8[%c0_196, %c1_197, %c3_198, %c0_199] : memref<2x10x10x64xbf16, #tpu.memory_space<vmem>>, vector<2x2x1x64xbf16>
    tpu.vector_store %arg8[%c0_196, %c1_197, %c3_198, %c0_199], %188 {strides = array<i32>} : memref<2x10x10x64xbf16, #tpu.memory_space<vmem>>, vector<2x2x1x64xbf16>,
    %193 = arith.truncf %186 : vector<2x2x2x64xf32> to vector<2x2x2x64xbf16>
    %c0_200 = arith.constant 0 : index
    %c1_201 = arith.constant 1 : index
    %c1_202 = arith.constant 1 : index
    %c0_203 = arith.constant 0 : index
    %194 = vector.load %arg8[%c0_200, %c1_201, %c1_202, %c0_203] : memref<2x10x10x64xbf16, #tpu.memory_space<vmem>>, vector<2x2x2x64xbf16>
    tpu.vector_store %arg8[%c0_200, %c1_201, %c1_202, %c0_203], %193 {strides = array<i32>} : memref<2x10x10x64xbf16, #tpu.memory_space<vmem>>, vector<2x2x2x64xbf16>,
    %c0_204 = arith.constant 0 : index
    %c0_205 = arith.constant 0 : index
    %c0_206 = arith.constant 0 : index
    %c0_207 = arith.constant 0 : index
    %195 = vector.load %arg8[%c0_204, %c0_205, %c0_206, %c0_207] : memref<2x10x10x64xbf16, #tpu.memory_space<vmem>>, vector<2x2x2x64xbf16>
    %196 = vector.shape_cast %195 : vector<2x2x2x64xbf16> to vector<8x64xbf16>
    %c0_208 = arith.constant 0 : index
    %c0_209 = arith.constant 0 : index
    %197 = vector.load %arg9[%c0_208, %c0_209] : memref<128x576xbf16, #tpu.memory_space<vmem>>, vector<8x64xbf16>
    tpu.vector_store %arg9[%c0_208, %c0_209], %196 {strides = array<i32>} : memref<128x576xbf16, #tpu.memory_space<vmem>>, vector<8x64xbf16>,
    %c0_210 = arith.constant 0 : index
    %c0_211 = arith.constant 0 : index
    %c1_212 = arith.constant 1 : index
    %c0_213 = arith.constant 0 : index
    %198 = vector.load %arg8[%c0_210, %c0_211, %c1_212, %c0_213] : memref<2x10x10x64xbf16, #tpu.memory_space<vmem>>, vector<2x2x2x64xbf16>
    %199 = vector.shape_cast %198 : vector<2x2x2x64xbf16> to vector<8x64xbf16>
    %c0_214 = arith.constant 0 : index
    %c64_215 = arith.constant 64 : index
    %200 = vector.load %arg9[%c0_214, %c64_215] : memref<128x576xbf16, #tpu.memory_space<vmem>>, vector<8x64xbf16>
    tpu.vector_store %arg9[%c0_214, %c64_215], %199 {strides = array<i32>} : memref<128x576xbf16, #tpu.memory_space<vmem>>, vector<8x64xbf16>,
    %c0_216 = arith.constant 0 : index
    %c0_217 = arith.constant 0 : index
    %c2_218 = arith.constant 2 : index
    %c0_219 = arith.constant 0 : index
    %201 = vector.load %arg8[%c0_216, %c0_217, %c2_218, %c0_219] : memref<2x10x10x64xbf16, #tpu.memory_space<vmem>>, vector<2x2x2x64xbf16>
    %202 = vector.shape_cast %201 : vector<2x2x2x64xbf16> to vector<8x64xbf16>
    %c0_220 = arith.constant 0 : index
    %c128_221 = arith.constant 128 : index
    %203 = vector.load %arg9[%c0_220, %c128_221] : memref<128x576xbf16, #tpu.memory_space<vmem>>, vector<8x64xbf16>
    tpu.vector_store %arg9[%c0_220, %c128_221], %202 {strides = array<i32>} : memref<128x576xbf16, #tpu.memory_space<vmem>>, vector<8x64xbf16>,
    %c0_222 = arith.constant 0 : index
    %c1_223 = arith.constant 1 : index
    %c0_224 = arith.constant 0 : index
    %c0_225 = arith.constant 0 : index
    %204 = vector.load %arg8[%c0_222, %c1_223, %c0_224, %c0_225] : memref<2x10x10x64xbf16, #tpu.memory_space<vmem>>, vector<2x2x2x64xbf16>
    %205 = vector.shape_cast %204 : vector<2x2x2x64xbf16> to vector<8x64xbf16>
    %c0_226 = arith.constant 0 : index
    %c192_227 = arith.constant 192 : index
    %206 = vector.load %arg9[%c0_226, %c192_227] : memref<128x576xbf16, #tpu.memory_space<vmem>>, vector<8x64xbf16>
    tpu.vector_store %arg9[%c0_226, %c192_227], %205 {strides = array<i32>} : memref<128x576xbf16, #tpu.memory_space<vmem>>, vector<8x64xbf16>,
    %c0_228 = arith.constant 0 : index
    %c1_229 = arith.constant 1 : index
    %c1_230 = arith.constant 1 : index
    %c0_231 = arith.constant 0 : index
    %207 = vector.load %arg8[%c0_228, %c1_229, %c1_230, %c0_231] : memref<2x10x10x64xbf16, #tpu.memory_space<vmem>>, vector<2x2x2x64xbf16>
    %208 = vector.shape_cast %207 : vector<2x2x2x64xbf16> to vector<8x64xbf16>
    %c0_232 = arith.constant 0 : index
    %c256_233 = arith.constant 256 : index
    %209 = vector.load %arg9[%c0_232, %c256_233] : memref<128x576xbf16, #tpu.memory_space<vmem>>, vector<8x64xbf16>
    tpu.vector_store %arg9[%c0_232, %c256_233], %208 {strides = array<i32>} : memref<128x576xbf16, #tpu.memory_space<vmem>>, vector<8x64xbf16>,
    %c0_234 = arith.constant 0 : index
    %c1_235 = arith.constant 1 : index
    %c2_236 = arith.constant 2 : index
    %c0_237 = arith.constant 0 : index
    %210 = vector.load %arg8[%c0_234, %c1_235, %c2_236, %c0_237] : memref<2x10x10x64xbf16, #tpu.memory_space<vmem>>, vector<2x2x2x64xbf16>
    %211 = vector.shape_cast %210 : vector<2x2x2x64xbf16> to vector<8x64xbf16>
    %c0_238 = arith.constant 0 : index
    %c320_239 = arith.constant 320 : index
    %212 = vector.load %arg9[%c0_238, %c320_239] : memref<128x576xbf16, #tpu.memory_space<vmem>>, vector<8x64xbf16>
    tpu.vector_store %arg9[%c0_238, %c320_239], %211 {strides = array<i32>} : memref<128x576xbf16, #tpu.memory_space<vmem>>, vector<8x64xbf16>,
    %c0_240 = arith.constant 0 : index
    %c2_241 = arith.constant 2 : index
    %c0_242 = arith.constant 0 : index
    %c0_243 = arith.constant 0 : index
    %213 = vector.load %arg8[%c0_240, %c2_241, %c0_242, %c0_243] : memref<2x10x10x64xbf16, #tpu.memory_space<vmem>>, vector<2x2x2x64xbf16>
    %214 = vector.shape_cast %213 : vector<2x2x2x64xbf16> to vector<8x64xbf16>
    %c0_244 = arith.constant 0 : index
    %c384_245 = arith.constant 384 : index
    %215 = vector.load %arg9[%c0_244, %c384_245] : memref<128x576xbf16, #tpu.memory_space<vmem>>, vector<8x64xbf16>
    tpu.vector_store %arg9[%c0_244, %c384_245], %214 {strides = array<i32>} : memref<128x576xbf16, #tpu.memory_space<vmem>>, vector<8x64xbf16>,
    %c0_246 = arith.constant 0 : index
    %c2_247 = arith.constant 2 : index
    %c1_248 = arith.constant 1 : index
    %c0_249 = arith.constant 0 : index
    %216 = vector.load %arg8[%c0_246, %c2_247, %c1_248, %c0_249] : memref<2x10x10x64xbf16, #tpu.memory_space<vmem>>, vector<2x2x2x64xbf16>
    %217 = vector.shape_cast %216 : vector<2x2x2x64xbf16> to vector<8x64xbf16>
    %c0_250 = arith.constant 0 : index
    %c448_251 = arith.constant 448 : index
    %218 = vector.load %arg9[%c0_250, %c448_251] : memref<128x576xbf16, #tpu.memory_space<vmem>>, vector<8x64xbf16>
    tpu.vector_store %arg9[%c0_250, %c448_251], %217 {strides = array<i32>} : memref<128x576xbf16, #tpu.memory_space<vmem>>, vector<8x64xbf16>,
    %c0_252 = arith.constant 0 : index
    %c2_253 = arith.constant 2 : index
    %c2_254 = arith.constant 2 : index
    %c0_255 = arith.constant 0 : index
    %219 = vector.load %arg8[%c0_252, %c2_253, %c2_254, %c0_255] : memref<2x10x10x64xbf16, #tpu.memory_space<vmem>>, vector<2x2x2x64xbf16>
    %220 = vector.shape_cast %219 : vector<2x2x2x64xbf16> to vector<8x64xbf16>
    %c0_256 = arith.constant 0 : index
    %c512_257 = arith.constant 512 : index
    %221 = vector.load %arg9[%c0_256, %c512_257] : memref<128x576xbf16, #tpu.memory_space<vmem>>, vector<8x64xbf16>
    tpu.vector_store %arg9[%c0_256, %c512_257], %220 {strides = array<i32>} : memref<128x576xbf16, #tpu.memory_space<vmem>>, vector<8x64xbf16>,
    %c0_258 = arith.constant 0 : index
    %c0_259 = arith.constant 0 : index
    %222 = vector.load %arg9[%c0_258, %c0_259] : memref<128x576xbf16, #tpu.memory_space<vmem>>, vector<8x576xbf16>
    %c0_260 = arith.constant 0 : index
    %c0_261 = arith.constant 0 : index
    %223 = vector.load %arg4[%c0_260, %c0_261] : memref<576x64xbf16, #tpu.memory_space<vmem>>, vector<576x64xbf16>
    %cst_262 = arith.constant dense<0.000000e+00> : vector<8x64xf32>
    %224 = tpu.matmul %222, %223, %cst_262 {dimension_numbers = #tpu.dot_dimension_numbers<[1], [0], [0], [1], [0, 0, 1, 1], [], []>} : vector<8x576xbf16>, vector<576x64xbf16>, vector<8x64xf32> -> vector<8x64xf32>
    %cst_263 = arith.constant dense<0.000000e+00> : vector<64xf32>
    %225 = vector.multi_reduction <add>, %224, %cst_263 [0] : vector<8x64xf32> to vector<64xf32>
    %226 = vector.shape_cast %225 : vector<64xf32> to vector<1x64xf32>
    %cst_264 = arith.constant 1.250000e-01 : f32
    %227 = vector.broadcast %cst_264 : f32 to vector<1x64xf32>
    %228 = arith.mulf %226, %227 : vector<1x64xf32>
    %229 = vector.broadcast %228 : vector<1x64xf32> to vector<8x64xf32>
    %230 = arith.subf %224, %229 : vector<8x64xf32>
    %231 = arith.mulf %230, %230 : vector<8x64xf32>
    %cst_265 = arith.constant dense<0.000000e+00> : vector<64xf32>
    %232 = vector.multi_reduction <add>, %231, %cst_265 [0] : vector<8x64xf32> to vector<64xf32>
    %233 = vector.shape_cast %232 : vector<64xf32> to vector<1x64xf32>
    %cst_266 = arith.constant 1.250000e-01 : f32
    %234 = vector.broadcast %cst_266 : f32 to vector<1x64xf32>
    %235 = arith.mulf %233, %234 : vector<1x64xf32>
    %c3_267 = arith.constant 3 : index
    %c0_268 = arith.constant 0 : index
    %236 = vector.load %arg5[%c3_267, %c0_268] : memref<4x64xf32, #tpu.memory_space<vmem>>, vector<1x64xf32>
    %cst_269 = arith.constant 9.99999974E-6 : f32
    %237 = vector.broadcast %cst_269 : f32 to vector<1x64xf32>
    %238 = arith.addf %235, %237 : vector<1x64xf32>
    %239 = math.rsqrt %238 : vector<1x64xf32>
    %240 = arith.mulf %236, %239 : vector<1x64xf32>
    %241 = vector.broadcast %240 : vector<1x64xf32> to vector<8x64xf32>
    %242 = arith.mulf %230, %241 : vector<8x64xf32>
    %c3_270 = arith.constant 3 : index
    %c0_271 = arith.constant 0 : index
    %243 = vector.load %arg6[%c3_270, %c0_271] : memref<4x64xf32, #tpu.memory_space<vmem>>, vector<1x64xf32>
    %244 = vector.broadcast %243 : vector<1x64xf32> to vector<8x64xf32>
    %245 = arith.addf %242, %244 : vector<8x64xf32>
    %246 = vector.shape_cast %245 : vector<8x64xf32> to vector<2x2x2x64xf32>
    %247 = vector.shape_cast %246 : vector<2x2x2x64xf32> to vector<2x1x2x2x64xf32>
    %248 = vector.extract_strided_slice %247 {offsets = [0, 0, 0, 0, 0], sizes = [2, 1, 1, 2, 64], strides = [1, 1, 1, 1, 1]} : vector<2x1x2x2x64xf32> to vector<2x1x1x2x64xf32>
    %249 = vector.shape_cast %248 : vector<2x1x1x2x64xf32> to vector<2x1x2x64xf32>
    %250 = vector.extract_strided_slice %247 {offsets = [0, 0, 1, 0, 0], sizes = [2, 1, 1, 2, 64], strides = [1, 1, 1, 1, 1]} : vector<2x1x2x2x64xf32> to vector<2x1x1x2x64xf32>
    %251 = vector.shape_cast %250 : vector<2x1x1x2x64xf32> to vector<2x1x2x64xf32>
    %252 = arith.maximumf %249, %251 : vector<2x1x2x64xf32>
    %253 = vector.shape_cast %252 : vector<2x1x2x64xf32> to vector<2x1x1x2x64xf32>
    %254 = vector.extract_strided_slice %253 {offsets = [0, 0, 0, 0, 0], sizes = [2, 1, 1, 1, 64], strides = [1, 1, 1, 1, 1]} : vector<2x1x1x2x64xf32> to vector<2x1x1x1x64xf32>
    %255 = vector.shape_cast %254 : vector<2x1x1x1x64xf32> to vector<2x1x1x64xf32>
    %256 = vector.extract_strided_slice %253 {offsets = [0, 0, 0, 1, 0], sizes = [2, 1, 1, 1, 64], strides = [1, 1, 1, 1, 1]} : vector<2x1x1x2x64xf32> to vector<2x1x1x1x64xf32>
    %257 = vector.shape_cast %256 : vector<2x1x1x1x64xf32> to vector<2x1x1x64xf32>
    %258 = arith.maximumf %255, %257 : vector<2x1x1x64xf32>
    %cst_272 = arith.constant 0.000000e+00 : f32
    %259 = vector.broadcast %cst_272 : f32 to vector<2x1x1x64xf32>
    %260 = arith.maximumf %258, %259 : vector<2x1x1x64xf32>
    %c0_273 = arith.constant 0 : index
    %c0_274 = arith.constant 0 : index
    %c0_275 = arith.constant 0 : index
    %c0_276 = arith.constant 0 : index
    %261 = vector.load %arg7[%c0_273, %c0_274, %c0_275, %c0_276] : memref<2x1x1x64xf32, #tpu.memory_space<vmem>>, vector<2x1x1x64xf32>
    tpu.vector_store %arg7[%c0_273, %c0_274, %c0_275, %c0_276], %260 {strides = array<i32>} : memref<2x1x1x64xf32, #tpu.memory_space<vmem>>, vector<2x1x1x64xf32>,
    return
  }
}

</mosaic_0001>

<llo_original>
// kernel: convnet_forward.1
$region0: #{convnet_forward.1}
  #allocation0 [shape = 'u32[]', space=smem, size = 0x4, offset = 0x4, fixed_abs, tag = 'smem constant byte address 0x4 - core index']
  #allocation1 [shape = 'u32[72,128]{1,0:T(1,128)}', space=vmem, size = 0x9000, scoped, tag = 'internal scratch']
  #allocation2 [shape = 'bf16[2,10,10,64]{3,2,1,0:T(8,128)(2,1)}', space=vmem, size = 0x14000, scoped, tag = 'scratch operand']
  #allocation3 [shape = 'bf16[128,576]{1,0:T(8,128)(2,1)}', space=vmem, size = 0x28000, scoped, tag = 'scratch operand']
  %s0 = inlined_call_operand.vmem [shape: bf16[512,32], index: 0, kind: input, shape index: {}]
  %s1 = inlined_call_operand.vmem [shape: bf16[32,64], index: 1, kind: input, shape index: {}]
  %s2 = inlined_call_operand.vmem [shape: bf16[576,64], index: 2, kind: input, shape index: {}]
  %s3 = inlined_call_operand.vmem [shape: bf16[576,64], index: 3, kind: input, shape index: {}]
  %s4 = inlined_call_operand.vmem [shape: bf16[576,64], index: 4, kind: input, shape index: {}]
  %s5 = inlined_call_operand.vmem [shape: f32[4,64], index: 5, kind: input, shape index: {}]
  %s6 = inlined_call_operand.vmem [shape: f32[4,64], index: 6, kind: input, shape index: {}]
  %s7 = inlined_call_operand.hbm [shape: f32[2,1,1,64], index: 7, kind: output, shape index: {}]
  %s8 = sld [smem:[#allocation0]]
  $region38: #{convnet_forward.1} parent=0
    _
  %s10 = ssub.s32 1, %s8
  %s11 = scalar_select 0, %s10, %s8
  $region1: #{convnet_forward.1} parent=0
    #allocation4 [shape = 'u8[1024]{0}', space=vmem, size = 0x400, scoped, tag = 'output window, operand 0, single buffered']
    #allocation5 [shape = 's32[1]{0}', space=sflag, size = 0x4, scoped, tag = 'scoped memory for convnet_forward.1']
    %12 = vsyncpa [#allocation5], 0
    // Predicated region
    $region2: #{convnet_forward.1} parent=1 // pred_check
      _
    $region3: #{convnet_forward.1} parent=1 // pred_check_branch
      %14 = sbr.rel (0) target = $region5
    $region4: #{convnet_forward.1} parent=1 // pred_region
      _
    $region5: #{convnet_forward.1} parent=1 // pred_fallthru
      _
    // Predicated region
    $region6: #{convnet_forward.1} parent=1 // pred_check
      _
    $region7: #{convnet_forward.1} parent=1 // pred_check_branch
      %16 = sbr.rel (0) target = $region9
    $region8: #{convnet_forward.1} parent=1 // pred_region
      _
    $region9: #{convnet_forward.1} parent=1 // pred_fallthru
      _
    // Predicated region
    $region10: #{convnet_forward.1} parent=1 // pred_check
      _
    $region11: #{convnet_forward.1} parent=1 // pred_check_branch
      %18 = sbr.rel (0) target = $region13
    $region12: #{convnet_forward.1} parent=1 // pred_region
      _
    $region13: #{convnet_forward.1} parent=1 // pred_fallthru
      _
    // Predicated region
    $region14: #{convnet_forward.1} parent=1 // pred_check
      _
    $region15: #{convnet_forward.1} parent=1 // pred_check_branch
      %20 = sbr.rel (0) target = $region17
    $region16: #{convnet_forward.1} parent=1 // pred_region
      _
    $region17: #{convnet_forward.1} parent=1 // pred_fallthru
      _
    // Predicated region
    $region18: #{convnet_forward.1} parent=1 // pred_check
      _
    $region19: #{convnet_forward.1} parent=1 // pred_check_branch
      %22 = sbr.rel (0) target = $region21
    $region20: #{convnet_forward.1} parent=1 // pred_region
      _
    $region21: #{convnet_forward.1} parent=1 // pred_fallthru
      _
    // Predicated region
    $region22: #{convnet_forward.1} parent=1 // pred_check
      _
    $region23: #{convnet_forward.1} parent=1 // pred_check_branch
      %24 = sbr.rel (0) target = $region25
    $region24: #{convnet_forward.1} parent=1 // pred_region
      _
    $region25: #{convnet_forward.1} parent=1 // pred_fallthru
      _
    // Predicated region
    $region26: #{convnet_forward.1} parent=1 // pred_check
      _
    $region27: #{convnet_forward.1} parent=1 // pred_check_branch
      %26 = sbr.rel (0) target = $region29
    $region28: #{convnet_forward.1} parent=1 // pred_region
      _
    $region29: #{convnet_forward.1} parent=1 // pred_fallthru
      _
    %v28 = vld [vmem:[%s0] sm:$0xf]
    %v29 = vld [vmem:[%s0 + $0x4] sm:$0xf]
    %v30 = vld [vmem:[%s0 + $0x8] sm:$0xf]
    %v31 = vld [vmem:[%s0 + $0xc] sm:$0xf]
    %v32 = vld [vmem:[%s0 + $0x10] sm:$0xf]
    %v33 = vld [vmem:[%s0 + $0x14] sm:$0xf]
    %v34 = vld [vmem:[%s0 + $0x18] sm:$0xf]
    %v35 = vld [vmem:[%s0 + $0x1c] sm:$0xf]
    %v36 = vld [vmem:[%s0 + $0x20] sm:$0xf]
    %v37 = vld [vmem:[%s0 + $0x24] sm:$0xf]
    %v38 = vld [vmem:[%s0 + $0x28] sm:$0xf]
    %v39 = vld [vmem:[%s0 + $0x2c] sm:$0xf]
    %v40 = vld [vmem:[%s0 + $0x30] sm:$0xf]
    %v41 = vld [vmem:[%s0 + $0x34] sm:$0xf]
    %v42 = vld [vmem:[%s0 + $0x38] sm:$0xf]
    %v43 = vld [vmem:[%s0 + $0x3c] sm:$0xf]
    %v44 = vld [vmem:[%s0 + $0x40] sm:$0xf]
    %v45 = vld [vmem:[%s0 + $0x44] sm:$0xf]
    %v46 = vld [vmem:[%s0 + $0x48] sm:$0xf]
    %v47 = vld [vmem:[%s0 + $0x4c] sm:$0xf]
    %v48 = vld [vmem:[%s0 + $0x50] sm:$0xf]
    %v49 = vld [vmem:[%s0 + $0x54] sm:$0xf]
    %v50 = vld [vmem:[%s0 + $0x58] sm:$0xf]
    %v51 = vld [vmem:[%s0 + $0x5c] sm:$0xf]
    %v52 = vld [vmem:[%s0 + $0x60] sm:$0xf]
    %v53 = vld [vmem:[%s0 + $0x64] sm:$0xf]
    %v54 = vld [vmem:[%s0 + $0x68] sm:$0xf]
    %v55 = vld [vmem:[%s0 + $0x6c] sm:$0xf]
    %v56 = vld [vmem:[%s0 + $0x70] sm:$0xf]
    %v57 = vld [vmem:[%s0 + $0x74] sm:$0xf]
    %v58 = vld [vmem:[%s0 + $0x78] sm:$0xf]
    %v59 = vld [vmem:[%s0 + $0x7c] sm:$0xf]
    %v60 = vld [vmem:[%s0 + $0x80] sm:$0xf]
    %v61 = vld [vmem:[%s0 + $0x84] sm:$0xf]
    %v62 = vld [vmem:[%s0 + $0x88] sm:$0xf]
    %v63 = vld [vmem:[%s0 + $0x8c] sm:$0xf]
    %v64 = vld [vmem:[%s0 + $0x90] sm:$0xf]
    %v65 = vld [vmem:[%s0 + $0x94] sm:$0xf]
    %v66 = vld [vmem:[%s0 + $0x98] sm:$0xf]
    %v67 = vld [vmem:[%s0 + $0x9c] sm:$0xf]
    %v68 = vld [vmem:[%s0 + $0xa0] sm:$0xf]
    %v69 = vld [vmem:[%s0 + $0xa4] sm:$0xf]
    %v70 = vld [vmem:[%s0 + $0xa8] sm:$0xf]
    %v71 = vld [vmem:[%s0 + $0xac] sm:$0xf]
    %v72 = vld [vmem:[%s0 + $0xb0] sm:$0xf]
    %v73 = vld [vmem:[%s0 + $0xb4] sm:$0xf]
    %v74 = vld [vmem:[%s0 + $0xb8] sm:$0xf]
    %v75 = vld [vmem:[%s0 + $0xbc] sm:$0xf]
    %v76 = vld [vmem:[%s0 + $0xc0] sm:$0xf]
    %v77 = vld [vmem:[%s0 + $0xc4] sm:$0xf]
    %v78 = vld [vmem:[%s0 + $0xc8] sm:$0xf]
    %v79 = vld [vmem:[%s0 + $0xcc] sm:$0xf]
    %v80 = vld [vmem:[%s0 + $0xd0] sm:$0xf]
    %v81 = vld [vmem:[%s0 + $0xd4] sm:$0xf]
    %v82 = vld [vmem:[%s0 + $0xd8] sm:$0xf]
    %v83 = vld [vmem:[%s0 + $0xdc] sm:$0xf]
    %v84 = vld [vmem:[%s0 + $0xe0] sm:$0xf]
    %v85 = vld [vmem:[%s0 + $0xe4] sm:$0xf]
    %v86 = vld [vmem:[%s0 + $0xe8] sm:$0xf]
    %v87 = vld [vmem:[%s0 + $0xec] sm:$0xf]
    %v88 = vld [vmem:[%s0 + $0xf0] sm:$0xf]
    %v89 = vld [vmem:[%s0 + $0xf4] sm:$0xf]
    %v90 = vld [vmem:[%s0 + $0xf8] sm:$0xf]
    %v91 = vld [vmem:[%s0 + $0xfc] sm:$0xf]
    %v92 = vld [vmem:[%s1] sm:$0xf]
    %v93 = vld [vmem:[%s1 + $0x4] sm:$0xf]
    %v94 = vld [vmem:[%s1 + $0x8] sm:$0xf]
    %v95 = vld [vmem:[%s1 + $0xc] sm:$0xf]
    %v160 = vunpack.c.l.b16 %v28
    %v161 = vunpack.c.l.b16 %v29
    %v162 = vunpack.c.l.b16 %v30
    %v163 = vunpack.c.l.b16 %v31
    %v164 = vunpack.c.l.b16 %v32
    %v165 = vunpack.c.l.b16 %v33
    %v166 = vunpack.c.l.b16 %v34
    %v167 = vunpack.c.l.b16 %v35
    %v168 = vunpack.c.l.b16 %v36
    %v169 = vunpack.c.l.b16 %v37
    %v170 = vunpack.c.l.b16 %v38
    %v171 = vunpack.c.l.b16 %v39
    %v172 = vunpack.c.l.b16 %v40
    %v173 = vunpack.c.l.b16 %v41
    %v174 = vunpack.c.l.b16 %v42
    %v175 = vunpack.c.l.b16 %v43
    %v176 = vunpack.c.l.b16 %v44
    %v177 = vunpack.c.l.b16 %v45
    %v178 = vunpack.c.l.b16 %v46
    %v179 = vunpack.c.l.b16 %v47
    %v180 = vunpack.c.l.b16 %v48
    %v181 = vunpack.c.l.b16 %v49
    %v182 = vunpack.c.l.b16 %v50
    %v183 = vunpack.c.l.b16 %v51
    %v184 = vunpack.c.l.b16 %v52
    %v185 = vunpack.c.l.b16 %v53
    %v186 = vunpack.c.l.b16 %v54
    %v187 = vunpack.c.l.b16 %v55
    %v188 = vunpack.c.l.b16 %v56
    %v189 = vunpack.c.l.b16 %v57
    %v190 = vunpack.c.l.b16 %v58
    %v191 = vunpack.c.l.b16 %v59
    %v192 = vunpack.c.l.b16 %v60
    %v193 = vunpack.c.l.b16 %v61
    %v194 = vunpack.c.l.b16 %v62
    %v195 = vunpack.c.l.b16 %v63
    %v196 = vunpack.c.l.b16 %v64
    %v197 = vunpack.c.l.b16 %v65
    %v198 = vunpack.c.l.b16 %v66
    %v199 = vunpack.c.l.b16 %v67
    %v200 = vunpack.c.l.b16 %v68
    %v201 = vunpack.c.l.b16 %v69
    %v202 = vunpack.c.l.b16 %v70
    %v203 = vunpack.c.l.b16 %v71
    %v204 = vunpack.c.l.b16 %v72
    %v205 = vunpack.c.l.b16 %v73
    %v206 = vunpack.c.l.b16 %v74
    %v207 = vunpack.c.l.b16 %v75
    %v208 = vunpack.c.l.b16 %v76
    %v209 = vunpack.c.l.b16 %v77
    %v210 = vunpack.c.l.b16 %v78
    %v211 = vunpack.c.l.b16 %v79
    %v212 = vunpack.c.l.b16 %v80
    %v213 = vunpack.c.l.b16 %v81
    %v214 = vunpack.c.l.b16 %v82
    %v215 = vunpack.c.l.b16 %v83
    %v216 = vunpack.c.l.b16 %v84
    %v217 = vunpack.c.l.b16 %v85
    %v218 = vunpack.c.l.b16 %v86
    %v219 = vunpack.c.l.b16 %v87
    %v220 = vunpack.c.l.b16 %v88
    %v221 = vunpack.c.l.b16 %v89
    %v222 = vunpack.c.l.b16 %v90
    %v223 = vunpack.c.l.b16 %v91
    %v224 = vpack.c.b16 %v161, %v160
    %v225 = vpack.c.b16 %v163, %v162
    %v226 = vpack.c.b16 %v165, %v164
    %v227 = vpack.c.b16 %v167, %v166
    %v228 = vpack.c.b16 %v169, %v168
    %v229 = vpack.c.b16 %v171, %v170
    %v230 = vpack.c.b16 %v173, %v172
    %v231 = vpack.c.b16 %v175, %v174
    %v232 = vpack.c.b16 %v177, %v176
    %v233 = vpack.c.b16 %v179, %v178
    %v234 = vpack.c.b16 %v181, %v180
    %v235 = vpack.c.b16 %v183, %v182
    %v236 = vpack.c.b16 %v185, %v184
    %v237 = vpack.c.b16 %v187, %v186
    %v238 = vpack.c.b16 %v189, %v188
    %v239 = vpack.c.b16 %v191, %v190
    %v240 = vpack.c.b16 %v193, %v192
    %v241 = vpack.c.b16 %v195, %v194
    %v242 = vpack.c.b16 %v197, %v196
    %v243 = vpack.c.b16 %v199, %v198
    %v244 = vpack.c.b16 %v201, %v200
    %v245 = vpack.c.b16 %v203, %v202
    %v246 = vpack.c.b16 %v205, %v204
    %v247 = vpack.c.b16 %v207, %v206
    %v248 = vpack.c.b16 %v209, %v208
    %v249 = vpack.c.b16 %v211, %v210
    %v250 = vpack.c.b16 %v213, %v212
    %v251 = vpack.c.b16 %v215, %v214
    %v252 = vpack.c.b16 %v217, %v216
    %v253 = vpack.c.b16 %v219, %v218
    %v254 = vpack.c.b16 %v221, %v220
    %v255 = vpack.c.b16 %v223, %v222
    %v260 = vunpack.c.l.b16 %v92
    %v261 = vunpack.c.l.b16 %v93
    %v262 = vunpack.c.l.b16 %v94
    %v263 = vunpack.c.l.b16 %v95
    %v264 = vpack.c.b16 %v261, %v260
    %v265 = vpack.c.b16 %v263, %v262
    %vm268 = vcmask 261120
    %v270 = vsel %vm268, %v224, 0
    %v273 = vsel %vm268, %v225, 0
    %v276 = vsel %vm268, %v226, 0
    %v279 = vsel %vm268, %v227, 0
    %v282 = vsel %vm268, %v228, 0
    %v285 = vsel %vm268, %v229, 0
    %v288 = vsel %vm268, %v230, 0
    %v291 = vsel %vm268, %v231, 0
    %v294 = vsel %vm268, %v232, 0
    %v297 = vsel %vm268, %v233, 0
    %v300 = vsel %vm268, %v234, 0
    %v303 = vsel %vm268, %v235, 0
    %v306 = vsel %vm268, %v236, 0
    %v309 = vsel %vm268, %v237, 0
    %v312 = vsel %vm268, %v238, 0
    %v315 = vsel %vm268, %v239, 0
    %v318 = vsel %vm268, %v240, 0
    %v321 = vsel %vm268, %v241, 0
    %v324 = vsel %vm268, %v242, 0
    %v327 = vsel %vm268, %v243, 0
    %v330 = vsel %vm268, %v244, 0
    %v333 = vsel %vm268, %v245, 0
    %v336 = vsel %vm268, %v246, 0
    %v339 = vsel %vm268, %v247, 0
    %v342 = vsel %vm268, %v248, 0
    %v345 = vsel %vm268, %v249, 0
    %v348 = vsel %vm268, %v250, 0
    %v351 = vsel %vm268, %v251, 0
    %v354 = vsel %vm268, %v252, 0
    %v357 = vsel %vm268, %v253, 0
    %v360 = vsel %vm268, %v254, 0
    %v363 = vsel %vm268, %v255, 0
    %365 = vmatpush.bf16.msra.mxu0 0
    %366 = vmatpush.bf16.msra.mxu0 0
    %367 = vmatpush.bf16.msra.mxu0 0
    %368 = vmatpush.bf16.msra.mxu0 0
    %369 = vmatpush.bf16.msra.mxu0 0
    %370 = vmatpush.bf16.msra.mxu0 0
    %371 = vmatpush.bf16.msra.mxu0 %v265
    %372 = vmatpush.bf16.msra.mxu0 %v264
    %373 = vmatmul.bf16.gmra.mxu0 %v270
    %v374 = vpop.f32.mrf.mxu0
    %v375 = vadd.f32 0.0, %v374
    %v376 = vpop.f32.mrf.mxu0
    %v377 = vadd.f32 0.0, %v376
    %378 = vmatmul.bf16.gmra.mxu0 %v273
    %v379 = vpop.f32.mrf.mxu0
    %v380 = vadd.f32 0.0, %v379
    %v381 = vpop.f32.mrf.mxu0
    %v382 = vadd.f32 0.0, %v381
    %383 = vmatmul.bf16.gmra.mxu0 %v276
    %v384 = vpop.f32.mrf.mxu0
    %v385 = vadd.f32 0.0, %v384
    %v386 = vpop.f32.mrf.mxu0
    %v387 = vadd.f32 0.0, %v386
    %388 = vmatmul.bf16.gmra.mxu0 %v279
    %v389 = vpop.f32.mrf.mxu0
    %v390 = vadd.f32 0.0, %v389
    %v391 = vpop.f32.mrf.mxu0
    %v392 = vadd.f32 0.0, %v391
    %393 = vmatmul.bf16.gmra.mxu0 %v282
    %v394 = vpop.f32.mrf.mxu0
    %v395 = vadd.f32 0.0, %v394
    %v396 = vpop.f32.mrf.mxu0
    %v397 = vadd.f32 0.0, %v396
    %398 = vmatmul.bf16.gmra.mxu0 %v285
    %v399 = vpop.f32.mrf.mxu0
    %v400 = vadd.f32 0.0, %v399
    %v401 = vpop.f32.mrf.mxu0
    %v402 = vadd.f32 0.0, %v401
    %403 = vmatmul.bf16.gmra.mxu0 %v288
    %v404 = vpop.f32.mrf.mxu0
    %v405 = vadd.f32 0.0, %v404
    %v406 = vpop.f32.mrf.mxu0
    %v407 = vadd.f32 0.0, %v406
    %408 = vmatmul.bf16.gmra.mxu0 %v291
    %v409 = vpop.f32.mrf.mxu0
    %v410 = vadd.f32 0.0, %v409
    %v411 = vpop.f32.mrf.mxu0
    %v412 = vadd.f32 0.0, %v411
    %413 = vmatmul.bf16.gmra.mxu0 %v294
    %v414 = vpop.f32.mrf.mxu0
    %v415 = vadd.f32 0.0, %v414
    %v416 = vpop.f32.mrf.mxu0
    %v417 = vadd.f32 0.0, %v416
    %418 = vmatmul.bf16.gmra.mxu0 %v297
    %v419 = vpop.f32.mrf.mxu0
    %v420 = vadd.f32 0.0, %v419
    %v421 = vpop.f32.mrf.mxu0
    %v422 = vadd.f32 0.0, %v421
    %423 = vmatmul.bf16.gmra.mxu0 %v300
    %v424 = vpop.f32.mrf.mxu0
    %v425 = vadd.f32 0.0, %v424
    %v426 = vpop.f32.mrf.mxu0
    %v427 = vadd.f32 0.0, %v426
    %428 = vmatmul.bf16.gmra.mxu0 %v303
    %v429 = vpop.f32.mrf.mxu0
    %v430 = vadd.f32 0.0, %v429
    %v431 = vpop.f32.mrf.mxu0
    %v432 = vadd.f32 0.0, %v431
    %433 = vmatmul.bf16.gmra.mxu0 %v306
    %v434 = vpop.f32.mrf.mxu0
    %v435 = vadd.f32 0.0, %v434
    %v436 = vpop.f32.mrf.mxu0
    %v437 = vadd.f32 0.0, %v436
    %438 = vmatmul.bf16.gmra.mxu0 %v309
    %v439 = vpop.f32.mrf.mxu0
    %v440 = vadd.f32 0.0, %v439
    %v441 = vpop.f32.mrf.mxu0
    %v442 = vadd.f32 0.0, %v441
    %443 = vmatmul.bf16.gmra.mxu0 %v312
    %v444 = vpop.f32.mrf.mxu0
    %v445 = vadd.f32 0.0, %v444
    %v446 = vpop.f32.mrf.mxu0
    %v447 = vadd.f32 0.0, %v446
    %448 = vmatmul.bf16.gmra.mxu0 %v315
    %v449 = vpop.f32.mrf.mxu0
    %v450 = vadd.f32 0.0, %v449
    %v451 = vpop.f32.mrf.mxu0
    %v452 = vadd.f32 0.0, %v451
    %453 = vmatmul.bf16.gmra.mxu0 %v318
    %v454 = vpop.f32.mrf.mxu0
    %v455 = vadd.f32 0.0, %v454
    %v456 = vpop.f32.mrf.mxu0
    %v457 = vadd.f32 0.0, %v456
    %458 = vmatmul.bf16.gmra.mxu0 %v321
    %v459 = vpop.f32.mrf.mxu0
    %v460 = vadd.f32 0.0, %v459
    %v461 = vpop.f32.mrf.mxu0
    %v462 = vadd.f32 0.0, %v461
    %463 = vmatmul.bf16.gmra.mxu0 %v324
    %v464 = vpop.f32.mrf.mxu0
    %v465 = vadd.f32 0.0, %v464
    %v466 = vpop.f32.mrf.mxu0
    %v467 = vadd.f32 0.0, %v466
    %468 = vmatmul.bf16.gmra.mxu0 %v327
    %v469 = vpop.f32.mrf.mxu0
    %v470 = vadd.f32 0.0, %v469
    %v471 = vpop.f32.mrf.mxu0
    %v472 = vadd.f32 0.0, %v471
    %473 = vmatmul.bf16.gmra.mxu0 %v330
    %v474 = vpop.f32.mrf.mxu0
    %v475 = vadd.f32 0.0, %v474
    %v476 = vpop.f32.mrf.mxu0
    %v477 = vadd.f32 0.0, %v476
    %478 = vmatmul.bf16.gmra.mxu0 %v333
    %v479 = vpop.f32.mrf.mxu0
    %v480 = vadd.f32 0.0, %v479
    %v481 = vpop.f32.mrf.mxu0
    %v482 = vadd.f32 0.0, %v481
    %483 = vmatmul.bf16.gmra.mxu0 %v336
    %v484 = vpop.f32.mrf.mxu0
    %v485 = vadd.f32 0.0, %v484
    %v486 = vpop.f32.mrf.mxu0
    %v487 = vadd.f32 0.0, %v486
    %488 = vmatmul.bf16.gmra.mxu0 %v339
    %v489 = vpop.f32.mrf.mxu0
    %v490 = vadd.f32 0.0, %v489
    %v491 = vpop.f32.mrf.mxu0
    %v492 = vadd.f32 0.0, %v491
    %493 = vmatmul.bf16.gmra.mxu0 %v342
    %v494 = vpop.f32.mrf.mxu0
    %v495 = vadd.f32 0.0, %v494
    %v496 = vpop.f32.mrf.mxu0
    %v497 = vadd.f32 0.0, %v496
    %498 = vmatmul.bf16.gmra.mxu0 %v345
    %v499 = vpop.f32.mrf.mxu0
    %v500 = vadd.f32 0.0, %v499
    %v501 = vpop.f32.mrf.mxu0
    %v502 = vadd.f32 0.0, %v501
    %503 = vmatmul.bf16.gmra.mxu0 %v348
    %v504 = vpop.f32.mrf.mxu0
    %v505 = vadd.f32 0.0, %v504
    %v506 = vpop.f32.mrf.mxu0
    %v507 = vadd.f32 0.0, %v506
    %508 = vmatmul.bf16.gmra.mxu0 %v351
    %v509 = vpop.f32.mrf.mxu0
    %v510 = vadd.f32 0.0, %v509
    %v511 = vpop.f32.mrf.mxu0
    %v512 = vadd.f32 0.0, %v511
    %513 = vmatmul.bf16.gmra.mxu0 %v354
    %v514 = vpop.f32.mrf.mxu0
    %v515 = vadd.f32 0.0, %v514
    %v516 = vpop.f32.mrf.mxu0
    %v517 = vadd.f32 0.0, %v516
    %518 = vmatmul.bf16.gmra.mxu0 %v357
    %v519 = vpop.f32.mrf.mxu0
    %v520 = vadd.f32 0.0, %v519
    %v521 = vpop.f32.mrf.mxu0
    %v522 = vadd.f32 0.0, %v521
    %523 = vmatmul.bf16.gmra.mxu0 %v360
    %v524 = vpop.f32.mrf.mxu0
    %v525 = vadd.f32 0.0, %v524
    %v526 = vpop.f32.mrf.mxu0
    %v527 = vadd.f32 0.0, %v526
    %528 = vmatmul.bf16.gmra.mxu0 %v363
    %v529 = vpop.f32.mrf.mxu0
    %v530 = vadd.f32 0.0, %v529
    %v531 = vpop.f32.mrf.mxu0
    %v532 = vadd.f32 0.0, %v531
    %533 = vdwg.mxu0
    %vm534 = vcmask 523264
    %v535 = vsel %vm534, %v375, 0.0
    %v536 = vsel %vm534, %v377, 0.0
    %v537 = vadd.f32 %v535, %v536
    %v538 = vsel %vm534, %v380, 0.0
    %v539 = vadd.f32 %v537, %v538
    %v540 = vsel %vm534, %v382, 0.0
    %v541 = vadd.f32 %v539, %v540
    %v542 = vsel %vm534, %v385, 0.0
    %v543 = vadd.f32 %v541, %v542
    %v544 = vsel %vm534, %v387, 0.0
    %v545 = vadd.f32 %v543, %v544
    %v546 = vsel %vm534, %v390, 0.0
    %v547 = vadd.f32 %v545, %v546
    %v548 = vsel %vm534, %v392, 0.0
    %v549 = vadd.f32 %v547, %v548
    %v550 = vsel %vm534, %v395, 0.0
    %v551 = vadd.f32 %v549, %v550
    %v552 = vsel %vm534, %v397, 0.0
    %v553 = vadd.f32 %v551, %v552
    %v554 = vsel %vm534, %v400, 0.0
    %v555 = vadd.f32 %v553, %v554
    %v556 = vsel %vm534, %v402, 0.0
    %v557 = vadd.f32 %v555, %v556
    %v558 = vsel %vm534, %v405, 0.0
    %v559 = vadd.f32 %v557, %v558
    %v560 = vsel %vm534, %v407, 0.0
    %v561 = vadd.f32 %v559, %v560
    %v562 = vsel %vm534, %v410, 0.0
    %v563 = vadd.f32 %v561, %v562
    %v564 = vsel %vm534, %v412, 0.0
    %v565 = vadd.f32 %v563, %v564
    %v566 = vsel %vm534, %v415, 0.0
    %v567 = vadd.f32 %v565, %v566
    %v568 = vsel %vm534, %v417, 0.0
    %v569 = vadd.f32 %v567, %v568
    %v570 = vsel %vm534, %v420, 0.0
    %v571 = vadd.f32 %v569, %v570
    %v572 = vsel %vm534, %v422, 0.0
    %v573 = vadd.f32 %v571, %v572
    %v574 = vsel %vm534, %v425, 0.0
    %v575 = vadd.f32 %v573, %v574
    %v576 = vsel %vm534, %v427, 0.0
    %v577 = vadd.f32 %v575, %v576
    %v578 = vsel %vm534, %v430, 0.0
    %v579 = vadd.f32 %v577, %v578
    %v580 = vsel %vm534, %v432, 0.0
    %v581 = vadd.f32 %v579, %v580
    %v582 = vsel %vm534, %v435, 0.0
    %v583 = vadd.f32 %v581, %v582
    %v584 = vsel %vm534, %v437, 0.0
    %v585 = vadd.f32 %v583, %v584
    %v586 = vsel %vm534, %v440, 0.0
    %v587 = vadd.f32 %v585, %v586
    %v588 = vsel %vm534, %v442, 0.0
    %v589 = vadd.f32 %v587, %v588
    %v590 = vsel %vm534, %v445, 0.0
    %v591 = vadd.f32 %v589, %v590
    %v592 = vsel %vm534, %v447, 0.0
    %v593 = vadd.f32 %v591, %v592
    %v594 = vsel %vm534, %v450, 0.0
    %v595 = vadd.f32 %v593, %v594
    %v596 = vsel %vm534, %v452, 0.0
    %v597 = vadd.f32 %v595, %v596
    %v598 = vsel %vm534, %v455, 0.0
    %v599 = vadd.f32 %v597, %v598
    %v600 = vsel %vm534, %v457, 0.0
    %v601 = vadd.f32 %v599, %v600
    %v602 = vsel %vm534, %v460, 0.0
    %v603 = vadd.f32 %v601, %v602
    %v604 = vsel %vm534, %v462, 0.0
    %v605 = vadd.f32 %v603, %v604
    %v606 = vsel %vm534, %v465, 0.0
    %v607 = vadd.f32 %v605, %v606
    %v608 = vsel %vm534, %v467, 0.0
    %v609 = vadd.f32 %v607, %v608
    %v610 = vsel %vm534, %v470, 0.0
    %v611 = vadd.f32 %v609, %v610
    %v612 = vsel %vm534, %v472, 0.0
    %v613 = vadd.f32 %v611, %v612
    %v614 = vsel %vm534, %v475, 0.0
    %v615 = vadd.f32 %v613, %v614
    %v616 = vsel %vm534, %v477, 0.0
    %v617 = vadd.f32 %v615, %v616
    %v618 = vsel %vm534, %v480, 0.0
    %v619 = vadd.f32 %v617, %v618
    %v620 = vsel %vm534, %v482, 0.0
    %v621 = vadd.f32 %v619, %v620
    %v622 = vsel %vm534, %v485, 0.0
    %v623 = vadd.f32 %v621, %v622
    %v624 = vsel %vm534, %v487, 0.0
    %v625 = vadd.f32 %v623, %v624
    %v626 = vsel %vm534, %v490, 0.0
    %v627 = vadd.f32 %v625, %v626
    %v628 = vsel %vm534, %v492, 0.0
    %v629 = vadd.f32 %v627, %v628
    %v630 = vsel %vm534, %v495, 0.0
    %v631 = vadd.f32 %v629, %v630
    %v632 = vsel %vm534, %v497, 0.0
    %v633 = vadd.f32 %v631, %v632
    %v634 = vsel %vm534, %v500, 0.0
    %v635 = vadd.f32 %v633, %v634
    %v636 = vsel %vm534, %v502, 0.0
    %v637 = vadd.f32 %v635, %v636
    %v638 = vsel %vm534, %v505, 0.0
    %v639 = vadd.f32 %v637, %v638
    %v640 = vsel %vm534, %v507, 0.0
    %v641 = vadd.f32 %v639, %v640
    %v642 = vsel %vm534, %v510, 0.0
    %v643 = vadd.f32 %v641, %v642
    %v644 = vsel %vm534, %v512, 0.0
    %v645 = vadd.f32 %v643, %v644
    %v646 = vsel %vm534, %v515, 0.0
    %v647 = vadd.f32 %v645, %v646
    %v648 = vsel %vm534, %v517, 0.0
    %v649 = vadd.f32 %v647, %v648
    %v650 = vsel %vm534, %v520, 0.0
    %v651 = vadd.f32 %v649, %v650
    %v652 = vsel %vm534, %v522, 0.0
    %v653 = vadd.f32 %v651, %v652
    %v654 = vsel %vm534, %v525, 0.0
    %v655 = vadd.f32 %v653, %v654
    %v656 = vsel %vm534, %v527, 0.0
    %v657 = vadd.f32 %v655, %v656
    %v658 = vsel %vm534, %v530, 0.0
    %v659 = vadd.f32 %v657, %v658
    %v660 = vsel %vm534, %v532, 0.0
    %v661 = vadd.f32 %v659, %v660
    %v662 = vrot.slane %v661, 4
    %v663 = vadd.f32 %v661, %v662
    %v664 = vrot.slane %v663, 2
    %v665 = vadd.f32 %v663, %v664
    %v666 = vrot.slane %v665, 1
    %v667 = vadd.f32 %v665, %v666
    %v668 = vmul.f32 %v667, 0.001953125
    %v669 = vsub.f32 %v375, %v668
    %v670 = vsub.f32 %v377, %v668
    %v671 = vsub.f32 %v380, %v668
    %v672 = vsub.f32 %v382, %v668
    %v673 = vsub.f32 %v385, %v668
    %v674 = vsub.f32 %v387, %v668
    %v675 = vsub.f32 %v390, %v668
    %v676 = vsub.f32 %v392, %v668
    %v677 = vsub.f32 %v395, %v668
    %v678 = vsub.f32 %v397, %v668
    %v679 = vsub.f32 %v400, %v668
    %v680 = vsub.f32 %v402, %v668
    %v681 = vsub.f32 %v405, %v668
    %v682 = vsub.f32 %v407, %v668
    %v683 = vsub.f32 %v410, %v668
    %v684 = vsub.f32 %v412, %v668
    %v685 = vsub.f32 %v415, %v668
    %v686 = vsub.f32 %v417, %v668
    %v687 = vsub.f32 %v420, %v668
    %v688 = vsub.f32 %v422, %v668
    %v689 = vsub.f32 %v425, %v668
    %v690 = vsub.f32 %v427, %v668
    %v691 = vsub.f32 %v430, %v668
    %v692 = vsub.f32 %v432, %v668
    %v693 = vsub.f32 %v435, %v668
    %v694 = vsub.f32 %v437, %v668
    %v695 = vsub.f32 %v440, %v668
    %v696 = vsub.f32 %v442, %v668
    %v697 = vsub.f32 %v445, %v668
    %v698 = vsub.f32 %v447, %v668
    %v699 = vsub.f32 %v450, %v668
    %v700 = vsub.f32 %v452, %v668
    %v701 = vsub.f32 %v455, %v668
    %v702 = vsub.f32 %v457, %v668
    %v703 = vsub.f32 %v460, %v668
    %v704 = vsub.f32 %v462, %v668
    %v705 = vsub.f32 %v465, %v668
    %v706 = vsub.f32 %v467, %v668
    %v707 = vsub.f32 %v470, %v668
    %v708 = vsub.f32 %v472, %v668
    %v709 = vsub.f32 %v475, %v668
    %v710 = vsub.f32 %v477, %v668
    %v711 = vsub.f32 %v480, %v668
    %v712 = vsub.f32 %v482, %v668
    %v713 = vsub.f32 %v485, %v668
    %v714 = vsub.f32 %v487, %v668
    %v715 = vsub.f32 %v490, %v668
    %v716 = vsub.f32 %v492, %v668
    %v717 = vsub.f32 %v495, %v668
    %v718 = vsub.f32 %v497, %v668
    %v719 = vsub.f32 %v500, %v668
    %v720 = vsub.f32 %v502, %v668
    %v721 = vsub.f32 %v505, %v668
    %v722 = vsub.f32 %v507, %v668
    %v723 = vsub.f32 %v510, %v668
    %v724 = vsub.f32 %v512, %v668
    %v725 = vsub.f32 %v515, %v668
    %v726 = vsub.f32 %v517, %v668
    %v727 = vsub.f32 %v520, %v668
    %v728 = vsub.f32 %v522, %v668
    %v729 = vsub.f32 %v525, %v668
    %v730 = vsub.f32 %v527, %v668
    %v731 = vsub.f32 %v530, %v668
    %v732 = vsub.f32 %v532, %v668
    %v733 = vmul.f32 %v669, %v669
    %v734 = vmul.f32 %v670, %v670
    %v735 = vmul.f32 %v671, %v671
    %v736 = vmul.f32 %v672, %v672
    %v737 = vmul.f32 %v673, %v673
    %v738 = vmul.f32 %v674, %v674
    %v739 = vmul.f32 %v675, %v675
    %v740 = vmul.f32 %v676, %v676
    %v741 = vmul.f32 %v677, %v677
    %v742 = vmul.f32 %v678, %v678
    %v743 = vmul.f32 %v679, %v679
    %v744 = vmul.f32 %v680, %v680
    %v745 = vmul.f32 %v681, %v681
    %v746 = vmul.f32 %v682, %v682
    %v747 = vmul.f32 %v683, %v683
    %v748 = vmul.f32 %v684, %v684
    %v749 = vmul.f32 %v685, %v685
    %v750 = vmul.f32 %v686, %v686
    %v751 = vmul.f32 %v687, %v687
    %v752 = vmul.f32 %v688, %v688
    %v753 = vmul.f32 %v689, %v689
    %v754 = vmul.f32 %v690, %v690
    %v755 = vmul.f32 %v691, %v691
    %v756 = vmul.f32 %v692, %v692
    %v757 = vmul.f32 %v693, %v693
    %v758 = vmul.f32 %v694, %v694
    %v759 = vmul.f32 %v695, %v695
    %v760 = vmul.f32 %v696, %v696
    %v761 = vmul.f32 %v697, %v697
    %v762 = vmul.f32 %v698, %v698
    %v763 = vmul.f32 %v699, %v699
    %v764 = vmul.f32 %v700, %v700
    %v765 = vmul.f32 %v701, %v701
    %v766 = vmul.f32 %v702, %v702
    %v767 = vmul.f32 %v703, %v703
    %v768 = vmul.f32 %v704, %v704
    %v769 = vmul.f32 %v705, %v705
    %v770 = vmul.f32 %v706, %v706
    %v771 = vmul.f32 %v707, %v707
    %v772 = vmul.f32 %v708, %v708
    %v773 = vmul.f32 %v709, %v709
    %v774 = vmul.f32 %v710, %v710
    %v775 = vmul.f32 %v711, %v711
    %v776 = vmul.f32 %v712, %v712
    %v777 = vmul.f32 %v713, %v713
    %v778 = vmul.f32 %v714, %v714
    %v779 = vmul.f32 %v715, %v715
    %v780 = vmul.f32 %v716, %v716
    %v781 = vmul.f32 %v717, %v717
    %v782 = vmul.f32 %v718, %v718
    %v783 = vmul.f32 %v719, %v719
    %v784 = vmul.f32 %v720, %v720
    %v785 = vmul.f32 %v721, %v721
    %v786 = vmul.f32 %v722, %v722
    %v787 = vmul.f32 %v723, %v723
    %v788 = vmul.f32 %v724, %v724
    %v789 = vmul.f32 %v725, %v725
    %v790 = vmul.f32 %v726, %v726
    %v791 = vmul.f32 %v727, %v727
    %v792 = vmul.f32 %v728, %v728
    %v793 = vmul.f32 %v729, %v729
    %v794 = vmul.f32 %v730, %v730
    %v795 = vmul.f32 %v731, %v731
    %v796 = vmul.f32 %v732, %v732
    %v797 = vsel %vm534, %v733, 0.0
    %v798 = vsel %vm534, %v734, 0.0
    %v799 = vadd.f32 %v797, %v798
    %v800 = vsel %vm534, %v735, 0.0
    %v801 = vadd.f32 %v799, %v800
    %v802 = vsel %vm534, %v736, 0.0
    %v803 = vadd.f32 %v801, %v802
    %v804 = vsel %vm534, %v737, 0.0
    %v805 = vadd.f32 %v803, %v804
    %v806 = vsel %vm534, %v738, 0.0
    %v807 = vadd.f32 %v805, %v806
    %v808 = vsel %vm534, %v739, 0.0
    %v809 = vadd.f32 %v807, %v808
    %v810 = vsel %vm534, %v740, 0.0
    %v811 = vadd.f32 %v809, %v810
    %v812 = vsel %vm534, %v741, 0.0
    %v813 = vadd.f32 %v811, %v812
    %v814 = vsel %vm534, %v742, 0.0
    %v815 = vadd.f32 %v813, %v814
    %v816 = vsel %vm534, %v743, 0.0
    %v817 = vadd.f32 %v815, %v816
    %v818 = vsel %vm534, %v744, 0.0
    %v819 = vadd.f32 %v817, %v818
    %v820 = vsel %vm534, %v745, 0.0
    %v821 = vadd.f32 %v819, %v820
    %v822 = vsel %vm534, %v746, 0.0
    %v823 = vadd.f32 %v821, %v822
    %v824 = vsel %vm534, %v747, 0.0
    %v825 = vadd.f32 %v823, %v824
    %v826 = vsel %vm534, %v748, 0.0
    %v827 = vadd.f32 %v825, %v826
    %v828 = vsel %vm534, %v749, 0.0
    %v829 = vadd.f32 %v827, %v828
    %v830 = vsel %vm534, %v750, 0.0
    %v831 = vadd.f32 %v829, %v830
    %v832 = vsel %vm534, %v751, 0.0
    %v833 = vadd.f32 %v831, %v832
    %v834 = vsel %vm534, %v752, 0.0
    %v835 = vadd.f32 %v833, %v834
    %v836 = vsel %vm534, %v753, 0.0
    %v837 = vadd.f32 %v835, %v836
    %v838 = vsel %vm534, %v754, 0.0
    %v839 = vadd.f32 %v837, %v838
    %v840 = vsel %vm534, %v755, 0.0
    %v841 = vadd.f32 %v839, %v840
    %v842 = vsel %vm534, %v756, 0.0
    %v843 = vadd.f32 %v841, %v842
    %v844 = vsel %vm534, %v757, 0.0
    %v845 = vadd.f32 %v843, %v844
    %v846 = vsel %vm534, %v758, 0.0
    %v847 = vadd.f32 %v845, %v846
    %v848 = vsel %vm534, %v759, 0.0
    %v849 = vadd.f32 %v847, %v848
    %v850 = vsel %vm534, %v760, 0.0
    %v851 = vadd.f32 %v849, %v850
    %v852 = vsel %vm534, %v761, 0.0
    %v853 = vadd.f32 %v851, %v852
    %v854 = vsel %vm534, %v762, 0.0
    %v855 = vadd.f32 %v853, %v854
    %v856 = vsel %vm534, %v763, 0.0
    %v857 = vadd.f32 %v855, %v856
    %v858 = vsel %vm534, %v764, 0.0
    %v859 = vadd.f32 %v857, %v858
    %v860 = vsel %vm534, %v765, 0.0
    %v861 = vadd.f32 %v859, %v860
    %v862 = vsel %vm534, %v766, 0.0
    %v863 = vadd.f32 %v861, %v862
    %v864 = vsel %vm534, %v767, 0.0
    %v865 = vadd.f32 %v863, %v864
    %v866 = vsel %vm534, %v768, 0.0
    %v867 = vadd.f32 %v865, %v866
    %v868 = vsel %vm534, %v769, 0.0
    %v869 = vadd.f32 %v867, %v868
    %v870 = vsel %vm534, %v770, 0.0
    %v871 = vadd.f32 %v869, %v870
    %v872 = vsel %vm534, %v771, 0.0
    %v873 = vadd.f32 %v871, %v872
    %v874 = vsel %vm534, %v772, 0.0
    %v875 = vadd.f32 %v873, %v874
    %v876 = vsel %vm534, %v773, 0.0
    %v877 = vadd.f32 %v875, %v876
    %v878 = vsel %vm534, %v774, 0.0
    %v879 = vadd.f32 %v877, %v878
    %v880 = vsel %vm534, %v775, 0.0
    %v881 = vadd.f32 %v879, %v880
    %v882 = vsel %vm534, %v776, 0.0
    %v883 = vadd.f32 %v881, %v882
    %v884 = vsel %vm534, %v777, 0.0
    %v885 = vadd.f32 %v883, %v884
    %v886 = vsel %vm534, %v778, 0.0
    %v887 = vadd.f32 %v885, %v886
    %v888 = vsel %vm534, %v779, 0.0
    %v889 = vadd.f32 %v887, %v888
    %v890 = vsel %vm534, %v780, 0.0
    %v891 = vadd.f32 %v889, %v890
    %v892 = vsel %vm534, %v781, 0.0
    %v893 = vadd.f32 %v891, %v892
    %v894 = vsel %vm534, %v782, 0.0
    %v895 = vadd.f32 %v893, %v894
    %v896 = vsel %vm534, %v783, 0.0
    %v897 = vadd.f32 %v895, %v896
    %v898 = vsel %vm534, %v784, 0.0
    %v899 = vadd.f32 %v897, %v898
    %v900 = vsel %vm534, %v785, 0.0
    %v901 = vadd.f32 %v899, %v900
    %v902 = vsel %vm534, %v786, 0.0
    %v903 = vadd.f32 %v901, %v902
    %v904 = vsel %vm534, %v787, 0.0
    %v905 = vadd.f32 %v903, %v904
    %v906 = vsel %vm534, %v788, 0.0
    %v907 = vadd.f32 %v905, %v906
    %v908 = vsel %vm534, %v789, 0.0
    %v909 = vadd.f32 %v907, %v908
    %v910 = vsel %vm534, %v790, 0.0
    %v911 = vadd.f32 %v909, %v910
    %v912 = vsel %vm534, %v791, 0.0
    %v913 = vadd.f32 %v911, %v912
    %v914 = vsel %vm534, %v792, 0.0
    %v915 = vadd.f32 %v913, %v914
    %v916 = vsel %vm534, %v793, 0.0
    %v917 = vadd.f32 %v915, %v916
    %v918 = vsel %vm534, %v794, 0.0
    %v919 = vadd.f32 %v917, %v918
    %v920 = vsel %vm534, %v795, 0.0
    %v921 = vadd.f32 %v919, %v920
    %v922 = vsel %vm534, %v796, 0.0
    %v923 = vadd.f32 %v921, %v922
    %v924 = vrot.slane %v923, 4
    %v925 = vadd.f32 %v923, %v924
    %v926 = vrot.slane %v925, 2
    %v927 = vadd.f32 %v925, %v926
    %v928 = vrot.slane %v927, 1
    %v929 = vadd.f32 %v927, %v928
    %v930 = vmul.f32 %v929, 0.001953125
    %v931 = vld [vmem:[%s5] sm:$0x1]
    %v932 = vadd.f32 %v930, 1e-05
    %v933 = vrsqrt.pop %v932
    %v934 = vmul.f32 %v933, %v932
    %v935 = vmul.f32 %v934, %v933
    %v936 = vmul.f32 0.5, %v935
    %v937 = vsub.f32 1.5, %v936
    %v938 = vmul.f32 %v933, %v937
    %vm939 = vweird.f32 %v932
    %vm940 = vweird.f32 %v933
    %vm941 = vmor %vm939, %vm940
    %v942 = vsel %vm941, %v933, %v938
    %v943 = vmul.f32 %v931, %v942
    %v944 = vperm.slane %v943, 0
    %v945 = vmul.f32 %v669, %v944
    %v946 = vmul.f32 %v670, %v944
    %v947 = vmul.f32 %v671, %v944
    %v948 = vmul.f32 %v672, %v944
    %v949 = vmul.f32 %v673, %v944
    %v950 = vmul.f32 %v674, %v944
    %v951 = vmul.f32 %v675, %v944
    %v952 = vmul.f32 %v676, %v944
    %v953 = vmul.f32 %v677, %v944
    %v954 = vmul.f32 %v678, %v944
    %v955 = vmul.f32 %v679, %v944
    %v956 = vmul.f32 %v680, %v944
    %v957 = vmul.f32 %v681, %v944
    %v958 = vmul.f32 %v682, %v944
    %v959 = vmul.f32 %v683, %v944
    %v960 = vmul.f32 %v684, %v944
    %v961 = vmul.f32 %v685, %v944
    %v962 = vmul.f32 %v686, %v944
    %v963 = vmul.f32 %v687, %v944
    %v964 = vmul.f32 %v688, %v944
    %v965 = vmul.f32 %v689, %v944
    %v966 = vmul.f32 %v690, %v944
    %v967 = vmul.f32 %v691, %v944
    %v968 = vmul.f32 %v692, %v944
    %v969 = vmul.f32 %v693, %v944
    %v970 = vmul.f32 %v694, %v944
    %v971 = vmul.f32 %v695, %v944
    %v972 = vmul.f32 %v696, %v944
    %v973 = vmul.f32 %v697, %v944
    %v974 = vmul.f32 %v698, %v944
    %v975 = vmul.f32 %v699, %v944
    %v976 = vmul.f32 %v700, %v944
    %v977 = vmul.f32 %v701, %v944
    %v978 = vmul.f32 %v702, %v944
    %v979 = vmul.f32 %v703, %v944
    %v980 = vmul.f32 %v704, %v944
    %v981 = vmul.f32 %v705, %v944
    %v982 = vmul.f32 %v706, %v944
    %v983 = vmul.f32 %v707, %v944
    %v984 = vmul.f32 %v708, %v944
    %v985 = vmul.f32 %v709, %v944
    %v986 = vmul.f32 %v710, %v944
    %v987 = vmul.f32 %v711, %v944
    %v988 = vmul.f32 %v712, %v944
    %v989 = vmul.f32 %v713, %v944
    %v990 = vmul.f32 %v714, %v944
    %v991 = vmul.f32 %v715, %v944
    %v992 = vmul.f32 %v716, %v944
    %v993 = vmul.f32 %v717, %v944
    %v994 = vmul.f32 %v718, %v944
    %v995 = vmul.f32 %v719, %v944
    %v996 = vmul.f32 %v720, %v944
    %v997 = vmul.f32 %v721, %v944
    %v998 = vmul.f32 %v722, %v944
    %v999 = vmul.f32 %v723, %v944
    %v1000 = vmul.f32 %v724, %v944
    %v1001 = vmul.f32 %v725, %v944
    %v1002 = vmul.f32 %v726, %v944
    %v1003 = vmul.f32 %v727, %v944
    %v1004 = vmul.f32 %v728, %v944
    %v1005 = vmul.f32 %v729, %v944
    %v1006 = vmul.f32 %v730, %v944
    %v1007 = vmul.f32 %v731, %v944
    %v1008 = vmul.f32 %v732, %v944
    %v1009 = vld [vmem:[%s6] sm:$0x1]
    %v1010 = vperm.slane %v1009, 0
    %v1011 = vadd.f32 %v945, %v1010
    %v1012 = vadd.f32 %v946, %v1010
    %v1013 = vadd.f32 %v947, %v1010
    %v1014 = vadd.f32 %v948, %v1010
    %v1015 = vadd.f32 %v949, %v1010
    %v1016 = vadd.f32 %v950, %v1010
    %v1017 = vadd.f32 %v951, %v1010
    %v1018 = vadd.f32 %v952, %v1010
    %v1019 = vadd.f32 %v953, %v1010
    %v1020 = vadd.f32 %v954, %v1010
    %v1021 = vadd.f32 %v955, %v1010
    %v1022 = vadd.f32 %v956, %v1010
    %v1023 = vadd.f32 %v957, %v1010
    %v1024 = vadd.f32 %v958, %v1010
    %v1025 = vadd.f32 %v959, %v1010
    %v1026 = vadd.f32 %v960, %v1010
    %v1027 = vadd.f32 %v961, %v1010
    %v1028 = vadd.f32 %v962, %v1010
    %v1029 = vadd.f32 %v963, %v1010
    %v1030 = vadd.f32 %v964, %v1010
    %v1031 = vadd.f32 %v965, %v1010
    %v1032 = vadd.f32 %v966, %v1010
    %v1033 = vadd.f32 %v967, %v1010
    %v1034 = vadd.f32 %v968, %v1010
    %v1035 = vadd.f32 %v969, %v1010
    %v1036 = vadd.f32 %v970, %v1010
    %v1037 = vadd.f32 %v971, %v1010
    %v1038 = vadd.f32 %v972, %v1010
    %v1039 = vadd.f32 %v973, %v1010
    %v1040 = vadd.f32 %v974, %v1010
    %v1041 = vadd.f32 %v975, %v1010
    %v1042 = vadd.f32 %v976, %v1010
    %v1043 = vadd.f32 %v977, %v1010
    %v1044 = vadd.f32 %v978, %v1010
    %v1045 = vadd.f32 %v979, %v1010
    %v1046 = vadd.f32 %v980, %v1010
    %v1047 = vadd.f32 %v981, %v1010
    %v1048 = vadd.f32 %v982, %v1010
    %v1049 = vadd.f32 %v983, %v1010
    %v1050 = vadd.f32 %v984, %v1010
    %v1051 = vadd.f32 %v985, %v1010
    %v1052 = vadd.f32 %v986, %v1010
    %v1053 = vadd.f32 %v987, %v1010
    %v1054 = vadd.f32 %v988, %v1010
    %v1055 = vadd.f32 %v989, %v1010
    %v1056 = vadd.f32 %v990, %v1010
    %v1057 = vadd.f32 %v991, %v1010
    %v1058 = vadd.f32 %v992, %v1010
    %v1059 = vadd.f32 %v993, %v1010
    %v1060 = vadd.f32 %v994, %v1010
    %v1061 = vadd.f32 %v995, %v1010
    %v1062 = vadd.f32 %v996, %v1010
    %v1063 = vadd.f32 %v997, %v1010
    %v1064 = vadd.f32 %v998, %v1010
    %v1065 = vadd.f32 %v999, %v1010
    %v1066 = vadd.f32 %v1000, %v1010
    %v1067 = vadd.f32 %v1001, %v1010
    %v1068 = vadd.f32 %v1002, %v1010
    %v1069 = vadd.f32 %v1003, %v1010
    %v1070 = vadd.f32 %v1004, %v1010
    %v1071 = vadd.f32 %v1005, %v1010
    %v1072 = vadd.f32 %v1006, %v1010
    %v1073 = vadd.f32 %v1007, %v1010
    %v1074 = vadd.f32 %v1008, %v1010
    %v1075 = vmax.f32 %v1011, %v1013
    %v1076 = vmax.f32 %v1012, %v1014
    %v1077 = vmax.f32 %v1015, %v1017
    %v1078 = vmax.f32 %v1016, %v1018
    %v1079 = vmax.f32 %v1019, %v1021
    %v1080 = vmax.f32 %v1020, %v1022
    %v1081 = vmax.f32 %v1023, %v1025
    %v1082 = vmax.f32 %v1024, %v1026
    %v1083 = vmax.f32 %v1027, %v1029
    %v1084 = vmax.f32 %v1028, %v1030
    %v1085 = vmax.f32 %v1031, %v1033
    %v1086 = vmax.f32 %v1032, %v1034
    %v1087 = vmax.f32 %v1035, %v1037
    %v1088 = vmax.f32 %v1036, %v1038
    %v1089 = vmax.f32 %v1039, %v1041
    %v1090 = vmax.f32 %v1040, %v1042
    %v1091 = vmax.f32 %v1043, %v1045
    %v1092 = vmax.f32 %v1044, %v1046
    %v1093 = vmax.f32 %v1047, %v1049
    %v1094 = vmax.f32 %v1048, %v1050
    %v1095 = vmax.f32 %v1051, %v1053
    %v1096 = vmax.f32 %v1052, %v1054
    %v1097 = vmax.f32 %v1055, %v1057
    %v1098 = vmax.f32 %v1056, %v1058
    %v1099 = vmax.f32 %v1059, %v1061
    %v1100 = vmax.f32 %v1060, %v1062
    %v1101 = vmax.f32 %v1063, %v1065
    %v1102 = vmax.f32 %v1064, %v1066
    %v1103 = vmax.f32 %v1067, %v1069
    %v1104 = vmax.f32 %v1068, %v1070
    %v1105 = vmax.f32 %v1071, %v1073
    %v1106 = vmax.f32 %v1072, %v1074
    %v1139 = vrot.slane %v1075, 2
    %v1140 = vrot.slane %v1075, 4
    %v1141 = vrot.slane %v1075, 6
    %v1142 = vrot.slane %v1076, 2
    %v1143 = vrot.slane %v1076, 4
    %v1144 = vrot.slane %v1076, 6
    %v1145 = vrot.slane %v1077, 2
    %v1146 = vrot.slane %v1077, 4
    %v1147 = vrot.slane %v1077, 6
    %v1148 = vrot.slane %v1078, 2
    %v1149 = vrot.slane %v1078, 4
    %v1150 = vrot.slane %v1078, 6
    %v1151 = vrot.slane %v1079, 2
    %v1152 = vrot.slane %v1079, 4
    %v1153 = vrot.slane %v1079, 6
    %v1154 = vrot.slane %v1080, 2
    %v1155 = vrot.slane %v1080, 4
    %v1156 = vrot.slane %v1080, 6
    %v1157 = vrot.slane %v1081, 2
    %v1158 = vrot.slane %v1081, 4
    %v1159 = vrot.slane %v1081, 6
    %v1160 = vrot.slane %v1082, 2
    %v1161 = vrot.slane %v1082, 4
    %v1162 = vrot.slane %v1082, 6
    %v1163 = vrot.slane %v1083, 2
    %v1164 = vrot.slane %v1083, 4
    %v1165 = vrot.slane %v1083, 6
    %v1166 = vrot.slane %v1084, 2
    %v1167 = vrot.slane %v1084, 4
    %v1168 = vrot.slane %v1084, 6
    %v1169 = vrot.slane %v1085, 2
    %v1170 = vrot.slane %v1085, 4
    %v1171 = vrot.slane %v1085, 6
    %v1172 = vrot.slane %v1086, 2
    %v1173 = vrot.slane %v1086, 4
    %v1174 = vrot.slane %v1086, 6
    %v1175 = vrot.slane %v1087, 2
    %v1176 = vrot.slane %v1087, 4
    %v1177 = vrot.slane %v1087, 6
    %v1178 = vrot.slane %v1088, 2
    %v1179 = vrot.slane %v1088, 4
    %v1180 = vrot.slane %v1088, 6
    %v1181 = vrot.slane %v1089, 2
    %v1182 = vrot.slane %v1089, 4
    %v1183 = vrot.slane %v1089, 6
    %v1184 = vrot.slane %v1090, 2
    %v1185 = vrot.slane %v1090, 4
    %v1186 = vrot.slane %v1090, 6
    %v1187 = vrot.slane %v1091, 2
    %v1188 = vrot.slane %v1091, 4
    %v1189 = vrot.slane %v1091, 6
    %v1190 = vrot.slane %v1092, 2
    %v1191 = vrot.slane %v1092, 4
    %v1192 = vrot.slane %v1092, 6
    %v1193 = vrot.slane %v1093, 2
    %v1194 = vrot.slane %v1093, 4
    %v1195 = vrot.slane %v1093, 6
    %v1196 = vrot.slane %v1094, 2
    %v1197 = vrot.slane %v1094, 4
    %v1198 = vrot.slane %v1094, 6
    %v1199 = vrot.slane %v1095, 2
    %v1200 = vrot.slane %v1095, 4
    %v1201 = vrot.slane %v1095, 6
    %v1202 = vrot.slane %v1096, 2
    %v1203 = vrot.slane %v1096, 4
    %v1204 = vrot.slane %v1096, 6
    %v1205 = vrot.slane %v1097, 2
    %v1206 = vrot.slane %v1097, 4
    %v1207 = vrot.slane %v1097, 6
    %v1208 = vrot.slane %v1098, 2
    %v1209 = vrot.slane %v1098, 4
    %v1210 = vrot.slane %v1098, 6
    %v1211 = vrot.slane %v1099, 2
    %v1212 = vrot.slane %v1099, 4
    %v1213 = vrot.slane %v1099, 6
    %v1214 = vrot.slane %v1100, 2
    %v1215 = vrot.slane %v1100, 4
    %v1216 = vrot.slane %v1100, 6
    %v1217 = vrot.slane %v1101, 2
    %v1218 = vrot.slane %v1101, 4
    %v1219 = vrot.slane %v1101, 6
    %v1220 = vrot.slane %v1102, 2
    %v1221 = vrot.slane %v1102, 4
    %v1222 = vrot.slane %v1102, 6
    %v1223 = vrot.slane %v1103, 2
    %v1224 = vrot.slane %v1103, 4
    %v1225 = vrot.slane %v1103, 6
    %v1226 = vrot.slane %v1104, 2
    %v1227 = vrot.slane %v1104, 4
    %v1228 = vrot.slane %v1104, 6
    %v1229 = vrot.slane %v1105, 2
    %v1230 = vrot.slane %v1105, 4
    %v1231 = vrot.slane %v1105, 6
    %v1232 = vrot.slane %v1106, 2
    %v1233 = vrot.slane %v1106, 4
    %v1234 = vrot.slane %v1106, 6
    %v1331 = vrot.slane %v1075, 7
    %v1332 = vrot.slane %v1331, 2
    %v1333 = vrot.slane %v1139, 7
    %v1334 = vrot.slane %v1333, 2
    %v1335 = vrot.slane %v1140, 7
    %v1336 = vrot.slane %v1335, 2
    %v1337 = vrot.slane %v1141, 7
    %v1338 = vrot.slane %v1337, 2
    %v1339 = vrot.slane %v1076, 7
    %v1340 = vrot.slane %v1339, 2
    %v1341 = vrot.slane %v1142, 7
    %v1342 = vrot.slane %v1341, 2
    %v1343 = vrot.slane %v1143, 7
    %v1344 = vrot.slane %v1343, 2
    %v1345 = vrot.slane %v1144, 7
    %v1346 = vrot.slane %v1345, 2
    %v1347 = vrot.slane %v1077, 7
    %v1348 = vrot.slane %v1347, 2
    %v1349 = vrot.slane %v1145, 7
    %v1350 = vrot.slane %v1349, 2
    %v1351 = vrot.slane %v1146, 7
    %v1352 = vrot.slane %v1351, 2
    %v1353 = vrot.slane %v1147, 7
    %v1354 = vrot.slane %v1353, 2
    %v1355 = vrot.slane %v1078, 7
    %v1356 = vrot.slane %v1355, 2
    %v1357 = vrot.slane %v1148, 7
    %v1358 = vrot.slane %v1357, 2
    %v1359 = vrot.slane %v1149, 7
    %v1360 = vrot.slane %v1359, 2
    %v1361 = vrot.slane %v1150, 7
    %v1362 = vrot.slane %v1361, 2
    %v1363 = vrot.slane %v1079, 7
    %v1364 = vrot.slane %v1363, 2
    %v1365 = vrot.slane %v1151, 7
    %v1366 = vrot.slane %v1365, 2
    %v1367 = vrot.slane %v1152, 7
    %v1368 = vrot.slane %v1367, 2
    %v1369 = vrot.slane %v1153, 7
    %v1370 = vrot.slane %v1369, 2
    %v1371 = vrot.slane %v1080, 7
    %v1372 = vrot.slane %v1371, 2
    %v1373 = vrot.slane %v1154, 7
    %v1374 = vrot.slane %v1373, 2
    %v1375 = vrot.slane %v1155, 7
    %v1376 = vrot.slane %v1375, 2
    %v1377 = vrot.slane %v1156, 7
    %v1378 = vrot.slane %v1377, 2
    %v1379 = vrot.slane %v1081, 7
    %v1380 = vrot.slane %v1379, 2
    %v1381 = vrot.slane %v1157, 7
    %v1382 = vrot.slane %v1381, 2
    %v1383 = vrot.slane %v1158, 7
    %v1384 = vrot.slane %v1383, 2
    %v1385 = vrot.slane %v1159, 7
    %v1386 = vrot.slane %v1385, 2
    %v1387 = vrot.slane %v1082, 7
    %v1388 = vrot.slane %v1387, 2
    %v1389 = vrot.slane %v1160, 7
    %v1390 = vrot.slane %v1389, 2
    %v1391 = vrot.slane %v1161, 7
    %v1392 = vrot.slane %v1391, 2
    %v1393 = vrot.slane %v1162, 7
    %v1394 = vrot.slane %v1393, 2
    %v1395 = vrot.slane %v1083, 7
    %v1396 = vrot.slane %v1395, 2
    %v1397 = vrot.slane %v1163, 7
    %v1398 = vrot.slane %v1397, 2
    %v1399 = vrot.slane %v1164, 7
    %v1400 = vrot.slane %v1399, 2
    %v1401 = vrot.slane %v1165, 7
    %v1402 = vrot.slane %v1401, 2
    %v1403 = vrot.slane %v1084, 7
    %v1404 = vrot.slane %v1403, 2
    %v1405 = vrot.slane %v1166, 7
    %v1406 = vrot.slane %v1405, 2
    %v1407 = vrot.slane %v1167, 7
    %v1408 = vrot.slane %v1407, 2
    %v1409 = vrot.slane %v1168, 7
    %v1410 = vrot.slane %v1409, 2
    %v1411 = vrot.slane %v1085, 7
    %v1412 = vrot.slane %v1411, 2
    %v1413 = vrot.slane %v1169, 7
    %v1414 = vrot.slane %v1413, 2
    %v1415 = vrot.slane %v1170, 7
    %v1416 = vrot.slane %v1415, 2
    %v1417 = vrot.slane %v1171, 7
    %v1418 = vrot.slane %v1417, 2
    %v1419 = vrot.slane %v1086, 7
    %v1420 = vrot.slane %v1419, 2
    %v1421 = vrot.slane %v1172, 7
    %v1422 = vrot.slane %v1421, 2
    %v1423 = vrot.slane %v1173, 7
    %v1424 = vrot.slane %v1423, 2
    %v1425 = vrot.slane %v1174, 7
    %v1426 = vrot.slane %v1425, 2
    %v1427 = vrot.slane %v1087, 7
    %v1428 = vrot.slane %v1427, 2
    %v1429 = vrot.slane %v1175, 7
    %v1430 = vrot.slane %v1429, 2
    %v1431 = vrot.slane %v1176, 7
    %v1432 = vrot.slane %v1431, 2
    %v1433 = vrot.slane %v1177, 7
    %v1434 = vrot.slane %v1433, 2
    %v1435 = vrot.slane %v1088, 7
    %v1436 = vrot.slane %v1435, 2
    %v1437 = vrot.slane %v1178, 7
    %v1438 = vrot.slane %v1437, 2
    %v1439 = vrot.slane %v1179, 7
    %v1440 = vrot.slane %v1439, 2
    %v1441 = vrot.slane %v1180, 7
    %v1442 = vrot.slane %v1441, 2
    %v1443 = vrot.slane %v1089, 7
    %v1444 = vrot.slane %v1443, 2
    %v1445 = vrot.slane %v1181, 7
    %v1446 = vrot.slane %v1445, 2
    %v1447 = vrot.slane %v1182, 7
    %v1448 = vrot.slane %v1447, 2
    %v1449 = vrot.slane %v1183, 7
    %v1450 = vrot.slane %v1449, 2
    %v1451 = vrot.slane %v1090, 7
    %v1452 = vrot.slane %v1451, 2
    %v1453 = vrot.slane %v1184, 7
    %v1454 = vrot.slane %v1453, 2
    %v1455 = vrot.slane %v1185, 7
    %v1456 = vrot.slane %v1455, 2
    %v1457 = vrot.slane %v1186, 7
    %v1458 = vrot.slane %v1457, 2
    %v1459 = vrot.slane %v1091, 7
    %v1460 = vrot.slane %v1459, 2
    %v1461 = vrot.slane %v1187, 7
    %v1462 = vrot.slane %v1461, 2
    %v1463 = vrot.slane %v1188, 7
    %v1464 = vrot.slane %v1463, 2
    %v1465 = vrot.slane %v1189, 7
    %v1466 = vrot.slane %v1465, 2
    %v1467 = vrot.slane %v1092, 7
    %v1468 = vrot.slane %v1467, 2
    %v1469 = vrot.slane %v1190, 7
    %v1470 = vrot.slane %v1469, 2
    %v1471 = vrot.slane %v1191, 7
    %v1472 = vrot.slane %v1471, 2
    %v1473 = vrot.slane %v1192, 7
    %v1474 = vrot.slane %v1473, 2
    %v1475 = vrot.slane %v1093, 7
    %v1476 = vrot.slane %v1475, 2
    %v1477 = vrot.slane %v1193, 7
    %v1478 = vrot.slane %v1477, 2
    %v1479 = vrot.slane %v1194, 7
    %v1480 = vrot.slane %v1479, 2
    %v1481 = vrot.slane %v1195, 7
    %v1482 = vrot.slane %v1481, 2
    %v1483 = vrot.slane %v1094, 7
    %v1484 = vrot.slane %v1483, 2
    %v1485 = vrot.slane %v1196, 7
    %v1486 = vrot.slane %v1485, 2
    %v1487 = vrot.slane %v1197, 7
    %v1488 = vrot.slane %v1487, 2
    %v1489 = vrot.slane %v1198, 7
    %v1490 = vrot.slane %v1489, 2
    %v1491 = vrot.slane %v1095, 7
    %v1492 = vrot.slane %v1491, 2
    %v1493 = vrot.slane %v1199, 7
    %v1494 = vrot.slane %v1493, 2
    %v1495 = vrot.slane %v1200, 7
    %v1496 = vrot.slane %v1495, 2
    %v1497 = vrot.slane %v1201, 7
    %v1498 = vrot.slane %v1497, 2
    %v1499 = vrot.slane %v1096, 7
    %v1500 = vrot.slane %v1499, 2
    %v1501 = vrot.slane %v1202, 7
    %v1502 = vrot.slane %v1501, 2
    %v1503 = vrot.slane %v1203, 7
    %v1504 = vrot.slane %v1503, 2
    %v1505 = vrot.slane %v1204, 7
    %v1506 = vrot.slane %v1505, 2
    %v1507 = vrot.slane %v1097, 7
    %v1508 = vrot.slane %v1507, 2
    %v1509 = vrot.slane %v1205, 7
    %v1510 = vrot.slane %v1509, 2
    %v1511 = vrot.slane %v1206, 7
    %v1512 = vrot.slane %v1511, 2
    %v1513 = vrot.slane %v1207, 7
    %v1514 = vrot.slane %v1513, 2
    %v1515 = vrot.slane %v1098, 7
    %v1516 = vrot.slane %v1515, 2
    %v1517 = vrot.slane %v1208, 7
    %v1518 = vrot.slane %v1517, 2
    %v1519 = vrot.slane %v1209, 7
    %v1520 = vrot.slane %v1519, 2
    %v1521 = vrot.slane %v1210, 7
    %v1522 = vrot.slane %v1521, 2
    %v1523 = vrot.slane %v1099, 7
    %v1524 = vrot.slane %v1523, 2
    %v1525 = vrot.slane %v1211, 7
    %v1526 = vrot.slane %v1525, 2
    %v1527 = vrot.slane %v1212, 7
    %v1528 = vrot.slane %v1527, 2
    %v1529 = vrot.slane %v1213, 7
    %v1530 = vrot.slane %v1529, 2
    %v1531 = vrot.slane %v1100, 7
    %v1532 = vrot.slane %v1531, 2
    %v1533 = vrot.slane %v1214, 7
    %v1534 = vrot.slane %v1533, 2
    %v1535 = vrot.slane %v1215, 7
    %v1536 = vrot.slane %v1535, 2
    %v1537 = vrot.slane %v1216, 7
    %v1538 = vrot.slane %v1537, 2
    %v1539 = vrot.slane %v1101, 7
    %v1540 = vrot.slane %v1539, 2
    %v1541 = vrot.slane %v1217, 7
    %v1542 = vrot.slane %v1541, 2
    %v1543 = vrot.slane %v1218, 7
    %v1544 = vrot.slane %v1543, 2
    %v1545 = vrot.slane %v1219, 7
    %v1546 = vrot.slane %v1545, 2
    %v1547 = vrot.slane %v1102, 7
    %v1548 = vrot.slane %v1547, 2
    %v1549 = vrot.slane %v1220, 7
    %v1550 = vrot.slane %v1549, 2
    %v1551 = vrot.slane %v1221, 7
    %v1552 = vrot.slane %v1551, 2
    %v1553 = vrot.slane %v1222, 7
    %v1554 = vrot.slane %v1553, 2
    %v1555 = vrot.slane %v1103, 7
    %v1556 = vrot.slane %v1555, 2
    %v1557 = vrot.slane %v1223, 7
    %v1558 = vrot.slane %v1557, 2
    %v1559 = vrot.slane %v1224, 7
    %v1560 = vrot.slane %v1559, 2
    %v1561 = vrot.slane %v1225, 7
    %v1562 = vrot.slane %v1561, 2
    %v1563 = vrot.slane %v1104, 7
    %v1564 = vrot.slane %v1563, 2
    %v1565 = vrot.slane %v1226, 7
    %v1566 = vrot.slane %v1565, 2
    %v1567 = vrot.slane %v1227, 7
    %v1568 = vrot.slane %v1567, 2
    %v1569 = vrot.slane %v1228, 7
    %v1570 = vrot.slane %v1569, 2
    %v1571 = vrot.slane %v1105, 7
    %v1572 = vrot.slane %v1571, 2
    %v1573 = vrot.slane %v1229, 7
    %v1574 = vrot.slane %v1573, 2
    %v1575 = vrot.slane %v1230, 7
    %v1576 = vrot.slane %v1575, 2
    %v1577 = vrot.slane %v1231, 7
    %v1578 = vrot.slane %v1577, 2
    %v1579 = vrot.slane %v1106, 7
    %v1580 = vrot.slane %v1579, 2
    %v1581 = vrot.slane %v1232, 7
    %v1582 = vrot.slane %v1581, 2
    %v1583 = vrot.slane %v1233, 7
    %v1584 = vrot.slane %v1583, 2
    %v1585 = vrot.slane %v1234, 7
    %v1586 = vrot.slane %v1585, 2
    %v1715 = vmax.f32 %v1075, %v1332
    %v1716 = vmax.f32 %v1139, %v1334
    %v1717 = vmax.f32 %v1140, %v1336
    %v1718 = vmax.f32 %v1141, %v1338
    %v1719 = vmax.f32 %v1076, %v1340
    %v1720 = vmax.f32 %v1142, %v1342
    %v1721 = vmax.f32 %v1143, %v1344
    %v1722 = vmax.f32 %v1144, %v1346
    %v1723 = vmax.f32 %v1077, %v1348
    %v1724 = vmax.f32 %v1145, %v1350
    %v1725 = vmax.f32 %v1146, %v1352
    %v1726 = vmax.f32 %v1147, %v1354
    %v1727 = vmax.f32 %v1078, %v1356
    %v1728 = vmax.f32 %v1148, %v1358
    %v1729 = vmax.f32 %v1149, %v1360
    %v1730 = vmax.f32 %v1150, %v1362
    %v1731 = vmax.f32 %v1079, %v1364
    %v1732 = vmax.f32 %v1151, %v1366
    %v1733 = vmax.f32 %v1152, %v1368
    %v1734 = vmax.f32 %v1153, %v1370
    %v1735 = vmax.f32 %v1080, %v1372
    %v1736 = vmax.f32 %v1154, %v1374
    %v1737 = vmax.f32 %v1155, %v1376
    %v1738 = vmax.f32 %v1156, %v1378
    %v1739 = vmax.f32 %v1081, %v1380
    %v1740 = vmax.f32 %v1157, %v1382
    %v1741 = vmax.f32 %v1158, %v1384
    %v1742 = vmax.f32 %v1159, %v1386
    %v1743 = vmax.f32 %v1082, %v1388
    %v1744 = vmax.f32 %v1160, %v1390
    %v1745 = vmax.f32 %v1161, %v1392
    %v1746 = vmax.f32 %v1162, %v1394
    %v1747 = vmax.f32 %v1083, %v1396
    %v1748 = vmax.f32 %v1163, %v1398
    %v1749 = vmax.f32 %v1164, %v1400
    %v1750 = vmax.f32 %v1165, %v1402
    %v1751 = vmax.f32 %v1084, %v1404
    %v1752 = vmax.f32 %v1166, %v1406
    %v1753 = vmax.f32 %v1167, %v1408
    %v1754 = vmax.f32 %v1168, %v1410
    %v1755 = vmax.f32 %v1085, %v1412
    %v1756 = vmax.f32 %v1169, %v1414
    %v1757 = vmax.f32 %v1170, %v1416
    %v1758 = vmax.f32 %v1171, %v1418
    %v1759 = vmax.f32 %v1086, %v1420
    %v1760 = vmax.f32 %v1172, %v1422
    %v1761 = vmax.f32 %v1173, %v1424
    %v1762 = vmax.f32 %v1174, %v1426
    %v1763 = vmax.f32 %v1087, %v1428
    %v1764 = vmax.f32 %v1175, %v1430
    %v1765 = vmax.f32 %v1176, %v1432
    %v1766 = vmax.f32 %v1177, %v1434
    %v1767 = vmax.f32 %v1088, %v1436
    %v1768 = vmax.f32 %v1178, %v1438
    %v1769 = vmax.f32 %v1179, %v1440
    %v1770 = vmax.f32 %v1180, %v1442
    %v1771 = vmax.f32 %v1089, %v1444
    %v1772 = vmax.f32 %v1181, %v1446
    %v1773 = vmax.f32 %v1182, %v1448
    %v1774 = vmax.f32 %v1183, %v1450
    %v1775 = vmax.f32 %v1090, %v1452
    %v1776 = vmax.f32 %v1184, %v1454
    %v1777 = vmax.f32 %v1185, %v1456
    %v1778 = vmax.f32 %v1186, %v1458
    %v1779 = vmax.f32 %v1091, %v1460
    %v1780 = vmax.f32 %v1187, %v1462
    %v1781 = vmax.f32 %v1188, %v1464
    %v1782 = vmax.f32 %v1189, %v1466
    %v1783 = vmax.f32 %v1092, %v1468
    %v1784 = vmax.f32 %v1190, %v1470
    %v1785 = vmax.f32 %v1191, %v1472
    %v1786 = vmax.f32 %v1192, %v1474
    %v1787 = vmax.f32 %v1093, %v1476
    %v1788 = vmax.f32 %v1193, %v1478
    %v1789 = vmax.f32 %v1194, %v1480
    %v1790 = vmax.f32 %v1195, %v1482
    %v1791 = vmax.f32 %v1094, %v1484
    %v1792 = vmax.f32 %v1196, %v1486
    %v1793 = vmax.f32 %v1197, %v1488
    %v1794 = vmax.f32 %v1198, %v1490
    %v1795 = vmax.f32 %v1095, %v1492
    %v1796 = vmax.f32 %v1199, %v1494
    %v1797 = vmax.f32 %v1200, %v1496
    %v1798 = vmax.f32 %v1201, %v1498
    %v1799 = vmax.f32 %v1096, %v1500
    %v1800 = vmax.f32 %v1202, %v1502
    %v1801 = vmax.f32 %v1203, %v1504
    %v1802 = vmax.f32 %v1204, %v1506
    %v1803 = vmax.f32 %v1097, %v1508
    %v1804 = vmax.f32 %v1205, %v1510
    %v1805 = vmax.f32 %v1206, %v1512
    %v1806 = vmax.f32 %v1207, %v1514
    %v1807 = vmax.f32 %v1098, %v1516
    %v1808 = vmax.f32 %v1208, %v1518
    %v1809 = vmax.f32 %v1209, %v1520
    %v1810 = vmax.f32 %v1210, %v1522
    %v1811 = vmax.f32 %v1099, %v1524
    %v1812 = vmax.f32 %v1211, %v1526
    %v1813 = vmax.f32 %v1212, %v1528
    %v1814 = vmax.f32 %v1213, %v1530
    %v1815 = vmax.f32 %v1100, %v1532
    %v1816 = vmax.f32 %v1214, %v1534
    %v1817 = vmax.f32 %v1215, %v1536
    %v1818 = vmax.f32 %v1216, %v1538
    %v1819 = vmax.f32 %v1101, %v1540
    %v1820 = vmax.f32 %v1217, %v1542
    %v1821 = vmax.f32 %v1218, %v1544
    %v1822 = vmax.f32 %v1219, %v1546
    %v1823 = vmax.f32 %v1102, %v1548
    %v1824 = vmax.f32 %v1220, %v1550
    %v1825 = vmax.f32 %v1221, %v1552
    %v1826 = vmax.f32 %v1222, %v1554
    %v1827 = vmax.f32 %v1103, %v1556
    %v1828 = vmax.f32 %v1223, %v1558
    %v1829 = vmax.f32 %v1224, %v1560
    %v1830 = vmax.f32 %v1225, %v1562
    %v1831 = vmax.f32 %v1104, %v1564
    %v1832 = vmax.f32 %v1226, %v1566
    %v1833 = vmax.f32 %v1227, %v1568
    %v1834 = vmax.f32 %v1228, %v1570
    %v1835 = vmax.f32 %v1105, %v1572
    %v1836 = vmax.f32 %v1229, %v1574
    %v1837 = vmax.f32 %v1230, %v1576
    %v1838 = vmax.f32 %v1231, %v1578
    %v1839 = vmax.f32 %v1106, %v1580
    %v1840 = vmax.f32 %v1232, %v1582
    %v1841 = vmax.f32 %v1233, %v1584
    %v1842 = vmax.f32 %v1234, %v1586
    %v1843 = vmax.f32 %v1715, 0.0
    %v1844 = vmax.f32 %v1716, 0.0
    %v1845 = vmax.f32 %v1717, 0.0
    %v1846 = vmax.f32 %v1718, 0.0
    %v1847 = vmax.f32 %v1719, 0.0
    %v1848 = vmax.f32 %v1720, 0.0
    %v1849 = vmax.f32 %v1721, 0.0
    %v1850 = vmax.f32 %v1722, 0.0
    %v1851 = vmax.f32 %v1723, 0.0
    %v1852 = vmax.f32 %v1724, 0.0
    %v1853 = vmax.f32 %v1725, 0.0
    %v1854 = vmax.f32 %v1726, 0.0
    %v1855 = vmax.f32 %v1727, 0.0
    %v1856 = vmax.f32 %v1728, 0.0
    %v1857 = vmax.f32 %v1729, 0.0
    %v1858 = vmax.f32 %v1730, 0.0
    %v1859 = vmax.f32 %v1731, 0.0
    %v1860 = vmax.f32 %v1732, 0.0
    %v1861 = vmax.f32 %v1733, 0.0
    %v1862 = vmax.f32 %v1734, 0.0
    %v1863 = vmax.f32 %v1735, 0.0
    %v1864 = vmax.f32 %v1736, 0.0
    %v1865 = vmax.f32 %v1737, 0.0
    %v1866 = vmax.f32 %v1738, 0.0
    %v1867 = vmax.f32 %v1739, 0.0
    %v1868 = vmax.f32 %v1740, 0.0
    %v1869 = vmax.f32 %v1741, 0.0
    %v1870 = vmax.f32 %v1742, 0.0
    %v1871 = vmax.f32 %v1743, 0.0
    %v1872 = vmax.f32 %v1744, 0.0
    %v1873 = vmax.f32 %v1745, 0.0
    %v1874 = vmax.f32 %v1746, 0.0
    %v1875 = vmax.f32 %v1747, 0.0
    %v1876 = vmax.f32 %v1748, 0.0
    %v1877 = vmax.f32 %v1749, 0.0
    %v1878 = vmax.f32 %v1750, 0.0
    %v1879 = vmax.f32 %v1751, 0.0
    %v1880 = vmax.f32 %v1752, 0.0
    %v1881 = vmax.f32 %v1753, 0.0
    %v1882 = vmax.f32 %v1754, 0.0
    %v1883 = vmax.f32 %v1755, 0.0
    %v1884 = vmax.f32 %v1756, 0.0
    %v1885 = vmax.f32 %v1757, 0.0
    %v1886 = vmax.f32 %v1758, 0.0
    %v1887 = vmax.f32 %v1759, 0.0
    %v1888 = vmax.f32 %v1760, 0.0
    %v1889 = vmax.f32 %v1761, 0.0
    %v1890 = vmax.f32 %v1762, 0.0
    %v1891 = vmax.f32 %v1763, 0.0
    %v1892 = vmax.f32 %v1764, 0.0
    %v1893 = vmax.f32 %v1765, 0.0
    %v1894 = vmax.f32 %v1766, 0.0
    %v1895 = vmax.f32 %v1767, 0.0
    %v1896 = vmax.f32 %v1768, 0.0
    %v1897 = vmax.f32 %v1769, 0.0
    %v1898 = vmax.f32 %v1770, 0.0
    %v1899 = vmax.f32 %v1771, 0.0
    %v1900 = vmax.f32 %v1772, 0.0
    %v1901 = vmax.f32 %v1773, 0.0
    %v1902 = vmax.f32 %v1774, 0.0
    %v1903 = vmax.f32 %v1775, 0.0
    %v1904 = vmax.f32 %v1776, 0.0
    %v1905 = vmax.f32 %v1777, 0.0
    %v1906 = vmax.f32 %v1778, 0.0
    %v1907 = vmax.f32 %v1779, 0.0
    %v1908 = vmax.f32 %v1780, 0.0
    %v1909 = vmax.f32 %v1781, 0.0
    %v1910 = vmax.f32 %v1782, 0.0
    %v1911 = vmax.f32 %v1783, 0.0
    %v1912 = vmax.f32 %v1784, 0.0
    %v1913 = vmax.f32 %v1785, 0.0
    %v1914 = vmax.f32 %v1786, 0.0
    %v1915 = vmax.f32 %v1787, 0.0
    %v1916 = vmax.f32 %v1788, 0.0
    %v1917 = vmax.f32 %v1789, 0.0
    %v1918 = vmax.f32 %v1790, 0.0
    %v1919 = vmax.f32 %v1791, 0.0
    %v1920 = vmax.f32 %v1792, 0.0
    %v1921 = vmax.f32 %v1793, 0.0
    %v1922 = vmax.f32 %v1794, 0.0
    %v1923 = vmax.f32 %v1795, 0.0
    %v1924 = vmax.f32 %v1796, 0.0
    %v1925 = vmax.f32 %v1797, 0.0
    %v1926 = vmax.f32 %v1798, 0.0
    %v1927 = vmax.f32 %v1799, 0.0
    %v1928 = vmax.f32 %v1800, 0.0
    %v1929 = vmax.f32 %v1801, 0.0
    %v1930 = vmax.f32 %v1802, 0.0
    %v1931 = vmax.f32 %v1803, 0.0
    %v1932 = vmax.f32 %v1804, 0.0
    %v1933 = vmax.f32 %v1805, 0.0
    %v1934 = vmax.f32 %v1806, 0.0
    %v1935 = vmax.f32 %v1807, 0.0
    %v1936 = vmax.f32 %v1808, 0.0
    %v1937 = vmax.f32 %v1809, 0.0
    %v1938 = vmax.f32 %v1810, 0.0
    %v1939 = vmax.f32 %v1811, 0.0
    %v1940 = vmax.f32 %v1812, 0.0
    %v1941 = vmax.f32 %v1813, 0.0
    %v1942 = vmax.f32 %v1814, 0.0
    %v1943 = vmax.f32 %v1815, 0.0
    %v1944 = vmax.f32 %v1816, 0.0
    %v1945 = vmax.f32 %v1817, 0.0
    %v1946 = vmax.f32 %v1818, 0.0
    %v1947 = vmax.f32 %v1819, 0.0
    %v1948 = vmax.f32 %v1820, 0.0
    %v1949 = vmax.f32 %v1821, 0.0
    %v1950 = vmax.f32 %v1822, 0.0
    %v1951 = vmax.f32 %v1823, 0.0
    %v1952 = vmax.f32 %v1824, 0.0
    %v1953 = vmax.f32 %v1825, 0.0
    %v1954 = vmax.f32 %v1826, 0.0
    %v1955 = vmax.f32 %v1827, 0.0
    %v1956 = vmax.f32 %v1828, 0.0
    %v1957 = vmax.f32 %v1829, 0.0
    %v1958 = vmax.f32 %v1830, 0.0
    %v1959 = vmax.f32 %v1831, 0.0
    %v1960 = vmax.f32 %v1832, 0.0
    %v1961 = vmax.f32 %v1833, 0.0
    %v1962 = vmax.f32 %v1834, 0.0
    %v1963 = vmax.f32 %v1835, 0.0
    %v1964 = vmax.f32 %v1836, 0.0
    %v1965 = vmax.f32 %v1837, 0.0
    %v1966 = vmax.f32 %v1838, 0.0
    %v1967 = vmax.f32 %v1839, 0.0
    %v1968 = vmax.f32 %v1840, 0.0
    %v1969 = vmax.f32 %v1841, 0.0
    %v1970 = vmax.f32 %v1842, 0.0
    %vm1971 = vcmask 519168
    %1972 = vst.msk [vmem:[#allocation2] sm:$0xf] %vm1971, 0
    %vm1973 = vcmask 516096
    %1974 = vst.msk [vmem:[#allocation2 + $0x4] sm:$0x1] %vm1973, 0
    %1975 = vst.msk [vmem:[#allocation2 + $0x50] sm:$0xf] %vm1971, 0
    %1976 = vst.msk [vmem:[#allocation2 + $0x54] sm:$0x1] %vm1973, 0
    %s1977 = scalar_lea.vmem [#allocation2], 72
    %1978 = vst.msk [vmem:[%s1977] sm:$0xf] %vm1971, 0
    %1979 = vst.msk [vmem:[%s1977 + $0x4] sm:$0x1] %vm1973, 0
    %1980 = vst.msk [vmem:[%s1977 + $0x50] sm:$0xf] %vm1971, 0
    %1981 = vst.msk [vmem:[%s1977 + $0x54] sm:$0x1] %vm1973, 0
    %s1982 = scalar_lea.vmem [#allocation2], 8
    %vm1983 = vcmask 516096
    %vm1984 = vsmask.f32 256
    %vm1985 = vmand %vm1983, %vm1984
    %v1986 = vld [vmem:[%s1982] sm:$0x1]
    %v1987 = vsel %vm1985, 0, %v1986
    %1988 = vst [vmem:[%s1982] sm:$0x1] %v1987
    %v1989 = vld [vmem:[%s1982 + $0x8] sm:$0x1]
    %v1990 = vsel %vm1985, 0, %v1989
    %1991 = vst [vmem:[%s1982 + $0x8] sm:$0x1] %v1990
    %v1992 = vld [vmem:[%s1982 + $0x10] sm:$0x1]
    %v1993 = vsel %vm1985, 0, %v1992
    %1994 = vst [vmem:[%s1982 + $0x10] sm:$0x1] %v1993
    %v1995 = vld [vmem:[%s1982 + $0x18] sm:$0x1]
    %v1996 = vsel %vm1985, 0, %v1995
    %1997 = vst [vmem:[%s1982 + $0x18] sm:$0x1] %v1996
    %v1998 = vld [vmem:[%s1982 + $0x20] sm:$0x1]
    %v1999 = vsel %vm1985, 0, %v1998
    %2000 = vst [vmem:[%s1982 + $0x20] sm:$0x1] %v1999
    %v2001 = vld [vmem:[%s1982 + $0x28] sm:$0x1]
    %v2002 = vsel %vm1985, 0, %v2001
    %2003 = vst [vmem:[%s1982 + $0x28] sm:$0x1] %v2002
    %v2004 = vld [vmem:[%s1982 + $0x30] sm:$0x1]
    %v2005 = vsel %vm1985, 0, %v2004
    %2006 = vst [vmem:[%s1982 + $0x30] sm:$0x1] %v2005
    %v2007 = vld [vmem:[%s1982 + $0x38] sm:$0x1]
    %v2008 = vsel %vm1985, 0, %v2007
    %2009 = vst [vmem:[%s1982 + $0x38] sm:$0x1] %v2008
    %v2010 = vld [vmem:[%s1982 + $0x50] sm:$0x1]
    %v2011 = vsel %vm1985, 0, %v2010
    %2012 = vst [vmem:[%s1982 + $0x50] sm:$0x1] %v2011
    %v2013 = vld [vmem:[%s1982 + $0x58] sm:$0x1]
    %v2014 = vsel %vm1985, 0, %v2013
    %2015 = vst [vmem:[%s1982 + $0x58] sm:$0x1] %v2014
    %v2016 = vld [vmem:[%s1982 + $0x60] sm:$0x1]
    %v2017 = vsel %vm1985, 0, %v2016
    %2018 = vst [vmem:[%s1982 + $0x60] sm:$0x1] %v2017
    %v2019 = vld [vmem:[%s1982 + $0x68] sm:$0x1]
    %v2020 = vsel %vm1985, 0, %v2019
    %2021 = vst [vmem:[%s1982 + $0x68] sm:$0x1] %v2020
    %v2022 = vld [vmem:[%s1982 + $0x70] sm:$0x1]
    %v2023 = vsel %vm1985, 0, %v2022
    %2024 = vst [vmem:[%s1982 + $0x70] sm:$0x1] %v2023
    %v2025 = vld [vmem:[%s1982 + $0x78] sm:$0x1]
    %v2026 = vsel %vm1985, 0, %v2025
    %2027 = vst [vmem:[%s1982 + $0x78] sm:$0x1] %v2026
    %v2028 = vld [vmem:[%s1982 + $0x80] sm:$0x1]
    %v2029 = vsel %vm1985, 0, %v2028
    %2030 = vst [vmem:[%s1982 + $0x80] sm:$0x1] %v2029
    %v2031 = vld [vmem:[%s1982 + $0x88] sm:$0x1]
    %v2032 = vsel %vm1985, 0, %v2031
    %2033 = vst [vmem:[%s1982 + $0x88] sm:$0x1] %v2032
    %vm2034 = vsmask.f32 7938
    %vm2035 = vmand %vm1983, %vm2034
    %v2036 = vld [vmem:[%s1982 + $0x4] sm:$0x1]
    %v2037 = vsel %vm2035, 0, %v2036
    %2038 = vst [vmem:[%s1982 + $0x4] sm:$0x1] %v2037
    %v2039 = vld [vmem:[%s1982 + $0xc] sm:$0x1]
    %v2040 = vsel %vm2035, 0, %v2039
    %2041 = vst [vmem:[%s1982 + $0xc] sm:$0x1] %v2040
    %v2042 = vld [vmem:[%s1982 + $0x14] sm:$0x1]
    %v2043 = vsel %vm2035, 0, %v2042
    %2044 = vst [vmem:[%s1982 + $0x14] sm:$0x1] %v2043
    %v2045 = vld [vmem:[%s1982 + $0x1c] sm:$0x1]
    %v2046 = vsel %vm2035, 0, %v2045
    %2047 = vst [vmem:[%s1982 + $0x1c] sm:$0x1] %v2046
    %v2048 = vld [vmem:[%s1982 + $0x24] sm:$0x1]
    %v2049 = vsel %vm2035, 0, %v2048
    %2050 = vst [vmem:[%s1982 + $0x24] sm:$0x1] %v2049
    %v2051 = vld [vmem:[%s1982 + $0x2c] sm:$0x1]
    %v2052 = vsel %vm2035, 0, %v2051
    %2053 = vst [vmem:[%s1982 + $0x2c] sm:$0x1] %v2052
    %v2054 = vld [vmem:[%s1982 + $0x34] sm:$0x1]
    %v2055 = vsel %vm2035, 0, %v2054
    %2056 = vst [vmem:[%s1982 + $0x34] sm:$0x1] %v2055
    %v2057 = vld [vmem:[%s1982 + $0x3c] sm:$0x1]
    %v2058 = vsel %vm2035, 0, %v2057
    %2059 = vst [vmem:[%s1982 + $0x3c] sm:$0x1] %v2058
    %v2060 = vld [vmem:[%s1982 + $0x54] sm:$0x1]
    %v2061 = vsel %vm2035, 0, %v2060
    %2062 = vst [vmem:[%s1982 + $0x54] sm:$0x1] %v2061
    %v2063 = vld [vmem:[%s1982 + $0x5c] sm:$0x1]
    %v2064 = vsel %vm2035, 0, %v2063
    %2065 = vst [vmem:[%s1982 + $0x5c] sm:$0x1] %v2064
    %v2066 = vld [vmem:[%s1982 + $0x64] sm:$0x1]
    %v2067 = vsel %vm2035, 0, %v2066
    %2068 = vst [vmem:[%s1982 + $0x64] sm:$0x1] %v2067
    %v2069 = vld [vmem:[%s1982 + $0x6c] sm:$0x1]
    %v2070 = vsel %vm2035, 0, %v2069
    %2071 = vst [vmem:[%s1982 + $0x6c] sm:$0x1] %v2070
    %v2072 = vld [vmem:[%s1982 + $0x74] sm:$0x1]
    %v2073 = vsel %vm2035, 0, %v2072
    %2074 = vst [vmem:[%s1982 + $0x74] sm:$0x1] %v2073
    %v2075 = vld [vmem:[%s1982 + $0x7c] sm:$0x1]
    %v2076 = vsel %vm2035, 0, %v2075
    %2077 = vst [vmem:[%s1982 + $0x7c] sm:$0x1] %v2076
    %v2078 = vld [vmem:[%s1982 + $0x84] sm:$0x1]
    %v2079 = vsel %vm2035, 0, %v2078
    %2080 = vst [vmem:[%s1982 + $0x84] sm:$0x1] %v2079
    %v2081 = vld [vmem:[%s1982 + $0x8c] sm:$0x1]
    %v2082 = vsel %vm2035, 0, %v2081
    %2083 = vst [vmem:[%s1982 + $0x8c] sm:$0x1] %v2082
    %v2084 = vpack.c.bf16 %v1843, %v1843
    %v2085 = vpack.c.bf16 %v1844, %v1844
    %v2086 = vpack.c.bf16 %v1845, %v1845
    %v2087 = vpack.c.bf16 %v1846, %v1846
    %v2088 = vpack.c.bf16 %v1847, %v1847
    %v2089 = vpack.c.bf16 %v1848, %v1848
    %v2090 = vpack.c.bf16 %v1849, %v1849
    %v2091 = vpack.c.bf16 %v1850, %v1850
    %v2092 = vpack.c.bf16 %v1851, %v1851
    %v2093 = vpack.c.bf16 %v1852, %v1852
    %v2094 = vpack.c.bf16 %v1853, %v1853
    %v2095 = vpack.c.bf16 %v1854, %v1854
    %v2096 = vpack.c.bf16 %v1855, %v1855
    %v2097 = vpack.c.bf16 %v1856, %v1856
    %v2098 = vpack.c.bf16 %v1857, %v1857
    %v2099 = vpack.c.bf16 %v1858, %v1858
    %v2100 = vpack.c.bf16 %v1859, %v1859
    %v2101 = vpack.c.bf16 %v1860, %v1860
    %v2102 = vpack.c.bf16 %v1861, %v1861
    %v2103 = vpack.c.bf16 %v1862, %v1862
    %v2104 = vpack.c.bf16 %v1863, %v1863
    %v2105 = vpack.c.bf16 %v1864, %v1864
    %v2106 = vpack.c.bf16 %v1865, %v1865
    %v2107 = vpack.c.bf16 %v1866, %v1866
    %v2108 = vpack.c.bf16 %v1867, %v1867
    %v2109 = vpack.c.bf16 %v1868, %v1868
    %v2110 = vpack.c.bf16 %v1869, %v1869
    %v2111 = vpack.c.bf16 %v1870, %v1870
    %v2112 = vpack.c.bf16 %v1871, %v1871
    %v2113 = vpack.c.bf16 %v1872, %v1872
    %v2114 = vpack.c.bf16 %v1873, %v1873
    %v2115 = vpack.c.bf16 %v1874, %v1874
    %v2116 = vpack.c.bf16 %v1875, %v1875
    %v2117 = vpack.c.bf16 %v1876, %v1876
    %v2118 = vpack.c.bf16 %v1877, %v1877
    %v2119 = vpack.c.bf16 %v1878, %v1878
    %v2120 = vpack.c.bf16 %v1879, %v1879
    %v2121 = vpack.c.bf16 %v1880, %v1880
    %v2122 = vpack.c.bf16 %v1881, %v1881
    %v2123 = vpack.c.bf16 %v1882, %v1882
    %v2124 = vpack.c.bf16 %v1883, %v1883
    %v2125 = vpack.c.bf16 %v1884, %v1884
    %v2126 = vpack.c.bf16 %v1885, %v1885
    %v2127 = vpack.c.bf16 %v1886, %v1886
    %v2128 = vpack.c.bf16 %v1887, %v1887
    %v2129 = vpack.c.bf16 %v1888, %v1888
    %v2130 = vpack.c.bf16 %v1889, %v1889
    %v2131 = vpack.c.bf16 %v1890, %v1890
    %v2132 = vpack.c.bf16 %v1891, %v1891
    %v2133 = vpack.c.bf16 %v1892, %v1892
    %v2134 = vpack.c.bf16 %v1893, %v1893
    %v2135 = vpack.c.bf16 %v1894, %v1894
    %v2136 = vpack.c.bf16 %v1895, %v1895
    %v2137 = vpack.c.bf16 %v1896, %v1896
    %v2138 = vpack.c.bf16 %v1897, %v1897
    %v2139 = vpack.c.bf16 %v1898, %v1898
    %v2140 = vpack.c.bf16 %v1899, %v1899
    %v2141 = vpack.c.bf16 %v1900, %v1900
    %v2142 = vpack.c.bf16 %v1901, %v1901
    %v2143 = vpack.c.bf16 %v1902, %v1902
    %v2144 = vpack.c.bf16 %v1903, %v1903
    %v2145 = vpack.c.bf16 %v1904, %v1904
    %v2146 = vpack.c.bf16 %v1905, %v1905
    %v2147 = vpack.c.bf16 %v1906, %v1906
    %v2148 = vpack.c.bf16 %v1907, %v1907
    %v2149 = vpack.c.bf16 %v1908, %v1908
    %v2150 = vpack.c.bf16 %v1909, %v1909
    %v2151 = vpack.c.bf16 %v1910, %v1910
    %v2152 = vpack.c.bf16 %v1911, %v1911
    %v2153 = vpack.c.bf16 %v1912, %v1912
    %v2154 = vpack.c.bf16 %v1913, %v1913
    %v2155 = vpack.c.bf16 %v1914, %v1914
    %v2156 = vpack.c.bf16 %v1915, %v1915
    %v2157 = vpack.c.bf16 %v1916, %v1916
    %v2158 = vpack.c.bf16 %v1917, %v1917
    %v2159 = vpack.c.bf16 %v1918, %v1918
    %v2160 = vpack.c.bf16 %v1919, %v1919
    %v2161 = vpack.c.bf16 %v1920, %v1920
    %v2162 = vpack.c.bf16 %v1921, %v1921
    %v2163 = vpack.c.bf16 %v1922, %v1922
    %v2164 = vpack.c.bf16 %v1923, %v1923
    %v2165 = vpack.c.bf16 %v1924, %v1924
    %v2166 = vpack.c.bf16 %v1925, %v1925
    %v2167 = vpack.c.bf16 %v1926, %v1926
    %v2168 = vpack.c.bf16 %v1927, %v1927
    %v2169 = vpack.c.bf16 %v1928, %v1928
    %v2170 = vpack.c.bf16 %v1929, %v1929
    %v2171 = vpack.c.bf16 %v1930, %v1930
    %v2172 = vpack.c.bf16 %v1931, %v1931
    %v2173 = vpack.c.bf16 %v1932, %v1932
    %v2174 = vpack.c.bf16 %v1933, %v1933
    %v2175 = vpack.c.bf16 %v1934, %v1934
    %v2176 = vpack.c.bf16 %v1935, %v1935
    %v2177 = vpack.c.bf16 %v1936, %v1936
    %v2178 = vpack.c.bf16 %v1937, %v1937
    %v2179 = vpack.c.bf16 %v1938, %v1938
    %v2180 = vpack.c.bf16 %v1939, %v1939
    %v2181 = vpack.c.bf16 %v1940, %v1940
    %v2182 = vpack.c.bf16 %v1941, %v1941
    %v2183 = vpack.c.bf16 %v1942, %v1942
    %v2184 = vpack.c.bf16 %v1943, %v1943
    %v2185 = vpack.c.bf16 %v1944, %v1944
    %v2186 = vpack.c.bf16 %v1945, %v1945
    %v2187 = vpack.c.bf16 %v1946, %v1946
    %v2188 = vpack.c.bf16 %v1947, %v1947
    %v2189 = vpack.c.bf16 %v1948, %v1948
    %v2190 = vpack.c.bf16 %v1949, %v1949
    %v2191 = vpack.c.bf16 %v1950, %v1950
    %v2192 = vpack.c.bf16 %v1951, %v1951
    %v2193 = vpack.c.bf16 %v1952, %v1952
    %v2194 = vpack.c.bf16 %v1953, %v1953
    %v2195 = vpack.c.bf16 %v1954, %v1954
    %v2196 = vpack.c.bf16 %v1955, %v1955
    %v2197 = vpack.c.bf16 %v1956, %v1956
    %v2198 = vpack.c.bf16 %v1957, %v1957
    %v2199 = vpack.c.bf16 %v1958, %v1958
    %v2200 = vpack.c.bf16 %v1959, %v1959
    %v2201 = vpack.c.bf16 %v1960, %v1960
    %v2202 = vpack.c.bf16 %v1961, %v1961
    %v2203 = vpack.c.bf16 %v1962, %v1962
    %v2204 = vpack.c.bf16 %v1963, %v1963
    %v2205 = vpack.c.bf16 %v1964, %v1964
    %v2206 = vpack.c.bf16 %v1965, %v1965
    %v2207 = vpack.c.bf16 %v1966, %v1966
    %v2208 = vpack.c.bf16 %v1967, %v1967
    %v2209 = vpack.c.bf16 %v1968, %v1968
    %v2210 = vpack.c.bf16 %v1969, %v1969
    %v2211 = vpack.c.bf16 %v1970, %v1970
    %v2340 = vunpack.c.l.b16 %v2084
    %v2341 = vunpack.c.l.b16 %v2085
    %v2342 = vunpack.c.l.b16 %v2086
    %v2343 = vunpack.c.l.b16 %v2087
    %v2344 = vunpack.c.l.b16 %v2088
    %v2345 = vunpack.c.l.b16 %v2089
    %v2346 = vunpack.c.l.b16 %v2090
    %v2347 = vunpack.c.l.b16 %v2091
    %v2348 = vunpack.c.l.b16 %v2092
    %v2349 = vunpack.c.l.b16 %v2093
    %v2350 = vunpack.c.l.b16 %v2094
    %v2351 = vunpack.c.l.b16 %v2095
    %v2352 = vunpack.c.l.b16 %v2096
    %v2353 = vunpack.c.l.b16 %v2097
    %v2354 = vunpack.c.l.b16 %v2098
    %v2355 = vunpack.c.l.b16 %v2099
    %v2356 = vunpack.c.l.b16 %v2100
    %v2357 = vunpack.c.l.b16 %v2101
    %v2358 = vunpack.c.l.b16 %v2102
    %v2359 = vunpack.c.l.b16 %v2103
    %v2360 = vunpack.c.l.b16 %v2104
    %v2361 = vunpack.c.l.b16 %v2105
    %v2362 = vunpack.c.l.b16 %v2106
    %v2363 = vunpack.c.l.b16 %v2107
    %v2364 = vunpack.c.l.b16 %v2108
    %v2365 = vunpack.c.l.b16 %v2109
    %v2366 = vunpack.c.l.b16 %v2110
    %v2367 = vunpack.c.l.b16 %v2111
    %v2368 = vunpack.c.l.b16 %v2112
    %v2369 = vunpack.c.l.b16 %v2113
    %v2370 = vunpack.c.l.b16 %v2114
    %v2371 = vunpack.c.l.b16 %v2115
    %v2372 = vunpack.c.l.b16 %v2116
    %v2373 = vunpack.c.l.b16 %v2117
    %v2374 = vunpack.c.l.b16 %v2118
    %v2375 = vunpack.c.l.b16 %v2119
    %v2376 = vunpack.c.l.b16 %v2120
    %v2377 = vunpack.c.l.b16 %v2121
    %v2378 = vunpack.c.l.b16 %v2122
    %v2379 = vunpack.c.l.b16 %v2123
    %v2380 = vunpack.c.l.b16 %v2124
    %v2381 = vunpack.c.l.b16 %v2125
    %v2382 = vunpack.c.l.b16 %v2126
    %v2383 = vunpack.c.l.b16 %v2127
    %v2384 = vunpack.c.l.b16 %v2128
    %v2385 = vunpack.c.l.b16 %v2129
    %v2386 = vunpack.c.l.b16 %v2130
    %v2387 = vunpack.c.l.b16 %v2131
    %v2388 = vunpack.c.l.b16 %v2132
    %v2389 = vunpack.c.l.b16 %v2133
    %v2390 = vunpack.c.l.b16 %v2134
    %v2391 = vunpack.c.l.b16 %v2135
    %v2392 = vunpack.c.l.b16 %v2136
    %v2393 = vunpack.c.l.b16 %v2137
    %v2394 = vunpack.c.l.b16 %v2138
    %v2395 = vunpack.c.l.b16 %v2139
    %v2396 = vunpack.c.l.b16 %v2140
    %v2397 = vunpack.c.l.b16 %v2141
    %v2398 = vunpack.c.l.b16 %v2142
    %v2399 = vunpack.c.l.b16 %v2143
    %v2400 = vunpack.c.l.b16 %v2144
    %v2401 = vunpack.c.l.b16 %v2145
    %v2402 = vunpack.c.l.b16 %v2146
    %v2403 = vunpack.c.l.b16 %v2147
    %v2404 = vunpack.c.l.b16 %v2148
    %v2405 = vunpack.c.l.b16 %v2149
    %v2406 = vunpack.c.l.b16 %v2150
    %v2407 = vunpack.c.l.b16 %v2151
    %v2408 = vunpack.c.l.b16 %v2152
    %v2409 = vunpack.c.l.b16 %v2153
    %v2410 = vunpack.c.l.b16 %v2154
    %v2411 = vunpack.c.l.b16 %v2155
    %v2412 = vunpack.c.l.b16 %v2156
    %v2413 = vunpack.c.l.b16 %v2157
    %v2414 = vunpack.c.l.b16 %v2158
    %v2415 = vunpack.c.l.b16 %v2159
    %v2416 = vunpack.c.l.b16 %v2160
    %v2417 = vunpack.c.l.b16 %v2161
    %v2418 = vunpack.c.l.b16 %v2162
    %v2419 = vunpack.c.l.b16 %v2163
    %v2420 = vunpack.c.l.b16 %v2164
    %v2421 = vunpack.c.l.b16 %v2165
    %v2422 = vunpack.c.l.b16 %v2166
    %v2423 = vunpack.c.l.b16 %v2167
    %v2424 = vunpack.c.l.b16 %v2168
    %v2425 = vunpack.c.l.b16 %v2169
    %v2426 = vunpack.c.l.b16 %v2170
    %v2427 = vunpack.c.l.b16 %v2171
    %v2428 = vunpack.c.l.b16 %v2172
    %v2429 = vunpack.c.l.b16 %v2173
    %v2430 = vunpack.c.l.b16 %v2174
    %v2431 = vunpack.c.l.b16 %v2175
    %v2432 = vunpack.c.l.b16 %v2176
    %v2433 = vunpack.c.l.b16 %v2177
    %v2434 = vunpack.c.l.b16 %v2178
    %v2435 = vunpack.c.l.b16 %v2179
    %v2436 = vunpack.c.l.b16 %v2180
    %v2437 = vunpack.c.l.b16 %v2181
    %v2438 = vunpack.c.l.b16 %v2182
    %v2439 = vunpack.c.l.b16 %v2183
    %v2440 = vunpack.c.l.b16 %v2184
    %v2441 = vunpack.c.l.b16 %v2185
    %v2442 = vunpack.c.l.b16 %v2186
    %v2443 = vunpack.c.l.b16 %v2187
    %v2444 = vunpack.c.l.b16 %v2188
    %v2445 = vunpack.c.l.b16 %v2189
    %v2446 = vunpack.c.l.b16 %v2190
    %v2447 = vunpack.c.l.b16 %v2191
    %v2448 = vunpack.c.l.b16 %v2192
    %v2449 = vunpack.c.l.b16 %v2193
    %v2450 = vunpack.c.l.b16 %v2194
    %v2451 = vunpack.c.l.b16 %v2195
    %v2452 = vunpack.c.l.b16 %v2196
    %v2453 = vunpack.c.l.b16 %v2197
    %v2454 = vunpack.c.l.b16 %v2198
    %v2455 = vunpack.c.l.b16 %v2199
    %v2456 = vunpack.c.l.b16 %v2200
    %v2457 = vunpack.c.l.b16 %v2201
    %v2458 = vunpack.c.l.b16 %v2202
    %v2459 = vunpack.c.l.b16 %v2203
    %v2460 = vunpack.c.l.b16 %v2204
    %v2461 = vunpack.c.l.b16 %v2205
    %v2462 = vunpack.c.l.b16 %v2206
    %v2463 = vunpack.c.l.b16 %v2207
    %v2464 = vunpack.c.l.b16 %v2208
    %v2465 = vunpack.c.l.b16 %v2209
    %v2466 = vunpack.c.l.b16 %v2210
    %v2467 = vunpack.c.l.b16 %v2211
    %v2468 = vrot.slane %v2340, 7
    %v2469 = vrot.slane %v2341, 6
    %vm2470 = vcmask 1042434
    %v2471 = vsel %vm2470, %v2469, %v2468
    %v2472 = vrot.slane %v2342, 5
    %vm2473 = vcmask 1043459
    %v2474 = vsel %vm2473, %v2472, %v2471
    %v2475 = vrot.slane %v2343, 4
    %vm2476 = vcmask 1044484
    %v2477 = vsel %vm2476, %v2475, %v2474
    %v2478 = vrot.slane %v2344, 3
    %vm2479 = vcmask 1045509
    %v2480 = vsel %vm2479, %v2478, %v2477
    %v2481 = vrot.slane %v2345, 2
    %vm2482 = vcmask 1046534
    %v2483 = vsel %vm2482, %v2481, %v2480
    %v2484 = vrot.slane %v2346, 1
    %vm2485 = vcmask 1047559
    %v2486 = vsel %vm2485, %v2484, %v2483
    %v2487 = vrot.slane %v2348, 7
    %v2488 = vrot.slane %v2349, 6
    %v2489 = vsel %vm2470, %v2488, %v2487
    %v2490 = vrot.slane %v2350, 5
    %v2491 = vsel %vm2473, %v2490, %v2489
    %v2492 = vrot.slane %v2351, 4
    %v2493 = vsel %vm2476, %v2492, %v2491
    %v2494 = vrot.slane %v2352, 3
    %v2495 = vsel %vm2479, %v2494, %v2493
    %v2496 = vrot.slane %v2353, 2
    %v2497 = vsel %vm2482, %v2496, %v2495
    %v2498 = vrot.slane %v2354, 1
    %v2499 = vsel %vm2485, %v2498, %v2497
    %v2500 = vrot.slane %v2356, 7
    %v2501 = vrot.slane %v2357, 6
    %v2502 = vsel %vm2470, %v2501, %v2500
    %v2503 = vrot.slane %v2358, 5
    %v2504 = vsel %vm2473, %v2503, %v2502
    %v2505 = vrot.slane %v2359, 4
    %v2506 = vsel %vm2476, %v2505, %v2504
    %v2507 = vrot.slane %v2360, 3
    %v2508 = vsel %vm2479, %v2507, %v2506
    %v2509 = vrot.slane %v2361, 2
    %v2510 = vsel %vm2482, %v2509, %v2508
    %v2511 = vrot.slane %v2362, 1
    %v2512 = vsel %vm2485, %v2511, %v2510
    %v2513 = vrot.slane %v2364, 7
    %v2514 = vrot.slane %v2365, 6
    %v2515 = vsel %vm2470, %v2514, %v2513
    %v2516 = vrot.slane %v2366, 5
    %v2517 = vsel %vm2473, %v2516, %v2515
    %v2518 = vrot.slane %v2367, 4
    %v2519 = vsel %vm2476, %v2518, %v2517
    %v2520 = vrot.slane %v2368, 3
    %v2521 = vsel %vm2479, %v2520, %v2519
    %v2522 = vrot.slane %v2369, 2
    %v2523 = vsel %vm2482, %v2522, %v2521
    %v2524 = vrot.slane %v2370, 1
    %v2525 = vsel %vm2485, %v2524, %v2523
    %v2526 = vrot.slane %v2372, 7
    %v2527 = vrot.slane %v2373, 6
    %v2528 = vsel %vm2470, %v2527, %v2526
    %v2529 = vrot.slane %v2374, 5
    %v2530 = vsel %vm2473, %v2529, %v2528
    %v2531 = vrot.slane %v2375, 4
    %v2532 = vsel %vm2476, %v2531, %v2530
    %v2533 = vrot.slane %v2376, 3
    %v2534 = vsel %vm2479, %v2533, %v2532
    %v2535 = vrot.slane %v2377, 2
    %v2536 = vsel %vm2482, %v2535, %v2534
    %v2537 = vrot.slane %v2378, 1
    %v2538 = vsel %vm2485, %v2537, %v2536
    %v2539 = vrot.slane %v2380, 7
    %v2540 = vrot.slane %v2381, 6
    %v2541 = vsel %vm2470, %v2540, %v2539
    %v2542 = vrot.slane %v2382, 5
    %v2543 = vsel %vm2473, %v2542, %v2541
    %v2544 = vrot.slane %v2383, 4
    %v2545 = vsel %vm2476, %v2544, %v2543
    %v2546 = vrot.slane %v2384, 3
    %v2547 = vsel %vm2479, %v2546, %v2545
    %v2548 = vrot.slane %v2385, 2
    %v2549 = vsel %vm2482, %v2548, %v2547
    %v2550 = vrot.slane %v2386, 1
    %v2551 = vsel %vm2485, %v2550, %v2549
    %v2552 = vrot.slane %v2388, 7
    %v2553 = vrot.slane %v2389, 6
    %v2554 = vsel %vm2470, %v2553, %v2552
    %v2555 = vrot.slane %v2390, 5
    %v2556 = vsel %vm2473, %v2555, %v2554
    %v2557 = vrot.slane %v2391, 4
    %v2558 = vsel %vm2476, %v2557, %v2556
    %v2559 = vrot.slane %v2392, 3
    %v2560 = vsel %vm2479, %v2559, %v2558
    %v2561 = vrot.slane %v2393, 2
    %v2562 = vsel %vm2482, %v2561, %v2560
    %v2563 = vrot.slane %v2394, 1
    %v2564 = vsel %vm2485, %v2563, %v2562
    %v2565 = vrot.slane %v2396, 7
    %v2566 = vrot.slane %v2397, 6
    %v2567 = vsel %vm2470, %v2566, %v2565
    %v2568 = vrot.slane %v2398, 5
    %v2569 = vsel %vm2473, %v2568, %v2567
    %v2570 = vrot.slane %v2399, 4
    %v2571 = vsel %vm2476, %v2570, %v2569
    %v2572 = vrot.slane %v2400, 3
    %v2573 = vsel %vm2479, %v2572, %v2571
    %v2574 = vrot.slane %v2401, 2
    %v2575 = vsel %vm2482, %v2574, %v2573
    %v2576 = vrot.slane %v2402, 1
    %v2577 = vsel %vm2485, %v2576, %v2575
    %v2578 = vrot.slane %v2404, 7
    %v2579 = vrot.slane %v2405, 6
    %v2580 = vsel %vm2470, %v2579, %v2578
    %v2581 = vrot.slane %v2406, 5
    %v2582 = vsel %vm2473, %v2581, %v2580
    %v2583 = vrot.slane %v2407, 4
    %v2584 = vsel %vm2476, %v2583, %v2582
    %v2585 = vrot.slane %v2408, 3
    %v2586 = vsel %vm2479, %v2585, %v2584
    %v2587 = vrot.slane %v2409, 2
    %v2588 = vsel %vm2482, %v2587, %v2586
    %v2589 = vrot.slane %v2410, 1
    %v2590 = vsel %vm2485, %v2589, %v2588
    %v2591 = vrot.slane %v2412, 7
    %v2592 = vrot.slane %v2413, 6
    %v2593 = vsel %vm2470, %v2592, %v2591
    %v2594 = vrot.slane %v2414, 5
    %v2595 = vsel %vm2473, %v2594, %v2593
    %v2596 = vrot.slane %v2415, 4
    %v2597 = vsel %vm2476, %v2596, %v2595
    %v2598 = vrot.slane %v2416, 3
    %v2599 = vsel %vm2479, %v2598, %v2597
    %v2600 = vrot.slane %v2417, 2
    %v2601 = vsel %vm2482, %v2600, %v2599
    %v2602 = vrot.slane %v2418, 1
    %v2603 = vsel %vm2485, %v2602, %v2601
    %v2604 = vrot.slane %v2420, 7
    %v2605 = vrot.slane %v2421, 6
    %v2606 = vsel %vm2470, %v2605, %v2604
    %v2607 = vrot.slane %v2422, 5
    %v2608 = vsel %vm2473, %v2607, %v2606
    %v2609 = vrot.slane %v2423, 4
    %v2610 = vsel %vm2476, %v2609, %v2608
    %v2611 = vrot.slane %v2424, 3
    %v2612 = vsel %vm2479, %v2611, %v2610
    %v2613 = vrot.slane %v2425, 2
    %v2614 = vsel %vm2482, %v2613, %v2612
    %v2615 = vrot.slane %v2426, 1
    %v2616 = vsel %vm2485, %v2615, %v2614
    %v2617 = vrot.slane %v2428, 7
    %v2618 = vrot.slane %v2429, 6
    %v2619 = vsel %vm2470, %v2618, %v2617
    %v2620 = vrot.slane %v2430, 5
    %v2621 = vsel %vm2473, %v2620, %v2619
    %v2622 = vrot.slane %v2431, 4
    %v2623 = vsel %vm2476, %v2622, %v2621
    %v2624 = vrot.slane %v2432, 3
    %v2625 = vsel %vm2479, %v2624, %v2623
    %v2626 = vrot.slane %v2433, 2
    %v2627 = vsel %vm2482, %v2626, %v2625
    %v2628 = vrot.slane %v2434, 1
    %v2629 = vsel %vm2485, %v2628, %v2627
    %v2630 = vrot.slane %v2436, 7
    %v2631 = vrot.slane %v2437, 6
    %v2632 = vsel %vm2470, %v2631, %v2630
    %v2633 = vrot.slane %v2438, 5
    %v2634 = vsel %vm2473, %v2633, %v2632
    %v2635 = vrot.slane %v2439, 4
    %v2636 = vsel %vm2476, %v2635, %v2634
    %v2637 = vrot.slane %v2440, 3
    %v2638 = vsel %vm2479, %v2637, %v2636
    %v2639 = vrot.slane %v2441, 2
    %v2640 = vsel %vm2482, %v2639, %v2638
    %v2641 = vrot.slane %v2442, 1
    %v2642 = vsel %vm2485, %v2641, %v2640
    %v2643 = vrot.slane %v2444, 7
    %v2644 = vrot.slane %v2445, 6
    %v2645 = vsel %vm2470, %v2644, %v2643
    %v2646 = vrot.slane %v2446, 5
    %v2647 = vsel %vm2473, %v2646, %v2645
    %v2648 = vrot.slane %v2447, 4
    %v2649 = vsel %vm2476, %v2648, %v2647
    %v2650 = vrot.slane %v2448, 3
    %v2651 = vsel %vm2479, %v2650, %v2649
    %v2652 = vrot.slane %v2449, 2
    %v2653 = vsel %vm2482, %v2652, %v2651
    %v2654 = vrot.slane %v2450, 1
    %v2655 = vsel %vm2485, %v2654, %v2653
    %v2656 = vrot.slane %v2452, 7
    %v2657 = vrot.slane %v2453, 6
    %v2658 = vsel %vm2470, %v2657, %v2656
    %v2659 = vrot.slane %v2454, 5
    %v2660 = vsel %vm2473, %v2659, %v2658
    %v2661 = vrot.slane %v2455, 4
    %v2662 = vsel %vm2476, %v2661, %v2660
    %v2663 = vrot.slane %v2456, 3
    %v2664 = vsel %vm2479, %v2663, %v2662
    %v2665 = vrot.slane %v2457, 2
    %v2666 = vsel %vm2482, %v2665, %v2664
    %v2667 = vrot.slane %v2458, 1
    %v2668 = vsel %vm2485, %v2667, %v2666
    %v2669 = vrot.slane %v2460, 7
    %v2670 = vrot.slane %v2461, 6
    %v2671 = vsel %vm2470, %v2670, %v2669
    %v2672 = vrot.slane %v2462, 5
    %v2673 = vsel %vm2473, %v2672, %v2671
    %v2674 = vrot.slane %v2463, 4
    %v2675 = vsel %vm2476, %v2674, %v2673
    %v2676 = vrot.slane %v2464, 3
    %v2677 = vsel %vm2479, %v2676, %v2675
    %v2678 = vrot.slane %v2465, 2
    %v2679 = vsel %vm2482, %v2678, %v2677
    %v2680 = vrot.slane %v2466, 1
    %v2681 = vsel %vm2485, %v2680, %v2679
    %v2682 = vpack.c.b16 %v2486, %v2486
    %v2683 = vpack.c.b16 %v2347, %v2347
    %v2684 = vpack.c.b16 %v2499, %v2499
    %v2685 = vpack.c.b16 %v2355, %v2355
    %v2686 = vpack.c.b16 %v2512, %v2512
    %v2687 = vpack.c.b16 %v2363, %v2363
    %v2688 = vpack.c.b16 %v2525, %v2525
    %v2689 = vpack.c.b16 %v2371, %v2371
    %v2690 = vpack.c.b16 %v2538, %v2538
    %v2691 = vpack.c.b16 %v2379, %v2379
    %v2692 = vpack.c.b16 %v2551, %v2551
    %v2693 = vpack.c.b16 %v2387, %v2387
    %v2694 = vpack.c.b16 %v2564, %v2564
    %v2695 = vpack.c.b16 %v2395, %v2395
    %v2696 = vpack.c.b16 %v2577, %v2577
    %v2697 = vpack.c.b16 %v2403, %v2403
    %v2698 = vpack.c.b16 %v2590, %v2590
    %v2699 = vpack.c.b16 %v2411, %v2411
    %v2700 = vpack.c.b16 %v2603, %v2603
    %v2701 = vpack.c.b16 %v2419, %v2419
    %v2702 = vpack.c.b16 %v2616, %v2616
    %v2703 = vpack.c.b16 %v2427, %v2427
    %v2704 = vpack.c.b16 %v2629, %v2629
    %v2705 = vpack.c.b16 %v2435, %v2435
    %v2706 = vpack.c.b16 %v2642, %v2642
    %v2707 = vpack.c.b16 %v2443, %v2443
    %v2708 = vpack.c.b16 %v2655, %v2655
    %v2709 = vpack.c.b16 %v2451, %v2451
    %v2710 = vpack.c.b16 %v2668, %v2668
    %v2711 = vpack.c.b16 %v2459, %v2459
    %v2712 = vpack.c.b16 %v2681, %v2681
    %v2713 = vpack.c.b16 %v2467, %v2467
    %vm2746 = vcmask 519168
    %vm2747 = vmand %vm2746, %vm2034
    %v2748 = vld [vmem:[%s1982] sm:$0xf]
    %v2749 = vsel %vm2747, %v2682, %v2748
    %2750 = vst [vmem:[%s1982] sm:$0xf] %v2749
    %v2751 = vld [vmem:[%s1982 + $0x4] sm:$0x1]
    %v2752 = vsel %vm1985, %v2683, %v2751
    %2753 = vst [vmem:[%s1982 + $0x4] sm:$0x1] %v2752
    %v2754 = vld [vmem:[%s1982 + $0x8] sm:$0xf]
    %v2755 = vsel %vm2747, %v2684, %v2754
    %2756 = vst [vmem:[%s1982 + $0x8] sm:$0xf] %v2755
    %v2757 = vld [vmem:[%s1982 + $0xc] sm:$0x1]
    %v2758 = vsel %vm1985, %v2685, %v2757
    %2759 = vst [vmem:[%s1982 + $0xc] sm:$0x1] %v2758
    %v2760 = vld [vmem:[%s1982 + $0x10] sm:$0xf]
    %v2761 = vsel %vm2747, %v2686, %v2760
    %2762 = vst [vmem:[%s1982 + $0x10] sm:$0xf] %v2761
    %v2763 = vld [vmem:[%s1982 + $0x14] sm:$0x1]
    %v2764 = vsel %vm1985, %v2687, %v2763
    %2765 = vst [vmem:[%s1982 + $0x14] sm:$0x1] %v2764
    %v2766 = vld [vmem:[%s1982 + $0x18] sm:$0xf]
    %v2767 = vsel %vm2747, %v2688, %v2766
    %2768 = vst [vmem:[%s1982 + $0x18] sm:$0xf] %v2767
    %v2769 = vld [vmem:[%s1982 + $0x1c] sm:$0x1]
    %v2770 = vsel %vm1985, %v2689, %v2769
    %2771 = vst [vmem:[%s1982 + $0x1c] sm:$0x1] %v2770
    %v2772 = vld [vmem:[%s1982 + $0x20] sm:$0xf]
    %v2773 = vsel %vm2747, %v2690, %v2772
    %2774 = vst [vmem:[%s1982 + $0x20] sm:$0xf] %v2773
    %v2775 = vld [vmem:[%s1982 + $0x24] sm:$0x1]
    %v2776 = vsel %vm1985, %v2691, %v2775
    %2777 = vst [vmem:[%s1982 + $0x24] sm:$0x1] %v2776
    %v2778 = vld [vmem:[%s1982 + $0x28] sm:$0xf]
    %v2779 = vsel %vm2747, %v2692, %v2778
    %2780 = vst [vmem:[%s1982 + $0x28] sm:$0xf] %v2779
    %v2781 = vld [vmem:[%s1982 + $0x2c] sm:$0x1]
    %v2782 = vsel %vm1985, %v2693, %v2781
    %2783 = vst [vmem:[%s1982 + $0x2c] sm:$0x1] %v2782
    %v2784 = vld [vmem:[%s1982 + $0x30] sm:$0xf]
    %v2785 = vsel %vm2747, %v2694, %v2784
    %2786 = vst [vmem:[%s1982 + $0x30] sm:$0xf] %v2785
    %v2787 = vld [vmem:[%s1982 + $0x34] sm:$0x1]
    %v2788 = vsel %vm1985, %v2695, %v2787
    %2789 = vst [vmem:[%s1982 + $0x34] sm:$0x1] %v2788
    %v2790 = vld [vmem:[%s1982 + $0x38] sm:$0xf]
    %v2791 = vsel %vm2747, %v2696, %v2790
    %2792 = vst [vmem:[%s1982 + $0x38] sm:$0xf] %v2791
    %v2793 = vld [vmem:[%s1982 + $0x3c] sm:$0x1]
    %v2794 = vsel %vm1985, %v2697, %v2793
    %2795 = vst [vmem:[%s1982 + $0x3c] sm:$0x1] %v2794
    %v2796 = vld [vmem:[%s1982 + $0x50] sm:$0xf]
    %v2797 = vsel %vm2747, %v2698, %v2796
    %2798 = vst [vmem:[%s1982 + $0x50] sm:$0xf] %v2797
    %v2799 = vld [vmem:[%s1982 + $0x54] sm:$0x1]
    %v2800 = vsel %vm1985, %v2699, %v2799
    %2801 = vst [vmem:[%s1982 + $0x54] sm:$0x1] %v2800
    %v2802 = vld [vmem:[%s1982 + $0x58] sm:$0xf]
    %v2803 = vsel %vm2747, %v2700, %v2802
    %2804 = vst [vmem:[%s1982 + $0x58] sm:$0xf] %v2803
    %v2805 = vld [vmem:[%s1982 + $0x5c] sm:$0x1]
    %v2806 = vsel %vm1985, %v2701, %v2805
    %2807 = vst [vmem:[%s1982 + $0x5c] sm:$0x1] %v2806
    %v2808 = vld [vmem:[%s1982 + $0x60] sm:$0xf]
    %v2809 = vsel %vm2747, %v2702, %v2808
    %2810 = vst [vmem:[%s1982 + $0x60] sm:$0xf] %v2809
    %v2811 = vld [vmem:[%s1982 + $0x64] sm:$0x1]
    %v2812 = vsel %vm1985, %v2703, %v2811
    %2813 = vst [vmem:[%s1982 + $0x64] sm:$0x1] %v2812
    %v2814 = vld [vmem:[%s1982 + $0x68] sm:$0xf]
    %v2815 = vsel %vm2747, %v2704, %v2814
    %2816 = vst [vmem:[%s1982 + $0x68] sm:$0xf] %v2815
    %v2817 = vld [vmem:[%s1982 + $0x6c] sm:$0x1]
    %v2818 = vsel %vm1985, %v2705, %v2817
    %2819 = vst [vmem:[%s1982 + $0x6c] sm:$0x1] %v2818
    %v2820 = vld [vmem:[%s1982 + $0x70] sm:$0xf]
    %v2821 = vsel %vm2747, %v2706, %v2820
    %2822 = vst [vmem:[%s1982 + $0x70] sm:$0xf] %v2821
    %v2823 = vld [vmem:[%s1982 + $0x74] sm:$0x1]
    %v2824 = vsel %vm1985, %v2707, %v2823
    %2825 = vst [vmem:[%s1982 + $0x74] sm:$0x1] %v2824
    %v2826 = vld [vmem:[%s1982 + $0x78] sm:$0xf]
    %v2827 = vsel %vm2747, %v2708, %v2826
    %2828 = vst [vmem:[%s1982 + $0x78] sm:$0xf] %v2827
    %v2829 = vld [vmem:[%s1982 + $0x7c] sm:$0x1]
    %v2830 = vsel %vm1985, %v2709, %v2829
    %2831 = vst [vmem:[%s1982 + $0x7c] sm:$0x1] %v2830
    %v2832 = vld [vmem:[%s1982 + $0x80] sm:$0xf]
    %v2833 = vsel %vm2747, %v2710, %v2832
    %2834 = vst [vmem:[%s1982 + $0x80] sm:$0xf] %v2833
    %v2835 = vld [vmem:[%s1982 + $0x84] sm:$0x1]
    %v2836 = vsel %vm1985, %v2711, %v2835
    %2837 = vst [vmem:[%s1982 + $0x84] sm:$0x1] %v2836
    %v2838 = vld [vmem:[%s1982 + $0x88] sm:$0xf]
    %v2839 = vsel %vm2747, %v2712, %v2838
    %2840 = vst [vmem:[%s1982 + $0x88] sm:$0xf] %v2839
    %v2841 = vld [vmem:[%s1982 + $0x8c] sm:$0x1]
    %v2842 = vsel %vm1985, %v2713, %v2841
    %2843 = vst [vmem:[%s1982 + $0x8c] sm:$0x1] %v2842
    %v2844 = vld [vmem:[#allocation2] sm:$0xf]
    %v2845 = vld [vmem:[#allocation2 + $0x8] sm:$0xf]
    %v2846 = vld [vmem:[#allocation2 + $0x10] sm:$0xf]
    %v2847 = vld [vmem:[#allocation2 + $0x18] sm:$0xf]
    %v2848 = vld [vmem:[#allocation2 + $0x20] sm:$0xf]
    %v2849 = vld [vmem:[#allocation2 + $0x28] sm:$0xf]
    %v2850 = vld [vmem:[#allocation2 + $0x30] sm:$0xf]
    %v2851 = vld [vmem:[#allocation2 + $0x38] sm:$0xf]
    %v2852 = vld [vmem:[#allocation2 + $0x50] sm:$0xf]
    %v2853 = vld [vmem:[#allocation2 + $0x58] sm:$0xf]
    %v2854 = vld [vmem:[#allocation2 + $0x60] sm:$0xf]
    %v2855 = vld [vmem:[#allocation2 + $0x68] sm:$0xf]
    %v2856 = vld [vmem:[#allocation2 + $0x70] sm:$0xf]
    %v2857 = vld [vmem:[#allocation2 + $0x78] sm:$0xf]
    %v2858 = vld [vmem:[#allocation2 + $0x80] sm:$0xf]
    %v2859 = vld [vmem:[#allocation2 + $0x88] sm:$0xf]
    %2860 = vst.msk [vmem:[#allocation3] sm:$0xf] %vm1971, %v2844
    %2861 = vst.msk [vmem:[#allocation3 + $0x14] sm:$0xf] %vm1971, %v2845
    %2862 = vst.msk [vmem:[#allocation3 + $0x28] sm:$0xf] %vm1971, %v2846
    %2863 = vst.msk [vmem:[#allocation3 + $0x3c] sm:$0xf] %vm1971, %v2847
    %2864 = vst.msk [vmem:[#allocation3 + $0x50] sm:$0xf] %vm1971, %v2848
    %2865 = vst.msk [vmem:[#allocation3 + $0x64] sm:$0xf] %vm1971, %v2849
    %2866 = vst.msk [vmem:[#allocation3 + $0x78] sm:$0xf] %vm1971, %v2850
    %2867 = vst.msk [vmem:[#allocation3 + $0x8c] sm:$0xf] %vm1971, %v2851
    %2868 = vst.msk [vmem:[#allocation3 + $0xa0] sm:$0xf] %vm1971, %v2852
    %2869 = vst.msk [vmem:[#allocation3 + $0xb4] sm:$0xf] %vm1971, %v2853
    %2870 = vst.msk [vmem:[#allocation3 + $0xc8] sm:$0xf] %vm1971, %v2854
    %2871 = vst.msk [vmem:[#allocation3 + $0xdc] sm:$0xf] %vm1971, %v2855
    %2872 = vst.msk [vmem:[#allocation3 + $0xf0] sm:$0xf] %vm1971, %v2856
    %2873 = vst.msk [vmem:[#allocation3 + $0x104] sm:$0xf] %vm1971, %v2857
    %2874 = vst.msk [vmem:[#allocation3 + $0x118] sm:$0xf] %vm1971, %v2858
    %2875 = vst.msk [vmem:[#allocation3 + $0x12c] sm:$0xf] %vm1971, %v2859
    %v2876 = vld [vmem:[#allocation2] sm:$0xf]
    %v2877 = vld [vmem:[#allocation2 + $0x4] sm:$0x1]
    %v2878 = vld [vmem:[#allocation2 + $0x8] sm:$0xf]
    %v2879 = vld [vmem:[#allocation2 + $0xc] sm:$0x1]
    %v2880 = vld [vmem:[#allocation2 + $0x10] sm:$0xf]
    %v2881 = vld [vmem:[#allocation2 + $0x14] sm:$0x1]
    %v2882 = vld [vmem:[#allocation2 + $0x18] sm:$0xf]
    %v2883 = vld [vmem:[#allocation2 + $0x1c] sm:$0x1]
    %v2884 = vld [vmem:[#allocation2 + $0x20] sm:$0xf]
    %v2885 = vld [vmem:[#allocation2 + $0x24] sm:$0x1]
    %v2886 = vld [vmem:[#allocation2 + $0x28] sm:$0xf]
    %v2887 = vld [vmem:[#allocation2 + $0x2c] sm:$0x1]
    %v2888 = vld [vmem:[#allocation2 + $0x30] sm:$0xf]
    %v2889 = vld [vmem:[#allocation2 + $0x34] sm:$0x1]
    %v2890 = vld [vmem:[#allocation2 + $0x38] sm:$0xf]
    %v2891 = vld [vmem:[#allocation2 + $0x3c] sm:$0x1]
    %v2892 = vld [vmem:[#allocation2 + $0x50] sm:$0xf]
    %v2893 = vld [vmem:[#allocation2 + $0x54] sm:$0x1]
    %v2894 = vld [vmem:[#allocation2 + $0x58] sm:$0xf]
    %v2895 = vld [vmem:[#allocation2 + $0x5c] sm:$0x1]
    %v2896 = vld [vmem:[#allocation2 + $0x60] sm:$0xf]
    %v2897 = vld [vmem:[#allocation2 + $0x64] sm:$0x1]
    %v2898 = vld [vmem:[#allocation2 + $0x68] sm:$0xf]
    %v2899 = vld [vmem:[#allocation2 + $0x6c] sm:$0x1]
    %v2900 = vld [vmem:[#allocation2 + $0x70] sm:$0xf]
    %v2901 = vld [vmem:[#allocation2 + $0x74] sm:$0x1]
    %v2902 = vld [vmem:[#allocation2 + $0x78] sm:$0xf]
    %v2903 = vld [vmem:[#allocation2 + $0x7c] sm:$0x1]
    %v2904 = vld [vmem:[#allocation2 + $0x80] sm:$0xf]
    %v2905 = vld [vmem:[#allocation2 + $0x84] sm:$0x1]
    %v2906 = vld [vmem:[#allocation2 + $0x88] sm:$0xf]
    %v2907 = vld [vmem:[#allocation2 + $0x8c] sm:$0x1]
    %vm2908 = vsmask.f32 3328
    %vm2909 = vsmask.f32 7440
    %vm2910 = vmor %vm2908, %vm2909
    %v2912 = vshrl.u32 %v2876, 16
    %v2914 = vrot.slane %v2912, 4
    %v2915 = vshll.u32 %v2876, 16
    %v2917 = vrot.slane %v2915, 5
    %v2918 = vor.u32 %v2914, %v2917
    %v2919 = vrot.slane %v2918, 4
    %v2921 = vshll.u32 %v2877, 16
    %v2923 = vrot.slane %v2921, 5
    %v2924 = vsel %vm2910, %v2919, %v2923
    %v2926 = vshrl.u32 %v2878, 16
    %v2928 = vrot.slane %v2926, 4
    %v2929 = vshll.u32 %v2878, 16
    %v2931 = vrot.slane %v2929, 5
    %v2932 = vor.u32 %v2928, %v2931
    %v2933 = vrot.slane %v2932, 4
    %v2935 = vshll.u32 %v2879, 16
    %v2937 = vrot.slane %v2935, 5
    %v2938 = vsel %vm2910, %v2933, %v2937
    %v2940 = vshrl.u32 %v2880, 16
    %v2942 = vrot.slane %v2940, 4
    %v2943 = vshll.u32 %v2880, 16
    %v2945 = vrot.slane %v2943, 5
    %v2946 = vor.u32 %v2942, %v2945
    %v2947 = vrot.slane %v2946, 4
    %v2949 = vshll.u32 %v2881, 16
    %v2951 = vrot.slane %v2949, 5
    %v2952 = vsel %vm2910, %v2947, %v2951
    %v2954 = vshrl.u32 %v2882, 16
    %v2956 = vrot.slane %v2954, 4
    %v2957 = vshll.u32 %v2882, 16
    %v2959 = vrot.slane %v2957, 5
    %v2960 = vor.u32 %v2956, %v2959
    %v2961 = vrot.slane %v2960, 4
    %v2963 = vshll.u32 %v2883, 16
    %v2965 = vrot.slane %v2963, 5
    %v2966 = vsel %vm2910, %v2961, %v2965
    %v2968 = vshrl.u32 %v2884, 16
    %v2970 = vrot.slane %v2968, 4
    %v2971 = vshll.u32 %v2884, 16
    %v2973 = vrot.slane %v2971, 5
    %v2974 = vor.u32 %v2970, %v2973
    %v2975 = vrot.slane %v2974, 4
    %v2977 = vshll.u32 %v2885, 16
    %v2979 = vrot.slane %v2977, 5
    %v2980 = vsel %vm2910, %v2975, %v2979
    %v2982 = vshrl.u32 %v2886, 16
    %v2984 = vrot.slane %v2982, 4
    %v2985 = vshll.u32 %v2886, 16
    %v2987 = vrot.slane %v2985, 5
    %v2988 = vor.u32 %v2984, %v2987
    %v2989 = vrot.slane %v2988, 4
    %v2991 = vshll.u32 %v2887, 16
    %v2993 = vrot.slane %v2991, 5
    %v2994 = vsel %vm2910, %v2989, %v2993
    %v2996 = vshrl.u32 %v2888, 16
    %v2998 = vrot.slane %v2996, 4
    %v2999 = vshll.u32 %v2888, 16
    %v3001 = vrot.slane %v2999, 5
    %v3002 = vor.u32 %v2998, %v3001
    %v3003 = vrot.slane %v3002, 4
    %v3005 = vshll.u32 %v2889, 16
    %v3007 = vrot.slane %v3005, 5
    %v3008 = vsel %vm2910, %v3003, %v3007
    %v3010 = vshrl.u32 %v2890, 16
    %v3012 = vrot.slane %v3010, 4
    %v3013 = vshll.u32 %v2890, 16
    %v3015 = vrot.slane %v3013, 5
    %v3016 = vor.u32 %v3012, %v3015
    %v3017 = vrot.slane %v3016, 4
    %v3019 = vshll.u32 %v2891, 16
    %v3021 = vrot.slane %v3019, 5
    %v3022 = vsel %vm2910, %v3017, %v3021
    %v3024 = vshrl.u32 %v2892, 16
    %v3026 = vrot.slane %v3024, 4
    %v3027 = vshll.u32 %v2892, 16
    %v3029 = vrot.slane %v3027, 5
    %v3030 = vor.u32 %v3026, %v3029
    %v3031 = vrot.slane %v3030, 4
    %v3033 = vshll.u32 %v2893, 16
    %v3035 = vrot.slane %v3033, 5
    %v3036 = vsel %vm2910, %v3031, %v3035
    %v3038 = vshrl.u32 %v2894, 16
    %v3040 = vrot.slane %v3038, 4
    %v3041 = vshll.u32 %v2894, 16
    %v3043 = vrot.slane %v3041, 5
    %v3044 = vor.u32 %v3040, %v3043
    %v3045 = vrot.slane %v3044, 4
    %v3047 = vshll.u32 %v2895, 16
    %v3049 = vrot.slane %v3047, 5
    %v3050 = vsel %vm2910, %v3045, %v3049
    %v3052 = vshrl.u32 %v2896, 16
    %v3054 = vrot.slane %v3052, 4
    %v3055 = vshll.u32 %v2896, 16
    %v3057 = vrot.slane %v3055, 5
    %v3058 = vor.u32 %v3054, %v3057
    %v3059 = vrot.slane %v3058, 4
    %v3061 = vshll.u32 %v2897, 16
    %v3063 = vrot.slane %v3061, 5
    %v3064 = vsel %vm2910, %v3059, %v3063
    %v3066 = vshrl.u32 %v2898, 16
    %v3068 = vrot.slane %v3066, 4
    %v3069 = vshll.u32 %v2898, 16
    %v3071 = vrot.slane %v3069, 5
    %v3072 = vor.u32 %v3068, %v3071
    %v3073 = vrot.slane %v3072, 4
    %v3075 = vshll.u32 %v2899, 16
    %v3077 = vrot.slane %v3075, 5
    %v3078 = vsel %vm2910, %v3073, %v3077
    %v3080 = vshrl.u32 %v2900, 16
    %v3082 = vrot.slane %v3080, 4
    %v3083 = vshll.u32 %v2900, 16
    %v3085 = vrot.slane %v3083, 5
    %v3086 = vor.u32 %v3082, %v3085
    %v3087 = vrot.slane %v3086, 4
    %v3089 = vshll.u32 %v2901, 16
    %v3091 = vrot.slane %v3089, 5
    %v3092 = vsel %vm2910, %v3087, %v3091
    %v3094 = vshrl.u32 %v2902, 16
    %v3096 = vrot.slane %v3094, 4
    %v3097 = vshll.u32 %v2902, 16
    %v3099 = vrot.slane %v3097, 5
    %v3100 = vor.u32 %v3096, %v3099
    %v3101 = vrot.slane %v3100, 4
    %v3103 = vshll.u32 %v2903, 16
    %v3105 = vrot.slane %v3103, 5
    %v3106 = vsel %vm2910, %v3101, %v3105
    %v3108 = vshrl.u32 %v2904, 16
    %v3110 = vrot.slane %v3108, 4
    %v3111 = vshll.u32 %v2904, 16
    %v3113 = vrot.slane %v3111, 5
    %v3114 = vor.u32 %v3110, %v3113
    %v3115 = vrot.slane %v3114, 4
    %v3117 = vshll.u32 %v2905, 16
    %v3119 = vrot.slane %v3117, 5
    %v3120 = vsel %vm2910, %v3115, %v3119
    %v3122 = vshrl.u32 %v2906, 16
    %v3124 = vrot.slane %v3122, 4
    %v3125 = vshll.u32 %v2906, 16
    %v3127 = vrot.slane %v3125, 5
    %v3128 = vor.u32 %v3124, %v3127
    %v3129 = vrot.slane %v3128, 4
    %v3131 = vshll.u32 %v2907, 16
    %v3133 = vrot.slane %v3131, 5
    %v3134 = vsel %vm2910, %v3129, %v3133
    %3135 = vrot.lane.b32.xlu0 %v2924, 64
    %v3136 = vpop.permute.xlu0 %3135
    %3137 = vrot.lane.b32.xlu0 %v2938, 64
    %v3138 = vpop.permute.xlu0 %3137
    %3139 = vrot.lane.b32.xlu0 %v2952, 64
    %v3140 = vpop.permute.xlu0 %3139
    %3141 = vrot.lane.b32.xlu0 %v2966, 64
    %v3142 = vpop.permute.xlu0 %3141
    %3143 = vrot.lane.b32.xlu0 %v2980, 64
    %v3144 = vpop.permute.xlu0 %3143
    %3145 = vrot.lane.b32.xlu0 %v2994, 64
    %v3146 = vpop.permute.xlu0 %3145
    %3147 = vrot.lane.b32.xlu0 %v3008, 64
    %v3148 = vpop.permute.xlu0 %3147
    %3149 = vrot.lane.b32.xlu0 %v3022, 64
    %v3150 = vpop.permute.xlu0 %3149
    %3151 = vrot.lane.b32.xlu0 %v3036, 64
    %v3152 = vpop.permute.xlu0 %3151
    %3153 = vrot.lane.b32.xlu0 %v3050, 64
    %v3154 = vpop.permute.xlu0 %3153
    %3155 = vrot.lane.b32.xlu0 %v3064, 64
    %v3156 = vpop.permute.xlu0 %3155
    %3157 = vrot.lane.b32.xlu0 %v3078, 64
    %v3158 = vpop.permute.xlu0 %3157
    %3159 = vrot.lane.b32.xlu0 %v3092, 64
    %v3160 = vpop.permute.xlu0 %3159
    %3161 = vrot.lane.b32.xlu0 %v3106, 64
    %v3162 = vpop.permute.xlu0 %3161
    %3163 = vrot.lane.b32.xlu0 %v3120, 64
    %v3164 = vpop.permute.xlu0 %3163
    %3165 = vrot.lane.b32.xlu0 %v3134, 64
    %v3166 = vpop.permute.xlu0 %3165
    %vm3183 = vcmask 1043968
    %3184 = vst.msk [vmem:[#allocation3] sm:$0xf] %vm3183, %v3136
    %3185 = vst.msk [vmem:[#allocation3 + $0x14] sm:$0xf] %vm3183, %v3138
    %3186 = vst.msk [vmem:[#allocation3 + $0x28] sm:$0xf] %vm3183, %v3140
    %3187 = vst.msk [vmem:[#allocation3 + $0x3c] sm:$0xf] %vm3183, %v3142
    %3188 = vst.msk [vmem:[#allocation3 + $0x50] sm:$0xf] %vm3183, %v3144
    %3189 = vst.msk [vmem:[#allocation3 + $0x64] sm:$0xf] %vm3183, %v3146
    %3190 = vst.msk [vmem:[#allocation3 + $0x78] sm:$0xf] %vm3183, %v3148
    %3191 = vst.msk [vmem:[#allocation3 + $0x8c] sm:$0xf] %vm3183, %v3150
    %3192 = vst.msk [vmem:[#allocation3 + $0xa0] sm:$0xf] %vm3183, %v3152
    %3193 = vst.msk [vmem:[#allocation3 + $0xb4] sm:$0xf] %vm3183, %v3154
    %3194 = vst.msk [vmem:[#allocation3 + $0xc8] sm:$0xf] %vm3183, %v3156
    %3195 = vst.msk [vmem:[#allocation3 + $0xdc] sm:$0xf] %vm3183, %v3158
    %3196 = vst.msk [vmem:[#allocation3 + $0xf0] sm:$0xf] %vm3183, %v3160
    %3197 = vst.msk [vmem:[#allocation3 + $0x104] sm:$0xf] %vm3183, %v3162
    %3198 = vst.msk [vmem:[#allocation3 + $0x118] sm:$0xf] %vm3183, %v3164
    %3199 = vst.msk [vmem:[#allocation3 + $0x12c] sm:$0xf] %vm3183, %v3166
    %v3200 = vld [vmem:[#allocation2] sm:$0xe]
    %v3201 = vld [vmem:[#allocation2 + $0x4] sm:$0x1]
    %v3202 = vld [vmem:[#allocation2 + $0x8] sm:$0xe]
    %v3203 = vld [vmem:[#allocation2 + $0xc] sm:$0x1]
    %v3204 = vld [vmem:[#allocation2 + $0x10] sm:$0xe]
    %v3205 = vld [vmem:[#allocation2 + $0x14] sm:$0x1]
    %v3206 = vld [vmem:[#allocation2 + $0x18] sm:$0xe]
    %v3207 = vld [vmem:[#allocation2 + $0x1c] sm:$0x1]
    %v3208 = vld [vmem:[#allocation2 + $0x20] sm:$0xe]
    %v3209 = vld [vmem:[#allocation2 + $0x24] sm:$0x1]
    %v3210 = vld [vmem:[#allocation2 + $0x28] sm:$0xe]
    %v3211 = vld [vmem:[#allocation2 + $0x2c] sm:$0x1]
    %v3212 = vld [vmem:[#allocation2 + $0x30] sm:$0xe]
    %v3213 = vld [vmem:[#allocation2 + $0x34] sm:$0x1]
    %v3214 = vld [vmem:[#allocation2 + $0x38] sm:$0xe]
    %v3215 = vld [vmem:[#allocation2 + $0x3c] sm:$0x1]
    %v3216 = vld [vmem:[#allocation2 + $0x50] sm:$0xe]
    %v3217 = vld [vmem:[#allocation2 + $0x54] sm:$0x1]
    %v3218 = vld [vmem:[#allocation2 + $0x58] sm:$0xe]
    %v3219 = vld [vmem:[#allocation2 + $0x5c] sm:$0x1]
    %v3220 = vld [vmem:[#allocation2 + $0x60] sm:$0xe]
    %v3221 = vld [vmem:[#allocation2 + $0x64] sm:$0x1]
    %v3222 = vld [vmem:[#allocation2 + $0x68] sm:$0xe]
    %v3223 = vld [vmem:[#allocation2 + $0x6c] sm:$0x1]
    %v3224 = vld [vmem:[#allocation2 + $0x70] sm:$0xe]
    %v3225 = vld [vmem:[#allocation2 + $0x74] sm:$0x1]
    %v3226 = vld [vmem:[#allocation2 + $0x78] sm:$0xe]
    %v3227 = vld [vmem:[#allocation2 + $0x7c] sm:$0x1]
    %v3228 = vld [vmem:[#allocation2 + $0x80] sm:$0xe]
    %v3229 = vld [vmem:[#allocation2 + $0x84] sm:$0x1]
    %v3230 = vld [vmem:[#allocation2 + $0x88] sm:$0xe]
    %v3231 = vld [vmem:[#allocation2 + $0x8c] sm:$0x1]
    %vm3264 = vcmask 1042432
    %vm3265 = vcmask 1046532
    %vm3266 = vmor %vm3264, %vm3265
    %v3267 = vrot.slane %v3200, 5
    %v3268 = vrot.slane %v3267, 4
    %v3269 = vrot.slane %v3201, 5
    %v3270 = vsel %vm3266, %v3268, %v3269
    %v3271 = vrot.slane %v3202, 5
    %v3272 = vrot.slane %v3271, 4
    %v3273 = vrot.slane %v3203, 5
    %v3274 = vsel %vm3266, %v3272, %v3273
    %v3275 = vrot.slane %v3204, 5
    %v3276 = vrot.slane %v3275, 4
    %v3277 = vrot.slane %v3205, 5
    %v3278 = vsel %vm3266, %v3276, %v3277
    %v3279 = vrot.slane %v3206, 5
    %v3280 = vrot.slane %v3279, 4
    %v3281 = vrot.slane %v3207, 5
    %v3282 = vsel %vm3266, %v3280, %v3281
    %v3283 = vrot.slane %v3208, 5
    %v3284 = vrot.slane %v3283, 4
    %v3285 = vrot.slane %v3209, 5
    %v3286 = vsel %vm3266, %v3284, %v3285
    %v3287 = vrot.slane %v3210, 5
    %v3288 = vrot.slane %v3287, 4
    %v3289 = vrot.slane %v3211, 5
    %v3290 = vsel %vm3266, %v3288, %v3289
    %v3291 = vrot.slane %v3212, 5
    %v3292 = vrot.slane %v3291, 4
    %v3293 = vrot.slane %v3213, 5
    %v3294 = vsel %vm3266, %v3292, %v3293
    %v3295 = vrot.slane %v3214, 5
    %v3296 = vrot.slane %v3295, 4
    %v3297 = vrot.slane %v3215, 5
    %v3298 = vsel %vm3266, %v3296, %v3297
    %v3299 = vrot.slane %v3216, 5
    %v3300 = vrot.slane %v3299, 4
    %v3301 = vrot.slane %v3217, 5
    %v3302 = vsel %vm3266, %v3300, %v3301
    %v3303 = vrot.slane %v3218, 5
    %v3304 = vrot.slane %v3303, 4
    %v3305 = vrot.slane %v3219, 5
    %v3306 = vsel %vm3266, %v3304, %v3305
    %v3307 = vrot.slane %v3220, 5
    %v3308 = vrot.slane %v3307, 4
    %v3309 = vrot.slane %v3221, 5
    %v3310 = vsel %vm3266, %v3308, %v3309
    %v3311 = vrot.slane %v3222, 5
    %v3312 = vrot.slane %v3311, 4
    %v3313 = vrot.slane %v3223, 5
    %v3314 = vsel %vm3266, %v3312, %v3313
    %v3315 = vrot.slane %v3224, 5
    %v3316 = vrot.slane %v3315, 4
    %v3317 = vrot.slane %v3225, 5
    %v3318 = vsel %vm3266, %v3316, %v3317
    %v3319 = vrot.slane %v3226, 5
    %v3320 = vrot.slane %v3319, 4
    %v3321 = vrot.slane %v3227, 5
    %v3322 = vsel %vm3266, %v3320, %v3321
    %v3323 = vrot.slane %v3228, 5
    %v3324 = vrot.slane %v3323, 4
    %v3325 = vrot.slane %v3229, 5
    %v3326 = vsel %vm3266, %v3324, %v3325
    %v3327 = vrot.slane %v3230, 5
    %v3328 = vrot.slane %v3327, 4
    %v3329 = vrot.slane %v3231, 5
    %v3330 = vsel %vm3266, %v3328, %v3329
    %3347 = vst.msk [vmem:[#allocation3 + $0x4] sm:$0xf] %vm1971, %v3270
    %3348 = vst.msk [vmem:[#allocation3 + $0x18] sm:$0xf] %vm1971, %v3274
    %3349 = vst.msk [vmem:[#allocation3 + $0x2c] sm:$0xf] %vm1971, %v3278
    %3350 = vst.msk [vmem:[#allocation3 + $0x40] sm:$0xf] %vm1971, %v3282
    %3351 = vst.msk [vmem:[#allocation3 + $0x54] sm:$0xf] %vm1971, %v3286
    %3352 = vst.msk [vmem:[#allocation3 + $0x68] sm:$0xf] %vm1971, %v3290
    %3353 = vst.msk [vmem:[#allocation3 + $0x7c] sm:$0xf] %vm1971, %v3294
    %3354 = vst.msk [vmem:[#allocation3 + $0x90] sm:$0xf] %vm1971, %v3298
    %3355 = vst.msk [vmem:[#allocation3 + $0xa4] sm:$0xf] %vm1971, %v3302
    %3356 = vst.msk [vmem:[#allocation3 + $0xb8] sm:$0xf] %vm1971, %v3306
    %3357 = vst.msk [vmem:[#allocation3 + $0xcc] sm:$0xf] %vm1971, %v3310
    %3358 = vst.msk [vmem:[#allocation3 + $0xe0] sm:$0xf] %vm1971, %v3314
    %3359 = vst.msk [vmem:[#allocation3 + $0xf4] sm:$0xf] %vm1971, %v3318
    %3360 = vst.msk [vmem:[#allocation3 + $0x108] sm:$0xf] %vm1971, %v3322
    %3361 = vst.msk [vmem:[#allocation3 + $0x11c] sm:$0xf] %vm1971, %v3326
    %3362 = vst.msk [vmem:[#allocation3 + $0x130] sm:$0xf] %vm1971, %v3330
    %v3363 = vld [vmem:[%s1982] sm:$0xf]
    %v3364 = vld [vmem:[%s1982 + $0x8] sm:$0xf]
    %v3365 = vld [vmem:[%s1982 + $0x10] sm:$0xf]
    %v3366 = vld [vmem:[%s1982 + $0x18] sm:$0xf]
    %v3367 = vld [vmem:[%s1982 + $0x20] sm:$0xf]
    %v3368 = vld [vmem:[%s1982 + $0x28] sm:$0xf]
    %v3369 = vld [vmem:[%s1982 + $0x30] sm:$0xf]
    %v3370 = vld [vmem:[%s1982 + $0x38] sm:$0xf]
    %v3371 = vld [vmem:[%s1982 + $0x50] sm:$0xf]
    %v3372 = vld [vmem:[%s1982 + $0x58] sm:$0xf]
    %v3373 = vld [vmem:[%s1982 + $0x60] sm:$0xf]
    %v3374 = vld [vmem:[%s1982 + $0x68] sm:$0xf]
    %v3375 = vld [vmem:[%s1982 + $0x70] sm:$0xf]
    %v3376 = vld [vmem:[%s1982 + $0x78] sm:$0xf]
    %v3377 = vld [vmem:[%s1982 + $0x80] sm:$0xf]
    %v3378 = vld [vmem:[%s1982 + $0x88] sm:$0xf]
    %3395 = vrot.lane.b32.xlu0 %v3363, 64
    %v3396 = vpop.permute.xlu0 %3395
    %3397 = vrot.lane.b32.xlu0 %v3364, 64
    %v3398 = vpop.permute.xlu0 %3397
    %3399 = vrot.lane.b32.xlu0 %v3365, 64
    %v3400 = vpop.permute.xlu0 %3399
    %3401 = vrot.lane.b32.xlu0 %v3366, 64
    %v3402 = vpop.permute.xlu0 %3401
    %3403 = vrot.lane.b32.xlu0 %v3367, 64
    %v3404 = vpop.permute.xlu0 %3403
    %3405 = vrot.lane.b32.xlu0 %v3368, 64
    %v3406 = vpop.permute.xlu0 %3405
    %3407 = vrot.lane.b32.xlu0 %v3369, 64
    %v3408 = vpop.permute.xlu0 %3407
    %3409 = vrot.lane.b32.xlu0 %v3370, 64
    %v3410 = vpop.permute.xlu0 %3409
    %3411 = vrot.lane.b32.xlu0 %v3371, 64
    %v3412 = vpop.permute.xlu0 %3411
    %3413 = vrot.lane.b32.xlu0 %v3372, 64
    %v3414 = vpop.permute.xlu0 %3413
    %3415 = vrot.lane.b32.xlu0 %v3373, 64
    %v3416 = vpop.permute.xlu0 %3415
    %3417 = vrot.lane.b32.xlu0 %v3374, 64
    %v3418 = vpop.permute.xlu0 %3417
    %3419 = vrot.lane.b32.xlu0 %v3375, 64
    %v3420 = vpop.permute.xlu0 %3419
    %3421 = vrot.lane.b32.xlu0 %v3376, 64
    %v3422 = vpop.permute.xlu0 %3421
    %3423 = vrot.lane.b32.xlu0 %v3377, 64
    %v3424 = vpop.permute.xlu0 %3423
    %3425 = vrot.lane.b32.xlu0 %v3378, 64
    %v3426 = vpop.permute.xlu0 %3425
    %3443 = vst.msk [vmem:[#allocation3 + $0x4] sm:$0xf] %vm3183, %v3396
    %3444 = vst.msk [vmem:[#allocation3 + $0x18] sm:$0xf] %vm3183, %v3398
    %3445 = vst.msk [vmem:[#allocation3 + $0x2c] sm:$0xf] %vm3183, %v3400
    %3446 = vst.msk [vmem:[#allocation3 + $0x40] sm:$0xf] %vm3183, %v3402
    %3447 = vst.msk [vmem:[#allocation3 + $0x54] sm:$0xf] %vm3183, %v3404
    %3448 = vst.msk [vmem:[#allocation3 + $0x68] sm:$0xf] %vm3183, %v3406
    %3449 = vst.msk [vmem:[#allocation3 + $0x7c] sm:$0xf] %vm3183, %v3408
    %3450 = vst.msk [vmem:[#allocation3 + $0x90] sm:$0xf] %vm3183, %v3410
    %3451 = vst.msk [vmem:[#allocation3 + $0xa4] sm:$0xf] %vm3183, %v3412
    %3452 = vst.msk [vmem:[#allocation3 + $0xb8] sm:$0xf] %vm3183, %v3414
    %3453 = vst.msk [vmem:[#allocation3 + $0xcc] sm:$0xf] %vm3183, %v3416
    %3454 = vst.msk [vmem:[#allocation3 + $0xe0] sm:$0xf] %vm3183, %v3418
    %3455 = vst.msk [vmem:[#allocation3 + $0xf4] sm:$0xf] %vm3183, %v3420
    %3456 = vst.msk [vmem:[#allocation3 + $0x108] sm:$0xf] %vm3183, %v3422
    %3457 = vst.msk [vmem:[#allocation3 + $0x11c] sm:$0xf] %vm3183, %v3424
    %3458 = vst.msk [vmem:[#allocation3 + $0x130] sm:$0xf] %vm3183, %v3426
    %v3459 = vld [vmem:[%s1982] sm:$0xf]
    %v3460 = vld [vmem:[%s1982 + $0x4] sm:$0x1]
    %v3461 = vld [vmem:[%s1982 + $0x8] sm:$0xf]
    %v3462 = vld [vmem:[%s1982 + $0xc] sm:$0x1]
    %v3463 = vld [vmem:[%s1982 + $0x10] sm:$0xf]
    %v3464 = vld [vmem:[%s1982 + $0x14] sm:$0x1]
    %v3465 = vld [vmem:[%s1982 + $0x18] sm:$0xf]
    %v3466 = vld [vmem:[%s1982 + $0x1c] sm:$0x1]
    %v3467 = vld [vmem:[%s1982 + $0x20] sm:$0xf]
    %v3468 = vld [vmem:[%s1982 + $0x24] sm:$0x1]
    %v3469 = vld [vmem:[%s1982 + $0x28] sm:$0xf]
    %v3470 = vld [vmem:[%s1982 + $0x2c] sm:$0x1]
    %v3471 = vld [vmem:[%s1982 + $0x30] sm:$0xf]
    %v3472 = vld [vmem:[%s1982 + $0x34] sm:$0x1]
    %v3473 = vld [vmem:[%s1982 + $0x38] sm:$0xf]
    %v3474 = vld [vmem:[%s1982 + $0x3c] sm:$0x1]
    %v3475 = vld [vmem:[%s1982 + $0x50] sm:$0xf]
    %v3476 = vld [vmem:[%s1982 + $0x54] sm:$0x1]
    %v3477 = vld [vmem:[%s1982 + $0x58] sm:$0xf]
    %v3478 = vld [vmem:[%s1982 + $0x5c] sm:$0x1]
    %v3479 = vld [vmem:[%s1982 + $0x60] sm:$0xf]
    %v3480 = vld [vmem:[%s1982 + $0x64] sm:$0x1]
    %v3481 = vld [vmem:[%s1982 + $0x68] sm:$0xf]
    %v3482 = vld [vmem:[%s1982 + $0x6c] sm:$0x1]
    %v3483 = vld [vmem:[%s1982 + $0x70] sm:$0xf]
    %v3484 = vld [vmem:[%s1982 + $0x74] sm:$0x1]
    %v3485 = vld [vmem:[%s1982 + $0x78] sm:$0xf]
    %v3486 = vld [vmem:[%s1982 + $0x7c] sm:$0x1]
    %v3487 = vld [vmem:[%s1982 + $0x80] sm:$0xf]
    %v3488 = vld [vmem:[%s1982 + $0x84] sm:$0x1]
    %v3489 = vld [vmem:[%s1982 + $0x88] sm:$0xf]
    %v3490 = vld [vmem:[%s1982 + $0x8c] sm:$0x1]
    %v3492 = vshrl.u32 %v3459, 16
    %v3494 = vrot.slane %v3492, 4
    %v3495 = vshll.u32 %v3459, 16
    %v3497 = vrot.slane %v3495, 5
    %v3498 = vor.u32 %v3494, %v3497
    %v3499 = vrot.slane %v3498, 4
    %v3501 = vshll.u32 %v3460, 16
    %v3503 = vrot.slane %v3501, 5
    %v3504 = vsel %vm2910, %v3499, %v3503
    %v3506 = vshrl.u32 %v3461, 16
    %v3508 = vrot.slane %v3506, 4
    %v3509 = vshll.u32 %v3461, 16
    %v3511 = vrot.slane %v3509, 5
    %v3512 = vor.u32 %v3508, %v3511
    %v3513 = vrot.slane %v3512, 4
    %v3515 = vshll.u32 %v3462, 16
    %v3517 = vrot.slane %v3515, 5
    %v3518 = vsel %vm2910, %v3513, %v3517
    %v3520 = vshrl.u32 %v3463, 16
    %v3522 = vrot.slane %v3520, 4
    %v3523 = vshll.u32 %v3463, 16
    %v3525 = vrot.slane %v3523, 5
    %v3526 = vor.u32 %v3522, %v3525
    %v3527 = vrot.slane %v3526, 4
    %v3529 = vshll.u32 %v3464, 16
    %v3531 = vrot.slane %v3529, 5
    %v3532 = vsel %vm2910, %v3527, %v3531
    %v3534 = vshrl.u32 %v3465, 16
    %v3536 = vrot.slane %v3534, 4
    %v3537 = vshll.u32 %v3465, 16
    %v3539 = vrot.slane %v3537, 5
    %v3540 = vor.u32 %v3536, %v3539
    %v3541 = vrot.slane %v3540, 4
    %v3543 = vshll.u32 %v3466, 16
    %v3545 = vrot.slane %v3543, 5
    %v3546 = vsel %vm2910, %v3541, %v3545
    %v3548 = vshrl.u32 %v3467, 16
    %v3550 = vrot.slane %v3548, 4
    %v3551 = vshll.u32 %v3467, 16
    %v3553 = vrot.slane %v3551, 5
    %v3554 = vor.u32 %v3550, %v3553
    %v3555 = vrot.slane %v3554, 4
    %v3557 = vshll.u32 %v3468, 16
    %v3559 = vrot.slane %v3557, 5
    %v3560 = vsel %vm2910, %v3555, %v3559
    %v3562 = vshrl.u32 %v3469, 16
    %v3564 = vrot.slane %v3562, 4
    %v3565 = vshll.u32 %v3469, 16
    %v3567 = vrot.slane %v3565, 5
    %v3568 = vor.u32 %v3564, %v3567
    %v3569 = vrot.slane %v3568, 4
    %v3571 = vshll.u32 %v3470, 16
    %v3573 = vrot.slane %v3571, 5
    %v3574 = vsel %vm2910, %v3569, %v3573
    %v3576 = vshrl.u32 %v3471, 16
    %v3578 = vrot.slane %v3576, 4
    %v3579 = vshll.u32 %v3471, 16
    %v3581 = vrot.slane %v3579, 5
    %v3582 = vor.u32 %v3578, %v3581
    %v3583 = vrot.slane %v3582, 4
    %v3585 = vshll.u32 %v3472, 16
    %v3587 = vrot.slane %v3585, 5
    %v3588 = vsel %vm2910, %v3583, %v3587
    %v3590 = vshrl.u32 %v3473, 16
    %v3592 = vrot.slane %v3590, 4
    %v3593 = vshll.u32 %v3473, 16
    %v3595 = vrot.slane %v3593, 5
    %v3596 = vor.u32 %v3592, %v3595
    %v3597 = vrot.slane %v3596, 4
    %v3599 = vshll.u32 %v3474, 16
    %v3601 = vrot.slane %v3599, 5
    %v3602 = vsel %vm2910, %v3597, %v3601
    %v3604 = vshrl.u32 %v3475, 16
    %v3606 = vrot.slane %v3604, 4
    %v3607 = vshll.u32 %v3475, 16
    %v3609 = vrot.slane %v3607, 5
    %v3610 = vor.u32 %v3606, %v3609
    %v3611 = vrot.slane %v3610, 4
    %v3613 = vshll.u32 %v3476, 16
    %v3615 = vrot.slane %v3613, 5
    %v3616 = vsel %vm2910, %v3611, %v3615
    %v3618 = vshrl.u32 %v3477, 16
    %v3620 = vrot.slane %v3618, 4
    %v3621 = vshll.u32 %v3477, 16
    %v3623 = vrot.slane %v3621, 5
    %v3624 = vor.u32 %v3620, %v3623
    %v3625 = vrot.slane %v3624, 4
    %v3627 = vshll.u32 %v3478, 16
    %v3629 = vrot.slane %v3627, 5
    %v3630 = vsel %vm2910, %v3625, %v3629
    %v3632 = vshrl.u32 %v3479, 16
    %v3634 = vrot.slane %v3632, 4
    %v3635 = vshll.u32 %v3479, 16
    %v3637 = vrot.slane %v3635, 5
    %v3638 = vor.u32 %v3634, %v3637
    %v3639 = vrot.slane %v3638, 4
    %v3641 = vshll.u32 %v3480, 16
    %v3643 = vrot.slane %v3641, 5
    %v3644 = vsel %vm2910, %v3639, %v3643
    %v3646 = vshrl.u32 %v3481, 16
    %v3648 = vrot.slane %v3646, 4
    %v3649 = vshll.u32 %v3481, 16
    %v3651 = vrot.slane %v3649, 5
    %v3652 = vor.u32 %v3648, %v3651
    %v3653 = vrot.slane %v3652, 4
    %v3655 = vshll.u32 %v3482, 16
    %v3657 = vrot.slane %v3655, 5
    %v3658 = vsel %vm2910, %v3653, %v3657
    %v3660 = vshrl.u32 %v3483, 16
    %v3662 = vrot.slane %v3660, 4
    %v3663 = vshll.u32 %v3483, 16
    %v3665 = vrot.slane %v3663, 5
    %v3666 = vor.u32 %v3662, %v3665
    %v3667 = vrot.slane %v3666, 4
    %v3669 = vshll.u32 %v3484, 16
    %v3671 = vrot.slane %v3669, 5
    %v3672 = vsel %vm2910, %v3667, %v3671
    %v3674 = vshrl.u32 %v3485, 16
    %v3676 = vrot.slane %v3674, 4
    %v3677 = vshll.u32 %v3485, 16
    %v3679 = vrot.slane %v3677, 5
    %v3680 = vor.u32 %v3676, %v3679
    %v3681 = vrot.slane %v3680, 4
    %v3683 = vshll.u32 %v3486, 16
    %v3685 = vrot.slane %v3683, 5
    %v3686 = vsel %vm2910, %v3681, %v3685
    %v3688 = vshrl.u32 %v3487, 16
    %v3690 = vrot.slane %v3688, 4
    %v3691 = vshll.u32 %v3487, 16
    %v3693 = vrot.slane %v3691, 5
    %v3694 = vor.u32 %v3690, %v3693
    %v3695 = vrot.slane %v3694, 4
    %v3697 = vshll.u32 %v3488, 16
    %v3699 = vrot.slane %v3697, 5
    %v3700 = vsel %vm2910, %v3695, %v3699
    %v3702 = vshrl.u32 %v3489, 16
    %v3704 = vrot.slane %v3702, 4
    %v3705 = vshll.u32 %v3489, 16
    %v3707 = vrot.slane %v3705, 5
    %v3708 = vor.u32 %v3704, %v3707
    %v3709 = vrot.slane %v3708, 4
    %v3711 = vshll.u32 %v3490, 16
    %v3713 = vrot.slane %v3711, 5
    %v3714 = vsel %vm2910, %v3709, %v3713
    %3731 = vst.msk [vmem:[#allocation3 + $0x8] sm:$0xf] %vm1971, %v3504
    %3732 = vst.msk [vmem:[#allocation3 + $0x1c] sm:$0xf] %vm1971, %v3518
    %3733 = vst.msk [vmem:[#allocation3 + $0x30] sm:$0xf] %vm1971, %v3532
    %3734 = vst.msk [vmem:[#allocation3 + $0x44] sm:$0xf] %vm1971, %v3546
    %3735 = vst.msk [vmem:[#allocation3 + $0x58] sm:$0xf] %vm1971, %v3560
    %3736 = vst.msk [vmem:[#allocation3 + $0x6c] sm:$0xf] %vm1971, %v3574
    %3737 = vst.msk [vmem:[#allocation3 + $0x80] sm:$0xf] %vm1971, %v3588
    %3738 = vst.msk [vmem:[#allocation3 + $0x94] sm:$0xf] %vm1971, %v3602
    %3739 = vst.msk [vmem:[#allocation3 + $0xa8] sm:$0xf] %vm1971, %v3616
    %3740 = vst.msk [vmem:[#allocation3 + $0xbc] sm:$0xf] %vm1971, %v3630
    %3741 = vst.msk [vmem:[#allocation3 + $0xd0] sm:$0xf] %vm1971, %v3644
    %3742 = vst.msk [vmem:[#allocation3 + $0xe4] sm:$0xf] %vm1971, %v3658
    %3743 = vst.msk [vmem:[#allocation3 + $0xf8] sm:$0xf] %vm1971, %v3672
    %3744 = vst.msk [vmem:[#allocation3 + $0x10c] sm:$0xf] %vm1971, %v3686
    %3745 = vst.msk [vmem:[#allocation3 + $0x120] sm:$0xf] %vm1971, %v3700
    %3746 = vst.msk [vmem:[#allocation3 + $0x134] sm:$0xf] %vm1971, %v3714
    %v3747 = vld [vmem:[%s1982] sm:$0xe]
    %v3748 = vld [vmem:[%s1982 + $0x4] sm:$0x1]
    %v3749 = vld [vmem:[%s1982 + $0x8] sm:$0xe]
    %v3750 = vld [vmem:[%s1982 + $0xc] sm:$0x1]
    %v3751 = vld [vmem:[%s1982 + $0x10] sm:$0xe]
    %v3752 = vld [vmem:[%s1982 + $0x14] sm:$0x1]
    %v3753 = vld [vmem:[%s1982 + $0x18] sm:$0xe]
    %v3754 = vld [vmem:[%s1982 + $0x1c] sm:$0x1]
    %v3755 = vld [vmem:[%s1982 + $0x20] sm:$0xe]
    %v3756 = vld [vmem:[%s1982 + $0x24] sm:$0x1]
    %v3757 = vld [vmem:[%s1982 + $0x28] sm:$0xe]
    %v3758 = vld [vmem:[%s1982 + $0x2c] sm:$0x1]
    %v3759 = vld [vmem:[%s1982 + $0x30] sm:$0xe]
    %v3760 = vld [vmem:[%s1982 + $0x34] sm:$0x1]
    %v3761 = vld [vmem:[%s1982 + $0x38] sm:$0xe]
    %v3762 = vld [vmem:[%s1982 + $0x3c] sm:$0x1]
    %v3763 = vld [vmem:[%s1982 + $0x50] sm:$0xe]
    %v3764 = vld [vmem:[%s1982 + $0x54] sm:$0x1]
    %v3765 = vld [vmem:[%s1982 + $0x58] sm:$0xe]
    %v3766 = vld [vmem:[%s1982 + $0x5c] sm:$0x1]
    %v3767 = vld [vmem:[%s1982 + $0x60] sm:$0xe]
    %v3768 = vld [vmem:[%s1982 + $0x64] sm:$0x1]
    %v3769 = vld [vmem:[%s1982 + $0x68] sm:$0xe]
    %v3770 = vld [vmem:[%s1982 + $0x6c] sm:$0x1]
    %v3771 = vld [vmem:[%s1982 + $0x70] sm:$0xe]
    %v3772 = vld [vmem:[%s1982 + $0x74] sm:$0x1]
    %v3773 = vld [vmem:[%s1982 + $0x78] sm:$0xe]
    %v3774 = vld [vmem:[%s1982 + $0x7c] sm:$0x1]
    %v3775 = vld [vmem:[%s1982 + $0x80] sm:$0xe]
    %v3776 = vld [vmem:[%s1982 + $0x84] sm:$0x1]
    %v3777 = vld [vmem:[%s1982 + $0x88] sm:$0xe]
    %v3778 = vld [vmem:[%s1982 + $0x8c] sm:$0x1]
    %v3811 = vrot.slane %v3747, 5
    %v3812 = vrot.slane %v3811, 4
    %v3813 = vrot.slane %v3748, 5
    %v3814 = vsel %vm3266, %v3812, %v3813
    %v3815 = vrot.slane %v3749, 5
    %v3816 = vrot.slane %v3815, 4
    %v3817 = vrot.slane %v3750, 5
    %v3818 = vsel %vm3266, %v3816, %v3817
    %v3819 = vrot.slane %v3751, 5
    %v3820 = vrot.slane %v3819, 4
    %v3821 = vrot.slane %v3752, 5
    %v3822 = vsel %vm3266, %v3820, %v3821
    %v3823 = vrot.slane %v3753, 5
    %v3824 = vrot.slane %v3823, 4
    %v3825 = vrot.slane %v3754, 5
    %v3826 = vsel %vm3266, %v3824, %v3825
    %v3827 = vrot.slane %v3755, 5
    %v3828 = vrot.slane %v3827, 4
    %v3829 = vrot.slane %v3756, 5
    %v3830 = vsel %vm3266, %v3828, %v3829
    %v3831 = vrot.slane %v3757, 5
    %v3832 = vrot.slane %v3831, 4
    %v3833 = vrot.slane %v3758, 5
    %v3834 = vsel %vm3266, %v3832, %v3833
    %v3835 = vrot.slane %v3759, 5
    %v3836 = vrot.slane %v3835, 4
    %v3837 = vrot.slane %v3760, 5
    %v3838 = vsel %vm3266, %v3836, %v3837
    %v3839 = vrot.slane %v3761, 5
    %v3840 = vrot.slane %v3839, 4
    %v3841 = vrot.slane %v3762, 5
    %v3842 = vsel %vm3266, %v3840, %v3841
    %v3843 = vrot.slane %v3763, 5
    %v3844 = vrot.slane %v3843, 4
    %v3845 = vrot.slane %v3764, 5
    %v3846 = vsel %vm3266, %v3844, %v3845
    %v3847 = vrot.slane %v3765, 5
    %v3848 = vrot.slane %v3847, 4
    %v3849 = vrot.slane %v3766, 5
    %v3850 = vsel %vm3266, %v3848, %v3849
    %v3851 = vrot.slane %v3767, 5
    %v3852 = vrot.slane %v3851, 4
    %v3853 = vrot.slane %v3768, 5
    %v3854 = vsel %vm3266, %v3852, %v3853
    %v3855 = vrot.slane %v3769, 5
    %v3856 = vrot.slane %v3855, 4
    %v3857 = vrot.slane %v3770, 5
    %v3858 = vsel %vm3266, %v3856, %v3857
    %v3859 = vrot.slane %v3771, 5
    %v3860 = vrot.slane %v3859, 4
    %v3861 = vrot.slane %v3772, 5
    %v3862 = vsel %vm3266, %v3860, %v3861
    %v3863 = vrot.slane %v3773, 5
    %v3864 = vrot.slane %v3863, 4
    %v3865 = vrot.slane %v3774, 5
    %v3866 = vsel %vm3266, %v3864, %v3865
    %v3867 = vrot.slane %v3775, 5
    %v3868 = vrot.slane %v3867, 4
    %v3869 = vrot.slane %v3776, 5
    %v3870 = vsel %vm3266, %v3868, %v3869
    %v3871 = vrot.slane %v3777, 5
    %v3872 = vrot.slane %v3871, 4
    %v3873 = vrot.slane %v3778, 5
    %v3874 = vsel %vm3266, %v3872, %v3873
    %3875 = vrot.lane.b32.xlu0 %v3814, 64
    %v3876 = vpop.permute.xlu0 %3875
    %3877 = vrot.lane.b32.xlu0 %v3818, 64
    %v3878 = vpop.permute.xlu0 %3877
    %3879 = vrot.lane.b32.xlu0 %v3822, 64
    %v3880 = vpop.permute.xlu0 %3879
    %3881 = vrot.lane.b32.xlu0 %v3826, 64
    %v3882 = vpop.permute.xlu0 %3881
    %3883 = vrot.lane.b32.xlu0 %v3830, 64
    %v3884 = vpop.permute.xlu0 %3883
    %3885 = vrot.lane.b32.xlu0 %v3834, 64
    %v3886 = vpop.permute.xlu0 %3885
    %3887 = vrot.lane.b32.xlu0 %v3838, 64
    %v3888 = vpop.permute.xlu0 %3887
    %3889 = vrot.lane.b32.xlu0 %v3842, 64
    %v3890 = vpop.permute.xlu0 %3889
    %3891 = vrot.lane.b32.xlu0 %v3846, 64
    %v3892 = vpop.permute.xlu0 %3891
    %3893 = vrot.lane.b32.xlu0 %v3850, 64
    %v3894 = vpop.permute.xlu0 %3893
    %3895 = vrot.lane.b32.xlu0 %v3854, 64
    %v3896 = vpop.permute.xlu0 %3895
    %3897 = vrot.lane.b32.xlu0 %v3858, 64
    %v3898 = vpop.permute.xlu0 %3897
    %3899 = vrot.lane.b32.xlu0 %v3862, 64
    %v3900 = vpop.permute.xlu0 %3899
    %3901 = vrot.lane.b32.xlu0 %v3866, 64
    %v3902 = vpop.permute.xlu0 %3901
    %3903 = vrot.lane.b32.xlu0 %v3870, 64
    %v3904 = vpop.permute.xlu0 %3903
    %3905 = vrot.lane.b32.xlu0 %v3874, 64
    %v3906 = vpop.permute.xlu0 %3905
    %3923 = vst.msk [vmem:[#allocation3 + $0x8] sm:$0xf] %vm3183, %v3876
    %3924 = vst.msk [vmem:[#allocation3 + $0x1c] sm:$0xf] %vm3183, %v3878
    %3925 = vst.msk [vmem:[#allocation3 + $0x30] sm:$0xf] %vm3183, %v3880
    %3926 = vst.msk [vmem:[#allocation3 + $0x44] sm:$0xf] %vm3183, %v3882
    %3927 = vst.msk [vmem:[#allocation3 + $0x58] sm:$0xf] %vm3183, %v3884
    %3928 = vst.msk [vmem:[#allocation3 + $0x6c] sm:$0xf] %vm3183, %v3886
    %3929 = vst.msk [vmem:[#allocation3 + $0x80] sm:$0xf] %vm3183, %v3888
    %3930 = vst.msk [vmem:[#allocation3 + $0x94] sm:$0xf] %vm3183, %v3890
    %3931 = vst.msk [vmem:[#allocation3 + $0xa8] sm:$0xf] %vm3183, %v3892
    %3932 = vst.msk [vmem:[#allocation3 + $0xbc] sm:$0xf] %vm3183, %v3894
    %3933 = vst.msk [vmem:[#allocation3 + $0xd0] sm:$0xf] %vm3183, %v3896
    %3934 = vst.msk [vmem:[#allocation3 + $0xe4] sm:$0xf] %vm3183, %v3898
    %3935 = vst.msk [vmem:[#allocation3 + $0xf8] sm:$0xf] %vm3183, %v3900
    %3936 = vst.msk [vmem:[#allocation3 + $0x10c] sm:$0xf] %vm3183, %v3902
    %3937 = vst.msk [vmem:[#allocation3 + $0x120] sm:$0xf] %vm3183, %v3904
    %3938 = vst.msk [vmem:[#allocation3 + $0x134] sm:$0xf] %vm3183, %v3906
    %s3939 = scalar_lea.vmem [#allocation2], 16
    %v3940 = vld [vmem:[%s3939] sm:$0xf]
    %v3941 = vld [vmem:[%s3939 + $0x8] sm:$0xf]
    %v3942 = vld [vmem:[%s3939 + $0x10] sm:$0xf]
    %v3943 = vld [vmem:[%s3939 + $0x18] sm:$0xf]
    %v3944 = vld [vmem:[%s3939 + $0x20] sm:$0xf]
    %v3945 = vld [vmem:[%s3939 + $0x28] sm:$0xf]
    %v3946 = vld [vmem:[%s3939 + $0x30] sm:$0xf]
    %v3947 = vld [vmem:[%s3939 + $0x38] sm:$0xf]
    %v3948 = vld [vmem:[%s3939 + $0x50] sm:$0xf]
    %v3949 = vld [vmem:[%s3939 + $0x58] sm:$0xf]
    %v3950 = vld [vmem:[%s3939 + $0x60] sm:$0xf]
    %v3951 = vld [vmem:[%s3939 + $0x68] sm:$0xf]
    %v3952 = vld [vmem:[%s3939 + $0x70] sm:$0xf]
    %v3953 = vld [vmem:[%s3939 + $0x78] sm:$0xf]
    %v3954 = vld [vmem:[%s3939 + $0x80] sm:$0xf]
    %v3955 = vld [vmem:[%s3939 + $0x88] sm:$0xf]
    %3956 = vst.msk [vmem:[#allocation3 + $0xc] sm:$0xf] %vm1971, %v3940
    %3957 = vst.msk [vmem:[#allocation3 + $0x20] sm:$0xf] %vm1971, %v3941
    %3958 = vst.msk [vmem:[#allocation3 + $0x34] sm:$0xf] %vm1971, %v3942
    %3959 = vst.msk [vmem:[#allocation3 + $0x48] sm:$0xf] %vm1971, %v3943
    %3960 = vst.msk [vmem:[#allocation3 + $0x5c] sm:$0xf] %vm1971, %v3944
    %3961 = vst.msk [vmem:[#allocation3 + $0x70] sm:$0xf] %vm1971, %v3945
    %3962 = vst.msk [vmem:[#allocation3 + $0x84] sm:$0xf] %vm1971, %v3946
    %3963 = vst.msk [vmem:[#allocation3 + $0x98] sm:$0xf] %vm1971, %v3947
    %3964 = vst.msk [vmem:[#allocation3 + $0xac] sm:$0xf] %vm1971, %v3948
    %3965 = vst.msk [vmem:[#allocation3 + $0xc0] sm:$0xf] %vm1971, %v3949
    %3966 = vst.msk [vmem:[#allocation3 + $0xd4] sm:$0xf] %vm1971, %v3950
    %3967 = vst.msk [vmem:[#allocation3 + $0xe8] sm:$0xf] %vm1971, %v3951
    %3968 = vst.msk [vmem:[#allocation3 + $0xfc] sm:$0xf] %vm1971, %v3952
    %3969 = vst.msk [vmem:[#allocation3 + $0x110] sm:$0xf] %vm1971, %v3953
    %3970 = vst.msk [vmem:[#allocation3 + $0x124] sm:$0xf] %vm1971, %v3954
    %3971 = vst.msk [vmem:[#allocation3 + $0x138] sm:$0xf] %vm1971, %v3955
    %v3972 = vld [vmem:[%s3939] sm:$0xf]
    %v3973 = vld [vmem:[%s3939 + $0x4] sm:$0x1]
    %v3974 = vld [vmem:[%s3939 + $0x8] sm:$0xf]
    %v3975 = vld [vmem:[%s3939 + $0xc] sm:$0x1]
    %v3976 = vld [vmem:[%s3939 + $0x10] sm:$0xf]
    %v3977 = vld [vmem:[%s3939 + $0x14] sm:$0x1]
    %v3978 = vld [vmem:[%s3939 + $0x18] sm:$0xf]
    %v3979 = vld [vmem:[%s3939 + $0x1c] sm:$0x1]
    %v3980 = vld [vmem:[%s3939 + $0x20] sm:$0xf]
    %v3981 = vld [vmem:[%s3939 + $0x24] sm:$0x1]
    %v3982 = vld [vmem:[%s3939 + $0x28] sm:$0xf]
    %v3983 = vld [vmem:[%s3939 + $0x2c] sm:$0x1]
    %v3984 = vld [vmem:[%s3939 + $0x30] sm:$0xf]
    %v3985 = vld [vmem:[%s3939 + $0x34] sm:$0x1]
    %v3986 = vld [vmem:[%s3939 + $0x38] sm:$0xf]
    %v3987 = vld [vmem:[%s3939 + $0x3c] sm:$0x1]
    %v3988 = vld [vmem:[%s3939 + $0x50] sm:$0xf]
    %v3989 = vld [vmem:[%s3939 + $0x54] sm:$0x1]
    %v3990 = vld [vmem:[%s3939 + $0x58] sm:$0xf]
    %v3991 = vld [vmem:[%s3939 + $0x5c] sm:$0x1]
    %v3992 = vld [vmem:[%s3939 + $0x60] sm:$0xf]
    %v3993 = vld [vmem:[%s3939 + $0x64] sm:$0x1]
    %v3994 = vld [vmem:[%s3939 + $0x68] sm:$0xf]
    %v3995 = vld [vmem:[%s3939 + $0x6c] sm:$0x1]
    %v3996 = vld [vmem:[%s3939 + $0x70] sm:$0xf]
    %v3997 = vld [vmem:[%s3939 + $0x74] sm:$0x1]
    %v3998 = vld [vmem:[%s3939 + $0x78] sm:$0xf]
    %v3999 = vld [vmem:[%s3939 + $0x7c] sm:$0x1]
    %v4000 = vld [vmem:[%s3939 + $0x80] sm:$0xf]
    %v4001 = vld [vmem:[%s3939 + $0x84] sm:$0x1]
    %v4002 = vld [vmem:[%s3939 + $0x88] sm:$0xf]
    %v4003 = vld [vmem:[%s3939 + $0x8c] sm:$0x1]
    %v4005 = vshrl.u32 %v3972, 16
    %v4007 = vrot.slane %v4005, 4
    %v4008 = vshll.u32 %v3972, 16
    %v4010 = vrot.slane %v4008, 5
    %v4011 = vor.u32 %v4007, %v4010
    %v4012 = vrot.slane %v4011, 4
    %v4014 = vshll.u32 %v3973, 16
    %v4016 = vrot.slane %v4014, 5
    %v4017 = vsel %vm2910, %v4012, %v4016
    %v4019 = vshrl.u32 %v3974, 16
    %v4021 = vrot.slane %v4019, 4
    %v4022 = vshll.u32 %v3974, 16
    %v4024 = vrot.slane %v4022, 5
    %v4025 = vor.u32 %v4021, %v4024
    %v4026 = vrot.slane %v4025, 4
    %v4028 = vshll.u32 %v3975, 16
    %v4030 = vrot.slane %v4028, 5
    %v4031 = vsel %vm2910, %v4026, %v4030
    %v4033 = vshrl.u32 %v3976, 16
    %v4035 = vrot.slane %v4033, 4
    %v4036 = vshll.u32 %v3976, 16
    %v4038 = vrot.slane %v4036, 5
    %v4039 = vor.u32 %v4035, %v4038
    %v4040 = vrot.slane %v4039, 4
    %v4042 = vshll.u32 %v3977, 16
    %v4044 = vrot.slane %v4042, 5
    %v4045 = vsel %vm2910, %v4040, %v4044
    %v4047 = vshrl.u32 %v3978, 16
    %v4049 = vrot.slane %v4047, 4
    %v4050 = vshll.u32 %v3978, 16
    %v4052 = vrot.slane %v4050, 5
    %v4053 = vor.u32 %v4049, %v4052
    %v4054 = vrot.slane %v4053, 4
    %v4056 = vshll.u32 %v3979, 16
    %v4058 = vrot.slane %v4056, 5
    %v4059 = vsel %vm2910, %v4054, %v4058
    %v4061 = vshrl.u32 %v3980, 16
    %v4063 = vrot.slane %v4061, 4
    %v4064 = vshll.u32 %v3980, 16
    %v4066 = vrot.slane %v4064, 5
    %v4067 = vor.u32 %v4063, %v4066
    %v4068 = vrot.slane %v4067, 4
    %v4070 = vshll.u32 %v3981, 16
    %v4072 = vrot.slane %v4070, 5
    %v4073 = vsel %vm2910, %v4068, %v4072
    %v4075 = vshrl.u32 %v3982, 16
    %v4077 = vrot.slane %v4075, 4
    %v4078 = vshll.u32 %v3982, 16
    %v4080 = vrot.slane %v4078, 5
    %v4081 = vor.u32 %v4077, %v4080
    %v4082 = vrot.slane %v4081, 4
    %v4084 = vshll.u32 %v3983, 16
    %v4086 = vrot.slane %v4084, 5
    %v4087 = vsel %vm2910, %v4082, %v4086
    %v4089 = vshrl.u32 %v3984, 16
    %v4091 = vrot.slane %v4089, 4
    %v4092 = vshll.u32 %v3984, 16
    %v4094 = vrot.slane %v4092, 5
    %v4095 = vor.u32 %v4091, %v4094
    %v4096 = vrot.slane %v4095, 4
    %v4098 = vshll.u32 %v3985, 16
    %v4100 = vrot.slane %v4098, 5
    %v4101 = vsel %vm2910, %v4096, %v4100
    %v4103 = vshrl.u32 %v3986, 16
    %v4105 = vrot.slane %v4103, 4
    %v4106 = vshll.u32 %v3986, 16
    %v4108 = vrot.slane %v4106, 5
    %v4109 = vor.u32 %v4105, %v4108
    %v4110 = vrot.slane %v4109, 4
    %v4112 = vshll.u32 %v3987, 16
    %v4114 = vrot.slane %v4112, 5
    %v4115 = vsel %vm2910, %v4110, %v4114
    %v4117 = vshrl.u32 %v3988, 16
    %v4119 = vrot.slane %v4117, 4
    %v4120 = vshll.u32 %v3988, 16
    %v4122 = vrot.slane %v4120, 5
    %v4123 = vor.u32 %v4119, %v4122
    %v4124 = vrot.slane %v4123, 4
    %v4126 = vshll.u32 %v3989, 16
    %v4128 = vrot.slane %v4126, 5
    %v4129 = vsel %vm2910, %v4124, %v4128
    %v4131 = vshrl.u32 %v3990, 16
    %v4133 = vrot.slane %v4131, 4
    %v4134 = vshll.u32 %v3990, 16
    %v4136 = vrot.slane %v4134, 5
    %v4137 = vor.u32 %v4133, %v4136
    %v4138 = vrot.slane %v4137, 4
    %v4140 = vshll.u32 %v3991, 16
    %v4142 = vrot.slane %v4140, 5
    %v4143 = vsel %vm2910, %v4138, %v4142
    %v4145 = vshrl.u32 %v3992, 16
    %v4147 = vrot.slane %v4145, 4
    %v4148 = vshll.u32 %v3992, 16
    %v4150 = vrot.slane %v4148, 5
    %v4151 = vor.u32 %v4147, %v4150
    %v4152 = vrot.slane %v4151, 4
    %v4154 = vshll.u32 %v3993, 16
    %v4156 = vrot.slane %v4154, 5
    %v4157 = vsel %vm2910, %v4152, %v4156
    %v4159 = vshrl.u32 %v3994, 16
    %v4161 = vrot.slane %v4159, 4
    %v4162 = vshll.u32 %v3994, 16
    %v4164 = vrot.slane %v4162, 5
    %v4165 = vor.u32 %v4161, %v4164
    %v4166 = vrot.slane %v4165, 4
    %v4168 = vshll.u32 %v3995, 16
    %v4170 = vrot.slane %v4168, 5
    %v4171 = vsel %vm2910, %v4166, %v4170
    %v4173 = vshrl.u32 %v3996, 16
    %v4175 = vrot.slane %v4173, 4
    %v4176 = vshll.u32 %v3996, 16
    %v4178 = vrot.slane %v4176, 5
    %v4179 = vor.u32 %v4175, %v4178
    %v4180 = vrot.slane %v4179, 4
    %v4182 = vshll.u32 %v3997, 16
    %v4184 = vrot.slane %v4182, 5
    %v4185 = vsel %vm2910, %v4180, %v4184
    %v4187 = vshrl.u32 %v3998, 16
    %v4189 = vrot.slane %v4187, 4
    %v4190 = vshll.u32 %v3998, 16
    %v4192 = vrot.slane %v4190, 5
    %v4193 = vor.u32 %v4189, %v4192
    %v4194 = vrot.slane %v4193, 4
    %v4196 = vshll.u32 %v3999, 16
    %v4198 = vrot.slane %v4196, 5
    %v4199 = vsel %vm2910, %v4194, %v4198
    %v4201 = vshrl.u32 %v4000, 16
    %v4203 = vrot.slane %v4201, 4
    %v4204 = vshll.u32 %v4000, 16
    %v4206 = vrot.slane %v4204, 5
    %v4207 = vor.u32 %v4203, %v4206
    %v4208 = vrot.slane %v4207, 4
    %v4210 = vshll.u32 %v4001, 16
    %v4212 = vrot.slane %v4210, 5
    %v4213 = vsel %vm2910, %v4208, %v4212
    %v4215 = vshrl.u32 %v4002, 16
    %v4217 = vrot.slane %v4215, 4
    %v4218 = vshll.u32 %v4002, 16
    %v4220 = vrot.slane %v4218, 5
    %v4221 = vor.u32 %v4217, %v4220
    %v4222 = vrot.slane %v4221, 4
    %v4224 = vshll.u32 %v4003, 16
    %v4226 = vrot.slane %v4224, 5
    %v4227 = vsel %vm2910, %v4222, %v4226
    %4228 = vrot.lane.b32.xlu0 %v4017, 64
    %v4229 = vpop.permute.xlu0 %4228
    %4230 = vrot.lane.b32.xlu0 %v4031, 64
    %v4231 = vpop.permute.xlu0 %4230
    %4232 = vrot.lane.b32.xlu0 %v4045, 64
    %v4233 = vpop.permute.xlu0 %4232
    %4234 = vrot.lane.b32.xlu0 %v4059, 64
    %v4235 = vpop.permute.xlu0 %4234
    %4236 = vrot.lane.b32.xlu0 %v4073, 64
    %v4237 = vpop.permute.xlu0 %4236
    %4238 = vrot.lane.b32.xlu0 %v4087, 64
    %v4239 = vpop.permute.xlu0 %4238
    %4240 = vrot.lane.b32.xlu0 %v4101, 64
    %v4241 = vpop.permute.xlu0 %4240
    %4242 = vrot.lane.b32.xlu0 %v4115, 64
    %v4243 = vpop.permute.xlu0 %4242
    %4244 = vrot.lane.b32.xlu0 %v4129, 64
    %v4245 = vpop.permute.xlu0 %4244
    %4246 = vrot.lane.b32.xlu0 %v4143, 64
    %v4247 = vpop.permute.xlu0 %4246
    %4248 = vrot.lane.b32.xlu0 %v4157, 64
    %v4249 = vpop.permute.xlu0 %4248
    %4250 = vrot.lane.b32.xlu0 %v4171, 64
    %v4251 = vpop.permute.xlu0 %4250
    %4252 = vrot.lane.b32.xlu0 %v4185, 64
    %v4253 = vpop.permute.xlu0 %4252
    %4254 = vrot.lane.b32.xlu0 %v4199, 64
    %v4255 = vpop.permute.xlu0 %4254
    %4256 = vrot.lane.b32.xlu0 %v4213, 64
    %v4257 = vpop.permute.xlu0 %4256
    %4258 = vrot.lane.b32.xlu0 %v4227, 64
    %v4259 = vpop.permute.xlu0 %4258
    %4276 = vst.msk [vmem:[#allocation3 + $0xc] sm:$0xf] %vm3183, %v4229
    %4277 = vst.msk [vmem:[#allocation3 + $0x20] sm:$0xf] %vm3183, %v4231
    %4278 = vst.msk [vmem:[#allocation3 + $0x34] sm:$0xf] %vm3183, %v4233
    %4279 = vst.msk [vmem:[#allocation3 + $0x48] sm:$0xf] %vm3183, %v4235
    %4280 = vst.msk [vmem:[#allocation3 + $0x5c] sm:$0xf] %vm3183, %v4237
    %4281 = vst.msk [vmem:[#allocation3 + $0x70] sm:$0xf] %vm3183, %v4239
    %4282 = vst.msk [vmem:[#allocation3 + $0x84] sm:$0xf] %vm3183, %v4241
    %4283 = vst.msk [vmem:[#allocation3 + $0x98] sm:$0xf] %vm3183, %v4243
    %4284 = vst.msk [vmem:[#allocation3 + $0xac] sm:$0xf] %vm3183, %v4245
    %4285 = vst.msk [vmem:[#allocation3 + $0xc0] sm:$0xf] %vm3183, %v4247
    %4286 = vst.msk [vmem:[#allocation3 + $0xd4] sm:$0xf] %vm3183, %v4249
    %4287 = vst.msk [vmem:[#allocation3 + $0xe8] sm:$0xf] %vm3183, %v4251
    %4288 = vst.msk [vmem:[#allocation3 + $0xfc] sm:$0xf] %vm3183, %v4253
    %4289 = vst.msk [vmem:[#allocation3 + $0x110] sm:$0xf] %vm3183, %v4255
    %4290 = vst.msk [vmem:[#allocation3 + $0x124] sm:$0xf] %vm3183, %v4257
    %4291 = vst.msk [vmem:[#allocation3 + $0x138] sm:$0xf] %vm3183, %v4259
    %v4292 = vld [vmem:[%s3939] sm:$0xe]
    %v4293 = vld [vmem:[%s3939 + $0x4] sm:$0x1]
    %v4294 = vld [vmem:[%s3939 + $0x8] sm:$0xe]
    %v4295 = vld [vmem:[%s3939 + $0xc] sm:$0x1]
    %v4296 = vld [vmem:[%s3939 + $0x10] sm:$0xe]
    %v4297 = vld [vmem:[%s3939 + $0x14] sm:$0x1]
    %v4298 = vld [vmem:[%s3939 + $0x18] sm:$0xe]
    %v4299 = vld [vmem:[%s3939 + $0x1c] sm:$0x1]
    %v4300 = vld [vmem:[%s3939 + $0x20] sm:$0xe]
    %v4301 = vld [vmem:[%s3939 + $0x24] sm:$0x1]
    %v4302 = vld [vmem:[%s3939 + $0x28] sm:$0xe]
    %v4303 = vld [vmem:[%s3939 + $0x2c] sm:$0x1]
    %v4304 = vld [vmem:[%s3939 + $0x30] sm:$0xe]
    %v4305 = vld [vmem:[%s3939 + $0x34] sm:$0x1]
    %v4306 = vld [vmem:[%s3939 + $0x38] sm:$0xe]
    %v4307 = vld [vmem:[%s3939 + $0x3c] sm:$0x1]
    %v4308 = vld [vmem:[%s3939 + $0x50] sm:$0xe]
    %v4309 = vld [vmem:[%s3939 + $0x54] sm:$0x1]
    %v4310 = vld [vmem:[%s3939 + $0x58] sm:$0xe]
    %v4311 = vld [vmem:[%s3939 + $0x5c] sm:$0x1]
    %v4312 = vld [vmem:[%s3939 + $0x60] sm:$0xe]
    %v4313 = vld [vmem:[%s3939 + $0x64] sm:$0x1]
    %v4314 = vld [vmem:[%s3939 + $0x68] sm:$0xe]
    %v4315 = vld [vmem:[%s3939 + $0x6c] sm:$0x1]
    %v4316 = vld [vmem:[%s3939 + $0x70] sm:$0xe]
    %v4317 = vld [vmem:[%s3939 + $0x74] sm:$0x1]
    %v4318 = vld [vmem:[%s3939 + $0x78] sm:$0xe]
    %v4319 = vld [vmem:[%s3939 + $0x7c] sm:$0x1]
    %v4320 = vld [vmem:[%s3939 + $0x80] sm:$0xe]
    %v4321 = vld [vmem:[%s3939 + $0x84] sm:$0x1]
    %v4322 = vld [vmem:[%s3939 + $0x88] sm:$0xe]
    %v4323 = vld [vmem:[%s3939 + $0x8c] sm:$0x1]
    %v4356 = vrot.slane %v4292, 5
    %v4357 = vrot.slane %v4356, 4
    %v4358 = vrot.slane %v4293, 5
    %v4359 = vsel %vm3266, %v4357, %v4358
    %v4360 = vrot.slane %v4294, 5
    %v4361 = vrot.slane %v4360, 4
    %v4362 = vrot.slane %v4295, 5
    %v4363 = vsel %vm3266, %v4361, %v4362
    %v4364 = vrot.slane %v4296, 5
    %v4365 = vrot.slane %v4364, 4
    %v4366 = vrot.slane %v4297, 5
    %v4367 = vsel %vm3266, %v4365, %v4366
    %v4368 = vrot.slane %v4298, 5
    %v4369 = vrot.slane %v4368, 4
    %v4370 = vrot.slane %v4299, 5
    %v4371 = vsel %vm3266, %v4369, %v4370
    %v4372 = vrot.slane %v4300, 5
    %v4373 = vrot.slane %v4372, 4
    %v4374 = vrot.slane %v4301, 5
    %v4375 = vsel %vm3266, %v4373, %v4374
    %v4376 = vrot.slane %v4302, 5
    %v4377 = vrot.slane %v4376, 4
    %v4378 = vrot.slane %v4303, 5
    %v4379 = vsel %vm3266, %v4377, %v4378
    %v4380 = vrot.slane %v4304, 5
    %v4381 = vrot.slane %v4380, 4
    %v4382 = vrot.slane %v4305, 5
    %v4383 = vsel %vm3266, %v4381, %v4382
    %v4384 = vrot.slane %v4306, 5
    %v4385 = vrot.slane %v4384, 4
    %v4386 = vrot.slane %v4307, 5
    %v4387 = vsel %vm3266, %v4385, %v4386
    %v4388 = vrot.slane %v4308, 5
    %v4389 = vrot.slane %v4388, 4
    %v4390 = vrot.slane %v4309, 5
    %v4391 = vsel %vm3266, %v4389, %v4390
    %v4392 = vrot.slane %v4310, 5
    %v4393 = vrot.slane %v4392, 4
    %v4394 = vrot.slane %v4311, 5
    %v4395 = vsel %vm3266, %v4393, %v4394
    %v4396 = vrot.slane %v4312, 5
    %v4397 = vrot.slane %v4396, 4
    %v4398 = vrot.slane %v4313, 5
    %v4399 = vsel %vm3266, %v4397, %v4398
    %v4400 = vrot.slane %v4314, 5
    %v4401 = vrot.slane %v4400, 4
    %v4402 = vrot.slane %v4315, 5
    %v4403 = vsel %vm3266, %v4401, %v4402
    %v4404 = vrot.slane %v4316, 5
    %v4405 = vrot.slane %v4404, 4
    %v4406 = vrot.slane %v4317, 5
    %v4407 = vsel %vm3266, %v4405, %v4406
    %v4408 = vrot.slane %v4318, 5
    %v4409 = vrot.slane %v4408, 4
    %v4410 = vrot.slane %v4319, 5
    %v4411 = vsel %vm3266, %v4409, %v4410
    %v4412 = vrot.slane %v4320, 5
    %v4413 = vrot.slane %v4412, 4
    %v4414 = vrot.slane %v4321, 5
    %v4415 = vsel %vm3266, %v4413, %v4414
    %v4416 = vrot.slane %v4322, 5
    %v4417 = vrot.slane %v4416, 4
    %v4418 = vrot.slane %v4323, 5
    %v4419 = vsel %vm3266, %v4417, %v4418
    %4436 = vst.msk [vmem:[#allocation3 + $0x10] sm:$0xf] %vm1971, %v4359
    %4437 = vst.msk [vmem:[#allocation3 + $0x24] sm:$0xf] %vm1971, %v4363
    %4438 = vst.msk [vmem:[#allocation3 + $0x38] sm:$0xf] %vm1971, %v4367
    %4439 = vst.msk [vmem:[#allocation3 + $0x4c] sm:$0xf] %vm1971, %v4371
    %4440 = vst.msk [vmem:[#allocation3 + $0x60] sm:$0xf] %vm1971, %v4375
    %4441 = vst.msk [vmem:[#allocation3 + $0x74] sm:$0xf] %vm1971, %v4379
    %4442 = vst.msk [vmem:[#allocation3 + $0x88] sm:$0xf] %vm1971, %v4383
    %4443 = vst.msk [vmem:[#allocation3 + $0x9c] sm:$0xf] %vm1971, %v4387
    %4444 = vst.msk [vmem:[#allocation3 + $0xb0] sm:$0xf] %vm1971, %v4391
    %4445 = vst.msk [vmem:[#allocation3 + $0xc4] sm:$0xf] %vm1971, %v4395
    %4446 = vst.msk [vmem:[#allocation3 + $0xd8] sm:$0xf] %vm1971, %v4399
    %4447 = vst.msk [vmem:[#allocation3 + $0xec] sm:$0xf] %vm1971, %v4403
    %4448 = vst.msk [vmem:[#allocation3 + $0x100] sm:$0xf] %vm1971, %v4407
    %4449 = vst.msk [vmem:[#allocation3 + $0x114] sm:$0xf] %vm1971, %v4411
    %4450 = vst.msk [vmem:[#allocation3 + $0x128] sm:$0xf] %vm1971, %v4415
    %4451 = vst.msk [vmem:[#allocation3 + $0x13c] sm:$0xf] %vm1971, %v4419
    %v4452 = vld [vmem:[#allocation3] sm:$0xff]
    %v4453 = vld [vmem:[#allocation3 + $0x8] sm:$0xff]
    %v4454 = vld [vmem:[#allocation3 + $0x10] sm:$0xf]
    %v4455 = vld [vmem:[#allocation3 + $0x14] sm:$0xff]
    %v4456 = vld [vmem:[#allocation3 + $0x1c] sm:$0xff]
    %v4457 = vld [vmem:[#allocation3 + $0x24] sm:$0xf]
    %v4458 = vld [vmem:[#allocation3 + $0x28] sm:$0xff]
    %v4459 = vld [vmem:[#allocation3 + $0x30] sm:$0xff]
    %v4460 = vld [vmem:[#allocation3 + $0x38] sm:$0xf]
    %v4461 = vld [vmem:[#allocation3 + $0x3c] sm:$0xff]
    %v4462 = vld [vmem:[#allocation3 + $0x44] sm:$0xff]
    %v4463 = vld [vmem:[#allocation3 + $0x4c] sm:$0xf]
    %v4464 = vld [vmem:[#allocation3 + $0x50] sm:$0xff]
    %v4465 = vld [vmem:[#allocation3 + $0x58] sm:$0xff]
    %v4466 = vld [vmem:[#allocation3 + $0x60] sm:$0xf]
    %v4467 = vld [vmem:[#allocation3 + $0x64] sm:$0xff]
    %v4468 = vld [vmem:[#allocation3 + $0x6c] sm:$0xff]
    %v4469 = vld [vmem:[#allocation3 + $0x74] sm:$0xf]
    %v4470 = vld [vmem:[#allocation3 + $0x78] sm:$0xff]
    %v4471 = vld [vmem:[#allocation3 + $0x80] sm:$0xff]
    %v4472 = vld [vmem:[#allocation3 + $0x88] sm:$0xf]
    %v4473 = vld [vmem:[#allocation3 + $0x8c] sm:$0xff]
    %v4474 = vld [vmem:[#allocation3 + $0x94] sm:$0xff]
    %v4475 = vld [vmem:[#allocation3 + $0x9c] sm:$0xf]
    %v4476 = vld [vmem:[#allocation3 + $0xa0] sm:$0xff]
    %v4477 = vld [vmem:[#allocation3 + $0xa8] sm:$0xff]
    %v4478 = vld [vmem:[#allocation3 + $0xb0] sm:$0xf]
    %v4479 = vld [vmem:[#allocation3 + $0xb4] sm:$0xff]
    %v4480 = vld [vmem:[#allocation3 + $0xbc] sm:$0xff]
    %v4481 = vld [vmem:[#allocation3 + $0xc4] sm:$0xf]
    %v4482 = vld [vmem:[#allocation3 + $0xc8] sm:$0xff]
    %v4483 = vld [vmem:[#allocation3 + $0xd0] sm:$0xff]
    %v4484 = vld [vmem:[#allocation3 + $0xd8] sm:$0xf]
    %v4485 = vld [vmem:[#allocation3 + $0xdc] sm:$0xff]
    %v4486 = vld [vmem:[#allocation3 + $0xe4] sm:$0xff]
    %v4487 = vld [vmem:[#allocation3 + $0xec] sm:$0xf]
    %v4488 = vld [vmem:[#allocation3 + $0xf0] sm:$0xff]
    %v4489 = vld [vmem:[#allocation3 + $0xf8] sm:$0xff]
    %v4490 = vld [vmem:[#allocation3 + $0x100] sm:$0xf]
    %v4491 = vld [vmem:[#allocation3 + $0x104] sm:$0xff]
    %v4492 = vld [vmem:[#allocation3 + $0x10c] sm:$0xff]
    %v4493 = vld [vmem:[#allocation3 + $0x114] sm:$0xf]
    %v4494 = vld [vmem:[#allocation3 + $0x118] sm:$0xff]
    %v4495 = vld [vmem:[#allocation3 + $0x120] sm:$0xff]
    %v4496 = vld [vmem:[#allocation3 + $0x128] sm:$0xf]
    %v4497 = vld [vmem:[#allocation3 + $0x12c] sm:$0xff]
    %v4498 = vld [vmem:[#allocation3 + $0x134] sm:$0xff]
    %v4499 = vld [vmem:[#allocation3 + $0x13c] sm:$0xf]
    %v4500 = vld [vmem:[%s2] sm:$0xf]
    %v4501 = vld [vmem:[%s2 + $0x4] sm:$0xf]
    %v4502 = vld [vmem:[%s2 + $0x8] sm:$0xf]
    %v4503 = vld [vmem:[%s2 + $0xc] sm:$0xf]
    %v4504 = vld [vmem:[%s2 + $0x10] sm:$0xf]
    %v4505 = vld [vmem:[%s2 + $0x14] sm:$0xf]
    %v4506 = vld [vmem:[%s2 + $0x18] sm:$0xf]
    %v4507 = vld [vmem:[%s2 + $0x1c] sm:$0xf]
    %v4508 = vld [vmem:[%s2 + $0x20] sm:$0xf]
    %v4509 = vld [vmem:[%s2 + $0x24] sm:$0xf]
    %v4510 = vld [vmem:[%s2 + $0x28] sm:$0xf]
    %v4511 = vld [vmem:[%s2 + $0x2c] sm:$0xf]
    %v4512 = vld [vmem:[%s2 + $0x30] sm:$0xf]
    %v4513 = vld [vmem:[%s2 + $0x34] sm:$0xf]
    %v4514 = vld [vmem:[%s2 + $0x38] sm:$0xf]
    %v4515 = vld [vmem:[%s2 + $0x3c] sm:$0xf]
    %v4516 = vld [vmem:[%s2 + $0x40] sm:$0xf]
    %v4517 = vld [vmem:[%s2 + $0x44] sm:$0xf]
    %v4518 = vld [vmem:[%s2 + $0x48] sm:$0xf]
    %v4519 = vld [vmem:[%s2 + $0x4c] sm:$0xf]
    %v4520 = vld [vmem:[%s2 + $0x50] sm:$0xf]
    %v4521 = vld [vmem:[%s2 + $0x54] sm:$0xf]
    %v4522 = vld [vmem:[%s2 + $0x58] sm:$0xf]
    %v4523 = vld [vmem:[%s2 + $0x5c] sm:$0xf]
    %v4524 = vld [vmem:[%s2 + $0x60] sm:$0xf]
    %v4525 = vld [vmem:[%s2 + $0x64] sm:$0xf]
    %v4526 = vld [vmem:[%s2 + $0x68] sm:$0xf]
    %v4527 = vld [vmem:[%s2 + $0x6c] sm:$0xf]
    %v4528 = vld [vmem:[%s2 + $0x70] sm:$0xf]
    %v4529 = vld [vmem:[%s2 + $0x74] sm:$0xf]
    %v4530 = vld [vmem:[%s2 + $0x78] sm:$0xf]
    %v4531 = vld [vmem:[%s2 + $0x7c] sm:$0xf]
    %v4532 = vld [vmem:[%s2 + $0x80] sm:$0xf]
    %v4533 = vld [vmem:[%s2 + $0x84] sm:$0xf]
    %v4534 = vld [vmem:[%s2 + $0x88] sm:$0xf]
    %v4535 = vld [vmem:[%s2 + $0x8c] sm:$0xf]
    %v4536 = vld [vmem:[%s2 + $0x90] sm:$0xf]
    %v4537 = vld [vmem:[%s2 + $0x94] sm:$0xf]
    %v4538 = vld [vmem:[%s2 + $0x98] sm:$0xf]
    %v4539 = vld [vmem:[%s2 + $0x9c] sm:$0xf]
    %v4540 = vld [vmem:[%s2 + $0xa0] sm:$0xf]
    %v4541 = vld [vmem:[%s2 + $0xa4] sm:$0xf]
    %v4542 = vld [vmem:[%s2 + $0xa8] sm:$0xf]
    %v4543 = vld [vmem:[%s2 + $0xac] sm:$0xf]
    %v4544 = vld [vmem:[%s2 + $0xb0] sm:$0xf]
    %v4545 = vld [vmem:[%s2 + $0xb4] sm:$0xf]
    %v4546 = vld [vmem:[%s2 + $0xb8] sm:$0xf]
    %v4547 = vld [vmem:[%s2 + $0xbc] sm:$0xf]
    %v4548 = vld [vmem:[%s2 + $0xc0] sm:$0xf]
    %v4549 = vld [vmem:[%s2 + $0xc4] sm:$0xf]
    %v4550 = vld [vmem:[%s2 + $0xc8] sm:$0xf]
    %v4551 = vld [vmem:[%s2 + $0xcc] sm:$0xf]
    %v4552 = vld [vmem:[%s2 + $0xd0] sm:$0xf]
    %v4553 = vld [vmem:[%s2 + $0xd4] sm:$0xf]
    %v4554 = vld [vmem:[%s2 + $0xd8] sm:$0xf]
    %v4555 = vld [vmem:[%s2 + $0xdc] sm:$0xf]
    %v4556 = vld [vmem:[%s2 + $0xe0] sm:$0xf]
    %v4557 = vld [vmem:[%s2 + $0xe4] sm:$0xf]
    %v4558 = vld [vmem:[%s2 + $0xe8] sm:$0xf]
    %v4559 = vld [vmem:[%s2 + $0xec] sm:$0xf]
    %v4560 = vld [vmem:[%s2 + $0xf0] sm:$0xf]
    %v4561 = vld [vmem:[%s2 + $0xf4] sm:$0xf]
    %v4562 = vld [vmem:[%s2 + $0xf8] sm:$0xf]
    %v4563 = vld [vmem:[%s2 + $0xfc] sm:$0xf]
    %v4564 = vld [vmem:[%s2 + $0x100] sm:$0xf]
    %v4565 = vld [vmem:[%s2 + $0x104] sm:$0xf]
    %v4566 = vld [vmem:[%s2 + $0x108] sm:$0xf]
    %v4567 = vld [vmem:[%s2 + $0x10c] sm:$0xf]
    %v4568 = vld [vmem:[%s2 + $0x110] sm:$0xf]
    %v4569 = vld [vmem:[%s2 + $0x114] sm:$0xf]
    %v4570 = vld [vmem:[%s2 + $0x118] sm:$0xf]
    %v4571 = vld [vmem:[%s2 + $0x11c] sm:$0xf]
    %v4620 = vunpack.c.l.b16 %v4452
    %v4621 = vunpack.c.h.b16 %v4452
    %v4622 = vunpack.c.l.b16 %v4453
    %v4623 = vunpack.c.h.b16 %v4453
    %v4624 = vunpack.c.l.b16 %v4454
    %v4625 = vunpack.c.l.b16 %v4455
    %v4626 = vunpack.c.h.b16 %v4455
    %v4627 = vunpack.c.l.b16 %v4456
    %v4628 = vunpack.c.h.b16 %v4456
    %v4629 = vunpack.c.l.b16 %v4457
    %v4630 = vunpack.c.l.b16 %v4458
    %v4631 = vunpack.c.h.b16 %v4458
    %v4632 = vunpack.c.l.b16 %v4459
    %v4633 = vunpack.c.h.b16 %v4459
    %v4634 = vunpack.c.l.b16 %v4460
    %v4635 = vunpack.c.l.b16 %v4461
    %v4636 = vunpack.c.h.b16 %v4461
    %v4637 = vunpack.c.l.b16 %v4462
    %v4638 = vunpack.c.h.b16 %v4462
    %v4639 = vunpack.c.l.b16 %v4463
    %v4640 = vunpack.c.l.b16 %v4464
    %v4641 = vunpack.c.h.b16 %v4464
    %v4642 = vunpack.c.l.b16 %v4465
    %v4643 = vunpack.c.h.b16 %v4465
    %v4644 = vunpack.c.l.b16 %v4466
    %v4645 = vunpack.c.l.b16 %v4467
    %v4646 = vunpack.c.h.b16 %v4467
    %v4647 = vunpack.c.l.b16 %v4468
    %v4648 = vunpack.c.h.b16 %v4468
    %v4649 = vunpack.c.l.b16 %v4469
    %v4650 = vunpack.c.l.b16 %v4470
    %v4651 = vunpack.c.h.b16 %v4470
    %v4652 = vunpack.c.l.b16 %v4471
    %v4653 = vunpack.c.h.b16 %v4471
    %v4654 = vunpack.c.l.b16 %v4472
    %v4655 = vunpack.c.l.b16 %v4473
    %v4656 = vunpack.c.h.b16 %v4473
    %v4657 = vunpack.c.l.b16 %v4474
    %v4658 = vunpack.c.h.b16 %v4474
    %v4659 = vunpack.c.l.b16 %v4475
    %v4660 = vunpack.c.l.b16 %v4476
    %v4661 = vunpack.c.h.b16 %v4476
    %v4662 = vunpack.c.l.b16 %v4477
    %v4663 = vunpack.c.h.b16 %v4477
    %v4664 = vunpack.c.l.b16 %v4478
    %v4665 = vunpack.c.l.b16 %v4479
    %v4666 = vunpack.c.h.b16 %v4479
    %v4667 = vunpack.c.l.b16 %v4480
    %v4668 = vunpack.c.h.b16 %v4480
    %v4669 = vunpack.c.l.b16 %v4481
    %v4670 = vunpack.c.l.b16 %v4482
    %v4671 = vunpack.c.h.b16 %v4482
    %v4672 = vunpack.c.l.b16 %v4483
    %v4673 = vunpack.c.h.b16 %v4483
    %v4674 = vunpack.c.l.b16 %v4484
    %v4675 = vunpack.c.l.b16 %v4485
    %v4676 = vunpack.c.h.b16 %v4485
    %v4677 = vunpack.c.l.b16 %v4486
    %v4678 = vunpack.c.h.b16 %v4486
    %v4679 = vunpack.c.l.b16 %v4487
    %v4680 = vunpack.c.l.b16 %v4488
    %v4681 = vunpack.c.h.b16 %v4488
    %v4682 = vunpack.c.l.b16 %v4489
    %v4683 = vunpack.c.h.b16 %v4489
    %v4684 = vunpack.c.l.b16 %v4490
    %v4685 = vunpack.c.l.b16 %v4491
    %v4686 = vunpack.c.h.b16 %v4491
    %v4687 = vunpack.c.l.b16 %v4492
    %v4688 = vunpack.c.h.b16 %v4492
    %v4689 = vunpack.c.l.b16 %v4493
    %v4690 = vunpack.c.l.b16 %v4494
    %v4691 = vunpack.c.h.b16 %v4494
    %v4692 = vunpack.c.l.b16 %v4495
    %v4693 = vunpack.c.h.b16 %v4495
    %v4694 = vunpack.c.l.b16 %v4496
    %v4695 = vunpack.c.l.b16 %v4497
    %v4696 = vunpack.c.h.b16 %v4497
    %v4697 = vunpack.c.l.b16 %v4498
    %v4698 = vunpack.c.h.b16 %v4498
    %v4699 = vunpack.c.l.b16 %v4499
    %v4700 = vpack.c.b16 %v4625, %v4620
    %v4701 = vpack.c.b16 %v4626, %v4621
    %v4702 = vpack.c.b16 %v4627, %v4622
    %v4703 = vpack.c.b16 %v4628, %v4623
    %v4704 = vpack.c.b16 %v4629, %v4624
    %v4705 = vpack.c.b16 %v4635, %v4630
    %v4706 = vpack.c.b16 %v4636, %v4631
    %v4707 = vpack.c.b16 %v4637, %v4632
    %v4708 = vpack.c.b16 %v4638, %v4633
    %v4709 = vpack.c.b16 %v4639, %v4634
    %v4710 = vpack.c.b16 %v4645, %v4640
    %v4711 = vpack.c.b16 %v4646, %v4641
    %v4712 = vpack.c.b16 %v4647, %v4642
    %v4713 = vpack.c.b16 %v4648, %v4643
    %v4714 = vpack.c.b16 %v4649, %v4644
    %v4715 = vpack.c.b16 %v4655, %v4650
    %v4716 = vpack.c.b16 %v4656, %v4651
    %v4717 = vpack.c.b16 %v4657, %v4652
    %v4718 = vpack.c.b16 %v4658, %v4653
    %v4719 = vpack.c.b16 %v4659, %v4654
    %v4720 = vpack.c.b16 %v4665, %v4660
    %v4721 = vpack.c.b16 %v4666, %v4661
    %v4722 = vpack.c.b16 %v4667, %v4662
    %v4723 = vpack.c.b16 %v4668, %v4663
    %v4724 = vpack.c.b16 %v4669, %v4664
    %v4725 = vpack.c.b16 %v4675, %v4670
    %v4726 = vpack.c.b16 %v4676, %v4671
    %v4727 = vpack.c.b16 %v4677, %v4672
    %v4728 = vpack.c.b16 %v4678, %v4673
    %v4729 = vpack.c.b16 %v4679, %v4674
    %v4730 = vpack.c.b16 %v4685, %v4680
    %v4731 = vpack.c.b16 %v4686, %v4681
    %v4732 = vpack.c.b16 %v4687, %v4682
    %v4733 = vpack.c.b16 %v4688, %v4683
    %v4734 = vpack.c.b16 %v4689, %v4684
    %v4735 = vpack.c.b16 %v4695, %v4690
    %v4736 = vpack.c.b16 %v4696, %v4691
    %v4737 = vpack.c.b16 %v4697, %v4692
    %v4738 = vpack.c.b16 %v4698, %v4693
    %v4739 = vpack.c.b16 %v4699, %v4694
    %v4844 = vunpack.c.l.b16 %v4500
    %v4845 = vunpack.c.l.b16 %v4501
    %v4846 = vunpack.c.l.b16 %v4502
    %v4847 = vunpack.c.l.b16 %v4503
    %v4848 = vunpack.c.l.b16 %v4504
    %v4849 = vunpack.c.l.b16 %v4505
    %v4850 = vunpack.c.l.b16 %v4506
    %v4851 = vunpack.c.l.b16 %v4507
    %v4852 = vunpack.c.l.b16 %v4508
    %v4853 = vunpack.c.l.b16 %v4509
    %v4854 = vunpack.c.l.b16 %v4510
    %v4855 = vunpack.c.l.b16 %v4511
    %v4856 = vunpack.c.l.b16 %v4512
    %v4857 = vunpack.c.l.b16 %v4513
    %v4858 = vunpack.c.l.b16 %v4514
    %v4859 = vunpack.c.l.b16 %v4515
    %v4860 = vunpack.c.l.b16 %v4516
    %v4861 = vunpack.c.l.b16 %v4517
    %v4862 = vunpack.c.l.b16 %v4518
    %v4863 = vunpack.c.l.b16 %v4519
    %v4864 = vunpack.c.l.b16 %v4520
    %v4865 = vunpack.c.l.b16 %v4521
    %v4866 = vunpack.c.l.b16 %v4522
    %v4867 = vunpack.c.l.b16 %v4523
    %v4868 = vunpack.c.l.b16 %v4524
    %v4869 = vunpack.c.l.b16 %v4525
    %v4870 = vunpack.c.l.b16 %v4526
    %v4871 = vunpack.c.l.b16 %v4527
    %v4872 = vunpack.c.l.b16 %v4528
    %v4873 = vunpack.c.l.b16 %v4529
    %v4874 = vunpack.c.l.b16 %v4530
    %v4875 = vunpack.c.l.b16 %v4531
    %v4876 = vunpack.c.l.b16 %v4532
    %v4877 = vunpack.c.l.b16 %v4533
    %v4878 = vunpack.c.l.b16 %v4534
    %v4879 = vunpack.c.l.b16 %v4535
    %v4880 = vunpack.c.l.b16 %v4536
    %v4881 = vunpack.c.l.b16 %v4537
    %v4882 = vunpack.c.l.b16 %v4538
    %v4883 = vunpack.c.l.b16 %v4539
    %v4884 = vunpack.c.l.b16 %v4540
    %v4885 = vunpack.c.l.b16 %v4541
    %v4886 = vunpack.c.l.b16 %v4542
    %v4887 = vunpack.c.l.b16 %v4543
    %v4888 = vunpack.c.l.b16 %v4544
    %v4889 = vunpack.c.l.b16 %v4545
    %v4890 = vunpack.c.l.b16 %v4546
    %v4891 = vunpack.c.l.b16 %v4547
    %v4892 = vunpack.c.l.b16 %v4548
    %v4893 = vunpack.c.l.b16 %v4549
    %v4894 = vunpack.c.l.b16 %v4550
    %v4895 = vunpack.c.l.b16 %v4551
    %v4896 = vunpack.c.l.b16 %v4552
    %v4897 = vunpack.c.l.b16 %v4553
    %v4898 = vunpack.c.l.b16 %v4554
    %v4899 = vunpack.c.l.b16 %v4555
    %v4900 = vunpack.c.l.b16 %v4556
    %v4901 = vunpack.c.l.b16 %v4557
    %v4902 = vunpack.c.l.b16 %v4558
    %v4903 = vunpack.c.l.b16 %v4559
    %v4904 = vunpack.c.l.b16 %v4560
    %v4905 = vunpack.c.l.b16 %v4561
    %v4906 = vunpack.c.l.b16 %v4562
    %v4907 = vunpack.c.l.b16 %v4563
    %v4908 = vunpack.c.l.b16 %v4564
    %v4909 = vunpack.c.l.b16 %v4565
    %v4910 = vunpack.c.l.b16 %v4566
    %v4911 = vunpack.c.l.b16 %v4567
    %v4912 = vunpack.c.l.b16 %v4568
    %v4913 = vunpack.c.l.b16 %v4569
    %v4914 = vunpack.c.l.b16 %v4570
    %v4915 = vunpack.c.l.b16 %v4571
    %v4916 = vpack.c.b16 %v4845, %v4844
    %v4917 = vpack.c.b16 %v4847, %v4846
    %v4918 = vpack.c.b16 %v4849, %v4848
    %v4919 = vpack.c.b16 %v4851, %v4850
    %v4920 = vpack.c.b16 %v4853, %v4852
    %v4921 = vpack.c.b16 %v4855, %v4854
    %v4922 = vpack.c.b16 %v4857, %v4856
    %v4923 = vpack.c.b16 %v4859, %v4858
    %v4924 = vpack.c.b16 %v4861, %v4860
    %v4925 = vpack.c.b16 %v4863, %v4862
    %v4926 = vpack.c.b16 %v4865, %v4864
    %v4927 = vpack.c.b16 %v4867, %v4866
    %v4928 = vpack.c.b16 %v4869, %v4868
    %v4929 = vpack.c.b16 %v4871, %v4870
    %v4930 = vpack.c.b16 %v4873, %v4872
    %v4931 = vpack.c.b16 %v4875, %v4874
    %v4932 = vpack.c.b16 %v4877, %v4876
    %v4933 = vpack.c.b16 %v4879, %v4878
    %v4934 = vpack.c.b16 %v4881, %v4880
    %v4935 = vpack.c.b16 %v4883, %v4882
    %v4936 = vpack.c.b16 %v4885, %v4884
    %v4937 = vpack.c.b16 %v4887, %v4886
    %v4938 = vpack.c.b16 %v4889, %v4888
    %v4939 = vpack.c.b16 %v4891, %v4890
    %v4940 = vpack.c.b16 %v4893, %v4892
    %v4941 = vpack.c.b16 %v4895, %v4894
    %v4942 = vpack.c.b16 %v4897, %v4896
    %v4943 = vpack.c.b16 %v4899, %v4898
    %v4944 = vpack.c.b16 %v4901, %v4900
    %v4945 = vpack.c.b16 %v4903, %v4902
    %v4946 = vpack.c.b16 %v4905, %v4904
    %v4947 = vpack.c.b16 %v4907, %v4906
    %v4948 = vpack.c.b16 %v4909, %v4908
    %v4949 = vpack.c.b16 %v4911, %v4910
    %v4950 = vpack.c.b16 %v4913, %v4912
    %v4951 = vpack.c.b16 %v4915, %v4914
    %v4989 = vsel %vm534, %v4704, 0
    %v4992 = vsel %vm534, %v4709, 0
    %v4995 = vsel %vm534, %v4714, 0
    %v4998 = vsel %vm534, %v4719, 0
    %v5001 = vsel %vm534, %v4724, 0
    %v5004 = vsel %vm534, %v4729, 0
    %v5007 = vsel %vm534, %v4734, 0
    %v5010 = vsel %vm534, %v4739, 0
    %5012 = vmatpush.bf16.msra.mxu0 %v4923
    %5013 = vmatpush.bf16.msra.mxu0 %v4922
    %5014 = vmatpush.bf16.msra.mxu0 %v4921
    %5015 = vmatpush.bf16.msra.mxu0 %v4920
    %5016 = vmatpush.bf16.msra.mxu0 %v4919
    %5017 = vmatpush.bf16.msra.mxu0 %v4918
    %5018 = vmatpush.bf16.msra.mxu0 %v4917
    %5019 = vmatpush.bf16.msra.mxu0 %v4916
    %5020 = vmatmul.bf16.gmra.mxu0 %v4700
    %v5021 = vpop.f32.mrf.mxu0
    %v5022 = vadd.f32 0.0, %v5021
    %v5023 = vpop.f32.mrf.mxu0
    %v5024 = vadd.f32 0.0, %v5023
    %5025 = vmatmul.bf16.gmra.mxu0 %v4705
    %v5026 = vpop.f32.mrf.mxu0
    %v5027 = vadd.f32 0.0, %v5026
    %v5028 = vpop.f32.mrf.mxu0
    %v5029 = vadd.f32 0.0, %v5028
    %5030 = vmatmul.bf16.gmra.mxu0 %v4710
    %v5031 = vpop.f32.mrf.mxu0
    %v5032 = vadd.f32 0.0, %v5031
    %v5033 = vpop.f32.mrf.mxu0
    %v5034 = vadd.f32 0.0, %v5033
    %5035 = vmatmul.bf16.gmra.mxu0 %v4715
    %v5036 = vpop.f32.mrf.mxu0
    %v5037 = vadd.f32 0.0, %v5036
    %v5038 = vpop.f32.mrf.mxu0
    %v5039 = vadd.f32 0.0, %v5038
    %5040 = vmatmul.bf16.gmra.mxu0 %v4720
    %v5041 = vpop.f32.mrf.mxu0
    %v5042 = vadd.f32 0.0, %v5041
    %v5043 = vpop.f32.mrf.mxu0
    %v5044 = vadd.f32 0.0, %v5043
    %5045 = vmatmul.bf16.gmra.mxu0 %v4725
    %v5046 = vpop.f32.mrf.mxu0
    %v5047 = vadd.f32 0.0, %v5046
    %v5048 = vpop.f32.mrf.mxu0
    %v5049 = vadd.f32 0.0, %v5048
    %5050 = vmatmul.bf16.gmra.mxu0 %v4730
    %v5051 = vpop.f32.mrf.mxu0
    %v5052 = vadd.f32 0.0, %v5051
    %v5053 = vpop.f32.mrf.mxu0
    %v5054 = vadd.f32 0.0, %v5053
    %5055 = vmatmul.bf16.gmra.mxu0 %v4735
    %v5056 = vpop.f32.mrf.mxu0
    %v5057 = vadd.f32 0.0, %v5056
    %v5058 = vpop.f32.mrf.mxu0
    %v5059 = vadd.f32 0.0, %v5058
    %5060 = vdwg.mxu0
    %5061 = vmatpush.bf16.msra.mxu0 %v4931
    %5062 = vmatpush.bf16.msra.mxu0 %v4930
    %5063 = vmatpush.bf16.msra.mxu0 %v4929
    %5064 = vmatpush.bf16.msra.mxu0 %v4928
    %5065 = vmatpush.bf16.msra.mxu0 %v4927
    %5066 = vmatpush.bf16.msra.mxu0 %v4926
    %5067 = vmatpush.bf16.msra.mxu0 %v4925
    %5068 = vmatpush.bf16.msra.mxu0 %v4924
    %5069 = vmatmul.bf16.gmra.mxu0 %v4701
    %v5070 = vpop.f32.mrf.mxu0
    %v5071 = vadd.f32 %v5022, %v5070
    %v5072 = vpop.f32.mrf.mxu0
    %v5073 = vadd.f32 %v5024, %v5072
    %5074 = vmatmul.bf16.gmra.mxu0 %v4706
    %v5075 = vpop.f32.mrf.mxu0
    %v5076 = vadd.f32 %v5027, %v5075
    %v5077 = vpop.f32.mrf.mxu0
    %v5078 = vadd.f32 %v5029, %v5077
    %5079 = vmatmul.bf16.gmra.mxu0 %v4711
    %v5080 = vpop.f32.mrf.mxu0
    %v5081 = vadd.f32 %v5032, %v5080
    %v5082 = vpop.f32.mrf.mxu0
    %v5083 = vadd.f32 %v5034, %v5082
    %5084 = vmatmul.bf16.gmra.mxu0 %v4716
    %v5085 = vpop.f32.mrf.mxu0
    %v5086 = vadd.f32 %v5037, %v5085
    %v5087 = vpop.f32.mrf.mxu0
    %v5088 = vadd.f32 %v5039, %v5087
    %5089 = vmatmul.bf16.gmra.mxu0 %v4721
    %v5090 = vpop.f32.mrf.mxu0
    %v5091 = vadd.f32 %v5042, %v5090
    %v5092 = vpop.f32.mrf.mxu0
    %v5093 = vadd.f32 %v5044, %v5092
    %5094 = vmatmul.bf16.gmra.mxu0 %v4726
    %v5095 = vpop.f32.mrf.mxu0
    %v5096 = vadd.f32 %v5047, %v5095
    %v5097 = vpop.f32.mrf.mxu0
    %v5098 = vadd.f32 %v5049, %v5097
    %5099 = vmatmul.bf16.gmra.mxu0 %v4731
    %v5100 = vpop.f32.mrf.mxu0
    %v5101 = vadd.f32 %v5052, %v5100
    %v5102 = vpop.f32.mrf.mxu0
    %v5103 = vadd.f32 %v5054, %v5102
    %5104 = vmatmul.bf16.gmra.mxu0 %v4736
    %v5105 = vpop.f32.mrf.mxu0
    %v5106 = vadd.f32 %v5057, %v5105
    %v5107 = vpop.f32.mrf.mxu0
    %v5108 = vadd.f32 %v5059, %v5107
    %5109 = vdwg.mxu0
    %5110 = vmatpush.bf16.msra.mxu0 %v4939
    %5111 = vmatpush.bf16.msra.mxu0 %v4938
    %5112 = vmatpush.bf16.msra.mxu0 %v4937
    %5113 = vmatpush.bf16.msra.mxu0 %v4936
    %5114 = vmatpush.bf16.msra.mxu0 %v4935
    %5115 = vmatpush.bf16.msra.mxu0 %v4934
    %5116 = vmatpush.bf16.msra.mxu0 %v4933
    %5117 = vmatpush.bf16.msra.mxu0 %v4932
    %5118 = vmatmul.bf16.gmra.mxu0 %v4702
    %v5119 = vpop.f32.mrf.mxu0
    %v5120 = vadd.f32 %v5071, %v5119
    %v5121 = vpop.f32.mrf.mxu0
    %v5122 = vadd.f32 %v5073, %v5121
    %5123 = vmatmul.bf16.gmra.mxu0 %v4707
    %v5124 = vpop.f32.mrf.mxu0
    %v5125 = vadd.f32 %v5076, %v5124
    %v5126 = vpop.f32.mrf.mxu0
    %v5127 = vadd.f32 %v5078, %v5126
    %5128 = vmatmul.bf16.gmra.mxu0 %v4712
    %v5129 = vpop.f32.mrf.mxu0
    %v5130 = vadd.f32 %v5081, %v5129
    %v5131 = vpop.f32.mrf.mxu0
    %v5132 = vadd.f32 %v5083, %v5131
    %5133 = vmatmul.bf16.gmra.mxu0 %v4717
    %v5134 = vpop.f32.mrf.mxu0
    %v5135 = vadd.f32 %v5086, %v5134
    %v5136 = vpop.f32.mrf.mxu0
    %v5137 = vadd.f32 %v5088, %v5136
    %5138 = vmatmul.bf16.gmra.mxu0 %v4722
    %v5139 = vpop.f32.mrf.mxu0
    %v5140 = vadd.f32 %v5091, %v5139
    %v5141 = vpop.f32.mrf.mxu0
    %v5142 = vadd.f32 %v5093, %v5141
    %5143 = vmatmul.bf16.gmra.mxu0 %v4727
    %v5144 = vpop.f32.mrf.mxu0
    %v5145 = vadd.f32 %v5096, %v5144
    %v5146 = vpop.f32.mrf.mxu0
    %v5147 = vadd.f32 %v5098, %v5146
    %5148 = vmatmul.bf16.gmra.mxu0 %v4732
    %v5149 = vpop.f32.mrf.mxu0
    %v5150 = vadd.f32 %v5101, %v5149
    %v5151 = vpop.f32.mrf.mxu0
    %v5152 = vadd.f32 %v5103, %v5151
    %5153 = vmatmul.bf16.gmra.mxu0 %v4737
    %v5154 = vpop.f32.mrf.mxu0
    %v5155 = vadd.f32 %v5106, %v5154
    %v5156 = vpop.f32.mrf.mxu0
    %v5157 = vadd.f32 %v5108, %v5156
    %5158 = vdwg.mxu0
    %5159 = vmatpush.bf16.msra.mxu0 %v4947
    %5160 = vmatpush.bf16.msra.mxu0 %v4946
    %5161 = vmatpush.bf16.msra.mxu0 %v4945
    %5162 = vmatpush.bf16.msra.mxu0 %v4944
    %5163 = vmatpush.bf16.msra.mxu0 %v4943
    %5164 = vmatpush.bf16.msra.mxu0 %v4942
    %5165 = vmatpush.bf16.msra.mxu0 %v4941
    %5166 = vmatpush.bf16.msra.mxu0 %v4940
    %5167 = vmatmul.bf16.gmra.mxu0 %v4703
    %v5168 = vpop.f32.mrf.mxu0
    %v5169 = vadd.f32 %v5120, %v5168
    %v5170 = vpop.f32.mrf.mxu0
    %v5171 = vadd.f32 %v5122, %v5170
    %5172 = vmatmul.bf16.gmra.mxu0 %v4708
    %v5173 = vpop.f32.mrf.mxu0
    %v5174 = vadd.f32 %v5125, %v5173
    %v5175 = vpop.f32.mrf.mxu0
    %v5176 = vadd.f32 %v5127, %v5175
    %5177 = vmatmul.bf16.gmra.mxu0 %v4713
    %v5178 = vpop.f32.mrf.mxu0
    %v5179 = vadd.f32 %v5130, %v5178
    %v5180 = vpop.f32.mrf.mxu0
    %v5181 = vadd.f32 %v5132, %v5180
    %5182 = vmatmul.bf16.gmra.mxu0 %v4718
    %v5183 = vpop.f32.mrf.mxu0
    %v5184 = vadd.f32 %v5135, %v5183
    %v5185 = vpop.f32.mrf.mxu0
    %v5186 = vadd.f32 %v5137, %v5185
    %5187 = vmatmul.bf16.gmra.mxu0 %v4723
    %v5188 = vpop.f32.mrf.mxu0
    %v5189 = vadd.f32 %v5140, %v5188
    %v5190 = vpop.f32.mrf.mxu0
    %v5191 = vadd.f32 %v5142, %v5190
    %5192 = vmatmul.bf16.gmra.mxu0 %v4728
    %v5193 = vpop.f32.mrf.mxu0
    %v5194 = vadd.f32 %v5145, %v5193
    %v5195 = vpop.f32.mrf.mxu0
    %v5196 = vadd.f32 %v5147, %v5195
    %5197 = vmatmul.bf16.gmra.mxu0 %v4733
    %v5198 = vpop.f32.mrf.mxu0
    %v5199 = vadd.f32 %v5150, %v5198
    %v5200 = vpop.f32.mrf.mxu0
    %v5201 = vadd.f32 %v5152, %v5200
    %5202 = vmatmul.bf16.gmra.mxu0 %v4738
    %v5203 = vpop.f32.mrf.mxu0
    %v5204 = vadd.f32 %v5155, %v5203
    %v5205 = vpop.f32.mrf.mxu0
    %v5206 = vadd.f32 %v5157, %v5205
    %5207 = vdwg.mxu0
    %5208 = vmatpush.bf16.msra.mxu0 0
    %5209 = vmatpush.bf16.msra.mxu0 0
    %5210 = vmatpush.bf16.msra.mxu0 0
    %5211 = vmatpush.bf16.msra.mxu0 0
    %5212 = vmatpush.bf16.msra.mxu0 %v4951
    %5213 = vmatpush.bf16.msra.mxu0 %v4950
    %5214 = vmatpush.bf16.msra.mxu0 %v4949
    %5215 = vmatpush.bf16.msra.mxu0 %v4948
    %5216 = vmatmul.bf16.gmra.mxu0 %v4989
    %v5217 = vpop.f32.mrf.mxu0
    %v5218 = vadd.f32 %v5169, %v5217
    %v5219 = vpop.f32.mrf.mxu0
    %v5220 = vadd.f32 %v5171, %v5219
    %5221 = vmatmul.bf16.gmra.mxu0 %v4992
    %v5222 = vpop.f32.mrf.mxu0
    %v5223 = vadd.f32 %v5174, %v5222
    %v5224 = vpop.f32.mrf.mxu0
    %v5225 = vadd.f32 %v5176, %v5224
    %5226 = vmatmul.bf16.gmra.mxu0 %v4995
    %v5227 = vpop.f32.mrf.mxu0
    %v5228 = vadd.f32 %v5179, %v5227
    %v5229 = vpop.f32.mrf.mxu0
    %v5230 = vadd.f32 %v5181, %v5229
    %5231 = vmatmul.bf16.gmra.mxu0 %v4998
    %v5232 = vpop.f32.mrf.mxu0
    %v5233 = vadd.f32 %v5184, %v5232
    %v5234 = vpop.f32.mrf.mxu0
    %v5235 = vadd.f32 %v5186, %v5234
    %5236 = vmatmul.bf16.gmra.mxu0 %v5001
    %v5237 = vpop.f32.mrf.mxu0
    %v5238 = vadd.f32 %v5189, %v5237
    %v5239 = vpop.f32.mrf.mxu0
    %v5240 = vadd.f32 %v5191, %v5239
    %5241 = vmatmul.bf16.gmra.mxu0 %v5004
    %v5242 = vpop.f32.mrf.mxu0
    %v5243 = vadd.f32 %v5194, %v5242
    %v5244 = vpop.f32.mrf.mxu0
    %v5245 = vadd.f32 %v5196, %v5244
    %5246 = vmatmul.bf16.gmra.mxu0 %v5007
    %v5247 = vpop.f32.mrf.mxu0
    %v5248 = vadd.f32 %v5199, %v5247
    %v5249 = vpop.f32.mrf.mxu0
    %v5250 = vadd.f32 %v5201, %v5249
    %5251 = vmatmul.bf16.gmra.mxu0 %v5010
    %v5252 = vpop.f32.mrf.mxu0
    %v5253 = vadd.f32 %v5204, %v5252
    %v5254 = vpop.f32.mrf.mxu0
    %v5255 = vadd.f32 %v5206, %v5254
    %5256 = vdwg.mxu0
    %v5257 = vsel %vm534, %v5218, 0.0
    %v5258 = vsel %vm534, %v5220, 0.0
    %v5259 = vadd.f32 %v5257, %v5258
    %v5260 = vsel %vm534, %v5223, 0.0
    %v5261 = vadd.f32 %v5259, %v5260
    %v5262 = vsel %vm534, %v5225, 0.0
    %v5263 = vadd.f32 %v5261, %v5262
    %v5264 = vsel %vm534, %v5228, 0.0
    %v5265 = vadd.f32 %v5263, %v5264
    %v5266 = vsel %vm534, %v5230, 0.0
    %v5267 = vadd.f32 %v5265, %v5266
    %v5268 = vsel %vm534, %v5233, 0.0
    %v5269 = vadd.f32 %v5267, %v5268
    %v5270 = vsel %vm534, %v5235, 0.0
    %v5271 = vadd.f32 %v5269, %v5270
    %v5272 = vsel %vm534, %v5238, 0.0
    %v5273 = vadd.f32 %v5271, %v5272
    %v5274 = vsel %vm534, %v5240, 0.0
    %v5275 = vadd.f32 %v5273, %v5274
    %v5276 = vsel %vm534, %v5243, 0.0
    %v5277 = vadd.f32 %v5275, %v5276
    %v5278 = vsel %vm534, %v5245, 0.0
    %v5279 = vadd.f32 %v5277, %v5278
    %v5280 = vsel %vm534, %v5248, 0.0
    %v5281 = vadd.f32 %v5279, %v5280
    %v5282 = vsel %vm534, %v5250, 0.0
    %v5283 = vadd.f32 %v5281, %v5282
    %v5284 = vsel %vm534, %v5253, 0.0
    %v5285 = vadd.f32 %v5283, %v5284
    %v5286 = vsel %vm534, %v5255, 0.0
    %v5287 = vadd.f32 %v5285, %v5286
    %v5288 = vrot.slane %v5287, 4
    %v5289 = vadd.f32 %v5287, %v5288
    %v5290 = vrot.slane %v5289, 2
    %v5291 = vadd.f32 %v5289, %v5290
    %v5292 = vrot.slane %v5291, 1
    %v5293 = vadd.f32 %v5291, %v5292
    %v5294 = vmul.f32 %v5293, 0.0078125
    %v5295 = vsub.f32 %v5218, %v5294
    %v5296 = vsub.f32 %v5220, %v5294
    %v5297 = vsub.f32 %v5223, %v5294
    %v5298 = vsub.f32 %v5225, %v5294
    %v5299 = vsub.f32 %v5228, %v5294
    %v5300 = vsub.f32 %v5230, %v5294
    %v5301 = vsub.f32 %v5233, %v5294
    %v5302 = vsub.f32 %v5235, %v5294
    %v5303 = vsub.f32 %v5238, %v5294
    %v5304 = vsub.f32 %v5240, %v5294
    %v5305 = vsub.f32 %v5243, %v5294
    %v5306 = vsub.f32 %v5245, %v5294
    %v5307 = vsub.f32 %v5248, %v5294
    %v5308 = vsub.f32 %v5250, %v5294
    %v5309 = vsub.f32 %v5253, %v5294
    %v5310 = vsub.f32 %v5255, %v5294
    %v5311 = vmul.f32 %v5295, %v5295
    %v5312 = vmul.f32 %v5296, %v5296
    %v5313 = vmul.f32 %v5297, %v5297
    %v5314 = vmul.f32 %v5298, %v5298
    %v5315 = vmul.f32 %v5299, %v5299
    %v5316 = vmul.f32 %v5300, %v5300
    %v5317 = vmul.f32 %v5301, %v5301
    %v5318 = vmul.f32 %v5302, %v5302
    %v5319 = vmul.f32 %v5303, %v5303
    %v5320 = vmul.f32 %v5304, %v5304
    %v5321 = vmul.f32 %v5305, %v5305
    %v5322 = vmul.f32 %v5306, %v5306
    %v5323 = vmul.f32 %v5307, %v5307
    %v5324 = vmul.f32 %v5308, %v5308
    %v5325 = vmul.f32 %v5309, %v5309
    %v5326 = vmul.f32 %v5310, %v5310
    %v5327 = vsel %vm534, %v5311, 0.0
    %v5328 = vsel %vm534, %v5312, 0.0
    %v5329 = vadd.f32 %v5327, %v5328
    %v5330 = vsel %vm534, %v5313, 0.0
    %v5331 = vadd.f32 %v5329, %v5330
    %v5332 = vsel %vm534, %v5314, 0.0
    %v5333 = vadd.f32 %v5331, %v5332
    %v5334 = vsel %vm534, %v5315, 0.0
    %v5335 = vadd.f32 %v5333, %v5334
    %v5336 = vsel %vm534, %v5316, 0.0
    %v5337 = vadd.f32 %v5335, %v5336
    %v5338 = vsel %vm534, %v5317, 0.0
    %v5339 = vadd.f32 %v5337, %v5338
    %v5340 = vsel %vm534, %v5318, 0.0
    %v5341 = vadd.f32 %v5339, %v5340
    %v5342 = vsel %vm534, %v5319, 0.0
    %v5343 = vadd.f32 %v5341, %v5342
    %v5344 = vsel %vm534, %v5320, 0.0
    %v5345 = vadd.f32 %v5343, %v5344
    %v5346 = vsel %vm534, %v5321, 0.0
    %v5347 = vadd.f32 %v5345, %v5346
    %v5348 = vsel %vm534, %v5322, 0.0
    %v5349 = vadd.f32 %v5347, %v5348
    %v5350 = vsel %vm534, %v5323, 0.0
    %v5351 = vadd.f32 %v5349, %v5350
    %v5352 = vsel %vm534, %v5324, 0.0
    %v5353 = vadd.f32 %v5351, %v5352
    %v5354 = vsel %vm534, %v5325, 0.0
    %v5355 = vadd.f32 %v5353, %v5354
    %v5356 = vsel %vm534, %v5326, 0.0
    %v5357 = vadd.f32 %v5355, %v5356
    %v5358 = vrot.slane %v5357, 4
    %v5359 = vadd.f32 %v5357, %v5358
    %v5360 = vrot.slane %v5359, 2
    %v5361 = vadd.f32 %v5359, %v5360
    %v5362 = vrot.slane %v5361, 1
    %v5363 = vadd.f32 %v5361, %v5362
    %v5364 = vmul.f32 %v5363, 0.0078125
    %v5365 = vld [vmem:[%s5 + $0x1] sm:$0x1]
    %v5366 = vadd.f32 %v5364, 1e-05
    %v5367 = vrsqrt.pop %v5366
    %v5368 = vmul.f32 %v5367, %v5366
    %v5369 = vmul.f32 %v5368, %v5367
    %v5370 = vmul.f32 0.5, %v5369
    %v5371 = vsub.f32 1.5, %v5370
    %v5372 = vmul.f32 %v5367, %v5371
    %vm5373 = vweird.f32 %v5366
    %vm5374 = vweird.f32 %v5367
    %vm5375 = vmor %vm5373, %vm5374
    %v5376 = vsel %vm5375, %v5367, %v5372
    %v5377 = vmul.f32 %v5365, %v5376
    %v5378 = vperm.slane %v5377, 0
    %v5379 = vmul.f32 %v5295, %v5378
    %v5380 = vmul.f32 %v5296, %v5378
    %v5381 = vmul.f32 %v5297, %v5378
    %v5382 = vmul.f32 %v5298, %v5378
    %v5383 = vmul.f32 %v5299, %v5378
    %v5384 = vmul.f32 %v5300, %v5378
    %v5385 = vmul.f32 %v5301, %v5378
    %v5386 = vmul.f32 %v5302, %v5378
    %v5387 = vmul.f32 %v5303, %v5378
    %v5388 = vmul.f32 %v5304, %v5378
    %v5389 = vmul.f32 %v5305, %v5378
    %v5390 = vmul.f32 %v5306, %v5378
    %v5391 = vmul.f32 %v5307, %v5378
    %v5392 = vmul.f32 %v5308, %v5378
    %v5393 = vmul.f32 %v5309, %v5378
    %v5394 = vmul.f32 %v5310, %v5378
    %v5395 = vld [vmem:[%s6 + $0x1] sm:$0x1]
    %v5396 = vperm.slane %v5395, 0
    %v5397 = vadd.f32 %v5379, %v5396
    %v5398 = vadd.f32 %v5380, %v5396
    %v5399 = vadd.f32 %v5381, %v5396
    %v5400 = vadd.f32 %v5382, %v5396
    %v5401 = vadd.f32 %v5383, %v5396
    %v5402 = vadd.f32 %v5384, %v5396
    %v5403 = vadd.f32 %v5385, %v5396
    %v5404 = vadd.f32 %v5386, %v5396
    %v5405 = vadd.f32 %v5387, %v5396
    %v5406 = vadd.f32 %v5388, %v5396
    %v5407 = vadd.f32 %v5389, %v5396
    %v5408 = vadd.f32 %v5390, %v5396
    %v5409 = vadd.f32 %v5391, %v5396
    %v5410 = vadd.f32 %v5392, %v5396
    %v5411 = vadd.f32 %v5393, %v5396
    %v5412 = vadd.f32 %v5394, %v5396
    %v5413 = vmax.f32 %v5397, %v5398
    %v5414 = vmax.f32 %v5399, %v5400
    %v5415 = vmax.f32 %v5401, %v5402
    %v5416 = vmax.f32 %v5403, %v5404
    %v5417 = vmax.f32 %v5405, %v5406
    %v5418 = vmax.f32 %v5407, %v5408
    %v5419 = vmax.f32 %v5409, %v5410
    %v5420 = vmax.f32 %v5411, %v5412
    %v5429 = vrot.slane %v5413, 2
    %v5430 = vrot.slane %v5413, 4
    %v5431 = vrot.slane %v5413, 6
    %v5432 = vrot.slane %v5414, 2
    %v5433 = vrot.slane %v5414, 4
    %v5434 = vrot.slane %v5414, 6
    %v5435 = vrot.slane %v5415, 2
    %v5436 = vrot.slane %v5415, 4
    %v5437 = vrot.slane %v5415, 6
    %v5438 = vrot.slane %v5416, 2
    %v5439 = vrot.slane %v5416, 4
    %v5440 = vrot.slane %v5416, 6
    %v5441 = vrot.slane %v5417, 2
    %v5442 = vrot.slane %v5417, 4
    %v5443 = vrot.slane %v5417, 6
    %v5444 = vrot.slane %v5418, 2
    %v5445 = vrot.slane %v5418, 4
    %v5446 = vrot.slane %v5418, 6
    %v5447 = vrot.slane %v5419, 2
    %v5448 = vrot.slane %v5419, 4
    %v5449 = vrot.slane %v5419, 6
    %v5450 = vrot.slane %v5420, 2
    %v5451 = vrot.slane %v5420, 4
    %v5452 = vrot.slane %v5420, 6
    %v5477 = vrot.slane %v5413, 7
    %v5478 = vrot.slane %v5477, 2
    %v5479 = vrot.slane %v5429, 7
    %v5480 = vrot.slane %v5479, 2
    %v5481 = vrot.slane %v5430, 7
    %v5482 = vrot.slane %v5481, 2
    %v5483 = vrot.slane %v5431, 7
    %v5484 = vrot.slane %v5483, 2
    %v5485 = vrot.slane %v5414, 7
    %v5486 = vrot.slane %v5485, 2
    %v5487 = vrot.slane %v5432, 7
    %v5488 = vrot.slane %v5487, 2
    %v5489 = vrot.slane %v5433, 7
    %v5490 = vrot.slane %v5489, 2
    %v5491 = vrot.slane %v5434, 7
    %v5492 = vrot.slane %v5491, 2
    %v5493 = vrot.slane %v5415, 7
    %v5494 = vrot.slane %v5493, 2
    %v5495 = vrot.slane %v5435, 7
    %v5496 = vrot.slane %v5495, 2
    %v5497 = vrot.slane %v5436, 7
    %v5498 = vrot.slane %v5497, 2
    %v5499 = vrot.slane %v5437, 7
    %v5500 = vrot.slane %v5499, 2
    %v5501 = vrot.slane %v5416, 7
    %v5502 = vrot.slane %v5501, 2
    %v5503 = vrot.slane %v5438, 7
    %v5504 = vrot.slane %v5503, 2
    %v5505 = vrot.slane %v5439, 7
    %v5506 = vrot.slane %v5505, 2
    %v5507 = vrot.slane %v5440, 7
    %v5508 = vrot.slane %v5507, 2
    %v5509 = vrot.slane %v5417, 7
    %v5510 = vrot.slane %v5509, 2
    %v5511 = vrot.slane %v5441, 7
    %v5512 = vrot.slane %v5511, 2
    %v5513 = vrot.slane %v5442, 7
    %v5514 = vrot.slane %v5513, 2
    %v5515 = vrot.slane %v5443, 7
    %v5516 = vrot.slane %v5515, 2
    %v5517 = vrot.slane %v5418, 7
    %v5518 = vrot.slane %v5517, 2
    %v5519 = vrot.slane %v5444, 7
    %v5520 = vrot.slane %v5519, 2
    %v5521 = vrot.slane %v5445, 7
    %v5522 = vrot.slane %v5521, 2
    %v5523 = vrot.slane %v5446, 7
    %v5524 = vrot.slane %v5523, 2
    %v5525 = vrot.slane %v5419, 7
    %v5526 = vrot.slane %v5525, 2
    %v5527 = vrot.slane %v5447, 7
    %v5528 = vrot.slane %v5527, 2
    %v5529 = vrot.slane %v5448, 7
    %v5530 = vrot.slane %v5529, 2
    %v5531 = vrot.slane %v5449, 7
    %v5532 = vrot.slane %v5531, 2
    %v5533 = vrot.slane %v5420, 7
    %v5534 = vrot.slane %v5533, 2
    %v5535 = vrot.slane %v5450, 7
    %v5536 = vrot.slane %v5535, 2
    %v5537 = vrot.slane %v5451, 7
    %v5538 = vrot.slane %v5537, 2
    %v5539 = vrot.slane %v5452, 7
    %v5540 = vrot.slane %v5539, 2
    %v5573 = vmax.f32 %v5413, %v5478
    %v5574 = vmax.f32 %v5429, %v5480
    %v5575 = vmax.f32 %v5430, %v5482
    %v5576 = vmax.f32 %v5431, %v5484
    %v5577 = vmax.f32 %v5414, %v5486
    %v5578 = vmax.f32 %v5432, %v5488
    %v5579 = vmax.f32 %v5433, %v5490
    %v5580 = vmax.f32 %v5434, %v5492
    %v5581 = vmax.f32 %v5415, %v5494
    %v5582 = vmax.f32 %v5435, %v5496
    %v5583 = vmax.f32 %v5436, %v5498
    %v5584 = vmax.f32 %v5437, %v5500
    %v5585 = vmax.f32 %v5416, %v5502
    %v5586 = vmax.f32 %v5438, %v5504
    %v5587 = vmax.f32 %v5439, %v5506
    %v5588 = vmax.f32 %v5440, %v5508
    %v5589 = vmax.f32 %v5417, %v5510
    %v5590 = vmax.f32 %v5441, %v5512
    %v5591 = vmax.f32 %v5442, %v5514
    %v5592 = vmax.f32 %v5443, %v5516
    %v5593 = vmax.f32 %v5418, %v5518
    %v5594 = vmax.f32 %v5444, %v5520
    %v5595 = vmax.f32 %v5445, %v5522
    %v5596 = vmax.f32 %v5446, %v5524
    %v5597 = vmax.f32 %v5419, %v5526
    %v5598 = vmax.f32 %v5447, %v5528
    %v5599 = vmax.f32 %v5448, %v5530
    %v5600 = vmax.f32 %v5449, %v5532
    %v5601 = vmax.f32 %v5420, %v5534
    %v5602 = vmax.f32 %v5450, %v5536
    %v5603 = vmax.f32 %v5451, %v5538
    %v5604 = vmax.f32 %v5452, %v5540
    %v5605 = vmax.f32 %v5573, 0.0
    %v5606 = vmax.f32 %v5574, 0.0
    %v5607 = vmax.f32 %v5575, 0.0
    %v5608 = vmax.f32 %v5576, 0.0
    %v5609 = vmax.f32 %v5577, 0.0
    %v5610 = vmax.f32 %v5578, 0.0
    %v5611 = vmax.f32 %v5579, 0.0
    %v5612 = vmax.f32 %v5580, 0.0
    %v5613 = vmax.f32 %v5581, 0.0
    %v5614 = vmax.f32 %v5582, 0.0
    %v5615 = vmax.f32 %v5583, 0.0
    %v5616 = vmax.f32 %v5584, 0.0
    %v5617 = vmax.f32 %v5585, 0.0
    %v5618 = vmax.f32 %v5586, 0.0
    %v5619 = vmax.f32 %v5587, 0.0
    %v5620 = vmax.f32 %v5588, 0.0
    %v5621 = vmax.f32 %v5589, 0.0
    %v5622 = vmax.f32 %v5590, 0.0
    %v5623 = vmax.f32 %v5591, 0.0
    %v5624 = vmax.f32 %v5592, 0.0
    %v5625 = vmax.f32 %v5593, 0.0
    %v5626 = vmax.f32 %v5594, 0.0
    %v5627 = vmax.f32 %v5595, 0.0
    %v5628 = vmax.f32 %v5596, 0.0
    %v5629 = vmax.f32 %v5597, 0.0
    %v5630 = vmax.f32 %v5598, 0.0
    %v5631 = vmax.f32 %v5599, 0.0
    %v5632 = vmax.f32 %v5600, 0.0
    %v5633 = vmax.f32 %v5601, 0.0
    %v5634 = vmax.f32 %v5602, 0.0
    %v5635 = vmax.f32 %v5603, 0.0
    %v5636 = vmax.f32 %v5604, 0.0
    %vm5637 = vcmask 518144
    %5638 = vst.msk [vmem:[#allocation2] sm:$0x7] %vm5637, 0
    %5639 = vst.msk [vmem:[#allocation2 + $0x50] sm:$0x7] %vm5637, 0
    %s5640 = scalar_lea.vmem [#allocation2], 40
    %5641 = vst.msk [vmem:[%s5640] sm:$0x7] %vm5637, 0
    %5642 = vst.msk [vmem:[%s5640 + $0x50] sm:$0x7] %vm5637, 0
    %v5643 = vld [vmem:[%s1982] sm:$0x1]
    %v5644 = vsel %vm1985, 0, %v5643
    %5645 = vst [vmem:[%s1982] sm:$0x1] %v5644
    %v5646 = vld [vmem:[%s1982 + $0x8] sm:$0x1]
    %v5647 = vsel %vm1985, 0, %v5646
    %5648 = vst [vmem:[%s1982 + $0x8] sm:$0x1] %v5647
    %v5649 = vld [vmem:[%s1982 + $0x10] sm:$0x1]
    %v5650 = vsel %vm1985, 0, %v5649
    %5651 = vst [vmem:[%s1982 + $0x10] sm:$0x1] %v5650
    %v5652 = vld [vmem:[%s1982 + $0x18] sm:$0x1]
    %v5653 = vsel %vm1985, 0, %v5652
    %5654 = vst [vmem:[%s1982 + $0x18] sm:$0x1] %v5653
    %v5655 = vld [vmem:[%s1982 + $0x50] sm:$0x1]
    %v5656 = vsel %vm1985, 0, %v5655
    %5657 = vst [vmem:[%s1982 + $0x50] sm:$0x1] %v5656
    %v5658 = vld [vmem:[%s1982 + $0x58] sm:$0x1]
    %v5659 = vsel %vm1985, 0, %v5658
    %5660 = vst [vmem:[%s1982 + $0x58] sm:$0x1] %v5659
    %v5661 = vld [vmem:[%s1982 + $0x60] sm:$0x1]
    %v5662 = vsel %vm1985, 0, %v5661
    %5663 = vst [vmem:[%s1982 + $0x60] sm:$0x1] %v5662
    %v5664 = vld [vmem:[%s1982 + $0x68] sm:$0x1]
    %v5665 = vsel %vm1985, 0, %v5664
    %5666 = vst [vmem:[%s1982 + $0x68] sm:$0x1] %v5665
    %vm5667 = vcmask 518146
    %vm5668 = vsmask.f32 7946
    %vm5669 = vmand %vm5667, %vm5668
    %v5670 = vld [vmem:[%s1982] sm:$0x4]
    %v5671 = vsel %vm5669, 0, %v5670
    %5672 = vst [vmem:[%s1982] sm:$0x4] %v5671
    %v5673 = vld [vmem:[%s1982 + $0x8] sm:$0x4]
    %v5674 = vsel %vm5669, 0, %v5673
    %5675 = vst [vmem:[%s1982 + $0x8] sm:$0x4] %v5674
    %v5676 = vld [vmem:[%s1982 + $0x10] sm:$0x4]
    %v5677 = vsel %vm5669, 0, %v5676
    %5678 = vst [vmem:[%s1982 + $0x10] sm:$0x4] %v5677
    %v5679 = vld [vmem:[%s1982 + $0x18] sm:$0x4]
    %v5680 = vsel %vm5669, 0, %v5679
    %5681 = vst [vmem:[%s1982 + $0x18] sm:$0x4] %v5680
    %v5682 = vld [vmem:[%s1982 + $0x50] sm:$0x4]
    %v5683 = vsel %vm5669, 0, %v5682
    %5684 = vst [vmem:[%s1982 + $0x50] sm:$0x4] %v5683
    %v5685 = vld [vmem:[%s1982 + $0x58] sm:$0x4]
    %v5686 = vsel %vm5669, 0, %v5685
    %5687 = vst [vmem:[%s1982 + $0x58] sm:$0x4] %v5686
    %v5688 = vld [vmem:[%s1982 + $0x60] sm:$0x4]
    %v5689 = vsel %vm5669, 0, %v5688
    %5690 = vst [vmem:[%s1982 + $0x60] sm:$0x4] %v5689
    %v5691 = vld [vmem:[%s1982 + $0x68] sm:$0x4]
    %v5692 = vsel %vm5669, 0, %v5691
    %5693 = vst [vmem:[%s1982 + $0x68] sm:$0x4] %v5692
    %v5694 = vpack.c.bf16 %v5605, %v5605
    %v5695 = vpack.c.bf16 %v5606, %v5606
    %v5696 = vpack.c.bf16 %v5607, %v5607
    %v5697 = vpack.c.bf16 %v5608, %v5608
    %v5698 = vpack.c.bf16 %v5609, %v5609
    %v5699 = vpack.c.bf16 %v5610, %v5610
    %v5700 = vpack.c.bf16 %v5611, %v5611
    %v5701 = vpack.c.bf16 %v5612, %v5612
    %v5702 = vpack.c.bf16 %v5613, %v5613
    %v5703 = vpack.c.bf16 %v5614, %v5614
    %v5704 = vpack.c.bf16 %v5615, %v5615
    %v5705 = vpack.c.bf16 %v5616, %v5616
    %v5706 = vpack.c.bf16 %v5617, %v5617
    %v5707 = vpack.c.bf16 %v5618, %v5618
    %v5708 = vpack.c.bf16 %v5619, %v5619
    %v5709 = vpack.c.bf16 %v5620, %v5620
    %v5710 = vpack.c.bf16 %v5621, %v5621
    %v5711 = vpack.c.bf16 %v5622, %v5622
    %v5712 = vpack.c.bf16 %v5623, %v5623
    %v5713 = vpack.c.bf16 %v5624, %v5624
    %v5714 = vpack.c.bf16 %v5625, %v5625
    %v5715 = vpack.c.bf16 %v5626, %v5626
    %v5716 = vpack.c.bf16 %v5627, %v5627
    %v5717 = vpack.c.bf16 %v5628, %v5628
    %v5718 = vpack.c.bf16 %v5629, %v5629
    %v5719 = vpack.c.bf16 %v5630, %v5630
    %v5720 = vpack.c.bf16 %v5631, %v5631
    %v5721 = vpack.c.bf16 %v5632, %v5632
    %v5722 = vpack.c.bf16 %v5633, %v5633
    %v5723 = vpack.c.bf16 %v5634, %v5634
    %v5724 = vpack.c.bf16 %v5635, %v5635
    %v5725 = vpack.c.bf16 %v5636, %v5636
    %v5758 = vunpack.c.l.b16 %v5694
    %v5759 = vunpack.c.l.b16 %v5695
    %v5760 = vunpack.c.l.b16 %v5696
    %v5761 = vunpack.c.l.b16 %v5697
    %v5762 = vunpack.c.l.b16 %v5698
    %v5763 = vunpack.c.l.b16 %v5699
    %v5764 = vunpack.c.l.b16 %v5700
    %v5765 = vunpack.c.l.b16 %v5701
    %v5766 = vunpack.c.l.b16 %v5702
    %v5767 = vunpack.c.l.b16 %v5703
    %v5768 = vunpack.c.l.b16 %v5704
    %v5769 = vunpack.c.l.b16 %v5705
    %v5770 = vunpack.c.l.b16 %v5706
    %v5771 = vunpack.c.l.b16 %v5707
    %v5772 = vunpack.c.l.b16 %v5708
    %v5773 = vunpack.c.l.b16 %v5709
    %v5774 = vunpack.c.l.b16 %v5710
    %v5775 = vunpack.c.l.b16 %v5711
    %v5776 = vunpack.c.l.b16 %v5712
    %v5777 = vunpack.c.l.b16 %v5713
    %v5778 = vunpack.c.l.b16 %v5714
    %v5779 = vunpack.c.l.b16 %v5715
    %v5780 = vunpack.c.l.b16 %v5716
    %v5781 = vunpack.c.l.b16 %v5717
    %v5782 = vunpack.c.l.b16 %v5718
    %v5783 = vunpack.c.l.b16 %v5719
    %v5784 = vunpack.c.l.b16 %v5720
    %v5785 = vunpack.c.l.b16 %v5721
    %v5786 = vunpack.c.l.b16 %v5722
    %v5787 = vunpack.c.l.b16 %v5723
    %v5788 = vunpack.c.l.b16 %v5724
    %v5789 = vunpack.c.l.b16 %v5725
    %v5790 = vrot.slane %v5758, 7
    %v5791 = vrot.slane %v5759, 6
    %v5792 = vsel %vm2470, %v5791, %v5790
    %v5793 = vrot.slane %v5760, 5
    %v5794 = vsel %vm2473, %v5793, %v5792
    %v5795 = vrot.slane %v5761, 4
    %v5796 = vsel %vm2476, %v5795, %v5794
    %v5797 = vrot.slane %v5762, 7
    %v5798 = vrot.slane %v5763, 6
    %v5799 = vsel %vm2470, %v5798, %v5797
    %v5800 = vrot.slane %v5764, 5
    %v5801 = vsel %vm2473, %v5800, %v5799
    %v5802 = vrot.slane %v5765, 4
    %v5803 = vsel %vm2476, %v5802, %v5801
    %v5804 = vrot.slane %v5766, 7
    %v5805 = vrot.slane %v5767, 6
    %v5806 = vsel %vm2470, %v5805, %v5804
    %v5807 = vrot.slane %v5768, 5
    %v5808 = vsel %vm2473, %v5807, %v5806
    %v5809 = vrot.slane %v5769, 4
    %v5810 = vsel %vm2476, %v5809, %v5808
    %v5811 = vrot.slane %v5770, 7
    %v5812 = vrot.slane %v5771, 6
    %v5813 = vsel %vm2470, %v5812, %v5811
    %v5814 = vrot.slane %v5772, 5
    %v5815 = vsel %vm2473, %v5814, %v5813
    %v5816 = vrot.slane %v5773, 4
    %v5817 = vsel %vm2476, %v5816, %v5815
    %v5818 = vrot.slane %v5774, 7
    %v5819 = vrot.slane %v5775, 6
    %v5820 = vsel %vm2470, %v5819, %v5818
    %v5821 = vrot.slane %v5776, 5
    %v5822 = vsel %vm2473, %v5821, %v5820
    %v5823 = vrot.slane %v5777, 4
    %v5824 = vsel %vm2476, %v5823, %v5822
    %v5825 = vrot.slane %v5778, 7
    %v5826 = vrot.slane %v5779, 6
    %v5827 = vsel %vm2470, %v5826, %v5825
    %v5828 = vrot.slane %v5780, 5
    %v5829 = vsel %vm2473, %v5828, %v5827
    %v5830 = vrot.slane %v5781, 4
    %v5831 = vsel %vm2476, %v5830, %v5829
    %v5832 = vrot.slane %v5782, 7
    %v5833 = vrot.slane %v5783, 6
    %v5834 = vsel %vm2470, %v5833, %v5832
    %v5835 = vrot.slane %v5784, 5
    %v5836 = vsel %vm2473, %v5835, %v5834
    %v5837 = vrot.slane %v5785, 4
    %v5838 = vsel %vm2476, %v5837, %v5836
    %v5839 = vrot.slane %v5786, 7
    %v5840 = vrot.slane %v5787, 6
    %v5841 = vsel %vm2470, %v5840, %v5839
    %v5842 = vrot.slane %v5788, 5
    %v5843 = vsel %vm2473, %v5842, %v5841
    %v5844 = vrot.slane %v5789, 4
    %v5845 = vsel %vm2476, %v5844, %v5843
    %v5846 = vpack.c.b16 %v5796, %v5796
    %v5847 = vpack.c.b16 %v5803, %v5803
    %v5848 = vpack.c.b16 %v5810, %v5810
    %v5849 = vpack.c.b16 %v5817, %v5817
    %v5850 = vpack.c.b16 %v5824, %v5824
    %v5851 = vpack.c.b16 %v5831, %v5831
    %v5852 = vpack.c.b16 %v5838, %v5838
    %v5853 = vpack.c.b16 %v5845, %v5845
    %vm5862 = vcmask 518144
    %vm5863 = vsmask.f32 2306
    %vm5864 = vmand %vm5862, %vm5863
    %v5865 = vld [vmem:[%s1982] sm:$0x7]
    %v5866 = vsel %vm5864, %v5846, %v5865
    %5867 = vst [vmem:[%s1982] sm:$0x7] %v5866
    %v5868 = vld [vmem:[%s1982 + $0x8] sm:$0x7]
    %v5869 = vsel %vm5864, %v5847, %v5868
    %5870 = vst [vmem:[%s1982 + $0x8] sm:$0x7] %v5869
    %v5871 = vld [vmem:[%s1982 + $0x10] sm:$0x7]
    %v5872 = vsel %vm5864, %v5848, %v5871
    %5873 = vst [vmem:[%s1982 + $0x10] sm:$0x7] %v5872
    %v5874 = vld [vmem:[%s1982 + $0x18] sm:$0x7]
    %v5875 = vsel %vm5864, %v5849, %v5874
    %5876 = vst [vmem:[%s1982 + $0x18] sm:$0x7] %v5875
    %v5877 = vld [vmem:[%s1982 + $0x50] sm:$0x7]
    %v5878 = vsel %vm5864, %v5850, %v5877
    %5879 = vst [vmem:[%s1982 + $0x50] sm:$0x7] %v5878
    %v5880 = vld [vmem:[%s1982 + $0x58] sm:$0x7]
    %v5881 = vsel %vm5864, %v5851, %v5880
    %5882 = vst [vmem:[%s1982 + $0x58] sm:$0x7] %v5881
    %v5883 = vld [vmem:[%s1982 + $0x60] sm:$0x7]
    %v5884 = vsel %vm5864, %v5852, %v5883
    %5885 = vst [vmem:[%s1982 + $0x60] sm:$0x7] %v5884
    %v5886 = vld [vmem:[%s1982 + $0x68] sm:$0x7]
    %v5887 = vsel %vm5864, %v5853, %v5886
    %5888 = vst [vmem:[%s1982 + $0x68] sm:$0x7] %v5887
    %v5889 = vld [vmem:[#allocation2] sm:$0x3]
    %v5890 = vld [vmem:[#allocation2 + $0x8] sm:$0x3]
    %v5891 = vld [vmem:[#allocation2 + $0x10] sm:$0x3]
    %v5892 = vld [vmem:[#allocation2 + $0x18] sm:$0x3]
    %v5893 = vld [vmem:[#allocation2 + $0x50] sm:$0x3]
    %v5894 = vld [vmem:[#allocation2 + $0x58] sm:$0x3]
    %v5895 = vld [vmem:[#allocation2 + $0x60] sm:$0x3]
    %v5896 = vld [vmem:[#allocation2 + $0x68] sm:$0x3]
    %5898 = vst [vmem:[#allocation1] ss:$2 sm:$0xff] %v5889
    %s5900 = scalar_lea.vmem [#allocation1], 1
    %5901 = vst [vmem:[%s5900] ss:$2 sm:$0xff] %v5890
    %s5903 = scalar_lea.vmem [#allocation1], 16
    %5904 = vst [vmem:[%s5903] ss:$2 sm:$0xff] %v5891
    %s5906 = scalar_lea.vmem [#allocation1], 17
    %5907 = vst [vmem:[%s5906] ss:$2 sm:$0xff] %v5892
    %s5909 = scalar_lea.vmem [#allocation1], 32
    %5910 = vst [vmem:[%s5909] ss:$2 sm:$0xff] %v5893
    %s5912 = scalar_lea.vmem [#allocation1], 33
    %5913 = vst [vmem:[%s5912] ss:$2 sm:$0xff] %v5894
    %s5915 = scalar_lea.vmem [#allocation1], 48
    %5916 = vst [vmem:[%s5915] ss:$2 sm:$0xff] %v5895
    %s5918 = scalar_lea.vmem [#allocation1], 49
    %5919 = vst [vmem:[%s5918] ss:$2 sm:$0xff] %v5896
    %v5920 = vld.sshfl [vmem:[#allocation1] sm:$0xff pattern:$0x75643120]
    %v5921 = vld.sshfl [vmem:[#allocation1 + $0x10] sm:$0xff pattern:$0x75643120]
    %v5922 = vld.sshfl [vmem:[#allocation1 + $0x20] sm:$0xff pattern:$0x75643120]
    %v5923 = vld.sshfl [vmem:[#allocation1 + $0x30] sm:$0xff pattern:$0x75643120]
    %5928 = vst.msk [vmem:[#allocation3] sm:$0xf] %vm1971, %v5920
    %5929 = vst.msk [vmem:[#allocation3 + $0x14] sm:$0xf] %vm1971, %v5921
    %5930 = vst.msk [vmem:[#allocation3 + $0x28] sm:$0xf] %vm1971, %v5922
    %5931 = vst.msk [vmem:[#allocation3 + $0x3c] sm:$0xf] %vm1971, %v5923
    %v5932 = vld [vmem:[#allocation2] sm:$0x7]
    %v5933 = vld [vmem:[#allocation2 + $0x8] sm:$0x7]
    %v5934 = vld [vmem:[#allocation2 + $0x10] sm:$0x7]
    %v5935 = vld [vmem:[#allocation2 + $0x18] sm:$0x7]
    %v5936 = vld [vmem:[#allocation2 + $0x50] sm:$0x7]
    %v5937 = vld [vmem:[#allocation2 + $0x58] sm:$0x7]
    %v5938 = vld [vmem:[#allocation2 + $0x60] sm:$0x7]
    %v5939 = vld [vmem:[#allocation2 + $0x68] sm:$0x7]
    %v5948 = vrot.slane %v5932, 2
    %v5949 = vrot.slane %v5933, 2
    %v5950 = vrot.slane %v5934, 2
    %v5951 = vrot.slane %v5935, 2
    %v5952 = vrot.slane %v5936, 2
    %v5953 = vrot.slane %v5937, 2
    %v5954 = vrot.slane %v5938, 2
    %v5955 = vrot.slane %v5939, 2
    %vm5956 = vcmask 1041408
    %v5959 = vsel %vm5956, %v5932, %v5948
    %vm5960 = vcmask 1043458
    %v5961 = vsel %vm5960, %v5932, %v5948
    %v5963 = vrot.slane %v5961, 2
    %v5966 = vsel %vm5956, %v5933, %v5949
    %v5967 = vsel %vm5960, %v5933, %v5949
    %v5969 = vrot.slane %v5967, 2
    %v5972 = vsel %vm5956, %v5934, %v5950
    %v5973 = vsel %vm5960, %v5934, %v5950
    %v5975 = vrot.slane %v5973, 2
    %v5978 = vsel %vm5956, %v5935, %v5951
    %v5979 = vsel %vm5960, %v5935, %v5951
    %v5981 = vrot.slane %v5979, 2
    %v5984 = vsel %vm5956, %v5936, %v5952
    %v5985 = vsel %vm5960, %v5936, %v5952
    %v5987 = vrot.slane %v5985, 2
    %v5990 = vsel %vm5956, %v5937, %v5953
    %v5991 = vsel %vm5960, %v5937, %v5953
    %v5993 = vrot.slane %v5991, 2
    %v5996 = vsel %vm5956, %v5938, %v5954
    %v5997 = vsel %vm5960, %v5938, %v5954
    %v5999 = vrot.slane %v5997, 2
    %v6002 = vsel %vm5956, %v5939, %v5955
    %v6003 = vsel %vm5960, %v5939, %v5955
    %v6005 = vrot.slane %v6003, 2
    %vm6006 = vsmask.f32 1280
    %vm6007 = vsmask.f32 3336
    %vm6008 = vmor %vm6006, %vm6007
    %vm6009 = vsmask.f32 5392
    %vm6010 = vmor %vm6008, %vm6009
    %vm6011 = vsmask.f32 7448
    %vm6012 = vmor %vm6010, %vm6011
    %v6013 = vshrl.u32 %v5959, 16
    %v6015 = vrot.slane %v6013, 6
    %v6016 = vshll.u32 %v5959, 16
    %v6018 = vrot.slane %v6016, 7
    %v6019 = vor.u32 %v6015, %v6018
    %v6020 = vrot.slane %v6019, 2
    %v6022 = vshll.u32 %v5963, 16
    %v6024 = vrot.slane %v6022, 7
    %v6025 = vsel %vm6012, %v6020, %v6024
    %v6026 = vshrl.u32 %v5966, 16
    %v6028 = vrot.slane %v6026, 6
    %v6029 = vshll.u32 %v5966, 16
    %v6031 = vrot.slane %v6029, 7
    %v6032 = vor.u32 %v6028, %v6031
    %v6033 = vrot.slane %v6032, 2
    %v6035 = vshll.u32 %v5969, 16
    %v6037 = vrot.slane %v6035, 7
    %v6038 = vsel %vm6012, %v6033, %v6037
    %v6039 = vshrl.u32 %v5972, 16
    %v6041 = vrot.slane %v6039, 6
    %v6042 = vshll.u32 %v5972, 16
    %v6044 = vrot.slane %v6042, 7
    %v6045 = vor.u32 %v6041, %v6044
    %v6046 = vrot.slane %v6045, 2
    %v6048 = vshll.u32 %v5975, 16
    %v6050 = vrot.slane %v6048, 7
    %v6051 = vsel %vm6012, %v6046, %v6050
    %v6052 = vshrl.u32 %v5978, 16
    %v6054 = vrot.slane %v6052, 6
    %v6055 = vshll.u32 %v5978, 16
    %v6057 = vrot.slane %v6055, 7
    %v6058 = vor.u32 %v6054, %v6057
    %v6059 = vrot.slane %v6058, 2
    %v6061 = vshll.u32 %v5981, 16
    %v6063 = vrot.slane %v6061, 7
    %v6064 = vsel %vm6012, %v6059, %v6063
    %v6065 = vshrl.u32 %v5984, 16
    %v6067 = vrot.slane %v6065, 6
    %v6068 = vshll.u32 %v5984, 16
    %v6070 = vrot.slane %v6068, 7
    %v6071 = vor.u32 %v6067, %v6070
    %v6072 = vrot.slane %v6071, 2
    %v6074 = vshll.u32 %v5987, 16
    %v6076 = vrot.slane %v6074, 7
    %v6077 = vsel %vm6012, %v6072, %v6076
    %v6078 = vshrl.u32 %v5990, 16
    %v6080 = vrot.slane %v6078, 6
    %v6081 = vshll.u32 %v5990, 16
    %v6083 = vrot.slane %v6081, 7
    %v6084 = vor.u32 %v6080, %v6083
    %v6085 = vrot.slane %v6084, 2
    %v6087 = vshll.u32 %v5993, 16
    %v6089 = vrot.slane %v6087, 7
    %v6090 = vsel %vm6012, %v6085, %v6089
    %v6091 = vshrl.u32 %v5996, 16
    %v6093 = vrot.slane %v6091, 6
    %v6094 = vshll.u32 %v5996, 16
    %v6096 = vrot.slane %v6094, 7
    %v6097 = vor.u32 %v6093, %v6096
    %v6098 = vrot.slane %v6097, 2
    %v6100 = vshll.u32 %v5999, 16
    %v6102 = vrot.slane %v6100, 7
    %v6103 = vsel %vm6012, %v6098, %v6102
    %v6104 = vshrl.u32 %v6002, 16
    %v6106 = vrot.slane %v6104, 6
    %v6107 = vshll.u32 %v6002, 16
    %v6109 = vrot.slane %v6107, 7
    %v6110 = vor.u32 %v6106, %v6109
    %v6111 = vrot.slane %v6110, 2
    %v6113 = vshll.u32 %v6005, 16
    %v6115 = vrot.slane %v6113, 7
    %v6116 = vsel %vm6012, %v6111, %v6115
    %6118 = vst [vmem:[#allocation1] ss:$2 sm:$0xff] %v6025
    %s6120 = scalar_lea.vmem [#allocation1], 1
    %6121 = vst [vmem:[%s6120] ss:$2 sm:$0xff] %v6038
    %s6123 = scalar_lea.vmem [#allocation1], 16
    %6124 = vst [vmem:[%s6123] ss:$2 sm:$0xff] %v6051
    %s6126 = scalar_lea.vmem [#allocation1], 17
    %6127 = vst [vmem:[%s6126] ss:$2 sm:$0xff] %v6064
    %s6129 = scalar_lea.vmem [#allocation1], 32
    %6130 = vst [vmem:[%s6129] ss:$2 sm:$0xff] %v6077
    %s6132 = scalar_lea.vmem [#allocation1], 33
    %6133 = vst [vmem:[%s6132] ss:$2 sm:$0xff] %v6090
    %s6135 = scalar_lea.vmem [#allocation1], 48
    %6136 = vst [vmem:[%s6135] ss:$2 sm:$0xff] %v6103
    %s6138 = scalar_lea.vmem [#allocation1], 49
    %6139 = vst [vmem:[%s6138] ss:$2 sm:$0xff] %v6116
    %v6140 = vld.sshfl [vmem:[#allocation1] sm:$0xff pattern:$0x75643120]
    %v6142 = vld.sshfl [vmem:[#allocation1 + $0x10] sm:$0xff pattern:$0x75643120]
    %v6144 = vld.sshfl [vmem:[#allocation1 + $0x20] sm:$0xff pattern:$0x75643120]
    %v6146 = vld.sshfl [vmem:[#allocation1 + $0x30] sm:$0xff pattern:$0x75643120]
    %6148 = vrot.lane.b32.xlu0 %v6140, 64
    %v6149 = vpop.permute.xlu0 %6148
    %6150 = vrot.lane.b32.xlu0 %v6142, 64
    %v6151 = vpop.permute.xlu0 %6150
    %6152 = vrot.lane.b32.xlu0 %v6144, 64
    %v6153 = vpop.permute.xlu0 %6152
    %6154 = vrot.lane.b32.xlu0 %v6146, 64
    %v6155 = vpop.permute.xlu0 %6154
    %6160 = vst.msk [vmem:[#allocation3] sm:$0xf] %vm3183, %v6149
    %6161 = vst.msk [vmem:[#allocation3 + $0x14] sm:$0xf] %vm3183, %v6151
    %6162 = vst.msk [vmem:[#allocation3 + $0x28] sm:$0xf] %vm3183, %v6153
    %6163 = vst.msk [vmem:[#allocation3 + $0x3c] sm:$0xf] %vm3183, %v6155
    %v6164 = vld [vmem:[#allocation2] sm:$0x6]
    %v6165 = vld [vmem:[#allocation2 + $0x8] sm:$0x6]
    %v6166 = vld [vmem:[#allocation2 + $0x10] sm:$0x6]
    %v6167 = vld [vmem:[#allocation2 + $0x18] sm:$0x6]
    %v6168 = vld [vmem:[#allocation2 + $0x50] sm:$0x6]
    %v6169 = vld [vmem:[#allocation2 + $0x58] sm:$0x6]
    %v6170 = vld [vmem:[#allocation2 + $0x60] sm:$0x6]
    %v6171 = vld [vmem:[#allocation2 + $0x68] sm:$0x6]
    %v6180 = vrot.slane %v6164, 2
    %v6181 = vrot.slane %v6165, 2
    %v6182 = vrot.slane %v6166, 2
    %v6183 = vrot.slane %v6167, 2
    %v6184 = vrot.slane %v6168, 2
    %v6185 = vrot.slane %v6169, 2
    %v6186 = vrot.slane %v6170, 2
    %v6187 = vrot.slane %v6171, 2
    %v6190 = vsel %vm5956, %v6164, %v6180
    %v6192 = vsel %vm5960, %v6164, %v6180
    %v6194 = vrot.slane %v6192, 2
    %v6197 = vsel %vm5956, %v6165, %v6181
    %v6199 = vsel %vm5960, %v6165, %v6181
    %v6201 = vrot.slane %v6199, 2
    %v6204 = vsel %vm5956, %v6166, %v6182
    %v6206 = vsel %vm5960, %v6166, %v6182
    %v6208 = vrot.slane %v6206, 2
    %v6211 = vsel %vm5956, %v6167, %v6183
    %v6213 = vsel %vm5960, %v6167, %v6183
    %v6215 = vrot.slane %v6213, 2
    %v6218 = vsel %vm5956, %v6168, %v6184
    %v6220 = vsel %vm5960, %v6168, %v6184
    %v6222 = vrot.slane %v6220, 2
    %v6225 = vsel %vm5956, %v6169, %v6185
    %v6227 = vsel %vm5960, %v6169, %v6185
    %v6229 = vrot.slane %v6227, 2
    %v6232 = vsel %vm5956, %v6170, %v6186
    %v6234 = vsel %vm5960, %v6170, %v6186
    %v6236 = vrot.slane %v6234, 2
    %v6239 = vsel %vm5956, %v6171, %v6187
    %v6241 = vsel %vm5960, %v6171, %v6187
    %v6243 = vrot.slane %v6241, 2
    %vm6244 = vcmask 1040384
    %vm6245 = vcmask 1042434
    %vm6246 = vmor %vm6244, %vm6245
    %vm6247 = vcmask 1044484
    %vm6248 = vmor %vm6246, %vm6247
    %vm6249 = vcmask 1046534
    %vm6250 = vmor %vm6248, %vm6249
    %v6251 = vrot.slane %v6190, 7
    %v6252 = vrot.slane %v6251, 2
    %v6253 = vrot.slane %v6194, 7
    %v6254 = vsel %vm6250, %v6252, %v6253
    %v6255 = vrot.slane %v6197, 7
    %v6256 = vrot.slane %v6255, 2
    %v6257 = vrot.slane %v6201, 7
    %v6258 = vsel %vm6250, %v6256, %v6257
    %v6259 = vrot.slane %v6204, 7
    %v6260 = vrot.slane %v6259, 2
    %v6261 = vrot.slane %v6208, 7
    %v6262 = vsel %vm6250, %v6260, %v6261
    %v6263 = vrot.slane %v6211, 7
    %v6264 = vrot.slane %v6263, 2
    %v6265 = vrot.slane %v6215, 7
    %v6266 = vsel %vm6250, %v6264, %v6265
    %v6267 = vrot.slane %v6218, 7
    %v6268 = vrot.slane %v6267, 2
    %v6269 = vrot.slane %v6222, 7
    %v6270 = vsel %vm6250, %v6268, %v6269
    %v6271 = vrot.slane %v6225, 7
    %v6272 = vrot.slane %v6271, 2
    %v6273 = vrot.slane %v6229, 7
    %v6274 = vsel %vm6250, %v6272, %v6273
    %v6275 = vrot.slane %v6232, 7
    %v6276 = vrot.slane %v6275, 2
    %v6277 = vrot.slane %v6236, 7
    %v6278 = vsel %vm6250, %v6276, %v6277
    %v6279 = vrot.slane %v6239, 7
    %v6280 = vrot.slane %v6279, 2
    %v6281 = vrot.slane %v6243, 7
    %v6282 = vsel %vm6250, %v6280, %v6281
    %6284 = vst [vmem:[#allocation1] ss:$2 sm:$0xff] %v6254
    %s6286 = scalar_lea.vmem [#allocation1], 1
    %6287 = vst [vmem:[%s6286] ss:$2 sm:$0xff] %v6258
    %s6289 = scalar_lea.vmem [#allocation1], 16
    %6290 = vst [vmem:[%s6289] ss:$2 sm:$0xff] %v6262
    %s6292 = scalar_lea.vmem [#allocation1], 17
    %6293 = vst [vmem:[%s6292] ss:$2 sm:$0xff] %v6266
    %s6295 = scalar_lea.vmem [#allocation1], 32
    %6296 = vst [vmem:[%s6295] ss:$2 sm:$0xff] %v6270
    %s6298 = scalar_lea.vmem [#allocation1], 33
    %6299 = vst [vmem:[%s6298] ss:$2 sm:$0xff] %v6274
    %s6301 = scalar_lea.vmem [#allocation1], 48
    %6302 = vst [vmem:[%s6301] ss:$2 sm:$0xff] %v6278
    %s6304 = scalar_lea.vmem [#allocation1], 49
    %6305 = vst [vmem:[%s6304] ss:$2 sm:$0xff] %v6282
    %v6306 = vld.sshfl [vmem:[#allocation1] sm:$0xff pattern:$0x75643120]
    %v6307 = vld.sshfl [vmem:[#allocation1 + $0x10] sm:$0xff pattern:$0x75643120]
    %v6308 = vld.sshfl [vmem:[#allocation1 + $0x20] sm:$0xff pattern:$0x75643120]
    %v6309 = vld.sshfl [vmem:[#allocation1 + $0x30] sm:$0xff pattern:$0x75643120]
    %6314 = vst.msk [vmem:[#allocation3 + $0x4] sm:$0xf] %vm1971, %v6306
    %6315 = vst.msk [vmem:[#allocation3 + $0x18] sm:$0xf] %vm1971, %v6307
    %6316 = vst.msk [vmem:[#allocation3 + $0x2c] sm:$0xf] %vm1971, %v6308
    %6317 = vst.msk [vmem:[#allocation3 + $0x40] sm:$0xf] %vm1971, %v6309
    %v6318 = vld [vmem:[%s1982] sm:$0x3]
    %v6319 = vld [vmem:[%s1982 + $0x8] sm:$0x3]
    %v6320 = vld [vmem:[%s1982 + $0x10] sm:$0x3]
    %v6321 = vld [vmem:[%s1982 + $0x18] sm:$0x3]
    %v6322 = vld [vmem:[%s1982 + $0x50] sm:$0x3]
    %v6323 = vld [vmem:[%s1982 + $0x58] sm:$0x3]
    %v6324 = vld [vmem:[%s1982 + $0x60] sm:$0x3]
    %v6325 = vld [vmem:[%s1982 + $0x68] sm:$0x3]
    %6327 = vst [vmem:[#allocation1] ss:$2 sm:$0xff] %v6318
    %s6329 = scalar_lea.vmem [#allocation1], 1
    %6330 = vst [vmem:[%s6329] ss:$2 sm:$0xff] %v6319
    %s6332 = scalar_lea.vmem [#allocation1], 16
    %6333 = vst [vmem:[%s6332] ss:$2 sm:$0xff] %v6320
    %s6335 = scalar_lea.vmem [#allocation1], 17
    %6336 = vst [vmem:[%s6335] ss:$2 sm:$0xff] %v6321
    %s6338 = scalar_lea.vmem [#allocation1], 32
    %6339 = vst [vmem:[%s6338] ss:$2 sm:$0xff] %v6322
    %s6341 = scalar_lea.vmem [#allocation1], 33
    %6342 = vst [vmem:[%s6341] ss:$2 sm:$0xff] %v6323
    %s6344 = scalar_lea.vmem [#allocation1], 48
    %6345 = vst [vmem:[%s6344] ss:$2 sm:$0xff] %v6324
    %s6347 = scalar_lea.vmem [#allocation1], 49
    %6348 = vst [vmem:[%s6347] ss:$2 sm:$0xff] %v6325
    %v6349 = vld.sshfl [vmem:[#allocation1] sm:$0xff pattern:$0x75643120]
    %v6351 = vld.sshfl [vmem:[#allocation1 + $0x10] sm:$0xff pattern:$0x75643120]
    %v6353 = vld.sshfl [vmem:[#allocation1 + $0x20] sm:$0xff pattern:$0x75643120]
    %v6355 = vld.sshfl [vmem:[#allocation1 + $0x30] sm:$0xff pattern:$0x75643120]
    %6357 = vrot.lane.b32.xlu0 %v6349, 64
    %v6358 = vpop.permute.xlu0 %6357
    %6359 = vrot.lane.b32.xlu0 %v6351, 64
    %v6360 = vpop.permute.xlu0 %6359
    %6361 = vrot.lane.b32.xlu0 %v6353, 64
    %v6362 = vpop.permute.xlu0 %6361
    %6363 = vrot.lane.b32.xlu0 %v6355, 64
    %v6364 = vpop.permute.xlu0 %6363
    %6369 = vst.msk [vmem:[#allocation3 + $0x4] sm:$0xf] %vm3183, %v6358
    %6370 = vst.msk [vmem:[#allocation3 + $0x18] sm:$0xf] %vm3183, %v6360
    %6371 = vst.msk [vmem:[#allocation3 + $0x2c] sm:$0xf] %vm3183, %v6362
    %6372 = vst.msk [vmem:[#allocation3 + $0x40] sm:$0xf] %vm3183, %v6364
    %v6373 = vld [vmem:[%s1982] sm:$0x7]
    %v6374 = vld [vmem:[%s1982 + $0x8] sm:$0x7]
    %v6375 = vld [vmem:[%s1982 + $0x10] sm:$0x7]
    %v6376 = vld [vmem:[%s1982 + $0x18] sm:$0x7]
    %v6377 = vld [vmem:[%s1982 + $0x50] sm:$0x7]
    %v6378 = vld [vmem:[%s1982 + $0x58] sm:$0x7]
    %v6379 = vld [vmem:[%s1982 + $0x60] sm:$0x7]
    %v6380 = vld [vmem:[%s1982 + $0x68] sm:$0x7]
    %v6389 = vrot.slane %v6373, 2
    %v6390 = vrot.slane %v6374, 2
    %v6391 = vrot.slane %v6375, 2
    %v6392 = vrot.slane %v6376, 2
    %v6393 = vrot.slane %v6377, 2
    %v6394 = vrot.slane %v6378, 2
    %v6395 = vrot.slane %v6379, 2
    %v6396 = vrot.slane %v6380, 2
    %v6399 = vsel %vm5956, %v6373, %v6389
    %v6400 = vsel %vm5960, %v6373, %v6389
    %v6402 = vrot.slane %v6400, 2
    %v6405 = vsel %vm5956, %v6374, %v6390
    %v6406 = vsel %vm5960, %v6374, %v6390
    %v6408 = vrot.slane %v6406, 2
    %v6411 = vsel %vm5956, %v6375, %v6391
    %v6412 = vsel %vm5960, %v6375, %v6391
    %v6414 = vrot.slane %v6412, 2
    %v6417 = vsel %vm5956, %v6376, %v6392
    %v6418 = vsel %vm5960, %v6376, %v6392
    %v6420 = vrot.slane %v6418, 2
    %v6423 = vsel %vm5956, %v6377, %v6393
    %v6424 = vsel %vm5960, %v6377, %v6393
    %v6426 = vrot.slane %v6424, 2
    %v6429 = vsel %vm5956, %v6378, %v6394
    %v6430 = vsel %vm5960, %v6378, %v6394
    %v6432 = vrot.slane %v6430, 2
    %v6435 = vsel %vm5956, %v6379, %v6395
    %v6436 = vsel %vm5960, %v6379, %v6395
    %v6438 = vrot.slane %v6436, 2
    %v6441 = vsel %vm5956, %v6380, %v6396
    %v6442 = vsel %vm5960, %v6380, %v6396
    %v6444 = vrot.slane %v6442, 2
    %v6445 = vshrl.u32 %v6399, 16
    %v6447 = vrot.slane %v6445, 6
    %v6448 = vshll.u32 %v6399, 16
    %v6450 = vrot.slane %v6448, 7
    %v6451 = vor.u32 %v6447, %v6450
    %v6452 = vrot.slane %v6451, 2
    %v6454 = vshll.u32 %v6402, 16
    %v6456 = vrot.slane %v6454, 7
    %v6457 = vsel %vm6012, %v6452, %v6456
    %v6458 = vshrl.u32 %v6405, 16
    %v6460 = vrot.slane %v6458, 6
    %v6461 = vshll.u32 %v6405, 16
    %v6463 = vrot.slane %v6461, 7
    %v6464 = vor.u32 %v6460, %v6463
    %v6465 = vrot.slane %v6464, 2
    %v6467 = vshll.u32 %v6408, 16
    %v6469 = vrot.slane %v6467, 7
    %v6470 = vsel %vm6012, %v6465, %v6469
    %v6471 = vshrl.u32 %v6411, 16
    %v6473 = vrot.slane %v6471, 6
    %v6474 = vshll.u32 %v6411, 16
    %v6476 = vrot.slane %v6474, 7
    %v6477 = vor.u32 %v6473, %v6476
    %v6478 = vrot.slane %v6477, 2
    %v6480 = vshll.u32 %v6414, 16
    %v6482 = vrot.slane %v6480, 7
    %v6483 = vsel %vm6012, %v6478, %v6482
    %v6484 = vshrl.u32 %v6417, 16
    %v6486 = vrot.slane %v6484, 6
    %v6487 = vshll.u32 %v6417, 16
    %v6489 = vrot.slane %v6487, 7
    %v6490 = vor.u32 %v6486, %v6489
    %v6491 = vrot.slane %v6490, 2
    %v6493 = vshll.u32 %v6420, 16
    %v6495 = vrot.slane %v6493, 7
    %v6496 = vsel %vm6012, %v6491, %v6495
    %v6497 = vshrl.u32 %v6423, 16
    %v6499 = vrot.slane %v6497, 6
    %v6500 = vshll.u32 %v6423, 16
    %v6502 = vrot.slane %v6500, 7
    %v6503 = vor.u32 %v6499, %v6502
    %v6504 = vrot.slane %v6503, 2
    %v6506 = vshll.u32 %v6426, 16
    %v6508 = vrot.slane %v6506, 7
    %v6509 = vsel %vm6012, %v6504, %v6508
    %v6510 = vshrl.u32 %v6429, 16
    %v6512 = vrot.slane %v6510, 6
    %v6513 = vshll.u32 %v6429, 16
    %v6515 = vrot.slane %v6513, 7
    %v6516 = vor.u32 %v6512, %v6515
    %v6517 = vrot.slane %v6516, 2
    %v6519 = vshll.u32 %v6432, 16
    %v6521 = vrot.slane %v6519, 7
    %v6522 = vsel %vm6012, %v6517, %v6521
    %v6523 = vshrl.u32 %v6435, 16
    %v6525 = vrot.slane %v6523, 6
    %v6526 = vshll.u32 %v6435, 16
    %v6528 = vrot.slane %v6526, 7
    %v6529 = vor.u32 %v6525, %v6528
    %v6530 = vrot.slane %v6529, 2
    %v6532 = vshll.u32 %v6438, 16
    %v6534 = vrot.slane %v6532, 7
    %v6535 = vsel %vm6012, %v6530, %v6534
    %v6536 = vshrl.u32 %v6441, 16
    %v6538 = vrot.slane %v6536, 6
    %v6539 = vshll.u32 %v6441, 16
    %v6541 = vrot.slane %v6539, 7
    %v6542 = vor.u32 %v6538, %v6541
    %v6543 = vrot.slane %v6542, 2
    %v6545 = vshll.u32 %v6444, 16
    %v6547 = vrot.slane %v6545, 7
    %v6548 = vsel %vm6012, %v6543, %v6547
    %6550 = vst [vmem:[#allocation1] ss:$2 sm:$0xff] %v6457
    %s6552 = scalar_lea.vmem [#allocation1], 1
    %6553 = vst [vmem:[%s6552] ss:$2 sm:$0xff] %v6470
    %s6555 = scalar_lea.vmem [#allocation1], 16
    %6556 = vst [vmem:[%s6555] ss:$2 sm:$0xff] %v6483
    %s6558 = scalar_lea.vmem [#allocation1], 17
    %6559 = vst [vmem:[%s6558] ss:$2 sm:$0xff] %v6496
    %s6561 = scalar_lea.vmem [#allocation1], 32
    %6562 = vst [vmem:[%s6561] ss:$2 sm:$0xff] %v6509
    %s6564 = scalar_lea.vmem [#allocation1], 33
    %6565 = vst [vmem:[%s6564] ss:$2 sm:$0xff] %v6522
    %s6567 = scalar_lea.vmem [#allocation1], 48
    %6568 = vst [vmem:[%s6567] ss:$2 sm:$0xff] %v6535
    %s6570 = scalar_lea.vmem [#allocation1], 49
    %6571 = vst [vmem:[%s6570] ss:$2 sm:$0xff] %v6548
    %v6572 = vld.sshfl [vmem:[#allocation1] sm:$0xff pattern:$0x75643120]
    %v6573 = vld.sshfl [vmem:[#allocation1 + $0x10] sm:$0xff pattern:$0x75643120]
    %v6574 = vld.sshfl [vmem:[#allocation1 + $0x20] sm:$0xff pattern:$0x75643120]
    %v6575 = vld.sshfl [vmem:[#allocation1 + $0x30] sm:$0xff pattern:$0x75643120]
    %6580 = vst.msk [vmem:[#allocation3 + $0x8] sm:$0xf] %vm1971, %v6572
    %6581 = vst.msk [vmem:[#allocation3 + $0x1c] sm:$0xf] %vm1971, %v6573
    %6582 = vst.msk [vmem:[#allocation3 + $0x30] sm:$0xf] %vm1971, %v6574
    %6583 = vst.msk [vmem:[#allocation3 + $0x44] sm:$0xf] %vm1971, %v6575
    %v6584 = vld [vmem:[%s1982] sm:$0x6]
    %v6585 = vld [vmem:[%s1982 + $0x8] sm:$0x6]
    %v6586 = vld [vmem:[%s1982 + $0x10] sm:$0x6]
    %v6587 = vld [vmem:[%s1982 + $0x18] sm:$0x6]
    %v6588 = vld [vmem:[%s1982 + $0x50] sm:$0x6]
    %v6589 = vld [vmem:[%s1982 + $0x58] sm:$0x6]
    %v6590 = vld [vmem:[%s1982 + $0x60] sm:$0x6]
    %v6591 = vld [vmem:[%s1982 + $0x68] sm:$0x6]
    %v6600 = vrot.slane %v6584, 2
    %v6601 = vrot.slane %v6585, 2
    %v6602 = vrot.slane %v6586, 2
    %v6603 = vrot.slane %v6587, 2
    %v6604 = vrot.slane %v6588, 2
    %v6605 = vrot.slane %v6589, 2
    %v6606 = vrot.slane %v6590, 2
    %v6607 = vrot.slane %v6591, 2
    %v6610 = vsel %vm5956, %v6584, %v6600
    %v6612 = vsel %vm5960, %v6584, %v6600
    %v6614 = vrot.slane %v6612, 2
    %v6617 = vsel %vm5956, %v6585, %v6601
    %v6619 = vsel %vm5960, %v6585, %v6601
    %v6621 = vrot.slane %v6619, 2
    %v6624 = vsel %vm5956, %v6586, %v6602
    %v6626 = vsel %vm5960, %v6586, %v6602
    %v6628 = vrot.slane %v6626, 2
    %v6631 = vsel %vm5956, %v6587, %v6603
    %v6633 = vsel %vm5960, %v6587, %v6603
    %v6635 = vrot.slane %v6633, 2
    %v6638 = vsel %vm5956, %v6588, %v6604
    %v6640 = vsel %vm5960, %v6588, %v6604
    %v6642 = vrot.slane %v6640, 2
    %v6645 = vsel %vm5956, %v6589, %v6605
    %v6647 = vsel %vm5960, %v6589, %v6605
    %v6649 = vrot.slane %v6647, 2
    %v6652 = vsel %vm5956, %v6590, %v6606
    %v6654 = vsel %vm5960, %v6590, %v6606
    %v6656 = vrot.slane %v6654, 2
    %v6659 = vsel %vm5956, %v6591, %v6607
    %v6661 = vsel %vm5960, %v6591, %v6607
    %v6663 = vrot.slane %v6661, 2
    %v6664 = vrot.slane %v6610, 7
    %v6665 = vrot.slane %v6664, 2
    %v6666 = vrot.slane %v6614, 7
    %v6667 = vsel %vm6250, %v6665, %v6666
    %v6668 = vrot.slane %v6617, 7
    %v6669 = vrot.slane %v6668, 2
    %v6670 = vrot.slane %v6621, 7
    %v6671 = vsel %vm6250, %v6669, %v6670
    %v6672 = vrot.slane %v6624, 7
    %v6673 = vrot.slane %v6672, 2
    %v6674 = vrot.slane %v6628, 7
    %v6675 = vsel %vm6250, %v6673, %v6674
    %v6676 = vrot.slane %v6631, 7
    %v6677 = vrot.slane %v6676, 2
    %v6678 = vrot.slane %v6635, 7
    %v6679 = vsel %vm6250, %v6677, %v6678
    %v6680 = vrot.slane %v6638, 7
    %v6681 = vrot.slane %v6680, 2
    %v6682 = vrot.slane %v6642, 7
    %v6683 = vsel %vm6250, %v6681, %v6682
    %v6684 = vrot.slane %v6645, 7
    %v6685 = vrot.slane %v6684, 2
    %v6686 = vrot.slane %v6649, 7
    %v6687 = vsel %vm6250, %v6685, %v6686
    %v6688 = vrot.slane %v6652, 7
    %v6689 = vrot.slane %v6688, 2
    %v6690 = vrot.slane %v6656, 7
    %v6691 = vsel %vm6250, %v6689, %v6690
    %v6692 = vrot.slane %v6659, 7
    %v6693 = vrot.slane %v6692, 2
    %v6694 = vrot.slane %v6663, 7
    %v6695 = vsel %vm6250, %v6693, %v6694
    %6697 = vst [vmem:[#allocation1] ss:$2 sm:$0xff] %v6667
    %s6699 = scalar_lea.vmem [#allocation1], 1
    %6700 = vst [vmem:[%s6699] ss:$2 sm:$0xff] %v6671
    %s6702 = scalar_lea.vmem [#allocation1], 16
    %6703 = vst [vmem:[%s6702] ss:$2 sm:$0xff] %v6675
    %s6705 = scalar_lea.vmem [#allocation1], 17
    %6706 = vst [vmem:[%s6705] ss:$2 sm:$0xff] %v6679
    %s6708 = scalar_lea.vmem [#allocation1], 32
    %6709 = vst [vmem:[%s6708] ss:$2 sm:$0xff] %v6683
    %s6711 = scalar_lea.vmem [#allocation1], 33
    %6712 = vst [vmem:[%s6711] ss:$2 sm:$0xff] %v6687
    %s6714 = scalar_lea.vmem [#allocation1], 48
    %6715 = vst [vmem:[%s6714] ss:$2 sm:$0xff] %v6691
    %s6717 = scalar_lea.vmem [#allocation1], 49
    %6718 = vst [vmem:[%s6717] ss:$2 sm:$0xff] %v6695
    %v6719 = vld.sshfl [vmem:[#allocation1] sm:$0xff pattern:$0x75643120]
    %v6721 = vld.sshfl [vmem:[#allocation1 + $0x10] sm:$0xff pattern:$0x75643120]
    %v6723 = vld.sshfl [vmem:[#allocation1 + $0x20] sm:$0xff pattern:$0x75643120]
    %v6725 = vld.sshfl [vmem:[#allocation1 + $0x30] sm:$0xff pattern:$0x75643120]
    %6727 = vrot.lane.b32.xlu0 %v6719, 64
    %v6728 = vpop.permute.xlu0 %6727
    %6729 = vrot.lane.b32.xlu0 %v6721, 64
    %v6730 = vpop.permute.xlu0 %6729
    %6731 = vrot.lane.b32.xlu0 %v6723, 64
    %v6732 = vpop.permute.xlu0 %6731
    %6733 = vrot.lane.b32.xlu0 %v6725, 64
    %v6734 = vpop.permute.xlu0 %6733
    %6739 = vst.msk [vmem:[#allocation3 + $0x8] sm:$0xf] %vm3183, %v6728
    %6740 = vst.msk [vmem:[#allocation3 + $0x1c] sm:$0xf] %vm3183, %v6730
    %6741 = vst.msk [vmem:[#allocation3 + $0x30] sm:$0xf] %vm3183, %v6732
    %6742 = vst.msk [vmem:[#allocation3 + $0x44] sm:$0xf] %vm3183, %v6734
    %v6743 = vld [vmem:[%s3939] sm:$0x3]
    %v6744 = vld [vmem:[%s3939 + $0x8] sm:$0x3]
    %v6745 = vld [vmem:[%s3939 + $0x10] sm:$0x3]
    %v6746 = vld [vmem:[%s3939 + $0x18] sm:$0x3]
    %v6747 = vld [vmem:[%s3939 + $0x50] sm:$0x3]
    %v6748 = vld [vmem:[%s3939 + $0x58] sm:$0x3]
    %v6749 = vld [vmem:[%s3939 + $0x60] sm:$0x3]
    %v6750 = vld [vmem:[%s3939 + $0x68] sm:$0x3]
    %6752 = vst [vmem:[#allocation1] ss:$2 sm:$0xff] %v6743
    %s6754 = scalar_lea.vmem [#allocation1], 1
    %6755 = vst [vmem:[%s6754] ss:$2 sm:$0xff] %v6744
    %s6757 = scalar_lea.vmem [#allocation1], 16
    %6758 = vst [vmem:[%s6757] ss:$2 sm:$0xff] %v6745
    %s6760 = scalar_lea.vmem [#allocation1], 17
    %6761 = vst [vmem:[%s6760] ss:$2 sm:$0xff] %v6746
    %s6763 = scalar_lea.vmem [#allocation1], 32
    %6764 = vst [vmem:[%s6763] ss:$2 sm:$0xff] %v6747
    %s6766 = scalar_lea.vmem [#allocation1], 33
    %6767 = vst [vmem:[%s6766] ss:$2 sm:$0xff] %v6748
    %s6769 = scalar_lea.vmem [#allocation1], 48
    %6770 = vst [vmem:[%s6769] ss:$2 sm:$0xff] %v6749
    %s6772 = scalar_lea.vmem [#allocation1], 49
    %6773 = vst [vmem:[%s6772] ss:$2 sm:$0xff] %v6750
    %v6774 = vld.sshfl [vmem:[#allocation1] sm:$0xff pattern:$0x75643120]
    %v6775 = vld.sshfl [vmem:[#allocation1 + $0x10] sm:$0xff pattern:$0x75643120]
    %v6776 = vld.sshfl [vmem:[#allocation1 + $0x20] sm:$0xff pattern:$0x75643120]
    %v6777 = vld.sshfl [vmem:[#allocation1 + $0x30] sm:$0xff pattern:$0x75643120]
    %6782 = vst.msk [vmem:[#allocation3 + $0xc] sm:$0xf] %vm1971, %v6774
    %6783 = vst.msk [vmem:[#allocation3 + $0x20] sm:$0xf] %vm1971, %v6775
    %6784 = vst.msk [vmem:[#allocation3 + $0x34] sm:$0xf] %vm1971, %v6776
    %6785 = vst.msk [vmem:[#allocation3 + $0x48] sm:$0xf] %vm1971, %v6777
    %v6786 = vld [vmem:[%s3939] sm:$0x7]
    %v6787 = vld [vmem:[%s3939 + $0x8] sm:$0x7]
    %v6788 = vld [vmem:[%s3939 + $0x10] sm:$0x7]
    %v6789 = vld [vmem:[%s3939 + $0x18] sm:$0x7]
    %v6790 = vld [vmem:[%s3939 + $0x50] sm:$0x7]
    %v6791 = vld [vmem:[%s3939 + $0x58] sm:$0x7]
    %v6792 = vld [vmem:[%s3939 + $0x60] sm:$0x7]
    %v6793 = vld [vmem:[%s3939 + $0x68] sm:$0x7]
    %v6802 = vrot.slane %v6786, 2
    %v6803 = vrot.slane %v6787, 2
    %v6804 = vrot.slane %v6788, 2
    %v6805 = vrot.slane %v6789, 2
    %v6806 = vrot.slane %v6790, 2
    %v6807 = vrot.slane %v6791, 2
    %v6808 = vrot.slane %v6792, 2
    %v6809 = vrot.slane %v6793, 2
    %v6812 = vsel %vm5956, %v6786, %v6802
    %v6813 = vsel %vm5960, %v6786, %v6802
    %v6815 = vrot.slane %v6813, 2
    %v6818 = vsel %vm5956, %v6787, %v6803
    %v6819 = vsel %vm5960, %v6787, %v6803
    %v6821 = vrot.slane %v6819, 2
    %v6824 = vsel %vm5956, %v6788, %v6804
    %v6825 = vsel %vm5960, %v6788, %v6804
    %v6827 = vrot.slane %v6825, 2
    %v6830 = vsel %vm5956, %v6789, %v6805
    %v6831 = vsel %vm5960, %v6789, %v6805
    %v6833 = vrot.slane %v6831, 2
    %v6836 = vsel %vm5956, %v6790, %v6806
    %v6837 = vsel %vm5960, %v6790, %v6806
    %v6839 = vrot.slane %v6837, 2
    %v6842 = vsel %vm5956, %v6791, %v6807
    %v6843 = vsel %vm5960, %v6791, %v6807
    %v6845 = vrot.slane %v6843, 2
    %v6848 = vsel %vm5956, %v6792, %v6808
    %v6849 = vsel %vm5960, %v6792, %v6808
    %v6851 = vrot.slane %v6849, 2
    %v6854 = vsel %vm5956, %v6793, %v6809
    %v6855 = vsel %vm5960, %v6793, %v6809
    %v6857 = vrot.slane %v6855, 2
    %v6858 = vshrl.u32 %v6812, 16
    %v6860 = vrot.slane %v6858, 6
    %v6861 = vshll.u32 %v6812, 16
    %v6863 = vrot.slane %v6861, 7
    %v6864 = vor.u32 %v6860, %v6863
    %v6865 = vrot.slane %v6864, 2
    %v6867 = vshll.u32 %v6815, 16
    %v6869 = vrot.slane %v6867, 7
    %v6870 = vsel %vm6012, %v6865, %v6869
    %v6871 = vshrl.u32 %v6818, 16
    %v6873 = vrot.slane %v6871, 6
    %v6874 = vshll.u32 %v6818, 16
    %v6876 = vrot.slane %v6874, 7
    %v6877 = vor.u32 %v6873, %v6876
    %v6878 = vrot.slane %v6877, 2
    %v6880 = vshll.u32 %v6821, 16
    %v6882 = vrot.slane %v6880, 7
    %v6883 = vsel %vm6012, %v6878, %v6882
    %v6884 = vshrl.u32 %v6824, 16
    %v6886 = vrot.slane %v6884, 6
    %v6887 = vshll.u32 %v6824, 16
    %v6889 = vrot.slane %v6887, 7
    %v6890 = vor.u32 %v6886, %v6889
    %v6891 = vrot.slane %v6890, 2
    %v6893 = vshll.u32 %v6827, 16
    %v6895 = vrot.slane %v6893, 7
    %v6896 = vsel %vm6012, %v6891, %v6895
    %v6897 = vshrl.u32 %v6830, 16
    %v6899 = vrot.slane %v6897, 6
    %v6900 = vshll.u32 %v6830, 16
    %v6902 = vrot.slane %v6900, 7
    %v6903 = vor.u32 %v6899, %v6902
    %v6904 = vrot.slane %v6903, 2
    %v6906 = vshll.u32 %v6833, 16
    %v6908 = vrot.slane %v6906, 7
    %v6909 = vsel %vm6012, %v6904, %v6908
    %v6910 = vshrl.u32 %v6836, 16
    %v6912 = vrot.slane %v6910, 6
    %v6913 = vshll.u32 %v6836, 16
    %v6915 = vrot.slane %v6913, 7
    %v6916 = vor.u32 %v6912, %v6915
    %v6917 = vrot.slane %v6916, 2
    %v6919 = vshll.u32 %v6839, 16
    %v6921 = vrot.slane %v6919, 7
    %v6922 = vsel %vm6012, %v6917, %v6921
    %v6923 = vshrl.u32 %v6842, 16
    %v6925 = vrot.slane %v6923, 6
    %v6926 = vshll.u32 %v6842, 16
    %v6928 = vrot.slane %v6926, 7
    %v6929 = vor.u32 %v6925, %v6928
    %v6930 = vrot.slane %v6929, 2
    %v6932 = vshll.u32 %v6845, 16
    %v6934 = vrot.slane %v6932, 7
    %v6935 = vsel %vm6012, %v6930, %v6934
    %v6936 = vshrl.u32 %v6848, 16
    %v6938 = vrot.slane %v6936, 6
    %v6939 = vshll.u32 %v6848, 16
    %v6941 = vrot.slane %v6939, 7
    %v6942 = vor.u32 %v6938, %v6941
    %v6943 = vrot.slane %v6942, 2
    %v6945 = vshll.u32 %v6851, 16
    %v6947 = vrot.slane %v6945, 7
    %v6948 = vsel %vm6012, %v6943, %v6947
    %v6949 = vshrl.u32 %v6854, 16
    %v6951 = vrot.slane %v6949, 6
    %v6952 = vshll.u32 %v6854, 16
    %v6954 = vrot.slane %v6952, 7
    %v6955 = vor.u32 %v6951, %v6954
    %v6956 = vrot.slane %v6955, 2
    %v6958 = vshll.u32 %v6857, 16
    %v6960 = vrot.slane %v6958, 7
    %v6961 = vsel %vm6012, %v6956, %v6960
    %6963 = vst [vmem:[#allocation1] ss:$2 sm:$0xff] %v6870
    %s6965 = scalar_lea.vmem [#allocation1], 1
    %6966 = vst [vmem:[%s6965] ss:$2 sm:$0xff] %v6883
    %s6968 = scalar_lea.vmem [#allocation1], 16
    %6969 = vst [vmem:[%s6968] ss:$2 sm:$0xff] %v6896
    %s6971 = scalar_lea.vmem [#allocation1], 17
    %6972 = vst [vmem:[%s6971] ss:$2 sm:$0xff] %v6909
    %s6974 = scalar_lea.vmem [#allocation1], 32
    %6975 = vst [vmem:[%s6974] ss:$2 sm:$0xff] %v6922
    %s6977 = scalar_lea.vmem [#allocation1], 33
    %6978 = vst [vmem:[%s6977] ss:$2 sm:$0xff] %v6935
    %s6980 = scalar_lea.vmem [#allocation1], 48
    %6981 = vst [vmem:[%s6980] ss:$2 sm:$0xff] %v6948
    %s6983 = scalar_lea.vmem [#allocation1], 49
    %6984 = vst [vmem:[%s6983] ss:$2 sm:$0xff] %v6961
    %v6985 = vld.sshfl [vmem:[#allocation1] sm:$0xff pattern:$0x75643120]
    %v6987 = vld.sshfl [vmem:[#allocation1 + $0x10] sm:$0xff pattern:$0x75643120]
    %v6989 = vld.sshfl [vmem:[#allocation1 + $0x20] sm:$0xff pattern:$0x75643120]
    %v6991 = vld.sshfl [vmem:[#allocation1 + $0x30] sm:$0xff pattern:$0x75643120]
    %6993 = vrot.lane.b32.xlu0 %v6985, 64
    %v6994 = vpop.permute.xlu0 %6993
    %6995 = vrot.lane.b32.xlu0 %v6987, 64
    %v6996 = vpop.permute.xlu0 %6995
    %6997 = vrot.lane.b32.xlu0 %v6989, 64
    %v6998 = vpop.permute.xlu0 %6997
    %6999 = vrot.lane.b32.xlu0 %v6991, 64
    %v7000 = vpop.permute.xlu0 %6999
    %7005 = vst.msk [vmem:[#allocation3 + $0xc] sm:$0xf] %vm3183, %v6994
    %7006 = vst.msk [vmem:[#allocation3 + $0x20] sm:$0xf] %vm3183, %v6996
    %7007 = vst.msk [vmem:[#allocation3 + $0x34] sm:$0xf] %vm3183, %v6998
    %7008 = vst.msk [vmem:[#allocation3 + $0x48] sm:$0xf] %vm3183, %v7000
    %v7009 = vld [vmem:[%s3939] sm:$0x6]
    %v7010 = vld [vmem:[%s3939 + $0x8] sm:$0x6]
    %v7011 = vld [vmem:[%s3939 + $0x10] sm:$0x6]
    %v7012 = vld [vmem:[%s3939 + $0x18] sm:$0x6]
    %v7013 = vld [vmem:[%s3939 + $0x50] sm:$0x6]
    %v7014 = vld [vmem:[%s3939 + $0x58] sm:$0x6]
    %v7015 = vld [vmem:[%s3939 + $0x60] sm:$0x6]
    %v7016 = vld [vmem:[%s3939 + $0x68] sm:$0x6]
    %v7025 = vrot.slane %v7009, 2
    %v7026 = vrot.slane %v7010, 2
    %v7027 = vrot.slane %v7011, 2
    %v7028 = vrot.slane %v7012, 2
    %v7029 = vrot.slane %v7013, 2
    %v7030 = vrot.slane %v7014, 2
    %v7031 = vrot.slane %v7015, 2
    %v7032 = vrot.slane %v7016, 2
    %v7035 = vsel %vm5956, %v7009, %v7025
    %v7037 = vsel %vm5960, %v7009, %v7025
    %v7039 = vrot.slane %v7037, 2
    %v7042 = vsel %vm5956, %v7010, %v7026
    %v7044 = vsel %vm5960, %v7010, %v7026
    %v7046 = vrot.slane %v7044, 2
    %v7049 = vsel %vm5956, %v7011, %v7027
    %v7051 = vsel %vm5960, %v7011, %v7027
    %v7053 = vrot.slane %v7051, 2
    %v7056 = vsel %vm5956, %v7012, %v7028
    %v7058 = vsel %vm5960, %v7012, %v7028
    %v7060 = vrot.slane %v7058, 2
    %v7063 = vsel %vm5956, %v7013, %v7029
    %v7065 = vsel %vm5960, %v7013, %v7029
    %v7067 = vrot.slane %v7065, 2
    %v7070 = vsel %vm5956, %v7014, %v7030
    %v7072 = vsel %vm5960, %v7014, %v7030
    %v7074 = vrot.slane %v7072, 2
    %v7077 = vsel %vm5956, %v7015, %v7031
    %v7079 = vsel %vm5960, %v7015, %v7031
    %v7081 = vrot.slane %v7079, 2
    %v7084 = vsel %vm5956, %v7016, %v7032
    %v7086 = vsel %vm5960, %v7016, %v7032
    %v7088 = vrot.slane %v7086, 2
    %v7089 = vrot.slane %v7035, 7
    %v7090 = vrot.slane %v7089, 2
    %v7091 = vrot.slane %v7039, 7
    %v7092 = vsel %vm6250, %v7090, %v7091
    %v7093 = vrot.slane %v7042, 7
    %v7094 = vrot.slane %v7093, 2
    %v7095 = vrot.slane %v7046, 7
    %v7096 = vsel %vm6250, %v7094, %v7095
    %v7097 = vrot.slane %v7049, 7
    %v7098 = vrot.slane %v7097, 2
    %v7099 = vrot.slane %v7053, 7
    %v7100 = vsel %vm6250, %v7098, %v7099
    %v7101 = vrot.slane %v7056, 7
    %v7102 = vrot.slane %v7101, 2
    %v7103 = vrot.slane %v7060, 7
    %v7104 = vsel %vm6250, %v7102, %v7103
    %v7105 = vrot.slane %v7063, 7
    %v7106 = vrot.slane %v7105, 2
    %v7107 = vrot.slane %v7067, 7
    %v7108 = vsel %vm6250, %v7106, %v7107
    %v7109 = vrot.slane %v7070, 7
    %v7110 = vrot.slane %v7109, 2
    %v7111 = vrot.slane %v7074, 7
    %v7112 = vsel %vm6250, %v7110, %v7111
    %v7113 = vrot.slane %v7077, 7
    %v7114 = vrot.slane %v7113, 2
    %v7115 = vrot.slane %v7081, 7
    %v7116 = vsel %vm6250, %v7114, %v7115
    %v7117 = vrot.slane %v7084, 7
    %v7118 = vrot.slane %v7117, 2
    %v7119 = vrot.slane %v7088, 7
    %v7120 = vsel %vm6250, %v7118, %v7119
    %7122 = vst [vmem:[#allocation1] ss:$2 sm:$0xff] %v7092
    %s7124 = scalar_lea.vmem [#allocation1], 1
    %7125 = vst [vmem:[%s7124] ss:$2 sm:$0xff] %v7096
    %s7127 = scalar_lea.vmem [#allocation1], 16
    %7128 = vst [vmem:[%s7127] ss:$2 sm:$0xff] %v7100
    %s7130 = scalar_lea.vmem [#allocation1], 17
    %7131 = vst [vmem:[%s7130] ss:$2 sm:$0xff] %v7104
    %s7133 = scalar_lea.vmem [#allocation1], 32
    %7134 = vst [vmem:[%s7133] ss:$2 sm:$0xff] %v7108
    %s7136 = scalar_lea.vmem [#allocation1], 33
    %7137 = vst [vmem:[%s7136] ss:$2 sm:$0xff] %v7112
    %s7139 = scalar_lea.vmem [#allocation1], 48
    %7140 = vst [vmem:[%s7139] ss:$2 sm:$0xff] %v7116
    %s7142 = scalar_lea.vmem [#allocation1], 49
    %7143 = vst [vmem:[%s7142] ss:$2 sm:$0xff] %v7120
    %v7144 = vld.sshfl [vmem:[#allocation1] sm:$0xff pattern:$0x75643120]
    %v7145 = vld.sshfl [vmem:[#allocation1 + $0x10] sm:$0xff pattern:$0x75643120]
    %v7146 = vld.sshfl [vmem:[#allocation1 + $0x20] sm:$0xff pattern:$0x75643120]
    %v7147 = vld.sshfl [vmem:[#allocation1 + $0x30] sm:$0xff pattern:$0x75643120]
    %7152 = vst.msk [vmem:[#allocation3 + $0x10] sm:$0xf] %vm1971, %v7144
    %7153 = vst.msk [vmem:[#allocation3 + $0x24] sm:$0xf] %vm1971, %v7145
    %7154 = vst.msk [vmem:[#allocation3 + $0x38] sm:$0xf] %vm1971, %v7146
    %7155 = vst.msk [vmem:[#allocation3 + $0x4c] sm:$0xf] %vm1971, %v7147
    %v7156 = vld [vmem:[#allocation3] sm:$0xff]
    %v7157 = vld [vmem:[#allocation3 + $0x8] sm:$0xff]
    %v7158 = vld [vmem:[#allocation3 + $0x10] sm:$0xf]
    %v7159 = vld [vmem:[#allocation3 + $0x14] sm:$0xff]
    %v7160 = vld [vmem:[#allocation3 + $0x1c] sm:$0xff]
    %v7161 = vld [vmem:[#allocation3 + $0x24] sm:$0xf]
    %v7162 = vld [vmem:[#allocation3 + $0x28] sm:$0xff]
    %v7163 = vld [vmem:[#allocation3 + $0x30] sm:$0xff]
    %v7164 = vld [vmem:[#allocation3 + $0x38] sm:$0xf]
    %v7165 = vld [vmem:[#allocation3 + $0x3c] sm:$0xff]
    %v7166 = vld [vmem:[#allocation3 + $0x44] sm:$0xff]
    %v7167 = vld [vmem:[#allocation3 + $0x4c] sm:$0xf]
    %v7168 = vld [vmem:[%s3] sm:$0xf]
    %v7169 = vld [vmem:[%s3 + $0x4] sm:$0xf]
    %v7170 = vld [vmem:[%s3 + $0x8] sm:$0xf]
    %v7171 = vld [vmem:[%s3 + $0xc] sm:$0xf]
    %v7172 = vld [vmem:[%s3 + $0x10] sm:$0xf]
    %v7173 = vld [vmem:[%s3 + $0x14] sm:$0xf]
    %v7174 = vld [vmem:[%s3 + $0x18] sm:$0xf]
    %v7175 = vld [vmem:[%s3 + $0x1c] sm:$0xf]
    %v7176 = vld [vmem:[%s3 + $0x20] sm:$0xf]
    %v7177 = vld [vmem:[%s3 + $0x24] sm:$0xf]
    %v7178 = vld [vmem:[%s3 + $0x28] sm:$0xf]
    %v7179 = vld [vmem:[%s3 + $0x2c] sm:$0xf]
    %v7180 = vld [vmem:[%s3 + $0x30] sm:$0xf]
    %v7181 = vld [vmem:[%s3 + $0x34] sm:$0xf]
    %v7182 = vld [vmem:[%s3 + $0x38] sm:$0xf]
    %v7183 = vld [vmem:[%s3 + $0x3c] sm:$0xf]
    %v7184 = vld [vmem:[%s3 + $0x40] sm:$0xf]
    %v7185 = vld [vmem:[%s3 + $0x44] sm:$0xf]
    %v7186 = vld [vmem:[%s3 + $0x48] sm:$0xf]
    %v7187 = vld [vmem:[%s3 + $0x4c] sm:$0xf]
    %v7188 = vld [vmem:[%s3 + $0x50] sm:$0xf]
    %v7189 = vld [vmem:[%s3 + $0x54] sm:$0xf]
    %v7190 = vld [vmem:[%s3 + $0x58] sm:$0xf]
    %v7191 = vld [vmem:[%s3 + $0x5c] sm:$0xf]
    %v7192 = vld [vmem:[%s3 + $0x60] sm:$0xf]
    %v7193 = vld [vmem:[%s3 + $0x64] sm:$0xf]
    %v7194 = vld [vmem:[%s3 + $0x68] sm:$0xf]
    %v7195 = vld [vmem:[%s3 + $0x6c] sm:$0xf]
    %v7196 = vld [vmem:[%s3 + $0x70] sm:$0xf]
    %v7197 = vld [vmem:[%s3 + $0x74] sm:$0xf]
    %v7198 = vld [vmem:[%s3 + $0x78] sm:$0xf]
    %v7199 = vld [vmem:[%s3 + $0x7c] sm:$0xf]
    %v7200 = vld [vmem:[%s3 + $0x80] sm:$0xf]
    %v7201 = vld [vmem:[%s3 + $0x84] sm:$0xf]
    %v7202 = vld [vmem:[%s3 + $0x88] sm:$0xf]
    %v7203 = vld [vmem:[%s3 + $0x8c] sm:$0xf]
    %v7204 = vld [vmem:[%s3 + $0x90] sm:$0xf]
    %v7205 = vld [vmem:[%s3 + $0x94] sm:$0xf]
    %v7206 = vld [vmem:[%s3 + $0x98] sm:$0xf]
    %v7207 = vld [vmem:[%s3 + $0x9c] sm:$0xf]
    %v7208 = vld [vmem:[%s3 + $0xa0] sm:$0xf]
    %v7209 = vld [vmem:[%s3 + $0xa4] sm:$0xf]
    %v7210 = vld [vmem:[%s3 + $0xa8] sm:$0xf]
    %v7211 = vld [vmem:[%s3 + $0xac] sm:$0xf]
    %v7212 = vld [vmem:[%s3 + $0xb0] sm:$0xf]
    %v7213 = vld [vmem:[%s3 + $0xb4] sm:$0xf]
    %v7214 = vld [vmem:[%s3 + $0xb8] sm:$0xf]
    %v7215 = vld [vmem:[%s3 + $0xbc] sm:$0xf]
    %v7216 = vld [vmem:[%s3 + $0xc0] sm:$0xf]
    %v7217 = vld [vmem:[%s3 + $0xc4] sm:$0xf]
    %v7218 = vld [vmem:[%s3 + $0xc8] sm:$0xf]
    %v7219 = vld [vmem:[%s3 + $0xcc] sm:$0xf]
    %v7220 = vld [vmem:[%s3 + $0xd0] sm:$0xf]
    %v7221 = vld [vmem:[%s3 + $0xd4] sm:$0xf]
    %v7222 = vld [vmem:[%s3 + $0xd8] sm:$0xf]
    %v7223 = vld [vmem:[%s3 + $0xdc] sm:$0xf]
    %v7224 = vld [vmem:[%s3 + $0xe0] sm:$0xf]
    %v7225 = vld [vmem:[%s3 + $0xe4] sm:$0xf]
    %v7226 = vld [vmem:[%s3 + $0xe8] sm:$0xf]
    %v7227 = vld [vmem:[%s3 + $0xec] sm:$0xf]
    %v7228 = vld [vmem:[%s3 + $0xf0] sm:$0xf]
    %v7229 = vld [vmem:[%s3 + $0xf4] sm:$0xf]
    %v7230 = vld [vmem:[%s3 + $0xf8] sm:$0xf]
    %v7231 = vld [vmem:[%s3 + $0xfc] sm:$0xf]
    %v7232 = vld [vmem:[%s3 + $0x100] sm:$0xf]
    %v7233 = vld [vmem:[%s3 + $0x104] sm:$0xf]
    %v7234 = vld [vmem:[%s3 + $0x108] sm:$0xf]
    %v7235 = vld [vmem:[%s3 + $0x10c] sm:$0xf]
    %v7236 = vld [vmem:[%s3 + $0x110] sm:$0xf]
    %v7237 = vld [vmem:[%s3 + $0x114] sm:$0xf]
    %v7238 = vld [vmem:[%s3 + $0x118] sm:$0xf]
    %v7239 = vld [vmem:[%s3 + $0x11c] sm:$0xf]
    %v7252 = vunpack.c.l.b16 %v7156
    %v7253 = vunpack.c.h.b16 %v7156
    %v7254 = vunpack.c.l.b16 %v7157
    %v7255 = vunpack.c.h.b16 %v7157
    %v7256 = vunpack.c.l.b16 %v7158
    %v7257 = vunpack.c.l.b16 %v7159
    %v7258 = vunpack.c.h.b16 %v7159
    %v7259 = vunpack.c.l.b16 %v7160
    %v7260 = vunpack.c.h.b16 %v7160
    %v7261 = vunpack.c.l.b16 %v7161
    %v7262 = vunpack.c.l.b16 %v7162
    %v7263 = vunpack.c.h.b16 %v7162
    %v7264 = vunpack.c.l.b16 %v7163
    %v7265 = vunpack.c.h.b16 %v7163
    %v7266 = vunpack.c.l.b16 %v7164
    %v7267 = vunpack.c.l.b16 %v7165
    %v7268 = vunpack.c.h.b16 %v7165
    %v7269 = vunpack.c.l.b16 %v7166
    %v7270 = vunpack.c.h.b16 %v7166
    %v7271 = vunpack.c.l.b16 %v7167
    %v7272 = vpack.c.b16 %v7257, %v7252
    %v7273 = vpack.c.b16 %v7258, %v7253
    %v7274 = vpack.c.b16 %v7259, %v7254
    %v7275 = vpack.c.b16 %v7260, %v7255
    %v7276 = vpack.c.b16 %v7261, %v7256
    %v7277 = vpack.c.b16 %v7267, %v7262
    %v7278 = vpack.c.b16 %v7268, %v7263
    %v7279 = vpack.c.b16 %v7269, %v7264
    %v7280 = vpack.c.b16 %v7270, %v7265
    %v7281 = vpack.c.b16 %v7271, %v7266
    %v7362 = vunpack.c.l.b16 %v7168
    %v7363 = vunpack.c.l.b16 %v7169
    %v7364 = vunpack.c.l.b16 %v7170
    %v7365 = vunpack.c.l.b16 %v7171
    %v7366 = vunpack.c.l.b16 %v7172
    %v7367 = vunpack.c.l.b16 %v7173
    %v7368 = vunpack.c.l.b16 %v7174
    %v7369 = vunpack.c.l.b16 %v7175
    %v7370 = vunpack.c.l.b16 %v7176
    %v7371 = vunpack.c.l.b16 %v7177
    %v7372 = vunpack.c.l.b16 %v7178
    %v7373 = vunpack.c.l.b16 %v7179
    %v7374 = vunpack.c.l.b16 %v7180
    %v7375 = vunpack.c.l.b16 %v7181
    %v7376 = vunpack.c.l.b16 %v7182
    %v7377 = vunpack.c.l.b16 %v7183
    %v7378 = vunpack.c.l.b16 %v7184
    %v7379 = vunpack.c.l.b16 %v7185
    %v7380 = vunpack.c.l.b16 %v7186
    %v7381 = vunpack.c.l.b16 %v7187
    %v7382 = vunpack.c.l.b16 %v7188
    %v7383 = vunpack.c.l.b16 %v7189
    %v7384 = vunpack.c.l.b16 %v7190
    %v7385 = vunpack.c.l.b16 %v7191
    %v7386 = vunpack.c.l.b16 %v7192
    %v7387 = vunpack.c.l.b16 %v7193
    %v7388 = vunpack.c.l.b16 %v7194
    %v7389 = vunpack.c.l.b16 %v7195
    %v7390 = vunpack.c.l.b16 %v7196
    %v7391 = vunpack.c.l.b16 %v7197
    %v7392 = vunpack.c.l.b16 %v7198
    %v7393 = vunpack.c.l.b16 %v7199
    %v7394 = vunpack.c.l.b16 %v7200
    %v7395 = vunpack.c.l.b16 %v7201
    %v7396 = vunpack.c.l.b16 %v7202
    %v7397 = vunpack.c.l.b16 %v7203
    %v7398 = vunpack.c.l.b16 %v7204
    %v7399 = vunpack.c.l.b16 %v7205
    %v7400 = vunpack.c.l.b16 %v7206
    %v7401 = vunpack.c.l.b16 %v7207
    %v7402 = vunpack.c.l.b16 %v7208
    %v7403 = vunpack.c.l.b16 %v7209
    %v7404 = vunpack.c.l.b16 %v7210
    %v7405 = vunpack.c.l.b16 %v7211
    %v7406 = vunpack.c.l.b16 %v7212
    %v7407 = vunpack.c.l.b16 %v7213
    %v7408 = vunpack.c.l.b16 %v7214
    %v7409 = vunpack.c.l.b16 %v7215
    %v7410 = vunpack.c.l.b16 %v7216
    %v7411 = vunpack.c.l.b16 %v7217
    %v7412 = vunpack.c.l.b16 %v7218
    %v7413 = vunpack.c.l.b16 %v7219
    %v7414 = vunpack.c.l.b16 %v7220
    %v7415 = vunpack.c.l.b16 %v7221
    %v7416 = vunpack.c.l.b16 %v7222
    %v7417 = vunpack.c.l.b16 %v7223
    %v7418 = vunpack.c.l.b16 %v7224
    %v7419 = vunpack.c.l.b16 %v7225
    %v7420 = vunpack.c.l.b16 %v7226
    %v7421 = vunpack.c.l.b16 %v7227
    %v7422 = vunpack.c.l.b16 %v7228
    %v7423 = vunpack.c.l.b16 %v7229
    %v7424 = vunpack.c.l.b16 %v7230
    %v7425 = vunpack.c.l.b16 %v7231
    %v7426 = vunpack.c.l.b16 %v7232
    %v7427 = vunpack.c.l.b16 %v7233
    %v7428 = vunpack.c.l.b16 %v7234
    %v7429 = vunpack.c.l.b16 %v7235
    %v7430 = vunpack.c.l.b16 %v7236
    %v7431 = vunpack.c.l.b16 %v7237
    %v7432 = vunpack.c.l.b16 %v7238
    %v7433 = vunpack.c.l.b16 %v7239
    %v7434 = vpack.c.b16 %v7363, %v7362
    %v7435 = vpack.c.b16 %v7365, %v7364
    %v7436 = vpack.c.b16 %v7367, %v7366
    %v7437 = vpack.c.b16 %v7369, %v7368
    %v7438 = vpack.c.b16 %v7371, %v7370
    %v7439 = vpack.c.b16 %v7373, %v7372
    %v7440 = vpack.c.b16 %v7375, %v7374
    %v7441 = vpack.c.b16 %v7377, %v7376
    %v7442 = vpack.c.b16 %v7379, %v7378
    %v7443 = vpack.c.b16 %v7381, %v7380
    %v7444 = vpack.c.b16 %v7383, %v7382
    %v7445 = vpack.c.b16 %v7385, %v7384
    %v7446 = vpack.c.b16 %v7387, %v7386
    %v7447 = vpack.c.b16 %v7389, %v7388
    %v7448 = vpack.c.b16 %v7391, %v7390
    %v7449 = vpack.c.b16 %v7393, %v7392
    %v7450 = vpack.c.b16 %v7395, %v7394
    %v7451 = vpack.c.b16 %v7397, %v7396
    %v7452 = vpack.c.b16 %v7399, %v7398
    %v7453 = vpack.c.b16 %v7401, %v7400
    %v7454 = vpack.c.b16 %v7403, %v7402
    %v7455 = vpack.c.b16 %v7405, %v7404
    %v7456 = vpack.c.b16 %v7407, %v7406
    %v7457 = vpack.c.b16 %v7409, %v7408
    %v7458 = vpack.c.b16 %v7411, %v7410
    %v7459 = vpack.c.b16 %v7413, %v7412
    %v7460 = vpack.c.b16 %v7415, %v7414
    %v7461 = vpack.c.b16 %v7417, %v7416
    %v7462 = vpack.c.b16 %v7419, %v7418
    %v7463 = vpack.c.b16 %v7421, %v7420
    %v7464 = vpack.c.b16 %v7423, %v7422
    %v7465 = vpack.c.b16 %v7425, %v7424
    %v7466 = vpack.c.b16 %v7427, %v7426
    %v7467 = vpack.c.b16 %v7429, %v7428
    %v7468 = vpack.c.b16 %v7431, %v7430
    %v7469 = vpack.c.b16 %v7433, %v7432
    %v7507 = vsel %vm534, %v7276, 0
    %v7510 = vsel %vm534, %v7281, 0
    %7512 = vmatpush.bf16.msra.mxu0 %v7441
    %7513 = vmatpush.bf16.msra.mxu0 %v7440
    %7514 = vmatpush.bf16.msra.mxu0 %v7439
    %7515 = vmatpush.bf16.msra.mxu0 %v7438
    %7516 = vmatpush.bf16.msra.mxu0 %v7437
    %7517 = vmatpush.bf16.msra.mxu0 %v7436
    %7518 = vmatpush.bf16.msra.mxu0 %v7435
    %7519 = vmatpush.bf16.msra.mxu0 %v7434
    %7520 = vmatmul.bf16.gmra.mxu0 %v7272
    %v7521 = vpop.f32.mrf.mxu0
    %v7522 = vadd.f32 0.0, %v7521
    %v7523 = vpop.f32.mrf.mxu0
    %v7524 = vadd.f32 0.0, %v7523
    %7525 = vmatmul.bf16.gmra.mxu0 %v7277
    %v7526 = vpop.f32.mrf.mxu0
    %v7527 = vadd.f32 0.0, %v7526
    %v7528 = vpop.f32.mrf.mxu0
    %v7529 = vadd.f32 0.0, %v7528
    %7530 = vdwg.mxu0
    %7531 = vmatpush.bf16.msra.mxu0 %v7449
    %7532 = vmatpush.bf16.msra.mxu0 %v7448
    %7533 = vmatpush.bf16.msra.mxu0 %v7447
    %7534 = vmatpush.bf16.msra.mxu0 %v7446
    %7535 = vmatpush.bf16.msra.mxu0 %v7445
    %7536 = vmatpush.bf16.msra.mxu0 %v7444
    %7537 = vmatpush.bf16.msra.mxu0 %v7443
    %7538 = vmatpush.bf16.msra.mxu0 %v7442
    %7539 = vmatmul.bf16.gmra.mxu0 %v7273
    %v7540 = vpop.f32.mrf.mxu0
    %v7541 = vadd.f32 %v7522, %v7540
    %v7542 = vpop.f32.mrf.mxu0
    %v7543 = vadd.f32 %v7524, %v7542
    %7544 = vmatmul.bf16.gmra.mxu0 %v7278
    %v7545 = vpop.f32.mrf.mxu0
    %v7546 = vadd.f32 %v7527, %v7545
    %v7547 = vpop.f32.mrf.mxu0
    %v7548 = vadd.f32 %v7529, %v7547
    %7549 = vdwg.mxu0
    %7550 = vmatpush.bf16.msra.mxu0 %v7457
    %7551 = vmatpush.bf16.msra.mxu0 %v7456
    %7552 = vmatpush.bf16.msra.mxu0 %v7455
    %7553 = vmatpush.bf16.msra.mxu0 %v7454
    %7554 = vmatpush.bf16.msra.mxu0 %v7453
    %7555 = vmatpush.bf16.msra.mxu0 %v7452
    %7556 = vmatpush.bf16.msra.mxu0 %v7451
    %7557 = vmatpush.bf16.msra.mxu0 %v7450
    %7558 = vmatmul.bf16.gmra.mxu0 %v7274
    %v7559 = vpop.f32.mrf.mxu0
    %v7560 = vadd.f32 %v7541, %v7559
    %v7561 = vpop.f32.mrf.mxu0
    %v7562 = vadd.f32 %v7543, %v7561
    %7563 = vmatmul.bf16.gmra.mxu0 %v7279
    %v7564 = vpop.f32.mrf.mxu0
    %v7565 = vadd.f32 %v7546, %v7564
    %v7566 = vpop.f32.mrf.mxu0
    %v7567 = vadd.f32 %v7548, %v7566
    %7568 = vdwg.mxu0
    %7569 = vmatpush.bf16.msra.mxu0 %v7465
    %7570 = vmatpush.bf16.msra.mxu0 %v7464
    %7571 = vmatpush.bf16.msra.mxu0 %v7463
    %7572 = vmatpush.bf16.msra.mxu0 %v7462
    %7573 = vmatpush.bf16.msra.mxu0 %v7461
    %7574 = vmatpush.bf16.msra.mxu0 %v7460
    %7575 = vmatpush.bf16.msra.mxu0 %v7459
    %7576 = vmatpush.bf16.msra.mxu0 %v7458
    %7577 = vmatmul.bf16.gmra.mxu0 %v7275
    %v7578 = vpop.f32.mrf.mxu0
    %v7579 = vadd.f32 %v7560, %v7578
    %v7580 = vpop.f32.mrf.mxu0
    %v7581 = vadd.f32 %v7562, %v7580
    %7582 = vmatmul.bf16.gmra.mxu0 %v7280
    %v7583 = vpop.f32.mrf.mxu0
    %v7584 = vadd.f32 %v7565, %v7583
    %v7585 = vpop.f32.mrf.mxu0
    %v7586 = vadd.f32 %v7567, %v7585
    %7587 = vdwg.mxu0
    %7588 = vmatpush.bf16.msra.mxu0 0
    %7589 = vmatpush.bf16.msra.mxu0 0
    %7590 = vmatpush.bf16.msra.mxu0 0
    %7591 = vmatpush.bf16.msra.mxu0 0
    %7592 = vmatpush.bf16.msra.mxu0 %v7469
    %7593 = vmatpush.bf16.msra.mxu0 %v7468
    %7594 = vmatpush.bf16.msra.mxu0 %v7467
    %7595 = vmatpush.bf16.msra.mxu0 %v7466
    %7596 = vmatmul.bf16.gmra.mxu0 %v7507
    %v7597 = vpop.f32.mrf.mxu0
    %v7598 = vadd.f32 %v7579, %v7597
    %v7599 = vpop.f32.mrf.mxu0
    %v7600 = vadd.f32 %v7581, %v7599
    %7601 = vmatmul.bf16.gmra.mxu0 %v7510
    %v7602 = vpop.f32.mrf.mxu0
    %v7603 = vadd.f32 %v7584, %v7602
    %v7604 = vpop.f32.mrf.mxu0
    %v7605 = vadd.f32 %v7586, %v7604
    %7606 = vdwg.mxu0
    %v7607 = vsel %vm534, %v7598, 0.0
    %v7608 = vsel %vm534, %v7600, 0.0
    %v7609 = vadd.f32 %v7607, %v7608
    %v7610 = vsel %vm534, %v7603, 0.0
    %v7611 = vadd.f32 %v7609, %v7610
    %v7612 = vsel %vm534, %v7605, 0.0
    %v7613 = vadd.f32 %v7611, %v7612
    %v7614 = vrot.slane %v7613, 4
    %v7615 = vadd.f32 %v7613, %v7614
    %v7616 = vrot.slane %v7615, 2
    %v7617 = vadd.f32 %v7615, %v7616
    %v7618 = vrot.slane %v7617, 1
    %v7619 = vadd.f32 %v7617, %v7618
    %v7620 = vmul.f32 %v7619, 0.03125
    %v7621 = vsub.f32 %v7598, %v7620
    %v7622 = vsub.f32 %v7600, %v7620
    %v7623 = vsub.f32 %v7603, %v7620
    %v7624 = vsub.f32 %v7605, %v7620
    %v7625 = vmul.f32 %v7621, %v7621
    %v7626 = vmul.f32 %v7622, %v7622
    %v7627 = vmul.f32 %v7623, %v7623
    %v7628 = vmul.f32 %v7624, %v7624
    %v7629 = vsel %vm534, %v7625, 0.0
    %v7630 = vsel %vm534, %v7626, 0.0
    %v7631 = vadd.f32 %v7629, %v7630
    %v7632 = vsel %vm534, %v7627, 0.0
    %v7633 = vadd.f32 %v7631, %v7632
    %v7634 = vsel %vm534, %v7628, 0.0
    %v7635 = vadd.f32 %v7633, %v7634
    %v7636 = vrot.slane %v7635, 4
    %v7637 = vadd.f32 %v7635, %v7636
    %v7638 = vrot.slane %v7637, 2
    %v7639 = vadd.f32 %v7637, %v7638
    %v7640 = vrot.slane %v7639, 1
    %v7641 = vadd.f32 %v7639, %v7640
    %v7642 = vmul.f32 %v7641, 0.03125
    %v7643 = vld [vmem:[%s5 + $0x2] sm:$0x1]
    %v7644 = vadd.f32 %v7642, 1e-05
    %v7645 = vrsqrt.pop %v7644
    %v7646 = vmul.f32 %v7645, %v7644
    %v7647 = vmul.f32 %v7646, %v7645
    %v7648 = vmul.f32 0.5, %v7647
    %v7649 = vsub.f32 1.5, %v7648
    %v7650 = vmul.f32 %v7645, %v7649
    %vm7651 = vweird.f32 %v7644
    %vm7652 = vweird.f32 %v7645
    %vm7653 = vmor %vm7651, %vm7652
    %v7654 = vsel %vm7653, %v7645, %v7650
    %v7655 = vmul.f32 %v7643, %v7654
    %v7656 = vperm.slane %v7655, 0
    %v7657 = vmul.f32 %v7621, %v7656
    %v7658 = vmul.f32 %v7622, %v7656
    %v7659 = vmul.f32 %v7623, %v7656
    %v7660 = vmul.f32 %v7624, %v7656
    %v7661 = vld [vmem:[%s6 + $0x2] sm:$0x1]
    %v7662 = vperm.slane %v7661, 0
    %v7663 = vadd.f32 %v7657, %v7662
    %v7664 = vadd.f32 %v7658, %v7662
    %v7665 = vadd.f32 %v7659, %v7662
    %v7666 = vadd.f32 %v7660, %v7662
    %v7671 = vrot.slane %v7663, 4
    %v7672 = vrot.slane %v7664, 4
    %v7673 = vrot.slane %v7665, 4
    %v7674 = vrot.slane %v7666, 4
    %v7679 = vmax.f32 %v7663, %v7671
    %v7680 = vmax.f32 %v7664, %v7672
    %v7681 = vmax.f32 %v7665, %v7673
    %v7682 = vmax.f32 %v7666, %v7674
    %v7687 = vrot.slane %v7679, 2
    %v7688 = vrot.slane %v7680, 2
    %v7689 = vrot.slane %v7681, 2
    %v7690 = vrot.slane %v7682, 2
    %v7691 = vsel %vm5956, %v7679, %v7687
    %v7692 = vsel %vm5960, %v7679, %v7687
    %v7693 = vrot.slane %v7692, 2
    %v7694 = vsel %vm5956, %v7680, %v7688
    %v7695 = vsel %vm5960, %v7680, %v7688
    %v7696 = vrot.slane %v7695, 2
    %v7697 = vsel %vm5956, %v7681, %v7689
    %v7698 = vsel %vm5960, %v7681, %v7689
    %v7699 = vrot.slane %v7698, 2
    %v7700 = vsel %vm5956, %v7682, %v7690
    %v7701 = vsel %vm5960, %v7682, %v7690
    %v7702 = vrot.slane %v7701, 2
    %v7711 = vrot.slane %v7691, 7
    %v7712 = vrot.slane %v7711, 2
    %v7713 = vrot.slane %v7693, 7
    %v7714 = vrot.slane %v7713, 2
    %v7715 = vrot.slane %v7694, 7
    %v7716 = vrot.slane %v7715, 2
    %v7717 = vrot.slane %v7696, 7
    %v7718 = vrot.slane %v7717, 2
    %v7719 = vrot.slane %v7697, 7
    %v7720 = vrot.slane %v7719, 2
    %v7721 = vrot.slane %v7699, 7
    %v7722 = vrot.slane %v7721, 2
    %v7723 = vrot.slane %v7700, 7
    %v7724 = vrot.slane %v7723, 2
    %v7725 = vrot.slane %v7702, 7
    %v7726 = vrot.slane %v7725, 2
    %v7735 = vmax.f32 %v7691, %v7712
    %v7736 = vmax.f32 %v7693, %v7714
    %v7737 = vmax.f32 %v7694, %v7716
    %v7738 = vmax.f32 %v7696, %v7718
    %v7739 = vmax.f32 %v7697, %v7720
    %v7740 = vmax.f32 %v7699, %v7722
    %v7741 = vmax.f32 %v7700, %v7724
    %v7742 = vmax.f32 %v7702, %v7726
    %v7743 = vmax.f32 %v7735, 0.0
    %v7744 = vmax.f32 %v7736, 0.0
    %v7745 = vmax.f32 %v7737, 0.0
    %v7746 = vmax.f32 %v7738, 0.0
    %v7747 = vmax.f32 %v7739, 0.0
    %v7748 = vmax.f32 %v7740, 0.0
    %v7749 = vmax.f32 %v7741, 0.0
    %v7750 = vmax.f32 %v7742, 0.0
    %vm7751 = vcmask 517120
    %7752 = vst.msk [vmem:[#allocation2] sm:$0x3] %vm7751, 0
    %7753 = vst.msk [vmem:[#allocation2 + $0x50] sm:$0x3] %vm7751, 0
    %s7754 = scalar_lea.vmem [#allocation2], 24
    %7755 = vst.msk [vmem:[%s7754] sm:$0x3] %vm7751, 0
    %7756 = vst.msk [vmem:[%s7754 + $0x50] sm:$0x3] %vm7751, 0
    %v7757 = vld [vmem:[%s1982] sm:$0x1]
    %v7758 = vsel %vm1985, 0, %v7757
    %7759 = vst [vmem:[%s1982] sm:$0x1] %v7758
    %v7760 = vld [vmem:[%s1982 + $0x8] sm:$0x1]
    %v7761 = vsel %vm1985, 0, %v7760
    %7762 = vst [vmem:[%s1982 + $0x8] sm:$0x1] %v7761
    %v7763 = vld [vmem:[%s1982 + $0x50] sm:$0x1]
    %v7764 = vsel %vm1985, 0, %v7763
    %7765 = vst [vmem:[%s1982 + $0x50] sm:$0x1] %v7764
    %v7766 = vld [vmem:[%s1982 + $0x58] sm:$0x1]
    %v7767 = vsel %vm1985, 0, %v7766
    %7768 = vst [vmem:[%s1982 + $0x58] sm:$0x1] %v7767
    %vm7769 = vcmask 517121
    %vm7770 = vsmask.f32 7942
    %vm7771 = vmand %vm7769, %vm7770
    %v7772 = vld [vmem:[%s1982] sm:$0x2]
    %v7773 = vsel %vm7771, 0, %v7772
    %7774 = vst [vmem:[%s1982] sm:$0x2] %v7773
    %v7775 = vld [vmem:[%s1982 + $0x8] sm:$0x2]
    %v7776 = vsel %vm7771, 0, %v7775
    %7777 = vst [vmem:[%s1982 + $0x8] sm:$0x2] %v7776
    %v7778 = vld [vmem:[%s1982 + $0x50] sm:$0x2]
    %v7779 = vsel %vm7771, 0, %v7778
    %7780 = vst [vmem:[%s1982 + $0x50] sm:$0x2] %v7779
    %v7781 = vld [vmem:[%s1982 + $0x58] sm:$0x2]
    %v7782 = vsel %vm7771, 0, %v7781
    %7783 = vst [vmem:[%s1982 + $0x58] sm:$0x2] %v7782
    %v7784 = vpack.c.bf16 %v7743, %v7743
    %v7785 = vpack.c.bf16 %v7744, %v7744
    %v7786 = vpack.c.bf16 %v7745, %v7745
    %v7787 = vpack.c.bf16 %v7746, %v7746
    %v7788 = vpack.c.bf16 %v7747, %v7747
    %v7789 = vpack.c.bf16 %v7748, %v7748
    %v7790 = vpack.c.bf16 %v7749, %v7749
    %v7791 = vpack.c.bf16 %v7750, %v7750
    %v7800 = vunpack.c.l.b16 %v7784
    %v7801 = vunpack.c.l.b16 %v7785
    %v7802 = vunpack.c.l.b16 %v7786
    %v7803 = vunpack.c.l.b16 %v7787
    %v7804 = vunpack.c.l.b16 %v7788
    %v7805 = vunpack.c.l.b16 %v7789
    %v7806 = vunpack.c.l.b16 %v7790
    %v7807 = vunpack.c.l.b16 %v7791
    %v7808 = vrot.slane %v7800, 7
    %v7809 = vrot.slane %v7801, 6
    %v7810 = vsel %vm2470, %v7809, %v7808
    %v7811 = vrot.slane %v7802, 7
    %v7812 = vrot.slane %v7803, 6
    %v7813 = vsel %vm2470, %v7812, %v7811
    %v7814 = vrot.slane %v7804, 7
    %v7815 = vrot.slane %v7805, 6
    %v7816 = vsel %vm2470, %v7815, %v7814
    %v7817 = vrot.slane %v7806, 7
    %v7818 = vrot.slane %v7807, 6
    %v7819 = vsel %vm2470, %v7818, %v7817
    %v7820 = vpack.c.b16 %v7810, %v7810
    %v7821 = vpack.c.b16 %v7813, %v7813
    %v7822 = vpack.c.b16 %v7816, %v7816
    %v7823 = vpack.c.b16 %v7819, %v7819
    %vm7828 = vcmask 517120
    %vm7829 = vsmask.f32 1282
    %vm7830 = vmand %vm7828, %vm7829
    %v7831 = vld [vmem:[%s1982] sm:$0x3]
    %v7832 = vsel %vm7830, %v7820, %v7831
    %7833 = vst [vmem:[%s1982] sm:$0x3] %v7832
    %v7834 = vld [vmem:[%s1982 + $0x8] sm:$0x3]
    %v7835 = vsel %vm7830, %v7821, %v7834
    %7836 = vst [vmem:[%s1982 + $0x8] sm:$0x3] %v7835
    %v7837 = vld [vmem:[%s1982 + $0x50] sm:$0x3]
    %v7838 = vsel %vm7830, %v7822, %v7837
    %7839 = vst [vmem:[%s1982 + $0x50] sm:$0x3] %v7838
    %v7840 = vld [vmem:[%s1982 + $0x58] sm:$0x3]
    %v7841 = vsel %vm7830, %v7823, %v7840
    %7842 = vst [vmem:[%s1982 + $0x58] sm:$0x3] %v7841
    %v7843 = vld [vmem:[#allocation2] sm:$0x1]
    %v7844 = vld [vmem:[#allocation2 + $0x8] sm:$0x1]
    %v7845 = vld [vmem:[#allocation2 + $0x50] sm:$0x1]
    %v7846 = vld [vmem:[#allocation2 + $0x58] sm:$0x1]
    %7848 = vst [vmem:[#allocation1] ss:$4 sm:$0xff] %v7843
    %s7850 = scalar_lea.vmem [#allocation1], 1
    %7851 = vst [vmem:[%s7850] ss:$4 sm:$0xff] %v7844
    %s7853 = scalar_lea.vmem [#allocation1], 2
    %7854 = vst [vmem:[%s7853] ss:$4 sm:$0xff] %v7845
    %s7856 = scalar_lea.vmem [#allocation1], 3
    %7857 = vst [vmem:[%s7856] ss:$4 sm:$0xff] %v7846
    %v7858 = vld [vmem:[#allocation1] sm:$0xff]
    %7860 = vst.msk [vmem:[#allocation3] sm:$0xf] %vm1971, %v7858
    %v7861 = vld [vmem:[#allocation2] sm:$0x3]
    %v7862 = vld [vmem:[#allocation2 + $0x8] sm:$0x3]
    %v7863 = vld [vmem:[#allocation2 + $0x50] sm:$0x3]
    %v7864 = vld [vmem:[#allocation2 + $0x58] sm:$0x3]
    %v7869 = vrot.slane %v7861, 3
    %v7870 = vrot.slane %v7862, 3
    %v7871 = vrot.slane %v7863, 3
    %v7872 = vrot.slane %v7864, 3
    %vm7873 = vcmask 1040384
    %v7876 = vsel %vm7873, %v7861, %v7869
    %vm7877 = vcmask 1041409
    %v7878 = vsel %vm7877, %v7861, %v7869
    %v7880 = vrot.slane %v7878, 1
    %v7883 = vsel %vm7873, %v7862, %v7870
    %v7884 = vsel %vm7877, %v7862, %v7870
    %v7886 = vrot.slane %v7884, 1
    %v7889 = vsel %vm7873, %v7863, %v7871
    %v7890 = vsel %vm7877, %v7863, %v7871
    %v7892 = vrot.slane %v7890, 1
    %v7895 = vsel %vm7873, %v7864, %v7872
    %v7896 = vsel %vm7877, %v7864, %v7872
    %v7898 = vrot.slane %v7896, 1
    %vm7899 = vsmask.f32 1284
    %vm7900 = vmor %vm1984, %vm7899
    %vm7901 = vsmask.f32 2312
    %vm7902 = vmor %vm7900, %vm7901
    %vm7903 = vsmask.f32 3340
    %vm7904 = vmor %vm7902, %vm7903
    %vm7905 = vsmask.f32 4368
    %vm7906 = vmor %vm7904, %vm7905
    %vm7907 = vsmask.f32 5396
    %vm7908 = vmor %vm7906, %vm7907
    %vm7909 = vsmask.f32 6424
    %vm7910 = vmor %vm7908, %vm7909
    %vm7911 = vsmask.f32 7452
    %vm7912 = vmor %vm7910, %vm7911
    %v7913 = vshrl.u32 %v7876, 16
    %v7915 = vrot.slane %v7913, 7
    %v7916 = vrot.slane %v7915, 1
    %v7918 = vshll.u32 %v7880, 16
    %v7920 = vsel %vm7912, %v7916, %v7918
    %v7921 = vshrl.u32 %v7883, 16
    %v7923 = vrot.slane %v7921, 7
    %v7924 = vrot.slane %v7923, 1
    %v7926 = vshll.u32 %v7886, 16
    %v7928 = vsel %vm7912, %v7924, %v7926
    %v7929 = vshrl.u32 %v7889, 16
    %v7931 = vrot.slane %v7929, 7
    %v7932 = vrot.slane %v7931, 1
    %v7934 = vshll.u32 %v7892, 16
    %v7936 = vsel %vm7912, %v7932, %v7934
    %v7937 = vshrl.u32 %v7895, 16
    %v7939 = vrot.slane %v7937, 7
    %v7940 = vrot.slane %v7939, 1
    %v7942 = vshll.u32 %v7898, 16
    %v7944 = vsel %vm7912, %v7940, %v7942
    %7946 = vst [vmem:[#allocation1] ss:$4 sm:$0xff] %v7920
    %s7948 = scalar_lea.vmem [#allocation1], 1
    %7949 = vst [vmem:[%s7948] ss:$4 sm:$0xff] %v7928
    %s7951 = scalar_lea.vmem [#allocation1], 2
    %7952 = vst [vmem:[%s7951] ss:$4 sm:$0xff] %v7936
    %s7954 = scalar_lea.vmem [#allocation1], 3
    %7955 = vst [vmem:[%s7954] ss:$4 sm:$0xff] %v7944
    %v7956 = vld [vmem:[#allocation1] sm:$0xff]
    %7958 = vrot.lane.b32.xlu0 %v7956, 64
    %v7959 = vpop.permute.xlu0 %7958
    %7961 = vst.msk [vmem:[#allocation3] sm:$0xf] %vm3183, %v7959
    %v7962 = vld [vmem:[#allocation2] sm:$0x2]
    %v7963 = vld [vmem:[#allocation2 + $0x8] sm:$0x2]
    %v7964 = vld [vmem:[#allocation2 + $0x50] sm:$0x2]
    %v7965 = vld [vmem:[#allocation2 + $0x58] sm:$0x2]
    %7967 = vst [vmem:[#allocation1] sm:$0xff] %v7962
    %s7968 = scalar_lea.vmem [#allocation1], 1
    %v7969 = vld [vmem:[%s7968] ss:$4 sm:$0xff]
    %7971 = vst [vmem:[#allocation1 + $0x20] sm:$0xff] %v7963
    %s7972 = scalar_lea.vmem [#allocation1], 33
    %v7973 = vld [vmem:[%s7972] ss:$4 sm:$0xff]
    %7975 = vst [vmem:[#allocation1] sm:$0xff] %v7964
    %v7976 = vld [vmem:[%s7968] ss:$4 sm:$0xff]
    %7978 = vst [vmem:[#allocation1 + $0x20] sm:$0xff] %v7965
    %v7979 = vld [vmem:[%s7972] ss:$4 sm:$0xff]
    %7980 = vst [vmem:[#allocation1] ss:$4 sm:$0xff] %v7969
    %s7981 = scalar_lea.vmem [#allocation1], 1
    %7982 = vst [vmem:[%s7981] ss:$4 sm:$0xff] %v7973
    %s7983 = scalar_lea.vmem [#allocation1], 2
    %7984 = vst [vmem:[%s7983] ss:$4 sm:$0xff] %v7976
    %s7985 = scalar_lea.vmem [#allocation1], 3
    %7986 = vst [vmem:[%s7985] ss:$4 sm:$0xff] %v7979
    %v7987 = vld [vmem:[#allocation1] sm:$0xff]
    %7989 = vst.msk [vmem:[#allocation3 + $0x4] sm:$0xf] %vm1971, %v7987
    %v7990 = vld [vmem:[%s1982] sm:$0x1]
    %v7991 = vld [vmem:[%s1982 + $0x8] sm:$0x1]
    %v7992 = vld [vmem:[%s1982 + $0x50] sm:$0x1]
    %v7993 = vld [vmem:[%s1982 + $0x58] sm:$0x1]
    %7995 = vst [vmem:[#allocation1] ss:$4 sm:$0xff] %v7990
    %s7997 = scalar_lea.vmem [#allocation1], 1
    %7998 = vst [vmem:[%s7997] ss:$4 sm:$0xff] %v7991
    %s8000 = scalar_lea.vmem [#allocation1], 2
    %8001 = vst [vmem:[%s8000] ss:$4 sm:$0xff] %v7992
    %s8003 = scalar_lea.vmem [#allocation1], 3
    %8004 = vst [vmem:[%s8003] ss:$4 sm:$0xff] %v7993
    %v8005 = vld [vmem:[#allocation1] sm:$0xff]
    %8007 = vrot.lane.b32.xlu0 %v8005, 64
    %v8008 = vpop.permute.xlu0 %8007
    %8010 = vst.msk [vmem:[#allocation3 + $0x4] sm:$0xf] %vm3183, %v8008
    %v8011 = vld [vmem:[%s1982] sm:$0x3]
    %v8012 = vld [vmem:[%s1982 + $0x8] sm:$0x3]
    %v8013 = vld [vmem:[%s1982 + $0x50] sm:$0x3]
    %v8014 = vld [vmem:[%s1982 + $0x58] sm:$0x3]
    %v8019 = vrot.slane %v8011, 3
    %v8020 = vrot.slane %v8012, 3
    %v8021 = vrot.slane %v8013, 3
    %v8022 = vrot.slane %v8014, 3
    %v8025 = vsel %vm7873, %v8011, %v8019
    %v8026 = vsel %vm7877, %v8011, %v8019
    %v8028 = vrot.slane %v8026, 1
    %v8031 = vsel %vm7873, %v8012, %v8020
    %v8032 = vsel %vm7877, %v8012, %v8020
    %v8034 = vrot.slane %v8032, 1
    %v8037 = vsel %vm7873, %v8013, %v8021
    %v8038 = vsel %vm7877, %v8013, %v8021
    %v8040 = vrot.slane %v8038, 1
    %v8043 = vsel %vm7873, %v8014, %v8022
    %v8044 = vsel %vm7877, %v8014, %v8022
    %v8046 = vrot.slane %v8044, 1
    %v8047 = vshrl.u32 %v8025, 16
    %v8049 = vrot.slane %v8047, 7
    %v8050 = vrot.slane %v8049, 1
    %v8052 = vshll.u32 %v8028, 16
    %v8054 = vsel %vm7912, %v8050, %v8052
    %v8055 = vshrl.u32 %v8031, 16
    %v8057 = vrot.slane %v8055, 7
    %v8058 = vrot.slane %v8057, 1
    %v8060 = vshll.u32 %v8034, 16
    %v8062 = vsel %vm7912, %v8058, %v8060
    %v8063 = vshrl.u32 %v8037, 16
    %v8065 = vrot.slane %v8063, 7
    %v8066 = vrot.slane %v8065, 1
    %v8068 = vshll.u32 %v8040, 16
    %v8070 = vsel %vm7912, %v8066, %v8068
    %v8071 = vshrl.u32 %v8043, 16
    %v8073 = vrot.slane %v8071, 7
    %v8074 = vrot.slane %v8073, 1
    %v8076 = vshll.u32 %v8046, 16
    %v8078 = vsel %vm7912, %v8074, %v8076
    %8080 = vst [vmem:[#allocation1] ss:$4 sm:$0xff] %v8054
    %s8082 = scalar_lea.vmem [#allocation1], 1
    %8083 = vst [vmem:[%s8082] ss:$4 sm:$0xff] %v8062
    %s8085 = scalar_lea.vmem [#allocation1], 2
    %8086 = vst [vmem:[%s8085] ss:$4 sm:$0xff] %v8070
    %s8088 = scalar_lea.vmem [#allocation1], 3
    %8089 = vst [vmem:[%s8088] ss:$4 sm:$0xff] %v8078
    %v8090 = vld [vmem:[#allocation1] sm:$0xff]
    %8092 = vst.msk [vmem:[#allocation3 + $0x8] sm:$0xf] %vm1971, %v8090
    %v8093 = vld [vmem:[%s1982] sm:$0x2]
    %v8094 = vld [vmem:[%s1982 + $0x8] sm:$0x2]
    %v8095 = vld [vmem:[%s1982 + $0x50] sm:$0x2]
    %v8096 = vld [vmem:[%s1982 + $0x58] sm:$0x2]
    %8098 = vst [vmem:[#allocation1] sm:$0xff] %v8093
    %s8099 = scalar_lea.vmem [#allocation1], 1
    %v8100 = vld [vmem:[%s8099] ss:$4 sm:$0xff]
    %8102 = vst [vmem:[#allocation1 + $0x20] sm:$0xff] %v8094
    %s8103 = scalar_lea.vmem [#allocation1], 33
    %v8104 = vld [vmem:[%s8103] ss:$4 sm:$0xff]
    %8106 = vst [vmem:[#allocation1] sm:$0xff] %v8095
    %v8107 = vld [vmem:[%s8099] ss:$4 sm:$0xff]
    %8109 = vst [vmem:[#allocation1 + $0x20] sm:$0xff] %v8096
    %v8110 = vld [vmem:[%s8103] ss:$4 sm:$0xff]
    %8111 = vst [vmem:[#allocation1] ss:$4 sm:$0xff] %v8100
    %s8112 = scalar_lea.vmem [#allocation1], 1
    %8113 = vst [vmem:[%s8112] ss:$4 sm:$0xff] %v8104
    %s8114 = scalar_lea.vmem [#allocation1], 2
    %8115 = vst [vmem:[%s8114] ss:$4 sm:$0xff] %v8107
    %s8116 = scalar_lea.vmem [#allocation1], 3
    %8117 = vst [vmem:[%s8116] ss:$4 sm:$0xff] %v8110
    %v8118 = vld [vmem:[#allocation1] sm:$0xff]
    %8120 = vrot.lane.b32.xlu0 %v8118, 64
    %v8121 = vpop.permute.xlu0 %8120
    %8123 = vst.msk [vmem:[#allocation3 + $0x8] sm:$0xf] %vm3183, %v8121
    %v8124 = vld [vmem:[%s3939] sm:$0x1]
    %v8125 = vld [vmem:[%s3939 + $0x8] sm:$0x1]
    %v8126 = vld [vmem:[%s3939 + $0x50] sm:$0x1]
    %v8127 = vld [vmem:[%s3939 + $0x58] sm:$0x1]
    %8129 = vst [vmem:[#allocation1] ss:$4 sm:$0xff] %v8124
    %s8131 = scalar_lea.vmem [#allocation1], 1
    %8132 = vst [vmem:[%s8131] ss:$4 sm:$0xff] %v8125
    %s8134 = scalar_lea.vmem [#allocation1], 2
    %8135 = vst [vmem:[%s8134] ss:$4 sm:$0xff] %v8126
    %s8137 = scalar_lea.vmem [#allocation1], 3
    %8138 = vst [vmem:[%s8137] ss:$4 sm:$0xff] %v8127
    %v8139 = vld [vmem:[#allocation1] sm:$0xff]
    %8141 = vst.msk [vmem:[#allocation3 + $0xc] sm:$0xf] %vm1971, %v8139
    %v8142 = vld [vmem:[%s3939] sm:$0x3]
    %v8143 = vld [vmem:[%s3939 + $0x8] sm:$0x3]
    %v8144 = vld [vmem:[%s3939 + $0x50] sm:$0x3]
    %v8145 = vld [vmem:[%s3939 + $0x58] sm:$0x3]
    %v8150 = vrot.slane %v8142, 3
    %v8151 = vrot.slane %v8143, 3
    %v8152 = vrot.slane %v8144, 3
    %v8153 = vrot.slane %v8145, 3
    %v8156 = vsel %vm7873, %v8142, %v8150
    %v8157 = vsel %vm7877, %v8142, %v8150
    %v8159 = vrot.slane %v8157, 1
    %v8162 = vsel %vm7873, %v8143, %v8151
    %v8163 = vsel %vm7877, %v8143, %v8151
    %v8165 = vrot.slane %v8163, 1
    %v8168 = vsel %vm7873, %v8144, %v8152
    %v8169 = vsel %vm7877, %v8144, %v8152
    %v8171 = vrot.slane %v8169, 1
    %v8174 = vsel %vm7873, %v8145, %v8153
    %v8175 = vsel %vm7877, %v8145, %v8153
    %v8177 = vrot.slane %v8175, 1
    %v8178 = vshrl.u32 %v8156, 16
    %v8180 = vrot.slane %v8178, 7
    %v8181 = vrot.slane %v8180, 1
    %v8183 = vshll.u32 %v8159, 16
    %v8185 = vsel %vm7912, %v8181, %v8183
    %v8186 = vshrl.u32 %v8162, 16
    %v8188 = vrot.slane %v8186, 7
    %v8189 = vrot.slane %v8188, 1
    %v8191 = vshll.u32 %v8165, 16
    %v8193 = vsel %vm7912, %v8189, %v8191
    %v8194 = vshrl.u32 %v8168, 16
    %v8196 = vrot.slane %v8194, 7
    %v8197 = vrot.slane %v8196, 1
    %v8199 = vshll.u32 %v8171, 16
    %v8201 = vsel %vm7912, %v8197, %v8199
    %v8202 = vshrl.u32 %v8174, 16
    %v8204 = vrot.slane %v8202, 7
    %v8205 = vrot.slane %v8204, 1
    %v8207 = vshll.u32 %v8177, 16
    %v8209 = vsel %vm7912, %v8205, %v8207
    %8211 = vst [vmem:[#allocation1] ss:$4 sm:$0xff] %v8185
    %s8213 = scalar_lea.vmem [#allocation1], 1
    %8214 = vst [vmem:[%s8213] ss:$4 sm:$0xff] %v8193
    %s8216 = scalar_lea.vmem [#allocation1], 2
    %8217 = vst [vmem:[%s8216] ss:$4 sm:$0xff] %v8201
    %s8219 = scalar_lea.vmem [#allocation1], 3
    %8220 = vst [vmem:[%s8219] ss:$4 sm:$0xff] %v8209
    %v8221 = vld [vmem:[#allocation1] sm:$0xff]
    %8223 = vrot.lane.b32.xlu0 %v8221, 64
    %v8224 = vpop.permute.xlu0 %8223
    %8226 = vst.msk [vmem:[#allocation3 + $0xc] sm:$0xf] %vm3183, %v8224
    %v8227 = vld [vmem:[%s3939] sm:$0x2]
    %v8228 = vld [vmem:[%s3939 + $0x8] sm:$0x2]
    %v8229 = vld [vmem:[%s3939 + $0x50] sm:$0x2]
    %v8230 = vld [vmem:[%s3939 + $0x58] sm:$0x2]
    %8232 = vst [vmem:[#allocation1] sm:$0xff] %v8227
    %s8233 = scalar_lea.vmem [#allocation1], 1
    %v8234 = vld [vmem:[%s8233] ss:$4 sm:$0xff]
    %8236 = vst [vmem:[#allocation1 + $0x20] sm:$0xff] %v8228
    %s8237 = scalar_lea.vmem [#allocation1], 33
    %v8238 = vld [vmem:[%s8237] ss:$4 sm:$0xff]
    %8240 = vst [vmem:[#allocation1] sm:$0xff] %v8229
    %v8241 = vld [vmem:[%s8233] ss:$4 sm:$0xff]
    %8243 = vst [vmem:[#allocation1 + $0x20] sm:$0xff] %v8230
    %v8244 = vld [vmem:[%s8237] ss:$4 sm:$0xff]
    %8245 = vst [vmem:[#allocation1] ss:$4 sm:$0xff] %v8234
    %s8246 = scalar_lea.vmem [#allocation1], 1
    %8247 = vst [vmem:[%s8246] ss:$4 sm:$0xff] %v8238
    %s8248 = scalar_lea.vmem [#allocation1], 2
    %8249 = vst [vmem:[%s8248] ss:$4 sm:$0xff] %v8241
    %s8250 = scalar_lea.vmem [#allocation1], 3
    %8251 = vst [vmem:[%s8250] ss:$4 sm:$0xff] %v8244
    %v8252 = vld [vmem:[#allocation1] sm:$0xff]
    %8254 = vst.msk [vmem:[#allocation3 + $0x10] sm:$0xf] %vm1971, %v8252
    %v8255 = vld [vmem:[#allocation3] sm:$0xff]
    %v8256 = vld [vmem:[#allocation3 + $0x8] sm:$0xff]
    %v8257 = vld [vmem:[#allocation3 + $0x10] sm:$0xf]
    %v8258 = vld [vmem:[%s4] sm:$0xf]
    %v8259 = vld [vmem:[%s4 + $0x4] sm:$0xf]
    %v8260 = vld [vmem:[%s4 + $0x8] sm:$0xf]
    %v8261 = vld [vmem:[%s4 + $0xc] sm:$0xf]
    %v8262 = vld [vmem:[%s4 + $0x10] sm:$0xf]
    %v8263 = vld [vmem:[%s4 + $0x14] sm:$0xf]
    %v8264 = vld [vmem:[%s4 + $0x18] sm:$0xf]
    %v8265 = vld [vmem:[%s4 + $0x1c] sm:$0xf]
    %v8266 = vld [vmem:[%s4 + $0x20] sm:$0xf]
    %v8267 = vld [vmem:[%s4 + $0x24] sm:$0xf]
    %v8268 = vld [vmem:[%s4 + $0x28] sm:$0xf]
    %v8269 = vld [vmem:[%s4 + $0x2c] sm:$0xf]
    %v8270 = vld [vmem:[%s4 + $0x30] sm:$0xf]
    %v8271 = vld [vmem:[%s4 + $0x34] sm:$0xf]
    %v8272 = vld [vmem:[%s4 + $0x38] sm:$0xf]
    %v8273 = vld [vmem:[%s4 + $0x3c] sm:$0xf]
    %v8274 = vld [vmem:[%s4 + $0x40] sm:$0xf]
    %v8275 = vld [vmem:[%s4 + $0x44] sm:$0xf]
    %v8276 = vld [vmem:[%s4 + $0x48] sm:$0xf]
    %v8277 = vld [vmem:[%s4 + $0x4c] sm:$0xf]
    %v8278 = vld [vmem:[%s4 + $0x50] sm:$0xf]
    %v8279 = vld [vmem:[%s4 + $0x54] sm:$0xf]
    %v8280 = vld [vmem:[%s4 + $0x58] sm:$0xf]
    %v8281 = vld [vmem:[%s4 + $0x5c] sm:$0xf]
    %v8282 = vld [vmem:[%s4 + $0x60] sm:$0xf]
    %v8283 = vld [vmem:[%s4 + $0x64] sm:$0xf]
    %v8284 = vld [vmem:[%s4 + $0x68] sm:$0xf]
    %v8285 = vld [vmem:[%s4 + $0x6c] sm:$0xf]
    %v8286 = vld [vmem:[%s4 + $0x70] sm:$0xf]
    %v8287 = vld [vmem:[%s4 + $0x74] sm:$0xf]
    %v8288 = vld [vmem:[%s4 + $0x78] sm:$0xf]
    %v8289 = vld [vmem:[%s4 + $0x7c] sm:$0xf]
    %v8290 = vld [vmem:[%s4 + $0x80] sm:$0xf]
    %v8291 = vld [vmem:[%s4 + $0x84] sm:$0xf]
    %v8292 = vld [vmem:[%s4 + $0x88] sm:$0xf]
    %v8293 = vld [vmem:[%s4 + $0x8c] sm:$0xf]
    %v8294 = vld [vmem:[%s4 + $0x90] sm:$0xf]
    %v8295 = vld [vmem:[%s4 + $0x94] sm:$0xf]
    %v8296 = vld [vmem:[%s4 + $0x98] sm:$0xf]
    %v8297 = vld [vmem:[%s4 + $0x9c] sm:$0xf]
    %v8298 = vld [vmem:[%s4 + $0xa0] sm:$0xf]
    %v8299 = vld [vmem:[%s4 + $0xa4] sm:$0xf]
    %v8300 = vld [vmem:[%s4 + $0xa8] sm:$0xf]
    %v8301 = vld [vmem:[%s4 + $0xac] sm:$0xf]
    %v8302 = vld [vmem:[%s4 + $0xb0] sm:$0xf]
    %v8303 = vld [vmem:[%s4 + $0xb4] sm:$0xf]
    %v8304 = vld [vmem:[%s4 + $0xb8] sm:$0xf]
    %v8305 = vld [vmem:[%s4 + $0xbc] sm:$0xf]
    %v8306 = vld [vmem:[%s4 + $0xc0] sm:$0xf]
    %v8307 = vld [vmem:[%s4 + $0xc4] sm:$0xf]
    %v8308 = vld [vmem:[%s4 + $0xc8] sm:$0xf]
    %v8309 = vld [vmem:[%s4 + $0xcc] sm:$0xf]
    %v8310 = vld [vmem:[%s4 + $0xd0] sm:$0xf]
    %v8311 = vld [vmem:[%s4 + $0xd4] sm:$0xf]
    %v8312 = vld [vmem:[%s4 + $0xd8] sm:$0xf]
    %v8313 = vld [vmem:[%s4 + $0xdc] sm:$0xf]
    %v8314 = vld [vmem:[%s4 + $0xe0] sm:$0xf]
    %v8315 = vld [vmem:[%s4 + $0xe4] sm:$0xf]
    %v8316 = vld [vmem:[%s4 + $0xe8] sm:$0xf]
    %v8317 = vld [vmem:[%s4 + $0xec] sm:$0xf]
    %v8318 = vld [vmem:[%s4 + $0xf0] sm:$0xf]
    %v8319 = vld [vmem:[%s4 + $0xf4] sm:$0xf]
    %v8320 = vld [vmem:[%s4 + $0xf8] sm:$0xf]
    %v8321 = vld [vmem:[%s4 + $0xfc] sm:$0xf]
    %v8322 = vld [vmem:[%s4 + $0x100] sm:$0xf]
    %v8323 = vld [vmem:[%s4 + $0x104] sm:$0xf]
    %v8324 = vld [vmem:[%s4 + $0x108] sm:$0xf]
    %v8325 = vld [vmem:[%s4 + $0x10c] sm:$0xf]
    %v8326 = vld [vmem:[%s4 + $0x110] sm:$0xf]
    %v8327 = vld [vmem:[%s4 + $0x114] sm:$0xf]
    %v8328 = vld [vmem:[%s4 + $0x118] sm:$0xf]
    %v8329 = vld [vmem:[%s4 + $0x11c] sm:$0xf]
    %v8333 = vunpack.c.l.b16 %v8255
    %v8334 = vunpack.c.h.b16 %v8255
    %v8335 = vunpack.c.l.b16 %v8256
    %v8336 = vunpack.c.h.b16 %v8256
    %v8337 = vunpack.c.l.b16 %v8257
    %v8338 = vpack.c.b16 %v8333, %v8333
    %v8339 = vpack.c.b16 %v8334, %v8334
    %v8340 = vpack.c.b16 %v8335, %v8335
    %v8341 = vpack.c.b16 %v8336, %v8336
    %v8342 = vpack.c.b16 %v8337, %v8337
    %v8419 = vunpack.c.l.b16 %v8258
    %v8420 = vunpack.c.l.b16 %v8259
    %v8421 = vunpack.c.l.b16 %v8260
    %v8422 = vunpack.c.l.b16 %v8261
    %v8423 = vunpack.c.l.b16 %v8262
    %v8424 = vunpack.c.l.b16 %v8263
    %v8425 = vunpack.c.l.b16 %v8264
    %v8426 = vunpack.c.l.b16 %v8265
    %v8427 = vunpack.c.l.b16 %v8266
    %v8428 = vunpack.c.l.b16 %v8267
    %v8429 = vunpack.c.l.b16 %v8268
    %v8430 = vunpack.c.l.b16 %v8269
    %v8431 = vunpack.c.l.b16 %v8270
    %v8432 = vunpack.c.l.b16 %v8271
    %v8433 = vunpack.c.l.b16 %v8272
    %v8434 = vunpack.c.l.b16 %v8273
    %v8435 = vunpack.c.l.b16 %v8274
    %v8436 = vunpack.c.l.b16 %v8275
    %v8437 = vunpack.c.l.b16 %v8276
    %v8438 = vunpack.c.l.b16 %v8277
    %v8439 = vunpack.c.l.b16 %v8278
    %v8440 = vunpack.c.l.b16 %v8279
    %v8441 = vunpack.c.l.b16 %v8280
    %v8442 = vunpack.c.l.b16 %v8281
    %v8443 = vunpack.c.l.b16 %v8282
    %v8444 = vunpack.c.l.b16 %v8283
    %v8445 = vunpack.c.l.b16 %v8284
    %v8446 = vunpack.c.l.b16 %v8285
    %v8447 = vunpack.c.l.b16 %v8286
    %v8448 = vunpack.c.l.b16 %v8287
    %v8449 = vunpack.c.l.b16 %v8288
    %v8450 = vunpack.c.l.b16 %v8289
    %v8451 = vunpack.c.l.b16 %v8290
    %v8452 = vunpack.c.l.b16 %v8291
    %v8453 = vunpack.c.l.b16 %v8292
    %v8454 = vunpack.c.l.b16 %v8293
    %v8455 = vunpack.c.l.b16 %v8294
    %v8456 = vunpack.c.l.b16 %v8295
    %v8457 = vunpack.c.l.b16 %v8296
    %v8458 = vunpack.c.l.b16 %v8297
    %v8459 = vunpack.c.l.b16 %v8298
    %v8460 = vunpack.c.l.b16 %v8299
    %v8461 = vunpack.c.l.b16 %v8300
    %v8462 = vunpack.c.l.b16 %v8301
    %v8463 = vunpack.c.l.b16 %v8302
    %v8464 = vunpack.c.l.b16 %v8303
    %v8465 = vunpack.c.l.b16 %v8304
    %v8466 = vunpack.c.l.b16 %v8305
    %v8467 = vunpack.c.l.b16 %v8306
    %v8468 = vunpack.c.l.b16 %v8307
    %v8469 = vunpack.c.l.b16 %v8308
    %v8470 = vunpack.c.l.b16 %v8309
    %v8471 = vunpack.c.l.b16 %v8310
    %v8472 = vunpack.c.l.b16 %v8311
    %v8473 = vunpack.c.l.b16 %v8312
    %v8474 = vunpack.c.l.b16 %v8313
    %v8475 = vunpack.c.l.b16 %v8314
    %v8476 = vunpack.c.l.b16 %v8315
    %v8477 = vunpack.c.l.b16 %v8316
    %v8478 = vunpack.c.l.b16 %v8317
    %v8479 = vunpack.c.l.b16 %v8318
    %v8480 = vunpack.c.l.b16 %v8319
    %v8481 = vunpack.c.l.b16 %v8320
    %v8482 = vunpack.c.l.b16 %v8321
    %v8483 = vunpack.c.l.b16 %v8322
    %v8484 = vunpack.c.l.b16 %v8323
    %v8485 = vunpack.c.l.b16 %v8324
    %v8486 = vunpack.c.l.b16 %v8325
    %v8487 = vunpack.c.l.b16 %v8326
    %v8488 = vunpack.c.l.b16 %v8327
    %v8489 = vunpack.c.l.b16 %v8328
    %v8490 = vunpack.c.l.b16 %v8329
    %v8491 = vpack.c.b16 %v8420, %v8419
    %v8492 = vpack.c.b16 %v8422, %v8421
    %v8493 = vpack.c.b16 %v8424, %v8423
    %v8494 = vpack.c.b16 %v8426, %v8425
    %v8495 = vpack.c.b16 %v8428, %v8427
    %v8496 = vpack.c.b16 %v8430, %v8429
    %v8497 = vpack.c.b16 %v8432, %v8431
    %v8498 = vpack.c.b16 %v8434, %v8433
    %v8499 = vpack.c.b16 %v8436, %v8435
    %v8500 = vpack.c.b16 %v8438, %v8437
    %v8501 = vpack.c.b16 %v8440, %v8439
    %v8502 = vpack.c.b16 %v8442, %v8441
    %v8503 = vpack.c.b16 %v8444, %v8443
    %v8504 = vpack.c.b16 %v8446, %v8445
    %v8505 = vpack.c.b16 %v8448, %v8447
    %v8506 = vpack.c.b16 %v8450, %v8449
    %v8507 = vpack.c.b16 %v8452, %v8451
    %v8508 = vpack.c.b16 %v8454, %v8453
    %v8509 = vpack.c.b16 %v8456, %v8455
    %v8510 = vpack.c.b16 %v8458, %v8457
    %v8511 = vpack.c.b16 %v8460, %v8459
    %v8512 = vpack.c.b16 %v8462, %v8461
    %v8513 = vpack.c.b16 %v8464, %v8463
    %v8514 = vpack.c.b16 %v8466, %v8465
    %v8515 = vpack.c.b16 %v8468, %v8467
    %v8516 = vpack.c.b16 %v8470, %v8469
    %v8517 = vpack.c.b16 %v8472, %v8471
    %v8518 = vpack.c.b16 %v8474, %v8473
    %v8519 = vpack.c.b16 %v8476, %v8475
    %v8520 = vpack.c.b16 %v8478, %v8477
    %v8521 = vpack.c.b16 %v8480, %v8479
    %v8522 = vpack.c.b16 %v8482, %v8481
    %v8523 = vpack.c.b16 %v8484, %v8483
    %v8524 = vpack.c.b16 %v8486, %v8485
    %v8525 = vpack.c.b16 %v8488, %v8487
    %v8526 = vpack.c.b16 %v8490, %v8489
    %v8564 = vsel %vm534, %v8342, 0
    %8566 = vmatpush.bf16.msra.mxu0 %v8498
    %8567 = vmatpush.bf16.msra.mxu0 %v8497
    %8568 = vmatpush.bf16.msra.mxu0 %v8496
    %8569 = vmatpush.bf16.msra.mxu0 %v8495
    %8570 = vmatpush.bf16.msra.mxu0 %v8494
    %8571 = vmatpush.bf16.msra.mxu0 %v8493
    %8572 = vmatpush.bf16.msra.mxu0 %v8492
    %8573 = vmatpush.bf16.msra.mxu0 %v8491
    %8574 = vmatmul.bf16.gmra.mxu0 %v8338
    %v8575 = vpop.f32.mrf.mxu0
    %v8576 = vadd.f32 0.0, %v8575
    %v8577 = vpop.f32.mrf.mxu0
    %8578 = vdwg.mxu0
    %8579 = vmatpush.bf16.msra.mxu0 %v8506
    %8580 = vmatpush.bf16.msra.mxu0 %v8505
    %8581 = vmatpush.bf16.msra.mxu0 %v8504
    %8582 = vmatpush.bf16.msra.mxu0 %v8503
    %8583 = vmatpush.bf16.msra.mxu0 %v8502
    %8584 = vmatpush.bf16.msra.mxu0 %v8501
    %8585 = vmatpush.bf16.msra.mxu0 %v8500
    %8586 = vmatpush.bf16.msra.mxu0 %v8499
    %8587 = vmatmul.bf16.gmra.mxu0 %v8339
    %v8588 = vpop.f32.mrf.mxu0
    %v8589 = vadd.f32 %v8576, %v8588
    %v8590 = vpop.f32.mrf.mxu0
    %8591 = vdwg.mxu0
    %8592 = vmatpush.bf16.msra.mxu0 %v8514
    %8593 = vmatpush.bf16.msra.mxu0 %v8513
    %8594 = vmatpush.bf16.msra.mxu0 %v8512
    %8595 = vmatpush.bf16.msra.mxu0 %v8511
    %8596 = vmatpush.bf16.msra.mxu0 %v8510
    %8597 = vmatpush.bf16.msra.mxu0 %v8509
    %8598 = vmatpush.bf16.msra.mxu0 %v8508
    %8599 = vmatpush.bf16.msra.mxu0 %v8507
    %8600 = vmatmul.bf16.gmra.mxu0 %v8340
    %v8601 = vpop.f32.mrf.mxu0
    %v8602 = vadd.f32 %v8589, %v8601
    %v8603 = vpop.f32.mrf.mxu0
    %8604 = vdwg.mxu0
    %8605 = vmatpush.bf16.msra.mxu0 %v8522
    %8606 = vmatpush.bf16.msra.mxu0 %v8521
    %8607 = vmatpush.bf16.msra.mxu0 %v8520
    %8608 = vmatpush.bf16.msra.mxu0 %v8519
    %8609 = vmatpush.bf16.msra.mxu0 %v8518
    %8610 = vmatpush.bf16.msra.mxu0 %v8517
    %8611 = vmatpush.bf16.msra.mxu0 %v8516
    %8612 = vmatpush.bf16.msra.mxu0 %v8515
    %8613 = vmatmul.bf16.gmra.mxu0 %v8341
    %v8614 = vpop.f32.mrf.mxu0
    %v8615 = vadd.f32 %v8602, %v8614
    %v8616 = vpop.f32.mrf.mxu0
    %8617 = vdwg.mxu0
    %8618 = vmatpush.bf16.msra.mxu0 0
    %8619 = vmatpush.bf16.msra.mxu0 0
    %8620 = vmatpush.bf16.msra.mxu0 0
    %8621 = vmatpush.bf16.msra.mxu0 0
    %8622 = vmatpush.bf16.msra.mxu0 %v8526
    %8623 = vmatpush.bf16.msra.mxu0 %v8525
    %8624 = vmatpush.bf16.msra.mxu0 %v8524
    %8625 = vmatpush.bf16.msra.mxu0 %v8523
    %8626 = vmatmul.bf16.gmra.mxu0 %v8564
    %v8627 = vpop.f32.mrf.mxu0
    %v8628 = vadd.f32 %v8615, %v8627
    %v8629 = vpop.f32.mrf.mxu0
    %8630 = vdwg.mxu0
    %v8631 = vsel %vm534, %v8628, 0.0
    %v8632 = vrot.slane %v8631, 4
    %v8633 = vadd.f32 %v8631, %v8632
    %v8634 = vrot.slane %v8633, 2
    %v8635 = vadd.f32 %v8633, %v8634
    %v8636 = vrot.slane %v8635, 1
    %v8637 = vadd.f32 %v8635, %v8636
    %v8638 = vmul.f32 %v8637, 0.125
    %v8639 = vsub.f32 %v8628, %v8638
    %v8640 = vmul.f32 %v8639, %v8639
    %v8641 = vsel %vm534, %v8640, 0.0
    %v8642 = vrot.slane %v8641, 4
    %v8643 = vadd.f32 %v8641, %v8642
    %v8644 = vrot.slane %v8643, 2
    %v8645 = vadd.f32 %v8643, %v8644
    %v8646 = vrot.slane %v8645, 1
    %v8647 = vadd.f32 %v8645, %v8646
    %v8648 = vmul.f32 %v8647, 0.125
    %v8649 = vld [vmem:[%s5 + $0x3] sm:$0x1]
    %v8650 = vadd.f32 %v8648, 1e-05
    %v8651 = vrsqrt.pop %v8650
    %v8652 = vmul.f32 %v8651, %v8650
    %v8653 = vmul.f32 %v8652, %v8651
    %v8654 = vmul.f32 0.5, %v8653
    %v8655 = vsub.f32 1.5, %v8654
    %v8656 = vmul.f32 %v8651, %v8655
    %vm8657 = vweird.f32 %v8650
    %vm8658 = vweird.f32 %v8651
    %vm8659 = vmor %vm8657, %vm8658
    %v8660 = vsel %vm8659, %v8651, %v8656
    %v8661 = vmul.f32 %v8649, %v8660
    %v8662 = vperm.slane %v8661, 0
    %v8663 = vmul.f32 %v8639, %v8662
    %v8664 = vld [vmem:[%s6 + $0x3] sm:$0x1]
    %v8665 = vperm.slane %v8664, 0
    %v8666 = vadd.f32 %v8663, %v8665
    %v8668 = vrot.slane %v8666, 2
    %v8669 = vrot.slane %v8666, 4
    %v8670 = vrot.slane %v8666, 6
    %v8674 = vmax.f32 %v8666, %v8668
    %v8675 = vmax.f32 %v8669, %v8670
    %v8678 = vrot.slane %v8674, 7
    %v8679 = vrot.slane %v8678, 2
    %v8680 = vrot.slane %v8675, 7
    %v8681 = vrot.slane %v8680, 2
    %v8684 = vmax.f32 %v8674, %v8679
    %v8685 = vmax.f32 %v8675, %v8681
    %v8686 = vmax.f32 %v8684, 0.0
    %v8687 = vmax.f32 %v8685, 0.0
    %8688 = vst.msk [vmem:[#allocation4] sm:$0x1] %vm1973, %v8686
    %8689 = vst.msk [vmem:[#allocation4 + $0x1] sm:$0x1] %vm1973, %v8687
    // Predicated region
    $region30: #{convnet_forward.1} parent=1 // pred_check
      _
    $region31: #{convnet_forward.1} parent=1 // pred_check_branch
      %8691 = sbr.rel (0) target = $region33
    $region32: #{convnet_forward.1} parent=1 // pred_region
      %8693 = vsyncadd [#allocation5], 0
      %s8694 = sshll.u32 [#allocation4], 4
      %s8695 = int_to_ptr.vmem [resolvable:$true] %s8694
      %s8696 = sshll.u32 %s7, 4
      %s8697 = int_to_ptr.hbm [resolvable:$true] %s8696
      %8702 = dma.vmem_to_hbm [thread:$0]  %s8695, 32, %s8697, [#allocation5], 16, 16, 1
    $region33: #{convnet_forward.1} parent=1 // pred_fallthru
      _
    // Predicated region
    $region34: #{convnet_forward.1} parent=1 // pred_check
      _
    $region35: #{convnet_forward.1} parent=1 // pred_check_branch
      %8704 = sbr.rel (0) target = $region37
    $region36: #{convnet_forward.1} parent=1 // pred_region
      %8706 = dma.done [#allocation5], 32
    $region37: #{convnet_forward.1} parent=1 // pred_fallthru
      _
    %8707 = vsyncpa [#allocation5], 1

</llo_original>
